<compile_context>
chip_gen: v7x
topology: tpu7x:2x2x1
jax: 0.10.0
libtpu: 0.0.40
codegen_flags: <defaults>
</compile_context>

<pallas_src>
import functools

import jax
import jax.numpy as jnp
from jax.experimental import pallas as pl
from jax.experimental.pallas import tpu as pltpu

# ----------------------------- "args" -----------------------------
NUM_INV_NODES = 4          # N
HIDDEN = 32                # hidden_size
NUM_ENC_LAYERS = 2
NUM_HEADS = 4
FF_MULT = 4
STATE_DIM = 5 + 6 * NUM_INV_NODES   # inp_size from the module
LN_EPS = 1e-5


def _round_up(x, m):
    return ((x + m - 1) // m) * m


# ----------------------------- kernel helpers -----------------------------
def _gelu(x):
    # tanh-approximate GELU (PyTorch nn.GELU defaults to exact erf).
    # TODO(synk): switch to exact erf GELU if bit-accuracy vs. PyTorch is required.
    c = jnp.float32(0.7978845608028654)  # sqrt(2/pi)
    return 0.5 * x * (1.0 + jnp.tanh(c * (x + 0.044715 * x * x * x)))


def _layernorm_cols(x, gamma, beta):
    """LayerNorm over the feature (sublane) axis for (H, M) batch-on-lanes data."""
    mu = jnp.mean(x, axis=0, keepdims=True)
    var = jnp.mean((x - mu) * (x - mu), axis=0, keepdims=True)
    return (x - mu) * jax.lax.rsqrt(var + LN_EPS) * gamma + beta


# ----------------------------- kernel -----------------------------
def dqn_emb_kernel(
    inv_ref, dem_ref,
    w_pre_ref, b_pre_ref,
    wqkv_ref, wo_ref, wf1_ref, wf2_ref, b_enc_ref,
    wq1_ref, b_head_ref,
    q_out_ref,
    *, num_heads, num_layers,
):
    f32 = jnp.float32
    bf16 = jnp.bfloat16

    N, BT = q_out_ref.shape            # num inv nodes, batch tile (lanes)
    H = wq1_ref.shape[0]               # hidden size
    NH = num_heads
    HD = H // NH                       # head dim (= 8 -> one sublane group)
    S = N + 1                          # tokens: N inventory nodes + 1 demand
    L = num_layers

    # --- unpack packed small weights (resident in VMEM, constant index_map) ---
    w_pre = w_pre_ref[...]                         # (H, 8 + H + 8 + H) bf16
    wi1 = w_pre[:, 0:8]                            # (H, 8)   inv  layer 1 (6 real feats)
    wi2 = w_pre[:, 8:8 + H]                        # (H, H)   inv  layer 2
    wd1 = w_pre[:, 8 + H:16 + H]                   # (H, 8)   dem  layer 1 (5 real feats)
    wd2 = w_pre[:, 16 + H:16 + 2 * H]              # (H, H)   dem  layer 2
    b_pre = b_pre_ref[...]                         # (H, 4) f32
    bi1 = b_pre[:, 0:1]
    bi2 = b_pre[:, 1:2]
    bd1 = b_pre[:, 2:3]
    bd2 = b_pre[:, 3:4]

    # --- InvEncoder: per-node MLP, nodes concatenated on the lane axis ---
    inv_x = inv_ref[...]                                               # (N*8, BT)
    x_nodes = jnp.concatenate(
        [inv_x[n * 8:(n + 1) * 8, :] for n in range(N)], axis=1).astype(bf16)  # (8, N*BT)
    hi = _gelu(jnp.dot(wi1, x_nodes, preferred_element_type=f32) + bi1)
    inv_emb = jnp.dot(wi2, hi.astype(bf16), preferred_element_type=f32) + bi2   # (H, N*BT)

    # --- DemandEncoder ---
    dem_x = dem_ref[...].astype(bf16)                                  # (8, BT)
    hdm = _gelu(jnp.dot(wd1, dem_x, preferred_element_type=f32) + bd1)
    dem_emb = jnp.dot(wd2, hdm.astype(bf16), preferred_element_type=f32) + bd2  # (H, BT)

    # --- residual stream: (H, S*BT), column = token*BT + batch (two block copies) ---
    x = jnp.concatenate([inv_emb, dem_emb], axis=1)                    # (H, S*BT)

    # --- state Encoder: L transformer encoder layers ---
    for l in range(L):
        b_l = b_enc_ref[l]                                             # (13H, 1) f32
        bqkv = b_l[0:3 * H]
        bo = b_l[3 * H:4 * H]
        bff1 = b_l[4 * H:8 * H]
        bff2 = b_l[8 * H:9 * H]
        ln1g = b_l[9 * H:10 * H]
        ln1b = b_l[10 * H:11 * H]
        ln2g = b_l[11 * H:12 * H]
        ln2b = b_l[12 * H:13 * H]

        # Fused QKV projection; 1/sqrt(HD) scale pre-folded into the Q weights.
        qkv = jnp.dot(wqkv_ref[l], x.astype(bf16), preferred_element_type=f32) + bqkv
        q = qkv[0:H]                  # (H, S*BT)
        k = qkv[H:2 * H]
        v = qkv[2 * H:3 * H]

        # Multi-head self-attention, batch-on-lanes.  Heads are contiguous
        # HD-row sublane segments; scores are elementwise multiplies + per-head
        # sublane-segment sums on lane-dense vregs (no masks, no tiny matmuls).
        k_tok = [k[:, t * BT:(t + 1) * BT] for t in range(S)]                       # (H, BT)
        v_tok = [v[:, t * BT:(t + 1) * BT].reshape(NH, HD, BT) for t in range(S)]   # (NH,HD,BT)
        ctx_blocks = []
        for qs in range(S):
            q_t = q[:, qs * BT:(qs + 1) * BT]                                       # (H, BT)
            s_list = [
                jnp.sum((q_t * k_tok[ks]).reshape(NH, HD, BT), axis=1)              # (NH, BT)
                for ks in range(S)
            ]
            m = s_list[0]
            for s_ in s_list[1:]:
                m = jnp.maximum(m, s_)
            e_list = [jnp.exp(s_ - m) for s_ in s_list]
            denom = e_list[0]
            for e_ in e_list[1:]:
                denom = denom + e_
            inv_denom = pl.reciprocal(denom, approx=True)                           # (NH, BT)
            ctx3 = jnp.zeros((NH, HD, BT), f32)
            for ks in range(S):
                ctx3 = ctx3 + (e_list[ks] * inv_denom)[:, None, :] * v_tok[ks]
            ctx_blocks.append(ctx3.reshape(H, BT))
        attn = jnp.concatenate(ctx_blocks, axis=1)                                  # (H, S*BT)

        a = jnp.dot(wo_ref[l], attn.astype(bf16), preferred_element_type=f32) + bo
        x = _layernorm_cols(x + a, ln1g, ln1b)

        ff = _gelu(jnp.dot(wf1_ref[l], x.astype(bf16), preferred_element_type=f32) + bff1)
        ff = jnp.dot(wf2_ref[l], ff.astype(bf16), preferred_element_type=f32) + bff2
        x = _layernorm_cols(x + ff, ln2g, ln2b)

    # --- Q head on the N inventory tokens only (first N*BT lane columns) ---
    b_head = b_head_ref[...]                     # (H, 3) f32: [bq1 | wq2 | bq2@row0]
    bq1 = b_head[:, 0:1]
    wq2 = b_head[:, 1:2]
    bq2 = b_head[0:1, 2:3]
    x_inv = x[:, :N * BT]                        # (H, N*BT)
    h1 = _gelu(jnp.dot(wq1_ref[...], x_inv.astype(bf16), preferred_element_type=f32) + bq1)
    h1w = h1 * wq2                               # (H, N*BT), H->1 head as VPU mul + reduce
    rows = [jnp.sum(h1w[:, n * BT:(n + 1) * BT], axis=0, keepdims=True) for n in range(N)]
    q_out_ref[...] = jnp.concatenate(rows, axis=0) + bq2          # (N, BT), lane-dense store


# ----------------------------- params -----------------------------
def _linear(key, fan_in, fan_out):
    kw, kb = jax.random.split(key)
    bound = 1.0 / float(fan_in) ** 0.5
    w = jax.random.uniform(kw, (fan_in, fan_out), jnp.float32, -bound, bound)
    b = jax.random.uniform(kb, (1, fan_out), jnp.float32, -bound, bound)
    return w, b


def make_params(key):
    """Module-style (unfused, f32, (in,out)-layout) parameters mirroring the PyTorch layers."""
    H = HIDDEN
    L = NUM_ENC_LAYERS
    keys = jax.random.split(key, 8 + 8 * L)
    ki = iter(keys)

    wi1, bi1 = _linear(next(ki), 6, H)
    wi2, bi2 = _linear(next(ki), H, H)
    wd1, bd1 = _linear(next(ki), 5, H)
    wd2, bd2 = _linear(next(ki), H, H)

    def stack_linear(fan_in, fan_out):
        ws, bs = [], []
        for _ in range(L):
            w, b = _linear(next(ki), fan_in, fan_out)
            ws.append(w)
            bs.append(b)
        return jnp.stack(ws), jnp.stack(bs)   # (L, in, out), (L, 1, out)

    wq, bq = stack_linear(H, H)
    wk, bk = stack_linear(H, H)
    wv, bv = stack_linear(H, H)
    wo, bo = stack_linear(H, H)
    wf1, bf1 = stack_linear(H, FF_MULT * H)
    wf2, bf2 = stack_linear(FF_MULT * H, H)

    ln1g = jnp.ones((L, 1, H), jnp.float32)
    ln1b = jnp.zeros((L, 1, H), jnp.float32)
    ln2g = jnp.ones((L, 1, H), jnp.float32)
    ln2b = jnp.zeros((L, 1, H), jnp.float32)

    wq1, bq1 = _linear(next(ki), H, H)
    wq2, bq2 = _linear(next(ki), H, 1)

    return (wi1, bi1, wi2, bi2,
            wd1, bd1, wd2, bd2,
            wq, bq, wk, bk, wv, bv, wo, bo,
            wf1, bf1, wf2, bf2,
            ln1g, ln1b, ln2g, ln2b,
            wq1, bq1, wq2, bq2)


def prepare_kernel_params(params):
    """Transpose weights to (out,in), fold the attention scale into Q, pad the tiny
    input layers to 8 features, cast MXU weights to bf16, and pack into 9 arrays."""
    (wi1, bi1, wi2, bi2, wd1, bd1, wd2, bd2,
     wq, bq, wk, bk, wv, bv, wo, bo,
     wf1, bf1, wf2, bf2,
     ln1g, ln1b, ln2g, ln2b,
     wq1, bq1, wq2, bq2) = params

    H = HIDDEN
    hd = H // NUM_HEADS
    scale = 1.0 / float(hd) ** 0.5
    bf16 = jnp.bfloat16

    T = lambda w: jnp.swapaxes(w, -1, -2)     # (..., in, out) -> (..., out, in)
    col = lambda b: jnp.swapaxes(b, -1, -2)   # (..., 1, out)  -> (..., out, 1)

    wi1T = jnp.pad(T(wi1), ((0, 0), (0, 2)))  # (H, 8), 6 real input features
    wd1T = jnp.pad(T(wd1), ((0, 0), (0, 3)))  # (H, 8), 5 real input features
    w_pre = jnp.concatenate([wi1T, T(wi2), wd1T, T(wd2)], axis=1).astype(bf16)   # (H, 80)
    b_pre = jnp.concatenate([col(bi1), col(bi2), col(bd1), col(bd2)], axis=1)    # (H, 4)

    wqkvT = jnp.concatenate([T(wq) * scale, T(wk), T(wv)], axis=1).astype(bf16)  # (L, 3H, H)
    bqkv = jnp.concatenate([col(bq) * scale, col(bk), col(bv)], axis=1)          # (L, 3H, 1)
    b_enc = jnp.concatenate(
        [bqkv, col(bo), col(bf1), col(bf2),
         col(ln1g), col(ln1b), col(ln2g), col(ln2b)], axis=1)                    # (L, 13H, 1)

    bq2_col = jnp.zeros((H, 1), jnp.float32).at[0, 0].set(bq2[0, 0])
    b_head = jnp.concatenate([col(bq1), wq2, bq2_col], axis=1)                   # (H, 3)

    return (w_pre, b_pre,
            wqkvT, T(wo).astype(bf16), T(wf1).astype(bf16), T(wf2).astype(bf16), b_enc,
            T(wq1).astype(bf16), b_head)


# ----------------------------- wrapper -----------------------------
def _const_index_map(ndim):
    return lambda i: (0,) * ndim


def dqn_emb_forward(state, kernel_params):
    squeeze = (state.ndim == 1)
    if squeeze:
        state = state[None, :]
    B = state.shape[0]
    N = NUM_INV_NODES

    # --- _extract_state, directly in kernel-native batch-on-lanes layout ---
    st = state.T.astype(jnp.float32)                       # (STATE_DIM, B)
    node_rows = []
    for n in range(N):
        node_rows += [n, N + n, 2 * N + n, 3 * N + 2 * n, 3 * N + 2 * n + 1, 5 * N + n]
    inv_in = st[jnp.array(node_rows), :].reshape(N, 6, B)
    inv_in = jnp.pad(inv_in, ((0, 0), (0, 2), (0, 0))).reshape(N * 8, B)   # rows n*8+f, 2 zero pads
    dem_in = jnp.pad(st[6 * N:6 * N + 5, :], ((0, 3), (0, 0)))             # (8, B)
    # valid_actions_mask is computed in the reference but unused in forward().

    # --- batch tiling: batch on the lane axis ---
    B_TILE = 256 if B > 256 else _round_up(B, 128)
    B_pad = _round_up(B, B_TILE)
    if B_pad != B:
        inv_in = jnp.pad(inv_in, ((0, 0), (0, B_pad - B)))
        dem_in = jnp.pad(dem_in, ((0, 0), (0, B_pad - B)))
    grid = (B_pad // B_TILE,)

    # Weights: full-block, constant index_map -> DMA'd once, resident in VMEM.
    weight_specs = [pl.BlockSpec(p.shape, _const_index_map(p.ndim)) for p in kernel_params]

    q_nb = pl.pallas_call(
        functools.partial(dqn_emb_kernel, num_heads=NUM_HEADS, num_layers=NUM_ENC_LAYERS),
        out_shape=jax.ShapeDtypeStruct((N, B_pad), jnp.float32),
        grid_spec=pltpu.PrefetchScalarGridSpec(
            num_scalar_prefetch=0,
            grid=grid,
            in_specs=[pl.BlockSpec((N * 8, B_TILE), lambda i: (0, i)),
                      pl.BlockSpec((8, B_TILE), lambda i: (0, i))] + weight_specs,
            out_specs=pl.BlockSpec((N, B_TILE), lambda i: (0, i)),
        ),
        compiler_params=pltpu.CompilerParams(
            dimension_semantics=("parallel",),
            vmem_limit_bytes=32 * 1024 * 1024),
    )(inv_in, dem_in, *kernel_params)

    q_vals = q_nb[:, :B].T              # (B, N)
    if squeeze:
        return q_vals.reshape(-1)
    return q_vals


# ----------------------------- main -----------------------------
if __name__ == "__main__":
    key = jax.random.PRNGKey(0)
    k_state, k_params = jax.random.split(key)

    batch = 2
    state = jax.random.uniform(k_state, (batch, STATE_DIM), jnp.float32, 0.0, 2.0)
    params = make_params(k_params)
    kparams = prepare_kernel_params(params)

    q = dqn_emb_forward(state, kparams)
    jax.block_until_ready(q)
    assert q.shape == (batch, NUM_INV_NODES), q.shape
    print("KERNEL_OK")
</pallas_src>

<mosaic_0001>
module attributes {stable_mosaic.version = 11 : i64} {
  func.func @dqn_emb_kernel(%arg0: i32, %arg1: memref<32x128xf32, #tpu.memory_space<vmem>>, %arg2: memref<8x128xf32, #tpu.memory_space<vmem>>, %arg3: memref<32x80xbf16, #tpu.memory_space<vmem>>, %arg4: memref<32x4xf32, #tpu.memory_space<vmem>>, %arg5: memref<2x96x32xbf16, #tpu.memory_space<vmem>>, %arg6: memref<2x32x32xbf16, #tpu.memory_space<vmem>>, %arg7: memref<2x128x32xbf16, #tpu.memory_space<vmem>>, %arg8: memref<2x32x128xbf16, #tpu.memory_space<vmem>>, %arg9: memref<2x416x1xf32, #tpu.memory_space<vmem>>, %arg10: memref<32x32xbf16, #tpu.memory_space<vmem>>, %arg11: memref<32x3xf32, #tpu.memory_space<vmem>>, %arg12: memref<4x128xf32, #tpu.memory_space<vmem>>) attributes {dimension_semantics = [#tpu.dimension_semantics<parallel>], iteration_bounds = array<i64: 1>, scalar_prefetch = 0 : i64, scratch_operands = 0 : i64, tpu.core_type = #tpu.core_type<tc>, window_params = [{transform_indices = @transform_0, window_bounds = array<i64: 32, 128>}, {transform_indices = @transform_1, window_bounds = array<i64: 8, 128>}, {pipeline_mode = #tpu.pipeline_mode<synchronous>, transform_indices = @transform_2, window_bounds = array<i64: 32, 80>}, {pipeline_mode = #tpu.pipeline_mode<synchronous>, transform_indices = @transform_3, window_bounds = array<i64: 32, 4>}, {pipeline_mode = #tpu.pipeline_mode<synchronous>, transform_indices = @transform_4, window_bounds = array<i64: 2, 96, 32>}, {pipeline_mode = #tpu.pipeline_mode<synchronous>, transform_indices = @transform_5, window_bounds = array<i64: 2, 32, 32>}, {pipeline_mode = #tpu.pipeline_mode<synchronous>, transform_indices = @transform_6, window_bounds = array<i64: 2, 128, 32>}, {pipeline_mode = #tpu.pipeline_mode<synchronous>, transform_indices = @transform_7, window_bounds = array<i64: 2, 32, 128>}, {pipeline_mode = #tpu.pipeline_mode<synchronous>, transform_indices = @transform_8, window_bounds = array<i64: 2, 416, 1>}, {pipeline_mode = #tpu.pipeline_mode<synchronous>, transform_indices = @transform_9, window_bounds = array<i64: 32, 32>}, {pipeline_mode = #tpu.pipeline_mode<synchronous>, transform_indices = @transform_10, window_bounds = array<i64: 32, 3>}, {transform_indices = @transform_11, window_bounds = array<i64: 4, 128>}]} {
    %c0 = arith.constant 0 : index
    %c0_0 = arith.constant 0 : index
    %0 = vector.load %arg3[%c0, %c0_0] : memref<32x80xbf16, #tpu.memory_space<vmem>>, vector<32x80xbf16>
    %1 = vector.extract_strided_slice %0 {offsets = [0, 0], sizes = [32, 8], strides = [1, 1]} : vector<32x80xbf16> to vector<32x8xbf16>
    %2 = vector.extract_strided_slice %0 {offsets = [0, 8], sizes = [32, 32], strides = [1, 1]} : vector<32x80xbf16> to vector<32x32xbf16>
    %3 = vector.extract_strided_slice %0 {offsets = [0, 40], sizes = [32, 8], strides = [1, 1]} : vector<32x80xbf16> to vector<32x8xbf16>
    %4 = vector.extract_strided_slice %0 {offsets = [0, 48], sizes = [32, 32], strides = [1, 1]} : vector<32x80xbf16> to vector<32x32xbf16>
    %c0_1 = arith.constant 0 : index
    %c0_2 = arith.constant 0 : index
    %5 = vector.load %arg4[%c0_1, %c0_2] : memref<32x4xf32, #tpu.memory_space<vmem>>, vector<32x4xf32>
    %6 = vector.extract_strided_slice %5 {offsets = [0, 0], sizes = [32, 1], strides = [1, 1]} : vector<32x4xf32> to vector<32x1xf32>
    %7 = vector.extract_strided_slice %5 {offsets = [0, 1], sizes = [32, 1], strides = [1, 1]} : vector<32x4xf32> to vector<32x1xf32>
    %8 = vector.extract_strided_slice %5 {offsets = [0, 2], sizes = [32, 1], strides = [1, 1]} : vector<32x4xf32> to vector<32x1xf32>
    %9 = vector.extract_strided_slice %5 {offsets = [0, 3], sizes = [32, 1], strides = [1, 1]} : vector<32x4xf32> to vector<32x1xf32>
    %c0_3 = arith.constant 0 : index
    %c0_4 = arith.constant 0 : index
    %10 = vector.load %arg1[%c0_3, %c0_4] : memref<32x128xf32, #tpu.memory_space<vmem>>, vector<32x128xf32>
    %11 = vector.extract_strided_slice %10 {offsets = [0, 0], sizes = [8, 128], strides = [1, 1]} : vector<32x128xf32> to vector<8x128xf32>
    %12 = vector.extract_strided_slice %10 {offsets = [8, 0], sizes = [8, 128], strides = [1, 1]} : vector<32x128xf32> to vector<8x128xf32>
    %13 = vector.extract_strided_slice %10 {offsets = [16, 0], sizes = [8, 128], strides = [1, 1]} : vector<32x128xf32> to vector<8x128xf32>
    %14 = vector.extract_strided_slice %10 {offsets = [24, 0], sizes = [8, 128], strides = [1, 1]} : vector<32x128xf32> to vector<8x128xf32>
    %15 = tpu.concatenate %11, %12, %13, %14 in 1 : vector<8x128xf32>, vector<8x128xf32>, vector<8x128xf32>, vector<8x128xf32> -> vector<8x512xf32>
    %16 = arith.truncf %15 : vector<8x512xf32> to vector<8x512xbf16>
    %cst = arith.constant dense<0.000000e+00> : vector<32x512xf32>
    %17 = tpu.matmul %1, %16, %cst {dimension_numbers = #tpu.dot_dimension_numbers<[1], [0], [0], [1], [0, 0, 1, 1], [], []>} : vector<32x8xbf16>, vector<8x512xbf16>, vector<32x512xf32> -> vector<32x512xf32>
    %18 = vector.broadcast %6 : vector<32x1xf32> to vector<32x512xf32>
    %19 = arith.addf %17, %18 : vector<32x512xf32>
    %cst_5 = arith.constant 5.000000e-01 : f32
    %20 = vector.broadcast %cst_5 : f32 to vector<32x512xf32>
    %21 = arith.mulf %20, %19 : vector<32x512xf32>
    %cst_6 = arith.constant 4.471500e-02 : f32
    %22 = vector.broadcast %cst_6 : f32 to vector<32x512xf32>
    %23 = arith.mulf %22, %19 : vector<32x512xf32>
    %24 = arith.mulf %23, %19 : vector<32x512xf32>
    %25 = arith.mulf %24, %19 : vector<32x512xf32>
    %26 = arith.addf %19, %25 : vector<32x512xf32>
    %cst_7 = arith.constant 0.797884583 : f32
    %27 = vector.broadcast %cst_7 : f32 to vector<32x512xf32>
    %28 = arith.mulf %27, %26 : vector<32x512xf32>
    %29 = math.tanh %28 : vector<32x512xf32>
    %cst_8 = arith.constant 1.000000e+00 : f32
    %30 = vector.broadcast %cst_8 : f32 to vector<32x512xf32>
    %31 = arith.addf %30, %29 : vector<32x512xf32>
    %32 = arith.mulf %21, %31 : vector<32x512xf32>
    %33 = arith.truncf %32 : vector<32x512xf32> to vector<32x512xbf16>
    %cst_9 = arith.constant dense<0.000000e+00> : vector<32x512xf32>
    %34 = tpu.matmul %2, %33, %cst_9 {dimension_numbers = #tpu.dot_dimension_numbers<[1], [0], [0], [1], [0, 0, 1, 1], [], []>} : vector<32x32xbf16>, vector<32x512xbf16>, vector<32x512xf32> -> vector<32x512xf32>
    %35 = vector.broadcast %7 : vector<32x1xf32> to vector<32x512xf32>
    %36 = arith.addf %34, %35 : vector<32x512xf32>
    %c0_10 = arith.constant 0 : index
    %c0_11 = arith.constant 0 : index
    %37 = vector.load %arg2[%c0_10, %c0_11] : memref<8x128xf32, #tpu.memory_space<vmem>>, vector<8x128xf32>
    %38 = arith.truncf %37 : vector<8x128xf32> to vector<8x128xbf16>
    %cst_12 = arith.constant dense<0.000000e+00> : vector<32x128xf32>
    %39 = tpu.matmul %3, %38, %cst_12 {dimension_numbers = #tpu.dot_dimension_numbers<[1], [0], [0], [1], [0, 0, 1, 1], [], []>} : vector<32x8xbf16>, vector<8x128xbf16>, vector<32x128xf32> -> vector<32x128xf32>
    %40 = vector.broadcast %8 : vector<32x1xf32> to vector<32x128xf32>
    %41 = arith.addf %39, %40 : vector<32x128xf32>
    %cst_13 = arith.constant 5.000000e-01 : f32
    %42 = vector.broadcast %cst_13 : f32 to vector<32x128xf32>
    %43 = arith.mulf %42, %41 : vector<32x128xf32>
    %cst_14 = arith.constant 4.471500e-02 : f32
    %44 = vector.broadcast %cst_14 : f32 to vector<32x128xf32>
    %45 = arith.mulf %44, %41 : vector<32x128xf32>
    %46 = arith.mulf %45, %41 : vector<32x128xf32>
    %47 = arith.mulf %46, %41 : vector<32x128xf32>
    %48 = arith.addf %41, %47 : vector<32x128xf32>
    %cst_15 = arith.constant 0.797884583 : f32
    %49 = vector.broadcast %cst_15 : f32 to vector<32x128xf32>
    %50 = arith.mulf %49, %48 : vector<32x128xf32>
    %51 = math.tanh %50 : vector<32x128xf32>
    %cst_16 = arith.constant 1.000000e+00 : f32
    %52 = vector.broadcast %cst_16 : f32 to vector<32x128xf32>
    %53 = arith.addf %52, %51 : vector<32x128xf32>
    %54 = arith.mulf %43, %53 : vector<32x128xf32>
    %55 = arith.truncf %54 : vector<32x128xf32> to vector<32x128xbf16>
    %cst_17 = arith.constant dense<0.000000e+00> : vector<32x128xf32>
    %56 = tpu.matmul %4, %55, %cst_17 {dimension_numbers = #tpu.dot_dimension_numbers<[1], [0], [0], [1], [0, 0, 1, 1], [], []>} : vector<32x32xbf16>, vector<32x128xbf16>, vector<32x128xf32> -> vector<32x128xf32>
    %57 = vector.broadcast %9 : vector<32x1xf32> to vector<32x128xf32>
    %58 = arith.addf %56, %57 : vector<32x128xf32>
    %59 = tpu.concatenate %36, %58 in 1 : vector<32x512xf32>, vector<32x128xf32> -> vector<32x640xf32>
    %c0_18 = arith.constant 0 : index
    %c0_19 = arith.constant 0 : index
    %c0_20 = arith.constant 0 : index
    %60 = vector.load %arg9[%c0_18, %c0_19, %c0_20] : memref<2x416x1xf32, #tpu.memory_space<vmem>>, vector<1x416x1xf32>
    %61 = vector.shape_cast %60 : vector<1x416x1xf32> to vector<416x1xf32>
    %62 = vector.extract_strided_slice %61 {offsets = [0, 0], sizes = [96, 1], strides = [1, 1]} : vector<416x1xf32> to vector<96x1xf32>
    %63 = vector.extract_strided_slice %61 {offsets = [96, 0], sizes = [32, 1], strides = [1, 1]} : vector<416x1xf32> to vector<32x1xf32>
    %64 = vector.extract_strided_slice %61 {offsets = [128, 0], sizes = [128, 1], strides = [1, 1]} : vector<416x1xf32> to vector<128x1xf32>
    %65 = vector.extract_strided_slice %61 {offsets = [256, 0], sizes = [32, 1], strides = [1, 1]} : vector<416x1xf32> to vector<32x1xf32>
    %66 = vector.extract_strided_slice %61 {offsets = [288, 0], sizes = [32, 1], strides = [1, 1]} : vector<416x1xf32> to vector<32x1xf32>
    %67 = vector.extract_strided_slice %61 {offsets = [320, 0], sizes = [32, 1], strides = [1, 1]} : vector<416x1xf32> to vector<32x1xf32>
    %68 = vector.extract_strided_slice %61 {offsets = [352, 0], sizes = [32, 1], strides = [1, 1]} : vector<416x1xf32> to vector<32x1xf32>
    %69 = vector.extract_strided_slice %61 {offsets = [384, 0], sizes = [32, 1], strides = [1, 1]} : vector<416x1xf32> to vector<32x1xf32>
    %c0_21 = arith.constant 0 : index
    %c0_22 = arith.constant 0 : index
    %c0_23 = arith.constant 0 : index
    %70 = vector.load %arg5[%c0_21, %c0_22, %c0_23] : memref<2x96x32xbf16, #tpu.memory_space<vmem>>, vector<1x96x32xbf16>
    %71 = vector.shape_cast %70 : vector<1x96x32xbf16> to vector<96x32xbf16>
    %72 = arith.truncf %59 : vector<32x640xf32> to vector<32x640xbf16>
    %cst_24 = arith.constant dense<0.000000e+00> : vector<96x640xf32>
    %73 = tpu.matmul %71, %72, %cst_24 {dimension_numbers = #tpu.dot_dimension_numbers<[1], [0], [0], [1], [0, 0, 1, 1], [], []>} : vector<96x32xbf16>, vector<32x640xbf16>, vector<96x640xf32> -> vector<96x640xf32>
    %74 = vector.broadcast %62 : vector<96x1xf32> to vector<96x640xf32>
    %75 = arith.addf %73, %74 : vector<96x640xf32>
    %76 = vector.extract_strided_slice %75 {offsets = [0, 0], sizes = [32, 640], strides = [1, 1]} : vector<96x640xf32> to vector<32x640xf32>
    %77 = vector.extract_strided_slice %75 {offsets = [32, 0], sizes = [32, 640], strides = [1, 1]} : vector<96x640xf32> to vector<32x640xf32>
    %78 = vector.extract_strided_slice %75 {offsets = [64, 0], sizes = [32, 640], strides = [1, 1]} : vector<96x640xf32> to vector<32x640xf32>
    %79 = vector.extract_strided_slice %77 {offsets = [0, 0], sizes = [32, 128], strides = [1, 1]} : vector<32x640xf32> to vector<32x128xf32>
    %80 = vector.extract_strided_slice %77 {offsets = [0, 128], sizes = [32, 128], strides = [1, 1]} : vector<32x640xf32> to vector<32x128xf32>
    %81 = vector.extract_strided_slice %77 {offsets = [0, 256], sizes = [32, 128], strides = [1, 1]} : vector<32x640xf32> to vector<32x128xf32>
    %82 = vector.extract_strided_slice %77 {offsets = [0, 384], sizes = [32, 128], strides = [1, 1]} : vector<32x640xf32> to vector<32x128xf32>
    %83 = vector.extract_strided_slice %77 {offsets = [0, 512], sizes = [32, 128], strides = [1, 1]} : vector<32x640xf32> to vector<32x128xf32>
    %84 = vector.extract_strided_slice %78 {offsets = [0, 0], sizes = [32, 128], strides = [1, 1]} : vector<32x640xf32> to vector<32x128xf32>
    %85 = vector.shape_cast %84 : vector<32x128xf32> to vector<4x8x128xf32>
    %86 = vector.extract_strided_slice %78 {offsets = [0, 128], sizes = [32, 128], strides = [1, 1]} : vector<32x640xf32> to vector<32x128xf32>
    %87 = vector.shape_cast %86 : vector<32x128xf32> to vector<4x8x128xf32>
    %88 = vector.extract_strided_slice %78 {offsets = [0, 256], sizes = [32, 128], strides = [1, 1]} : vector<32x640xf32> to vector<32x128xf32>
    %89 = vector.shape_cast %88 : vector<32x128xf32> to vector<4x8x128xf32>
    %90 = vector.extract_strided_slice %78 {offsets = [0, 384], sizes = [32, 128], strides = [1, 1]} : vector<32x640xf32> to vector<32x128xf32>
    %91 = vector.shape_cast %90 : vector<32x128xf32> to vector<4x8x128xf32>
    %92 = vector.extract_strided_slice %78 {offsets = [0, 512], sizes = [32, 128], strides = [1, 1]} : vector<32x640xf32> to vector<32x128xf32>
    %93 = vector.shape_cast %92 : vector<32x128xf32> to vector<4x8x128xf32>
    %94 = vector.extract_strided_slice %76 {offsets = [0, 0], sizes = [32, 128], strides = [1, 1]} : vector<32x640xf32> to vector<32x128xf32>
    %95 = arith.mulf %94, %79 : vector<32x128xf32>
    %96 = vector.shape_cast %95 : vector<32x128xf32> to vector<4x8x128xf32>
    %cst_25 = arith.constant dense<0.000000e+00> : vector<4x128xf32>
    %97 = vector.multi_reduction <add>, %96, %cst_25 [1] : vector<4x8x128xf32> to vector<4x128xf32>
    %98 = arith.mulf %94, %80 : vector<32x128xf32>
    %99 = vector.shape_cast %98 : vector<32x128xf32> to vector<4x8x128xf32>
    %cst_26 = arith.constant dense<0.000000e+00> : vector<4x128xf32>
    %100 = vector.multi_reduction <add>, %99, %cst_26 [1] : vector<4x8x128xf32> to vector<4x128xf32>
    %101 = arith.mulf %94, %81 : vector<32x128xf32>
    %102 = vector.shape_cast %101 : vector<32x128xf32> to vector<4x8x128xf32>
    %cst_27 = arith.constant dense<0.000000e+00> : vector<4x128xf32>
    %103 = vector.multi_reduction <add>, %102, %cst_27 [1] : vector<4x8x128xf32> to vector<4x128xf32>
    %104 = arith.mulf %94, %82 : vector<32x128xf32>
    %105 = vector.shape_cast %104 : vector<32x128xf32> to vector<4x8x128xf32>
    %cst_28 = arith.constant dense<0.000000e+00> : vector<4x128xf32>
    %106 = vector.multi_reduction <add>, %105, %cst_28 [1] : vector<4x8x128xf32> to vector<4x128xf32>
    %107 = arith.mulf %94, %83 : vector<32x128xf32>
    %108 = vector.shape_cast %107 : vector<32x128xf32> to vector<4x8x128xf32>
    %cst_29 = arith.constant dense<0.000000e+00> : vector<4x128xf32>
    %109 = vector.multi_reduction <add>, %108, %cst_29 [1] : vector<4x8x128xf32> to vector<4x128xf32>
    %110 = arith.maximumf %97, %100 : vector<4x128xf32>
    %111 = arith.maximumf %110, %103 : vector<4x128xf32>
    %112 = arith.maximumf %111, %106 : vector<4x128xf32>
    %113 = arith.maximumf %112, %109 : vector<4x128xf32>
    %114 = arith.subf %97, %113 : vector<4x128xf32>
    %115 = math.exp %114 : vector<4x128xf32>
    %116 = arith.subf %100, %113 : vector<4x128xf32>
    %117 = math.exp %116 : vector<4x128xf32>
    %118 = arith.subf %103, %113 : vector<4x128xf32>
    %119 = math.exp %118 : vector<4x128xf32>
    %120 = arith.subf %106, %113 : vector<4x128xf32>
    %121 = math.exp %120 : vector<4x128xf32>
    %122 = arith.subf %109, %113 : vector<4x128xf32>
    %123 = math.exp %122 : vector<4x128xf32>
    %124 = arith.addf %115, %117 : vector<4x128xf32>
    %125 = arith.addf %124, %119 : vector<4x128xf32>
    %126 = arith.addf %125, %121 : vector<4x128xf32>
    %127 = arith.addf %126, %123 : vector<4x128xf32>
    %128 = tpu.reciprocal %127 {approx = true} : vector<4x128xf32> -> vector<4x128xf32>
    %cst_30 = arith.constant 0.000000e+00 : f32
    %129 = vector.broadcast %cst_30 : f32 to vector<4x8x128xf32>
    %130 = arith.mulf %115, %128 : vector<4x128xf32>
    %131 = vector.shape_cast %130 : vector<4x128xf32> to vector<4x1x128xf32>
    %132 = vector.broadcast %131 : vector<4x1x128xf32> to vector<4x8x128xf32>
    %133 = arith.mulf %132, %85 : vector<4x8x128xf32>
    %134 = arith.addf %129, %133 : vector<4x8x128xf32>
    %135 = arith.mulf %117, %128 : vector<4x128xf32>
    %136 = vector.shape_cast %135 : vector<4x128xf32> to vector<4x1x128xf32>
    %137 = vector.broadcast %136 : vector<4x1x128xf32> to vector<4x8x128xf32>
    %138 = arith.mulf %137, %87 : vector<4x8x128xf32>
    %139 = arith.addf %134, %138 : vector<4x8x128xf32>
    %140 = arith.mulf %119, %128 : vector<4x128xf32>
    %141 = vector.shape_cast %140 : vector<4x128xf32> to vector<4x1x128xf32>
    %142 = vector.broadcast %141 : vector<4x1x128xf32> to vector<4x8x128xf32>
    %143 = arith.mulf %142, %89 : vector<4x8x128xf32>
    %144 = arith.addf %139, %143 : vector<4x8x128xf32>
    %145 = arith.mulf %121, %128 : vector<4x128xf32>
    %146 = vector.shape_cast %145 : vector<4x128xf32> to vector<4x1x128xf32>
    %147 = vector.broadcast %146 : vector<4x1x128xf32> to vector<4x8x128xf32>
    %148 = arith.mulf %147, %91 : vector<4x8x128xf32>
    %149 = arith.addf %144, %148 : vector<4x8x128xf32>
    %150 = arith.mulf %123, %128 : vector<4x128xf32>
    %151 = vector.shape_cast %150 : vector<4x128xf32> to vector<4x1x128xf32>
    %152 = vector.broadcast %151 : vector<4x1x128xf32> to vector<4x8x128xf32>
    %153 = arith.mulf %152, %93 : vector<4x8x128xf32>
    %154 = arith.addf %149, %153 : vector<4x8x128xf32>
    %155 = vector.shape_cast %154 : vector<4x8x128xf32> to vector<32x128xf32>
    %156 = vector.extract_strided_slice %76 {offsets = [0, 128], sizes = [32, 128], strides = [1, 1]} : vector<32x640xf32> to vector<32x128xf32>
    %157 = arith.mulf %156, %79 : vector<32x128xf32>
    %158 = vector.shape_cast %157 : vector<32x128xf32> to vector<4x8x128xf32>
    %cst_31 = arith.constant dense<0.000000e+00> : vector<4x128xf32>
    %159 = vector.multi_reduction <add>, %158, %cst_31 [1] : vector<4x8x128xf32> to vector<4x128xf32>
    %160 = arith.mulf %156, %80 : vector<32x128xf32>
    %161 = vector.shape_cast %160 : vector<32x128xf32> to vector<4x8x128xf32>
    %cst_32 = arith.constant dense<0.000000e+00> : vector<4x128xf32>
    %162 = vector.multi_reduction <add>, %161, %cst_32 [1] : vector<4x8x128xf32> to vector<4x128xf32>
    %163 = arith.mulf %156, %81 : vector<32x128xf32>
    %164 = vector.shape_cast %163 : vector<32x128xf32> to vector<4x8x128xf32>
    %cst_33 = arith.constant dense<0.000000e+00> : vector<4x128xf32>
    %165 = vector.multi_reduction <add>, %164, %cst_33 [1] : vector<4x8x128xf32> to vector<4x128xf32>
    %166 = arith.mulf %156, %82 : vector<32x128xf32>
    %167 = vector.shape_cast %166 : vector<32x128xf32> to vector<4x8x128xf32>
    %cst_34 = arith.constant dense<0.000000e+00> : vector<4x128xf32>
    %168 = vector.multi_reduction <add>, %167, %cst_34 [1] : vector<4x8x128xf32> to vector<4x128xf32>
    %169 = arith.mulf %156, %83 : vector<32x128xf32>
    %170 = vector.shape_cast %169 : vector<32x128xf32> to vector<4x8x128xf32>
    %cst_35 = arith.constant dense<0.000000e+00> : vector<4x128xf32>
    %171 = vector.multi_reduction <add>, %170, %cst_35 [1] : vector<4x8x128xf32> to vector<4x128xf32>
    %172 = arith.maximumf %159, %162 : vector<4x128xf32>
    %173 = arith.maximumf %172, %165 : vector<4x128xf32>
    %174 = arith.maximumf %173, %168 : vector<4x128xf32>
    %175 = arith.maximumf %174, %171 : vector<4x128xf32>
    %176 = arith.subf %159, %175 : vector<4x128xf32>
    %177 = math.exp %176 : vector<4x128xf32>
    %178 = arith.subf %162, %175 : vector<4x128xf32>
    %179 = math.exp %178 : vector<4x128xf32>
    %180 = arith.subf %165, %175 : vector<4x128xf32>
    %181 = math.exp %180 : vector<4x128xf32>
    %182 = arith.subf %168, %175 : vector<4x128xf32>
    %183 = math.exp %182 : vector<4x128xf32>
    %184 = arith.subf %171, %175 : vector<4x128xf32>
    %185 = math.exp %184 : vector<4x128xf32>
    %186 = arith.addf %177, %179 : vector<4x128xf32>
    %187 = arith.addf %186, %181 : vector<4x128xf32>
    %188 = arith.addf %187, %183 : vector<4x128xf32>
    %189 = arith.addf %188, %185 : vector<4x128xf32>
    %190 = tpu.reciprocal %189 {approx = true} : vector<4x128xf32> -> vector<4x128xf32>
    %cst_36 = arith.constant 0.000000e+00 : f32
    %191 = vector.broadcast %cst_36 : f32 to vector<4x8x128xf32>
    %192 = arith.mulf %177, %190 : vector<4x128xf32>
    %193 = vector.shape_cast %192 : vector<4x128xf32> to vector<4x1x128xf32>
    %194 = vector.broadcast %193 : vector<4x1x128xf32> to vector<4x8x128xf32>
    %195 = arith.mulf %194, %85 : vector<4x8x128xf32>
    %196 = arith.addf %191, %195 : vector<4x8x128xf32>
    %197 = arith.mulf %179, %190 : vector<4x128xf32>
    %198 = vector.shape_cast %197 : vector<4x128xf32> to vector<4x1x128xf32>
    %199 = vector.broadcast %198 : vector<4x1x128xf32> to vector<4x8x128xf32>
    %200 = arith.mulf %199, %87 : vector<4x8x128xf32>
    %201 = arith.addf %196, %200 : vector<4x8x128xf32>
    %202 = arith.mulf %181, %190 : vector<4x128xf32>
    %203 = vector.shape_cast %202 : vector<4x128xf32> to vector<4x1x128xf32>
    %204 = vector.broadcast %203 : vector<4x1x128xf32> to vector<4x8x128xf32>
    %205 = arith.mulf %204, %89 : vector<4x8x128xf32>
    %206 = arith.addf %201, %205 : vector<4x8x128xf32>
    %207 = arith.mulf %183, %190 : vector<4x128xf32>
    %208 = vector.shape_cast %207 : vector<4x128xf32> to vector<4x1x128xf32>
    %209 = vector.broadcast %208 : vector<4x1x128xf32> to vector<4x8x128xf32>
    %210 = arith.mulf %209, %91 : vector<4x8x128xf32>
    %211 = arith.addf %206, %210 : vector<4x8x128xf32>
    %212 = arith.mulf %185, %190 : vector<4x128xf32>
    %213 = vector.shape_cast %212 : vector<4x128xf32> to vector<4x1x128xf32>
    %214 = vector.broadcast %213 : vector<4x1x128xf32> to vector<4x8x128xf32>
    %215 = arith.mulf %214, %93 : vector<4x8x128xf32>
    %216 = arith.addf %211, %215 : vector<4x8x128xf32>
    %217 = vector.shape_cast %216 : vector<4x8x128xf32> to vector<32x128xf32>
    %218 = vector.extract_strided_slice %76 {offsets = [0, 256], sizes = [32, 128], strides = [1, 1]} : vector<32x640xf32> to vector<32x128xf32>
    %219 = arith.mulf %218, %79 : vector<32x128xf32>
    %220 = vector.shape_cast %219 : vector<32x128xf32> to vector<4x8x128xf32>
    %cst_37 = arith.constant dense<0.000000e+00> : vector<4x128xf32>
    %221 = vector.multi_reduction <add>, %220, %cst_37 [1] : vector<4x8x128xf32> to vector<4x128xf32>
    %222 = arith.mulf %218, %80 : vector<32x128xf32>
    %223 = vector.shape_cast %222 : vector<32x128xf32> to vector<4x8x128xf32>
    %cst_38 = arith.constant dense<0.000000e+00> : vector<4x128xf32>
    %224 = vector.multi_reduction <add>, %223, %cst_38 [1] : vector<4x8x128xf32> to vector<4x128xf32>
    %225 = arith.mulf %218, %81 : vector<32x128xf32>
    %226 = vector.shape_cast %225 : vector<32x128xf32> to vector<4x8x128xf32>
    %cst_39 = arith.constant dense<0.000000e+00> : vector<4x128xf32>
    %227 = vector.multi_reduction <add>, %226, %cst_39 [1] : vector<4x8x128xf32> to vector<4x128xf32>
    %228 = arith.mulf %218, %82 : vector<32x128xf32>
    %229 = vector.shape_cast %228 : vector<32x128xf32> to vector<4x8x128xf32>
    %cst_40 = arith.constant dense<0.000000e+00> : vector<4x128xf32>
    %230 = vector.multi_reduction <add>, %229, %cst_40 [1] : vector<4x8x128xf32> to vector<4x128xf32>
    %231 = arith.mulf %218, %83 : vector<32x128xf32>
    %232 = vector.shape_cast %231 : vector<32x128xf32> to vector<4x8x128xf32>
    %cst_41 = arith.constant dense<0.000000e+00> : vector<4x128xf32>
    %233 = vector.multi_reduction <add>, %232, %cst_41 [1] : vector<4x8x128xf32> to vector<4x128xf32>
    %234 = arith.maximumf %221, %224 : vector<4x128xf32>
    %235 = arith.maximumf %234, %227 : vector<4x128xf32>
    %236 = arith.maximumf %235, %230 : vector<4x128xf32>
    %237 = arith.maximumf %236, %233 : vector<4x128xf32>
    %238 = arith.subf %221, %237 : vector<4x128xf32>
    %239 = math.exp %238 : vector<4x128xf32>
    %240 = arith.subf %224, %237 : vector<4x128xf32>
    %241 = math.exp %240 : vector<4x128xf32>
    %242 = arith.subf %227, %237 : vector<4x128xf32>
    %243 = math.exp %242 : vector<4x128xf32>
    %244 = arith.subf %230, %237 : vector<4x128xf32>
    %245 = math.exp %244 : vector<4x128xf32>
    %246 = arith.subf %233, %237 : vector<4x128xf32>
    %247 = math.exp %246 : vector<4x128xf32>
    %248 = arith.addf %239, %241 : vector<4x128xf32>
    %249 = arith.addf %248, %243 : vector<4x128xf32>
    %250 = arith.addf %249, %245 : vector<4x128xf32>
    %251 = arith.addf %250, %247 : vector<4x128xf32>
    %252 = tpu.reciprocal %251 {approx = true} : vector<4x128xf32> -> vector<4x128xf32>
    %cst_42 = arith.constant 0.000000e+00 : f32
    %253 = vector.broadcast %cst_42 : f32 to vector<4x8x128xf32>
    %254 = arith.mulf %239, %252 : vector<4x128xf32>
    %255 = vector.shape_cast %254 : vector<4x128xf32> to vector<4x1x128xf32>
    %256 = vector.broadcast %255 : vector<4x1x128xf32> to vector<4x8x128xf32>
    %257 = arith.mulf %256, %85 : vector<4x8x128xf32>
    %258 = arith.addf %253, %257 : vector<4x8x128xf32>
    %259 = arith.mulf %241, %252 : vector<4x128xf32>
    %260 = vector.shape_cast %259 : vector<4x128xf32> to vector<4x1x128xf32>
    %261 = vector.broadcast %260 : vector<4x1x128xf32> to vector<4x8x128xf32>
    %262 = arith.mulf %261, %87 : vector<4x8x128xf32>
    %263 = arith.addf %258, %262 : vector<4x8x128xf32>
    %264 = arith.mulf %243, %252 : vector<4x128xf32>
    %265 = vector.shape_cast %264 : vector<4x128xf32> to vector<4x1x128xf32>
    %266 = vector.broadcast %265 : vector<4x1x128xf32> to vector<4x8x128xf32>
    %267 = arith.mulf %266, %89 : vector<4x8x128xf32>
    %268 = arith.addf %263, %267 : vector<4x8x128xf32>
    %269 = arith.mulf %245, %252 : vector<4x128xf32>
    %270 = vector.shape_cast %269 : vector<4x128xf32> to vector<4x1x128xf32>
    %271 = vector.broadcast %270 : vector<4x1x128xf32> to vector<4x8x128xf32>
    %272 = arith.mulf %271, %91 : vector<4x8x128xf32>
    %273 = arith.addf %268, %272 : vector<4x8x128xf32>
    %274 = arith.mulf %247, %252 : vector<4x128xf32>
    %275 = vector.shape_cast %274 : vector<4x128xf32> to vector<4x1x128xf32>
    %276 = vector.broadcast %275 : vector<4x1x128xf32> to vector<4x8x128xf32>
    %277 = arith.mulf %276, %93 : vector<4x8x128xf32>
    %278 = arith.addf %273, %277 : vector<4x8x128xf32>
    %279 = vector.shape_cast %278 : vector<4x8x128xf32> to vector<32x128xf32>
    %280 = vector.extract_strided_slice %76 {offsets = [0, 384], sizes = [32, 128], strides = [1, 1]} : vector<32x640xf32> to vector<32x128xf32>
    %281 = arith.mulf %280, %79 : vector<32x128xf32>
    %282 = vector.shape_cast %281 : vector<32x128xf32> to vector<4x8x128xf32>
    %cst_43 = arith.constant dense<0.000000e+00> : vector<4x128xf32>
    %283 = vector.multi_reduction <add>, %282, %cst_43 [1] : vector<4x8x128xf32> to vector<4x128xf32>
    %284 = arith.mulf %280, %80 : vector<32x128xf32>
    %285 = vector.shape_cast %284 : vector<32x128xf32> to vector<4x8x128xf32>
    %cst_44 = arith.constant dense<0.000000e+00> : vector<4x128xf32>
    %286 = vector.multi_reduction <add>, %285, %cst_44 [1] : vector<4x8x128xf32> to vector<4x128xf32>
    %287 = arith.mulf %280, %81 : vector<32x128xf32>
    %288 = vector.shape_cast %287 : vector<32x128xf32> to vector<4x8x128xf32>
    %cst_45 = arith.constant dense<0.000000e+00> : vector<4x128xf32>
    %289 = vector.multi_reduction <add>, %288, %cst_45 [1] : vector<4x8x128xf32> to vector<4x128xf32>
    %290 = arith.mulf %280, %82 : vector<32x128xf32>
    %291 = vector.shape_cast %290 : vector<32x128xf32> to vector<4x8x128xf32>
    %cst_46 = arith.constant dense<0.000000e+00> : vector<4x128xf32>
    %292 = vector.multi_reduction <add>, %291, %cst_46 [1] : vector<4x8x128xf32> to vector<4x128xf32>
    %293 = arith.mulf %280, %83 : vector<32x128xf32>
    %294 = vector.shape_cast %293 : vector<32x128xf32> to vector<4x8x128xf32>
    %cst_47 = arith.constant dense<0.000000e+00> : vector<4x128xf32>
    %295 = vector.multi_reduction <add>, %294, %cst_47 [1] : vector<4x8x128xf32> to vector<4x128xf32>
    %296 = arith.maximumf %283, %286 : vector<4x128xf32>
    %297 = arith.maximumf %296, %289 : vector<4x128xf32>
    %298 = arith.maximumf %297, %292 : vector<4x128xf32>
    %299 = arith.maximumf %298, %295 : vector<4x128xf32>
    %300 = arith.subf %283, %299 : vector<4x128xf32>
    %301 = math.exp %300 : vector<4x128xf32>
    %302 = arith.subf %286, %299 : vector<4x128xf32>
    %303 = math.exp %302 : vector<4x128xf32>
    %304 = arith.subf %289, %299 : vector<4x128xf32>
    %305 = math.exp %304 : vector<4x128xf32>
    %306 = arith.subf %292, %299 : vector<4x128xf32>
    %307 = math.exp %306 : vector<4x128xf32>
    %308 = arith.subf %295, %299 : vector<4x128xf32>
    %309 = math.exp %308 : vector<4x128xf32>
    %310 = arith.addf %301, %303 : vector<4x128xf32>
    %311 = arith.addf %310, %305 : vector<4x128xf32>
    %312 = arith.addf %311, %307 : vector<4x128xf32>
    %313 = arith.addf %312, %309 : vector<4x128xf32>
    %314 = tpu.reciprocal %313 {approx = true} : vector<4x128xf32> -> vector<4x128xf32>
    %cst_48 = arith.constant 0.000000e+00 : f32
    %315 = vector.broadcast %cst_48 : f32 to vector<4x8x128xf32>
    %316 = arith.mulf %301, %314 : vector<4x128xf32>
    %317 = vector.shape_cast %316 : vector<4x128xf32> to vector<4x1x128xf32>
    %318 = vector.broadcast %317 : vector<4x1x128xf32> to vector<4x8x128xf32>
    %319 = arith.mulf %318, %85 : vector<4x8x128xf32>
    %320 = arith.addf %315, %319 : vector<4x8x128xf32>
    %321 = arith.mulf %303, %314 : vector<4x128xf32>
    %322 = vector.shape_cast %321 : vector<4x128xf32> to vector<4x1x128xf32>
    %323 = vector.broadcast %322 : vector<4x1x128xf32> to vector<4x8x128xf32>
    %324 = arith.mulf %323, %87 : vector<4x8x128xf32>
    %325 = arith.addf %320, %324 : vector<4x8x128xf32>
    %326 = arith.mulf %305, %314 : vector<4x128xf32>
    %327 = vector.shape_cast %326 : vector<4x128xf32> to vector<4x1x128xf32>
    %328 = vector.broadcast %327 : vector<4x1x128xf32> to vector<4x8x128xf32>
    %329 = arith.mulf %328, %89 : vector<4x8x128xf32>
    %330 = arith.addf %325, %329 : vector<4x8x128xf32>
    %331 = arith.mulf %307, %314 : vector<4x128xf32>
    %332 = vector.shape_cast %331 : vector<4x128xf32> to vector<4x1x128xf32>
    %333 = vector.broadcast %332 : vector<4x1x128xf32> to vector<4x8x128xf32>
    %334 = arith.mulf %333, %91 : vector<4x8x128xf32>
    %335 = arith.addf %330, %334 : vector<4x8x128xf32>
    %336 = arith.mulf %309, %314 : vector<4x128xf32>
    %337 = vector.shape_cast %336 : vector<4x128xf32> to vector<4x1x128xf32>
    %338 = vector.broadcast %337 : vector<4x1x128xf32> to vector<4x8x128xf32>
    %339 = arith.mulf %338, %93 : vector<4x8x128xf32>
    %340 = arith.addf %335, %339 : vector<4x8x128xf32>
    %341 = vector.shape_cast %340 : vector<4x8x128xf32> to vector<32x128xf32>
    %342 = vector.extract_strided_slice %76 {offsets = [0, 512], sizes = [32, 128], strides = [1, 1]} : vector<32x640xf32> to vector<32x128xf32>
    %343 = arith.mulf %342, %79 : vector<32x128xf32>
    %344 = vector.shape_cast %343 : vector<32x128xf32> to vector<4x8x128xf32>
    %cst_49 = arith.constant dense<0.000000e+00> : vector<4x128xf32>
    %345 = vector.multi_reduction <add>, %344, %cst_49 [1] : vector<4x8x128xf32> to vector<4x128xf32>
    %346 = arith.mulf %342, %80 : vector<32x128xf32>
    %347 = vector.shape_cast %346 : vector<32x128xf32> to vector<4x8x128xf32>
    %cst_50 = arith.constant dense<0.000000e+00> : vector<4x128xf32>
    %348 = vector.multi_reduction <add>, %347, %cst_50 [1] : vector<4x8x128xf32> to vector<4x128xf32>
    %349 = arith.mulf %342, %81 : vector<32x128xf32>
    %350 = vector.shape_cast %349 : vector<32x128xf32> to vector<4x8x128xf32>
    %cst_51 = arith.constant dense<0.000000e+00> : vector<4x128xf32>
    %351 = vector.multi_reduction <add>, %350, %cst_51 [1] : vector<4x8x128xf32> to vector<4x128xf32>
    %352 = arith.mulf %342, %82 : vector<32x128xf32>
    %353 = vector.shape_cast %352 : vector<32x128xf32> to vector<4x8x128xf32>
    %cst_52 = arith.constant dense<0.000000e+00> : vector<4x128xf32>
    %354 = vector.multi_reduction <add>, %353, %cst_52 [1] : vector<4x8x128xf32> to vector<4x128xf32>
    %355 = arith.mulf %342, %83 : vector<32x128xf32>
    %356 = vector.shape_cast %355 : vector<32x128xf32> to vector<4x8x128xf32>
    %cst_53 = arith.constant dense<0.000000e+00> : vector<4x128xf32>
    %357 = vector.multi_reduction <add>, %356, %cst_53 [1] : vector<4x8x128xf32> to vector<4x128xf32>
    %358 = arith.maximumf %345, %348 : vector<4x128xf32>
    %359 = arith.maximumf %358, %351 : vector<4x128xf32>
    %360 = arith.maximumf %359, %354 : vector<4x128xf32>
    %361 = arith.maximumf %360, %357 : vector<4x128xf32>
    %362 = arith.subf %345, %361 : vector<4x128xf32>
    %363 = math.exp %362 : vector<4x128xf32>
    %364 = arith.subf %348, %361 : vector<4x128xf32>
    %365 = math.exp %364 : vector<4x128xf32>
    %366 = arith.subf %351, %361 : vector<4x128xf32>
    %367 = math.exp %366 : vector<4x128xf32>
    %368 = arith.subf %354, %361 : vector<4x128xf32>
    %369 = math.exp %368 : vector<4x128xf32>
    %370 = arith.subf %357, %361 : vector<4x128xf32>
    %371 = math.exp %370 : vector<4x128xf32>
    %372 = arith.addf %363, %365 : vector<4x128xf32>
    %373 = arith.addf %372, %367 : vector<4x128xf32>
    %374 = arith.addf %373, %369 : vector<4x128xf32>
    %375 = arith.addf %374, %371 : vector<4x128xf32>
    %376 = tpu.reciprocal %375 {approx = true} : vector<4x128xf32> -> vector<4x128xf32>
    %cst_54 = arith.constant 0.000000e+00 : f32
    %377 = vector.broadcast %cst_54 : f32 to vector<4x8x128xf32>
    %378 = arith.mulf %363, %376 : vector<4x128xf32>
    %379 = vector.shape_cast %378 : vector<4x128xf32> to vector<4x1x128xf32>
    %380 = vector.broadcast %379 : vector<4x1x128xf32> to vector<4x8x128xf32>
    %381 = arith.mulf %380, %85 : vector<4x8x128xf32>
    %382 = arith.addf %377, %381 : vector<4x8x128xf32>
    %383 = arith.mulf %365, %376 : vector<4x128xf32>
    %384 = vector.shape_cast %383 : vector<4x128xf32> to vector<4x1x128xf32>
    %385 = vector.broadcast %384 : vector<4x1x128xf32> to vector<4x8x128xf32>
    %386 = arith.mulf %385, %87 : vector<4x8x128xf32>
    %387 = arith.addf %382, %386 : vector<4x8x128xf32>
    %388 = arith.mulf %367, %376 : vector<4x128xf32>
    %389 = vector.shape_cast %388 : vector<4x128xf32> to vector<4x1x128xf32>
    %390 = vector.broadcast %389 : vector<4x1x128xf32> to vector<4x8x128xf32>
    %391 = arith.mulf %390, %89 : vector<4x8x128xf32>
    %392 = arith.addf %387, %391 : vector<4x8x128xf32>
    %393 = arith.mulf %369, %376 : vector<4x128xf32>
    %394 = vector.shape_cast %393 : vector<4x128xf32> to vector<4x1x128xf32>
    %395 = vector.broadcast %394 : vector<4x1x128xf32> to vector<4x8x128xf32>
    %396 = arith.mulf %395, %91 : vector<4x8x128xf32>
    %397 = arith.addf %392, %396 : vector<4x8x128xf32>
    %398 = arith.mulf %371, %376 : vector<4x128xf32>
    %399 = vector.shape_cast %398 : vector<4x128xf32> to vector<4x1x128xf32>
    %400 = vector.broadcast %399 : vector<4x1x128xf32> to vector<4x8x128xf32>
    %401 = arith.mulf %400, %93 : vector<4x8x128xf32>
    %402 = arith.addf %397, %401 : vector<4x8x128xf32>
    %403 = vector.shape_cast %402 : vector<4x8x128xf32> to vector<32x128xf32>
    %404 = tpu.concatenate %155, %217, %279, %341, %403 in 1 : vector<32x128xf32>, vector<32x128xf32>, vector<32x128xf32>, vector<32x128xf32>, vector<32x128xf32> -> vector<32x640xf32>
    %c0_55 = arith.constant 0 : index
    %c0_56 = arith.constant 0 : index
    %c0_57 = arith.constant 0 : index
    %405 = vector.load %arg6[%c0_55, %c0_56, %c0_57] : memref<2x32x32xbf16, #tpu.memory_space<vmem>>, vector<1x32x32xbf16>
    %406 = vector.shape_cast %405 : vector<1x32x32xbf16> to vector<32x32xbf16>
    %407 = arith.truncf %404 : vector<32x640xf32> to vector<32x640xbf16>
    %cst_58 = arith.constant dense<0.000000e+00> : vector<32x640xf32>
    %408 = tpu.matmul %406, %407, %cst_58 {dimension_numbers = #tpu.dot_dimension_numbers<[1], [0], [0], [1], [0, 0, 1, 1], [], []>} : vector<32x32xbf16>, vector<32x640xbf16>, vector<32x640xf32> -> vector<32x640xf32>
    %409 = vector.broadcast %63 : vector<32x1xf32> to vector<32x640xf32>
    %410 = arith.addf %408, %409 : vector<32x640xf32>
    %411 = arith.addf %59, %410 : vector<32x640xf32>
    %cst_59 = arith.constant dense<0.000000e+00> : vector<640xf32>
    %412 = vector.multi_reduction <add>, %411, %cst_59 [0] : vector<32x640xf32> to vector<640xf32>
    %413 = vector.shape_cast %412 : vector<640xf32> to vector<1x640xf32>
    %cst_60 = arith.constant 3.200000e+01 : f32
    %414 = vector.broadcast %cst_60 : f32 to vector<1x640xf32>
    %415 = arith.divf %413, %414 : vector<1x640xf32>
    %416 = vector.broadcast %415 : vector<1x640xf32> to vector<32x640xf32>
    %417 = arith.subf %411, %416 : vector<32x640xf32>
    %418 = vector.broadcast %415 : vector<1x640xf32> to vector<32x640xf32>
    %419 = arith.subf %411, %418 : vector<32x640xf32>
    %420 = arith.mulf %417, %419 : vector<32x640xf32>
    %cst_61 = arith.constant dense<0.000000e+00> : vector<640xf32>
    %421 = vector.multi_reduction <add>, %420, %cst_61 [0] : vector<32x640xf32> to vector<640xf32>
    %422 = vector.shape_cast %421 : vector<640xf32> to vector<1x640xf32>
    %cst_62 = arith.constant 3.200000e+01 : f32
    %423 = vector.broadcast %cst_62 : f32 to vector<1x640xf32>
    %424 = arith.divf %422, %423 : vector<1x640xf32>
    %425 = vector.broadcast %415 : vector<1x640xf32> to vector<32x640xf32>
    %426 = arith.subf %411, %425 : vector<32x640xf32>
    %cst_63 = arith.constant 9.99999974E-6 : f32
    %427 = vector.broadcast %cst_63 : f32 to vector<1x640xf32>
    %428 = arith.addf %424, %427 : vector<1x640xf32>
    %429 = math.rsqrt %428 : vector<1x640xf32>
    %430 = vector.broadcast %429 : vector<1x640xf32> to vector<32x640xf32>
    %431 = arith.mulf %426, %430 : vector<32x640xf32>
    %432 = vector.broadcast %66 : vector<32x1xf32> to vector<32x640xf32>
    %433 = arith.mulf %431, %432 : vector<32x640xf32>
    %434 = vector.broadcast %67 : vector<32x1xf32> to vector<32x640xf32>
    %435 = arith.addf %433, %434 : vector<32x640xf32>
    %c0_64 = arith.constant 0 : index
    %c0_65 = arith.constant 0 : index
    %c0_66 = arith.constant 0 : index
    %436 = vector.load %arg7[%c0_64, %c0_65, %c0_66] : memref<2x128x32xbf16, #tpu.memory_space<vmem>>, vector<1x128x32xbf16>
    %437 = vector.shape_cast %436 : vector<1x128x32xbf16> to vector<128x32xbf16>
    %438 = arith.truncf %435 : vector<32x640xf32> to vector<32x640xbf16>
    %cst_67 = arith.constant dense<0.000000e+00> : vector<128x640xf32>
    %439 = tpu.matmul %437, %438, %cst_67 {dimension_numbers = #tpu.dot_dimension_numbers<[1], [0], [0], [1], [0, 0, 1, 1], [], []>} : vector<128x32xbf16>, vector<32x640xbf16>, vector<128x640xf32> -> vector<128x640xf32>
    %440 = vector.broadcast %64 : vector<128x1xf32> to vector<128x640xf32>
    %441 = arith.addf %439, %440 : vector<128x640xf32>
    %cst_68 = arith.constant 5.000000e-01 : f32
    %442 = vector.broadcast %cst_68 : f32 to vector<128x640xf32>
    %443 = arith.mulf %442, %441 : vector<128x640xf32>
    %cst_69 = arith.constant 4.471500e-02 : f32
    %444 = vector.broadcast %cst_69 : f32 to vector<128x640xf32>
    %445 = arith.mulf %444, %441 : vector<128x640xf32>
    %446 = arith.mulf %445, %441 : vector<128x640xf32>
    %447 = arith.mulf %446, %441 : vector<128x640xf32>
    %448 = arith.addf %441, %447 : vector<128x640xf32>
    %cst_70 = arith.constant 0.797884583 : f32
    %449 = vector.broadcast %cst_70 : f32 to vector<128x640xf32>
    %450 = arith.mulf %449, %448 : vector<128x640xf32>
    %451 = math.tanh %450 : vector<128x640xf32>
    %cst_71 = arith.constant 1.000000e+00 : f32
    %452 = vector.broadcast %cst_71 : f32 to vector<128x640xf32>
    %453 = arith.addf %452, %451 : vector<128x640xf32>
    %454 = arith.mulf %443, %453 : vector<128x640xf32>
    %c0_72 = arith.constant 0 : index
    %c0_73 = arith.constant 0 : index
    %c0_74 = arith.constant 0 : index
    %455 = vector.load %arg8[%c0_72, %c0_73, %c0_74] : memref<2x32x128xbf16, #tpu.memory_space<vmem>>, vector<1x32x128xbf16>
    %456 = vector.shape_cast %455 : vector<1x32x128xbf16> to vector<32x128xbf16>
    %457 = arith.truncf %454 : vector<128x640xf32> to vector<128x640xbf16>
    %cst_75 = arith.constant dense<0.000000e+00> : vector<32x640xf32>
    %458 = tpu.matmul %456, %457, %cst_75 {dimension_numbers = #tpu.dot_dimension_numbers<[1], [0], [0], [1], [0, 0, 1, 1], [], []>} : vector<32x128xbf16>, vector<128x640xbf16>, vector<32x640xf32> -> vector<32x640xf32>
    %459 = vector.broadcast %65 : vector<32x1xf32> to vector<32x640xf32>
    %460 = arith.addf %458, %459 : vector<32x640xf32>
    %461 = arith.addf %435, %460 : vector<32x640xf32>
    %cst_76 = arith.constant dense<0.000000e+00> : vector<640xf32>
    %462 = vector.multi_reduction <add>, %461, %cst_76 [0] : vector<32x640xf32> to vector<640xf32>
    %463 = vector.shape_cast %462 : vector<640xf32> to vector<1x640xf32>
    %cst_77 = arith.constant 3.200000e+01 : f32
    %464 = vector.broadcast %cst_77 : f32 to vector<1x640xf32>
    %465 = arith.divf %463, %464 : vector<1x640xf32>
    %466 = vector.broadcast %465 : vector<1x640xf32> to vector<32x640xf32>
    %467 = arith.subf %461, %466 : vector<32x640xf32>
    %468 = vector.broadcast %465 : vector<1x640xf32> to vector<32x640xf32>
    %469 = arith.subf %461, %468 : vector<32x640xf32>
    %470 = arith.mulf %467, %469 : vector<32x640xf32>
    %cst_78 = arith.constant dense<0.000000e+00> : vector<640xf32>
    %471 = vector.multi_reduction <add>, %470, %cst_78 [0] : vector<32x640xf32> to vector<640xf32>
    %472 = vector.shape_cast %471 : vector<640xf32> to vector<1x640xf32>
    %cst_79 = arith.constant 3.200000e+01 : f32
    %473 = vector.broadcast %cst_79 : f32 to vector<1x640xf32>
    %474 = arith.divf %472, %473 : vector<1x640xf32>
    %475 = vector.broadcast %465 : vector<1x640xf32> to vector<32x640xf32>
    %476 = arith.subf %461, %475 : vector<32x640xf32>
    %cst_80 = arith.constant 9.99999974E-6 : f32
    %477 = vector.broadcast %cst_80 : f32 to vector<1x640xf32>
    %478 = arith.addf %474, %477 : vector<1x640xf32>
    %479 = math.rsqrt %478 : vector<1x640xf32>
    %480 = vector.broadcast %479 : vector<1x640xf32> to vector<32x640xf32>
    %481 = arith.mulf %476, %480 : vector<32x640xf32>
    %482 = vector.broadcast %68 : vector<32x1xf32> to vector<32x640xf32>
    %483 = arith.mulf %481, %482 : vector<32x640xf32>
    %484 = vector.broadcast %69 : vector<32x1xf32> to vector<32x640xf32>
    %485 = arith.addf %483, %484 : vector<32x640xf32>
    %c1 = arith.constant 1 : index
    %c0_81 = arith.constant 0 : index
    %c0_82 = arith.constant 0 : index
    %486 = vector.load %arg9[%c1, %c0_81, %c0_82] : memref<2x416x1xf32, #tpu.memory_space<vmem>>, vector<1x416x1xf32>
    %487 = vector.shape_cast %486 : vector<1x416x1xf32> to vector<416x1xf32>
    %488 = vector.extract_strided_slice %487 {offsets = [0, 0], sizes = [96, 1], strides = [1, 1]} : vector<416x1xf32> to vector<96x1xf32>
    %489 = vector.extract_strided_slice %487 {offsets = [96, 0], sizes = [32, 1], strides = [1, 1]} : vector<416x1xf32> to vector<32x1xf32>
    %490 = vector.extract_strided_slice %487 {offsets = [128, 0], sizes = [128, 1], strides = [1, 1]} : vector<416x1xf32> to vector<128x1xf32>
    %491 = vector.extract_strided_slice %487 {offsets = [256, 0], sizes = [32, 1], strides = [1, 1]} : vector<416x1xf32> to vector<32x1xf32>
    %492 = vector.extract_strided_slice %487 {offsets = [288, 0], sizes = [32, 1], strides = [1, 1]} : vector<416x1xf32> to vector<32x1xf32>
    %493 = vector.extract_strided_slice %487 {offsets = [320, 0], sizes = [32, 1], strides = [1, 1]} : vector<416x1xf32> to vector<32x1xf32>
    %494 = vector.extract_strided_slice %487 {offsets = [352, 0], sizes = [32, 1], strides = [1, 1]} : vector<416x1xf32> to vector<32x1xf32>
    %495 = vector.extract_strided_slice %487 {offsets = [384, 0], sizes = [32, 1], strides = [1, 1]} : vector<416x1xf32> to vector<32x1xf32>
    %c1_83 = arith.constant 1 : index
    %c0_84 = arith.constant 0 : index
    %c0_85 = arith.constant 0 : index
    %496 = vector.load %arg5[%c1_83, %c0_84, %c0_85] : memref<2x96x32xbf16, #tpu.memory_space<vmem>>, vector<1x96x32xbf16>
    %497 = vector.shape_cast %496 : vector<1x96x32xbf16> to vector<96x32xbf16>
    %498 = arith.truncf %485 : vector<32x640xf32> to vector<32x640xbf16>
    %cst_86 = arith.constant dense<0.000000e+00> : vector<96x640xf32>
    %499 = tpu.matmul %497, %498, %cst_86 {dimension_numbers = #tpu.dot_dimension_numbers<[1], [0], [0], [1], [0, 0, 1, 1], [], []>} : vector<96x32xbf16>, vector<32x640xbf16>, vector<96x640xf32> -> vector<96x640xf32>
    %500 = vector.broadcast %488 : vector<96x1xf32> to vector<96x640xf32>
    %501 = arith.addf %499, %500 : vector<96x640xf32>
    %502 = vector.extract_strided_slice %501 {offsets = [0, 0], sizes = [32, 640], strides = [1, 1]} : vector<96x640xf32> to vector<32x640xf32>
    %503 = vector.extract_strided_slice %501 {offsets = [32, 0], sizes = [32, 640], strides = [1, 1]} : vector<96x640xf32> to vector<32x640xf32>
    %504 = vector.extract_strided_slice %501 {offsets = [64, 0], sizes = [32, 640], strides = [1, 1]} : vector<96x640xf32> to vector<32x640xf32>
    %505 = vector.extract_strided_slice %503 {offsets = [0, 0], sizes = [32, 128], strides = [1, 1]} : vector<32x640xf32> to vector<32x128xf32>
    %506 = vector.extract_strided_slice %503 {offsets = [0, 128], sizes = [32, 128], strides = [1, 1]} : vector<32x640xf32> to vector<32x128xf32>
    %507 = vector.extract_strided_slice %503 {offsets = [0, 256], sizes = [32, 128], strides = [1, 1]} : vector<32x640xf32> to vector<32x128xf32>
    %508 = vector.extract_strided_slice %503 {offsets = [0, 384], sizes = [32, 128], strides = [1, 1]} : vector<32x640xf32> to vector<32x128xf32>
    %509 = vector.extract_strided_slice %503 {offsets = [0, 512], sizes = [32, 128], strides = [1, 1]} : vector<32x640xf32> to vector<32x128xf32>
    %510 = vector.extract_strided_slice %504 {offsets = [0, 0], sizes = [32, 128], strides = [1, 1]} : vector<32x640xf32> to vector<32x128xf32>
    %511 = vector.shape_cast %510 : vector<32x128xf32> to vector<4x8x128xf32>
    %512 = vector.extract_strided_slice %504 {offsets = [0, 128], sizes = [32, 128], strides = [1, 1]} : vector<32x640xf32> to vector<32x128xf32>
    %513 = vector.shape_cast %512 : vector<32x128xf32> to vector<4x8x128xf32>
    %514 = vector.extract_strided_slice %504 {offsets = [0, 256], sizes = [32, 128], strides = [1, 1]} : vector<32x640xf32> to vector<32x128xf32>
    %515 = vector.shape_cast %514 : vector<32x128xf32> to vector<4x8x128xf32>
    %516 = vector.extract_strided_slice %504 {offsets = [0, 384], sizes = [32, 128], strides = [1, 1]} : vector<32x640xf32> to vector<32x128xf32>
    %517 = vector.shape_cast %516 : vector<32x128xf32> to vector<4x8x128xf32>
    %518 = vector.extract_strided_slice %504 {offsets = [0, 512], sizes = [32, 128], strides = [1, 1]} : vector<32x640xf32> to vector<32x128xf32>
    %519 = vector.shape_cast %518 : vector<32x128xf32> to vector<4x8x128xf32>
    %520 = vector.extract_strided_slice %502 {offsets = [0, 0], sizes = [32, 128], strides = [1, 1]} : vector<32x640xf32> to vector<32x128xf32>
    %521 = arith.mulf %520, %505 : vector<32x128xf32>
    %522 = vector.shape_cast %521 : vector<32x128xf32> to vector<4x8x128xf32>
    %cst_87 = arith.constant dense<0.000000e+00> : vector<4x128xf32>
    %523 = vector.multi_reduction <add>, %522, %cst_87 [1] : vector<4x8x128xf32> to vector<4x128xf32>
    %524 = arith.mulf %520, %506 : vector<32x128xf32>
    %525 = vector.shape_cast %524 : vector<32x128xf32> to vector<4x8x128xf32>
    %cst_88 = arith.constant dense<0.000000e+00> : vector<4x128xf32>
    %526 = vector.multi_reduction <add>, %525, %cst_88 [1] : vector<4x8x128xf32> to vector<4x128xf32>
    %527 = arith.mulf %520, %507 : vector<32x128xf32>
    %528 = vector.shape_cast %527 : vector<32x128xf32> to vector<4x8x128xf32>
    %cst_89 = arith.constant dense<0.000000e+00> : vector<4x128xf32>
    %529 = vector.multi_reduction <add>, %528, %cst_89 [1] : vector<4x8x128xf32> to vector<4x128xf32>
    %530 = arith.mulf %520, %508 : vector<32x128xf32>
    %531 = vector.shape_cast %530 : vector<32x128xf32> to vector<4x8x128xf32>
    %cst_90 = arith.constant dense<0.000000e+00> : vector<4x128xf32>
    %532 = vector.multi_reduction <add>, %531, %cst_90 [1] : vector<4x8x128xf32> to vector<4x128xf32>
    %533 = arith.mulf %520, %509 : vector<32x128xf32>
    %534 = vector.shape_cast %533 : vector<32x128xf32> to vector<4x8x128xf32>
    %cst_91 = arith.constant dense<0.000000e+00> : vector<4x128xf32>
    %535 = vector.multi_reduction <add>, %534, %cst_91 [1] : vector<4x8x128xf32> to vector<4x128xf32>
    %536 = arith.maximumf %523, %526 : vector<4x128xf32>
    %537 = arith.maximumf %536, %529 : vector<4x128xf32>
    %538 = arith.maximumf %537, %532 : vector<4x128xf32>
    %539 = arith.maximumf %538, %535 : vector<4x128xf32>
    %540 = arith.subf %523, %539 : vector<4x128xf32>
    %541 = math.exp %540 : vector<4x128xf32>
    %542 = arith.subf %526, %539 : vector<4x128xf32>
    %543 = math.exp %542 : vector<4x128xf32>
    %544 = arith.subf %529, %539 : vector<4x128xf32>
    %545 = math.exp %544 : vector<4x128xf32>
    %546 = arith.subf %532, %539 : vector<4x128xf32>
    %547 = math.exp %546 : vector<4x128xf32>
    %548 = arith.subf %535, %539 : vector<4x128xf32>
    %549 = math.exp %548 : vector<4x128xf32>
    %550 = arith.addf %541, %543 : vector<4x128xf32>
    %551 = arith.addf %550, %545 : vector<4x128xf32>
    %552 = arith.addf %551, %547 : vector<4x128xf32>
    %553 = arith.addf %552, %549 : vector<4x128xf32>
    %554 = tpu.reciprocal %553 {approx = true} : vector<4x128xf32> -> vector<4x128xf32>
    %cst_92 = arith.constant 0.000000e+00 : f32
    %555 = vector.broadcast %cst_92 : f32 to vector<4x8x128xf32>
    %556 = arith.mulf %541, %554 : vector<4x128xf32>
    %557 = vector.shape_cast %556 : vector<4x128xf32> to vector<4x1x128xf32>
    %558 = vector.broadcast %557 : vector<4x1x128xf32> to vector<4x8x128xf32>
    %559 = arith.mulf %558, %511 : vector<4x8x128xf32>
    %560 = arith.addf %555, %559 : vector<4x8x128xf32>
    %561 = arith.mulf %543, %554 : vector<4x128xf32>
    %562 = vector.shape_cast %561 : vector<4x128xf32> to vector<4x1x128xf32>
    %563 = vector.broadcast %562 : vector<4x1x128xf32> to vector<4x8x128xf32>
    %564 = arith.mulf %563, %513 : vector<4x8x128xf32>
    %565 = arith.addf %560, %564 : vector<4x8x128xf32>
    %566 = arith.mulf %545, %554 : vector<4x128xf32>
    %567 = vector.shape_cast %566 : vector<4x128xf32> to vector<4x1x128xf32>
    %568 = vector.broadcast %567 : vector<4x1x128xf32> to vector<4x8x128xf32>
    %569 = arith.mulf %568, %515 : vector<4x8x128xf32>
    %570 = arith.addf %565, %569 : vector<4x8x128xf32>
    %571 = arith.mulf %547, %554 : vector<4x128xf32>
    %572 = vector.shape_cast %571 : vector<4x128xf32> to vector<4x1x128xf32>
    %573 = vector.broadcast %572 : vector<4x1x128xf32> to vector<4x8x128xf32>
    %574 = arith.mulf %573, %517 : vector<4x8x128xf32>
    %575 = arith.addf %570, %574 : vector<4x8x128xf32>
    %576 = arith.mulf %549, %554 : vector<4x128xf32>
    %577 = vector.shape_cast %576 : vector<4x128xf32> to vector<4x1x128xf32>
    %578 = vector.broadcast %577 : vector<4x1x128xf32> to vector<4x8x128xf32>
    %579 = arith.mulf %578, %519 : vector<4x8x128xf32>
    %580 = arith.addf %575, %579 : vector<4x8x128xf32>
    %581 = vector.shape_cast %580 : vector<4x8x128xf32> to vector<32x128xf32>
    %582 = vector.extract_strided_slice %502 {offsets = [0, 128], sizes = [32, 128], strides = [1, 1]} : vector<32x640xf32> to vector<32x128xf32>
    %583 = arith.mulf %582, %505 : vector<32x128xf32>
    %584 = vector.shape_cast %583 : vector<32x128xf32> to vector<4x8x128xf32>
    %cst_93 = arith.constant dense<0.000000e+00> : vector<4x128xf32>
    %585 = vector.multi_reduction <add>, %584, %cst_93 [1] : vector<4x8x128xf32> to vector<4x128xf32>
    %586 = arith.mulf %582, %506 : vector<32x128xf32>
    %587 = vector.shape_cast %586 : vector<32x128xf32> to vector<4x8x128xf32>
    %cst_94 = arith.constant dense<0.000000e+00> : vector<4x128xf32>
    %588 = vector.multi_reduction <add>, %587, %cst_94 [1] : vector<4x8x128xf32> to vector<4x128xf32>
    %589 = arith.mulf %582, %507 : vector<32x128xf32>
    %590 = vector.shape_cast %589 : vector<32x128xf32> to vector<4x8x128xf32>
    %cst_95 = arith.constant dense<0.000000e+00> : vector<4x128xf32>
    %591 = vector.multi_reduction <add>, %590, %cst_95 [1] : vector<4x8x128xf32> to vector<4x128xf32>
    %592 = arith.mulf %582, %508 : vector<32x128xf32>
    %593 = vector.shape_cast %592 : vector<32x128xf32> to vector<4x8x128xf32>
    %cst_96 = arith.constant dense<0.000000e+00> : vector<4x128xf32>
    %594 = vector.multi_reduction <add>, %593, %cst_96 [1] : vector<4x8x128xf32> to vector<4x128xf32>
    %595 = arith.mulf %582, %509 : vector<32x128xf32>
    %596 = vector.shape_cast %595 : vector<32x128xf32> to vector<4x8x128xf32>
    %cst_97 = arith.constant dense<0.000000e+00> : vector<4x128xf32>
    %597 = vector.multi_reduction <add>, %596, %cst_97 [1] : vector<4x8x128xf32> to vector<4x128xf32>
    %598 = arith.maximumf %585, %588 : vector<4x128xf32>
    %599 = arith.maximumf %598, %591 : vector<4x128xf32>
    %600 = arith.maximumf %599, %594 : vector<4x128xf32>
    %601 = arith.maximumf %600, %597 : vector<4x128xf32>
    %602 = arith.subf %585, %601 : vector<4x128xf32>
    %603 = math.exp %602 : vector<4x128xf32>
    %604 = arith.subf %588, %601 : vector<4x128xf32>
    %605 = math.exp %604 : vector<4x128xf32>
    %606 = arith.subf %591, %601 : vector<4x128xf32>
    %607 = math.exp %606 : vector<4x128xf32>
    %608 = arith.subf %594, %601 : vector<4x128xf32>
    %609 = math.exp %608 : vector<4x128xf32>
    %610 = arith.subf %597, %601 : vector<4x128xf32>
    %611 = math.exp %610 : vector<4x128xf32>
    %612 = arith.addf %603, %605 : vector<4x128xf32>
    %613 = arith.addf %612, %607 : vector<4x128xf32>
    %614 = arith.addf %613, %609 : vector<4x128xf32>
    %615 = arith.addf %614, %611 : vector<4x128xf32>
    %616 = tpu.reciprocal %615 {approx = true} : vector<4x128xf32> -> vector<4x128xf32>
    %cst_98 = arith.constant 0.000000e+00 : f32
    %617 = vector.broadcast %cst_98 : f32 to vector<4x8x128xf32>
    %618 = arith.mulf %603, %616 : vector<4x128xf32>
    %619 = vector.shape_cast %618 : vector<4x128xf32> to vector<4x1x128xf32>
    %620 = vector.broadcast %619 : vector<4x1x128xf32> to vector<4x8x128xf32>
    %621 = arith.mulf %620, %511 : vector<4x8x128xf32>
    %622 = arith.addf %617, %621 : vector<4x8x128xf32>
    %623 = arith.mulf %605, %616 : vector<4x128xf32>
    %624 = vector.shape_cast %623 : vector<4x128xf32> to vector<4x1x128xf32>
    %625 = vector.broadcast %624 : vector<4x1x128xf32> to vector<4x8x128xf32>
    %626 = arith.mulf %625, %513 : vector<4x8x128xf32>
    %627 = arith.addf %622, %626 : vector<4x8x128xf32>
    %628 = arith.mulf %607, %616 : vector<4x128xf32>
    %629 = vector.shape_cast %628 : vector<4x128xf32> to vector<4x1x128xf32>
    %630 = vector.broadcast %629 : vector<4x1x128xf32> to vector<4x8x128xf32>
    %631 = arith.mulf %630, %515 : vector<4x8x128xf32>
    %632 = arith.addf %627, %631 : vector<4x8x128xf32>
    %633 = arith.mulf %609, %616 : vector<4x128xf32>
    %634 = vector.shape_cast %633 : vector<4x128xf32> to vector<4x1x128xf32>
    %635 = vector.broadcast %634 : vector<4x1x128xf32> to vector<4x8x128xf32>
    %636 = arith.mulf %635, %517 : vector<4x8x128xf32>
    %637 = arith.addf %632, %636 : vector<4x8x128xf32>
    %638 = arith.mulf %611, %616 : vector<4x128xf32>
    %639 = vector.shape_cast %638 : vector<4x128xf32> to vector<4x1x128xf32>
    %640 = vector.broadcast %639 : vector<4x1x128xf32> to vector<4x8x128xf32>
    %641 = arith.mulf %640, %519 : vector<4x8x128xf32>
    %642 = arith.addf %637, %641 : vector<4x8x128xf32>
    %643 = vector.shape_cast %642 : vector<4x8x128xf32> to vector<32x128xf32>
    %644 = vector.extract_strided_slice %502 {offsets = [0, 256], sizes = [32, 128], strides = [1, 1]} : vector<32x640xf32> to vector<32x128xf32>
    %645 = arith.mulf %644, %505 : vector<32x128xf32>
    %646 = vector.shape_cast %645 : vector<32x128xf32> to vector<4x8x128xf32>
    %cst_99 = arith.constant dense<0.000000e+00> : vector<4x128xf32>
    %647 = vector.multi_reduction <add>, %646, %cst_99 [1] : vector<4x8x128xf32> to vector<4x128xf32>
    %648 = arith.mulf %644, %506 : vector<32x128xf32>
    %649 = vector.shape_cast %648 : vector<32x128xf32> to vector<4x8x128xf32>
    %cst_100 = arith.constant dense<0.000000e+00> : vector<4x128xf32>
    %650 = vector.multi_reduction <add>, %649, %cst_100 [1] : vector<4x8x128xf32> to vector<4x128xf32>
    %651 = arith.mulf %644, %507 : vector<32x128xf32>
    %652 = vector.shape_cast %651 : vector<32x128xf32> to vector<4x8x128xf32>
    %cst_101 = arith.constant dense<0.000000e+00> : vector<4x128xf32>
    %653 = vector.multi_reduction <add>, %652, %cst_101 [1] : vector<4x8x128xf32> to vector<4x128xf32>
    %654 = arith.mulf %644, %508 : vector<32x128xf32>
    %655 = vector.shape_cast %654 : vector<32x128xf32> to vector<4x8x128xf32>
    %cst_102 = arith.constant dense<0.000000e+00> : vector<4x128xf32>
    %656 = vector.multi_reduction <add>, %655, %cst_102 [1] : vector<4x8x128xf32> to vector<4x128xf32>
    %657 = arith.mulf %644, %509 : vector<32x128xf32>
    %658 = vector.shape_cast %657 : vector<32x128xf32> to vector<4x8x128xf32>
    %cst_103 = arith.constant dense<0.000000e+00> : vector<4x128xf32>
    %659 = vector.multi_reduction <add>, %658, %cst_103 [1] : vector<4x8x128xf32> to vector<4x128xf32>
    %660 = arith.maximumf %647, %650 : vector<4x128xf32>
    %661 = arith.maximumf %660, %653 : vector<4x128xf32>
    %662 = arith.maximumf %661, %656 : vector<4x128xf32>
    %663 = arith.maximumf %662, %659 : vector<4x128xf32>
    %664 = arith.subf %647, %663 : vector<4x128xf32>
    %665 = math.exp %664 : vector<4x128xf32>
    %666 = arith.subf %650, %663 : vector<4x128xf32>
    %667 = math.exp %666 : vector<4x128xf32>
    %668 = arith.subf %653, %663 : vector<4x128xf32>
    %669 = math.exp %668 : vector<4x128xf32>
    %670 = arith.subf %656, %663 : vector<4x128xf32>
    %671 = math.exp %670 : vector<4x128xf32>
    %672 = arith.subf %659, %663 : vector<4x128xf32>
    %673 = math.exp %672 : vector<4x128xf32>
    %674 = arith.addf %665, %667 : vector<4x128xf32>
    %675 = arith.addf %674, %669 : vector<4x128xf32>
    %676 = arith.addf %675, %671 : vector<4x128xf32>
    %677 = arith.addf %676, %673 : vector<4x128xf32>
    %678 = tpu.reciprocal %677 {approx = true} : vector<4x128xf32> -> vector<4x128xf32>
    %cst_104 = arith.constant 0.000000e+00 : f32
    %679 = vector.broadcast %cst_104 : f32 to vector<4x8x128xf32>
    %680 = arith.mulf %665, %678 : vector<4x128xf32>
    %681 = vector.shape_cast %680 : vector<4x128xf32> to vector<4x1x128xf32>
    %682 = vector.broadcast %681 : vector<4x1x128xf32> to vector<4x8x128xf32>
    %683 = arith.mulf %682, %511 : vector<4x8x128xf32>
    %684 = arith.addf %679, %683 : vector<4x8x128xf32>
    %685 = arith.mulf %667, %678 : vector<4x128xf32>
    %686 = vector.shape_cast %685 : vector<4x128xf32> to vector<4x1x128xf32>
    %687 = vector.broadcast %686 : vector<4x1x128xf32> to vector<4x8x128xf32>
    %688 = arith.mulf %687, %513 : vector<4x8x128xf32>
    %689 = arith.addf %684, %688 : vector<4x8x128xf32>
    %690 = arith.mulf %669, %678 : vector<4x128xf32>
    %691 = vector.shape_cast %690 : vector<4x128xf32> to vector<4x1x128xf32>
    %692 = vector.broadcast %691 : vector<4x1x128xf32> to vector<4x8x128xf32>
    %693 = arith.mulf %692, %515 : vector<4x8x128xf32>
    %694 = arith.addf %689, %693 : vector<4x8x128xf32>
    %695 = arith.mulf %671, %678 : vector<4x128xf32>
    %696 = vector.shape_cast %695 : vector<4x128xf32> to vector<4x1x128xf32>
    %697 = vector.broadcast %696 : vector<4x1x128xf32> to vector<4x8x128xf32>
    %698 = arith.mulf %697, %517 : vector<4x8x128xf32>
    %699 = arith.addf %694, %698 : vector<4x8x128xf32>
    %700 = arith.mulf %673, %678 : vector<4x128xf32>
    %701 = vector.shape_cast %700 : vector<4x128xf32> to vector<4x1x128xf32>
    %702 = vector.broadcast %701 : vector<4x1x128xf32> to vector<4x8x128xf32>
    %703 = arith.mulf %702, %519 : vector<4x8x128xf32>
    %704 = arith.addf %699, %703 : vector<4x8x128xf32>
    %705 = vector.shape_cast %704 : vector<4x8x128xf32> to vector<32x128xf32>
    %706 = vector.extract_strided_slice %502 {offsets = [0, 384], sizes = [32, 128], strides = [1, 1]} : vector<32x640xf32> to vector<32x128xf32>
    %707 = arith.mulf %706, %505 : vector<32x128xf32>
    %708 = vector.shape_cast %707 : vector<32x128xf32> to vector<4x8x128xf32>
    %cst_105 = arith.constant dense<0.000000e+00> : vector<4x128xf32>
    %709 = vector.multi_reduction <add>, %708, %cst_105 [1] : vector<4x8x128xf32> to vector<4x128xf32>
    %710 = arith.mulf %706, %506 : vector<32x128xf32>
    %711 = vector.shape_cast %710 : vector<32x128xf32> to vector<4x8x128xf32>
    %cst_106 = arith.constant dense<0.000000e+00> : vector<4x128xf32>
    %712 = vector.multi_reduction <add>, %711, %cst_106 [1] : vector<4x8x128xf32> to vector<4x128xf32>
    %713 = arith.mulf %706, %507 : vector<32x128xf32>
    %714 = vector.shape_cast %713 : vector<32x128xf32> to vector<4x8x128xf32>
    %cst_107 = arith.constant dense<0.000000e+00> : vector<4x128xf32>
    %715 = vector.multi_reduction <add>, %714, %cst_107 [1] : vector<4x8x128xf32> to vector<4x128xf32>
    %716 = arith.mulf %706, %508 : vector<32x128xf32>
    %717 = vector.shape_cast %716 : vector<32x128xf32> to vector<4x8x128xf32>
    %cst_108 = arith.constant dense<0.000000e+00> : vector<4x128xf32>
    %718 = vector.multi_reduction <add>, %717, %cst_108 [1] : vector<4x8x128xf32> to vector<4x128xf32>
    %719 = arith.mulf %706, %509 : vector<32x128xf32>
    %720 = vector.shape_cast %719 : vector<32x128xf32> to vector<4x8x128xf32>
    %cst_109 = arith.constant dense<0.000000e+00> : vector<4x128xf32>
    %721 = vector.multi_reduction <add>, %720, %cst_109 [1] : vector<4x8x128xf32> to vector<4x128xf32>
    %722 = arith.maximumf %709, %712 : vector<4x128xf32>
    %723 = arith.maximumf %722, %715 : vector<4x128xf32>
    %724 = arith.maximumf %723, %718 : vector<4x128xf32>
    %725 = arith.maximumf %724, %721 : vector<4x128xf32>
    %726 = arith.subf %709, %725 : vector<4x128xf32>
    %727 = math.exp %726 : vector<4x128xf32>
    %728 = arith.subf %712, %725 : vector<4x128xf32>
    %729 = math.exp %728 : vector<4x128xf32>
    %730 = arith.subf %715, %725 : vector<4x128xf32>
    %731 = math.exp %730 : vector<4x128xf32>
    %732 = arith.subf %718, %725 : vector<4x128xf32>
    %733 = math.exp %732 : vector<4x128xf32>
    %734 = arith.subf %721, %725 : vector<4x128xf32>
    %735 = math.exp %734 : vector<4x128xf32>
    %736 = arith.addf %727, %729 : vector<4x128xf32>
    %737 = arith.addf %736, %731 : vector<4x128xf32>
    %738 = arith.addf %737, %733 : vector<4x128xf32>
    %739 = arith.addf %738, %735 : vector<4x128xf32>
    %740 = tpu.reciprocal %739 {approx = true} : vector<4x128xf32> -> vector<4x128xf32>
    %cst_110 = arith.constant 0.000000e+00 : f32
    %741 = vector.broadcast %cst_110 : f32 to vector<4x8x128xf32>
    %742 = arith.mulf %727, %740 : vector<4x128xf32>
    %743 = vector.shape_cast %742 : vector<4x128xf32> to vector<4x1x128xf32>
    %744 = vector.broadcast %743 : vector<4x1x128xf32> to vector<4x8x128xf32>
    %745 = arith.mulf %744, %511 : vector<4x8x128xf32>
    %746 = arith.addf %741, %745 : vector<4x8x128xf32>
    %747 = arith.mulf %729, %740 : vector<4x128xf32>
    %748 = vector.shape_cast %747 : vector<4x128xf32> to vector<4x1x128xf32>
    %749 = vector.broadcast %748 : vector<4x1x128xf32> to vector<4x8x128xf32>
    %750 = arith.mulf %749, %513 : vector<4x8x128xf32>
    %751 = arith.addf %746, %750 : vector<4x8x128xf32>
    %752 = arith.mulf %731, %740 : vector<4x128xf32>
    %753 = vector.shape_cast %752 : vector<4x128xf32> to vector<4x1x128xf32>
    %754 = vector.broadcast %753 : vector<4x1x128xf32> to vector<4x8x128xf32>
    %755 = arith.mulf %754, %515 : vector<4x8x128xf32>
    %756 = arith.addf %751, %755 : vector<4x8x128xf32>
    %757 = arith.mulf %733, %740 : vector<4x128xf32>
    %758 = vector.shape_cast %757 : vector<4x128xf32> to vector<4x1x128xf32>
    %759 = vector.broadcast %758 : vector<4x1x128xf32> to vector<4x8x128xf32>
    %760 = arith.mulf %759, %517 : vector<4x8x128xf32>
    %761 = arith.addf %756, %760 : vector<4x8x128xf32>
    %762 = arith.mulf %735, %740 : vector<4x128xf32>
    %763 = vector.shape_cast %762 : vector<4x128xf32> to vector<4x1x128xf32>
    %764 = vector.broadcast %763 : vector<4x1x128xf32> to vector<4x8x128xf32>
    %765 = arith.mulf %764, %519 : vector<4x8x128xf32>
    %766 = arith.addf %761, %765 : vector<4x8x128xf32>
    %767 = vector.shape_cast %766 : vector<4x8x128xf32> to vector<32x128xf32>
    %768 = vector.extract_strided_slice %502 {offsets = [0, 512], sizes = [32, 128], strides = [1, 1]} : vector<32x640xf32> to vector<32x128xf32>
    %769 = arith.mulf %768, %505 : vector<32x128xf32>
    %770 = vector.shape_cast %769 : vector<32x128xf32> to vector<4x8x128xf32>
    %cst_111 = arith.constant dense<0.000000e+00> : vector<4x128xf32>
    %771 = vector.multi_reduction <add>, %770, %cst_111 [1] : vector<4x8x128xf32> to vector<4x128xf32>
    %772 = arith.mulf %768, %506 : vector<32x128xf32>
    %773 = vector.shape_cast %772 : vector<32x128xf32> to vector<4x8x128xf32>
    %cst_112 = arith.constant dense<0.000000e+00> : vector<4x128xf32>
    %774 = vector.multi_reduction <add>, %773, %cst_112 [1] : vector<4x8x128xf32> to vector<4x128xf32>
    %775 = arith.mulf %768, %507 : vector<32x128xf32>
    %776 = vector.shape_cast %775 : vector<32x128xf32> to vector<4x8x128xf32>
    %cst_113 = arith.constant dense<0.000000e+00> : vector<4x128xf32>
    %777 = vector.multi_reduction <add>, %776, %cst_113 [1] : vector<4x8x128xf32> to vector<4x128xf32>
    %778 = arith.mulf %768, %508 : vector<32x128xf32>
    %779 = vector.shape_cast %778 : vector<32x128xf32> to vector<4x8x128xf32>
    %cst_114 = arith.constant dense<0.000000e+00> : vector<4x128xf32>
    %780 = vector.multi_reduction <add>, %779, %cst_114 [1] : vector<4x8x128xf32> to vector<4x128xf32>
    %781 = arith.mulf %768, %509 : vector<32x128xf32>
    %782 = vector.shape_cast %781 : vector<32x128xf32> to vector<4x8x128xf32>
    %cst_115 = arith.constant dense<0.000000e+00> : vector<4x128xf32>
    %783 = vector.multi_reduction <add>, %782, %cst_115 [1] : vector<4x8x128xf32> to vector<4x128xf32>
    %784 = arith.maximumf %771, %774 : vector<4x128xf32>
    %785 = arith.maximumf %784, %777 : vector<4x128xf32>
    %786 = arith.maximumf %785, %780 : vector<4x128xf32>
    %787 = arith.maximumf %786, %783 : vector<4x128xf32>
    %788 = arith.subf %771, %787 : vector<4x128xf32>
    %789 = math.exp %788 : vector<4x128xf32>
    %790 = arith.subf %774, %787 : vector<4x128xf32>
    %791 = math.exp %790 : vector<4x128xf32>
    %792 = arith.subf %777, %787 : vector<4x128xf32>
    %793 = math.exp %792 : vector<4x128xf32>
    %794 = arith.subf %780, %787 : vector<4x128xf32>
    %795 = math.exp %794 : vector<4x128xf32>
    %796 = arith.subf %783, %787 : vector<4x128xf32>
    %797 = math.exp %796 : vector<4x128xf32>
    %798 = arith.addf %789, %791 : vector<4x128xf32>
    %799 = arith.addf %798, %793 : vector<4x128xf32>
    %800 = arith.addf %799, %795 : vector<4x128xf32>
    %801 = arith.addf %800, %797 : vector<4x128xf32>
    %802 = tpu.reciprocal %801 {approx = true} : vector<4x128xf32> -> vector<4x128xf32>
    %cst_116 = arith.constant 0.000000e+00 : f32
    %803 = vector.broadcast %cst_116 : f32 to vector<4x8x128xf32>
    %804 = arith.mulf %789, %802 : vector<4x128xf32>
    %805 = vector.shape_cast %804 : vector<4x128xf32> to vector<4x1x128xf32>
    %806 = vector.broadcast %805 : vector<4x1x128xf32> to vector<4x8x128xf32>
    %807 = arith.mulf %806, %511 : vector<4x8x128xf32>
    %808 = arith.addf %803, %807 : vector<4x8x128xf32>
    %809 = arith.mulf %791, %802 : vector<4x128xf32>
    %810 = vector.shape_cast %809 : vector<4x128xf32> to vector<4x1x128xf32>
    %811 = vector.broadcast %810 : vector<4x1x128xf32> to vector<4x8x128xf32>
    %812 = arith.mulf %811, %513 : vector<4x8x128xf32>
    %813 = arith.addf %808, %812 : vector<4x8x128xf32>
    %814 = arith.mulf %793, %802 : vector<4x128xf32>
    %815 = vector.shape_cast %814 : vector<4x128xf32> to vector<4x1x128xf32>
    %816 = vector.broadcast %815 : vector<4x1x128xf32> to vector<4x8x128xf32>
    %817 = arith.mulf %816, %515 : vector<4x8x128xf32>
    %818 = arith.addf %813, %817 : vector<4x8x128xf32>
    %819 = arith.mulf %795, %802 : vector<4x128xf32>
    %820 = vector.shape_cast %819 : vector<4x128xf32> to vector<4x1x128xf32>
    %821 = vector.broadcast %820 : vector<4x1x128xf32> to vector<4x8x128xf32>
    %822 = arith.mulf %821, %517 : vector<4x8x128xf32>
    %823 = arith.addf %818, %822 : vector<4x8x128xf32>
    %824 = arith.mulf %797, %802 : vector<4x128xf32>
    %825 = vector.shape_cast %824 : vector<4x128xf32> to vector<4x1x128xf32>
    %826 = vector.broadcast %825 : vector<4x1x128xf32> to vector<4x8x128xf32>
    %827 = arith.mulf %826, %519 : vector<4x8x128xf32>
    %828 = arith.addf %823, %827 : vector<4x8x128xf32>
    %829 = vector.shape_cast %828 : vector<4x8x128xf32> to vector<32x128xf32>
    %830 = tpu.concatenate %581, %643, %705, %767, %829 in 1 : vector<32x128xf32>, vector<32x128xf32>, vector<32x128xf32>, vector<32x128xf32>, vector<32x128xf32> -> vector<32x640xf32>
    %c1_117 = arith.constant 1 : index
    %c0_118 = arith.constant 0 : index
    %c0_119 = arith.constant 0 : index
    %831 = vector.load %arg6[%c1_117, %c0_118, %c0_119] : memref<2x32x32xbf16, #tpu.memory_space<vmem>>, vector<1x32x32xbf16>
    %832 = vector.shape_cast %831 : vector<1x32x32xbf16> to vector<32x32xbf16>
    %833 = arith.truncf %830 : vector<32x640xf32> to vector<32x640xbf16>
    %cst_120 = arith.constant dense<0.000000e+00> : vector<32x640xf32>
    %834 = tpu.matmul %832, %833, %cst_120 {dimension_numbers = #tpu.dot_dimension_numbers<[1], [0], [0], [1], [0, 0, 1, 1], [], []>} : vector<32x32xbf16>, vector<32x640xbf16>, vector<32x640xf32> -> vector<32x640xf32>
    %835 = vector.broadcast %489 : vector<32x1xf32> to vector<32x640xf32>
    %836 = arith.addf %834, %835 : vector<32x640xf32>
    %837 = arith.addf %485, %836 : vector<32x640xf32>
    %cst_121 = arith.constant dense<0.000000e+00> : vector<640xf32>
    %838 = vector.multi_reduction <add>, %837, %cst_121 [0] : vector<32x640xf32> to vector<640xf32>
    %839 = vector.shape_cast %838 : vector<640xf32> to vector<1x640xf32>
    %cst_122 = arith.constant 3.200000e+01 : f32
    %840 = vector.broadcast %cst_122 : f32 to vector<1x640xf32>
    %841 = arith.divf %839, %840 : vector<1x640xf32>
    %842 = vector.broadcast %841 : vector<1x640xf32> to vector<32x640xf32>
    %843 = arith.subf %837, %842 : vector<32x640xf32>
    %844 = vector.broadcast %841 : vector<1x640xf32> to vector<32x640xf32>
    %845 = arith.subf %837, %844 : vector<32x640xf32>
    %846 = arith.mulf %843, %845 : vector<32x640xf32>
    %cst_123 = arith.constant dense<0.000000e+00> : vector<640xf32>
    %847 = vector.multi_reduction <add>, %846, %cst_123 [0] : vector<32x640xf32> to vector<640xf32>
    %848 = vector.shape_cast %847 : vector<640xf32> to vector<1x640xf32>
    %cst_124 = arith.constant 3.200000e+01 : f32
    %849 = vector.broadcast %cst_124 : f32 to vector<1x640xf32>
    %850 = arith.divf %848, %849 : vector<1x640xf32>
    %851 = vector.broadcast %841 : vector<1x640xf32> to vector<32x640xf32>
    %852 = arith.subf %837, %851 : vector<32x640xf32>
    %cst_125 = arith.constant 9.99999974E-6 : f32
    %853 = vector.broadcast %cst_125 : f32 to vector<1x640xf32>
    %854 = arith.addf %850, %853 : vector<1x640xf32>
    %855 = math.rsqrt %854 : vector<1x640xf32>
    %856 = vector.broadcast %855 : vector<1x640xf32> to vector<32x640xf32>
    %857 = arith.mulf %852, %856 : vector<32x640xf32>
    %858 = vector.broadcast %492 : vector<32x1xf32> to vector<32x640xf32>
    %859 = arith.mulf %857, %858 : vector<32x640xf32>
    %860 = vector.broadcast %493 : vector<32x1xf32> to vector<32x640xf32>
    %861 = arith.addf %859, %860 : vector<32x640xf32>
    %c1_126 = arith.constant 1 : index
    %c0_127 = arith.constant 0 : index
    %c0_128 = arith.constant 0 : index
    %862 = vector.load %arg7[%c1_126, %c0_127, %c0_128] : memref<2x128x32xbf16, #tpu.memory_space<vmem>>, vector<1x128x32xbf16>
    %863 = vector.shape_cast %862 : vector<1x128x32xbf16> to vector<128x32xbf16>
    %864 = arith.truncf %861 : vector<32x640xf32> to vector<32x640xbf16>
    %cst_129 = arith.constant dense<0.000000e+00> : vector<128x640xf32>
    %865 = tpu.matmul %863, %864, %cst_129 {dimension_numbers = #tpu.dot_dimension_numbers<[1], [0], [0], [1], [0, 0, 1, 1], [], []>} : vector<128x32xbf16>, vector<32x640xbf16>, vector<128x640xf32> -> vector<128x640xf32>
    %866 = vector.broadcast %490 : vector<128x1xf32> to vector<128x640xf32>
    %867 = arith.addf %865, %866 : vector<128x640xf32>
    %cst_130 = arith.constant 5.000000e-01 : f32
    %868 = vector.broadcast %cst_130 : f32 to vector<128x640xf32>
    %869 = arith.mulf %868, %867 : vector<128x640xf32>
    %cst_131 = arith.constant 4.471500e-02 : f32
    %870 = vector.broadcast %cst_131 : f32 to vector<128x640xf32>
    %871 = arith.mulf %870, %867 : vector<128x640xf32>
    %872 = arith.mulf %871, %867 : vector<128x640xf32>
    %873 = arith.mulf %872, %867 : vector<128x640xf32>
    %874 = arith.addf %867, %873 : vector<128x640xf32>
    %cst_132 = arith.constant 0.797884583 : f32
    %875 = vector.broadcast %cst_132 : f32 to vector<128x640xf32>
    %876 = arith.mulf %875, %874 : vector<128x640xf32>
    %877 = math.tanh %876 : vector<128x640xf32>
    %cst_133 = arith.constant 1.000000e+00 : f32
    %878 = vector.broadcast %cst_133 : f32 to vector<128x640xf32>
    %879 = arith.addf %878, %877 : vector<128x640xf32>
    %880 = arith.mulf %869, %879 : vector<128x640xf32>
    %c1_134 = arith.constant 1 : index
    %c0_135 = arith.constant 0 : index
    %c0_136 = arith.constant 0 : index
    %881 = vector.load %arg8[%c1_134, %c0_135, %c0_136] : memref<2x32x128xbf16, #tpu.memory_space<vmem>>, vector<1x32x128xbf16>
    %882 = vector.shape_cast %881 : vector<1x32x128xbf16> to vector<32x128xbf16>
    %883 = arith.truncf %880 : vector<128x640xf32> to vector<128x640xbf16>
    %cst_137 = arith.constant dense<0.000000e+00> : vector<32x640xf32>
    %884 = tpu.matmul %882, %883, %cst_137 {dimension_numbers = #tpu.dot_dimension_numbers<[1], [0], [0], [1], [0, 0, 1, 1], [], []>} : vector<32x128xbf16>, vector<128x640xbf16>, vector<32x640xf32> -> vector<32x640xf32>
    %885 = vector.broadcast %491 : vector<32x1xf32> to vector<32x640xf32>
    %886 = arith.addf %884, %885 : vector<32x640xf32>
    %887 = arith.addf %861, %886 : vector<32x640xf32>
    %cst_138 = arith.constant dense<0.000000e+00> : vector<640xf32>
    %888 = vector.multi_reduction <add>, %887, %cst_138 [0] : vector<32x640xf32> to vector<640xf32>
    %889 = vector.shape_cast %888 : vector<640xf32> to vector<1x640xf32>
    %cst_139 = arith.constant 3.200000e+01 : f32
    %890 = vector.broadcast %cst_139 : f32 to vector<1x640xf32>
    %891 = arith.divf %889, %890 : vector<1x640xf32>
    %892 = vector.broadcast %891 : vector<1x640xf32> to vector<32x640xf32>
    %893 = arith.subf %887, %892 : vector<32x640xf32>
    %894 = vector.broadcast %891 : vector<1x640xf32> to vector<32x640xf32>
    %895 = arith.subf %887, %894 : vector<32x640xf32>
    %896 = arith.mulf %893, %895 : vector<32x640xf32>
    %cst_140 = arith.constant dense<0.000000e+00> : vector<640xf32>
    %897 = vector.multi_reduction <add>, %896, %cst_140 [0] : vector<32x640xf32> to vector<640xf32>
    %898 = vector.shape_cast %897 : vector<640xf32> to vector<1x640xf32>
    %cst_141 = arith.constant 3.200000e+01 : f32
    %899 = vector.broadcast %cst_141 : f32 to vector<1x640xf32>
    %900 = arith.divf %898, %899 : vector<1x640xf32>
    %901 = vector.broadcast %891 : vector<1x640xf32> to vector<32x640xf32>
    %902 = arith.subf %887, %901 : vector<32x640xf32>
    %cst_142 = arith.constant 9.99999974E-6 : f32
    %903 = vector.broadcast %cst_142 : f32 to vector<1x640xf32>
    %904 = arith.addf %900, %903 : vector<1x640xf32>
    %905 = math.rsqrt %904 : vector<1x640xf32>
    %906 = vector.broadcast %905 : vector<1x640xf32> to vector<32x640xf32>
    %907 = arith.mulf %902, %906 : vector<32x640xf32>
    %908 = vector.broadcast %494 : vector<32x1xf32> to vector<32x640xf32>
    %909 = arith.mulf %907, %908 : vector<32x640xf32>
    %910 = vector.broadcast %495 : vector<32x1xf32> to vector<32x640xf32>
    %911 = arith.addf %909, %910 : vector<32x640xf32>
    %c0_143 = arith.constant 0 : index
    %c0_144 = arith.constant 0 : index
    %912 = vector.load %arg11[%c0_143, %c0_144] : memref<32x3xf32, #tpu.memory_space<vmem>>, vector<32x3xf32>
    %913 = vector.extract_strided_slice %912 {offsets = [0, 0], sizes = [32, 1], strides = [1, 1]} : vector<32x3xf32> to vector<32x1xf32>
    %914 = vector.extract_strided_slice %912 {offsets = [0, 1], sizes = [32, 1], strides = [1, 1]} : vector<32x3xf32> to vector<32x1xf32>
    %915 = vector.extract_strided_slice %912 {offsets = [0, 2], sizes = [1, 1], strides = [1, 1]} : vector<32x3xf32> to vector<1x1xf32>
    %916 = vector.extract_strided_slice %911 {offsets = [0, 0], sizes = [32, 512], strides = [1, 1]} : vector<32x640xf32> to vector<32x512xf32>
    %c0_145 = arith.constant 0 : index
    %c0_146 = arith.constant 0 : index
    %917 = vector.load %arg10[%c0_145, %c0_146] : memref<32x32xbf16, #tpu.memory_space<vmem>>, vector<32x32xbf16>
    %918 = arith.truncf %916 : vector<32x512xf32> to vector<32x512xbf16>
    %cst_147 = arith.constant dense<0.000000e+00> : vector<32x512xf32>
    %919 = tpu.matmul %917, %918, %cst_147 {dimension_numbers = #tpu.dot_dimension_numbers<[1], [0], [0], [1], [0, 0, 1, 1], [], []>} : vector<32x32xbf16>, vector<32x512xbf16>, vector<32x512xf32> -> vector<32x512xf32>
    %920 = vector.broadcast %913 : vector<32x1xf32> to vector<32x512xf32>
    %921 = arith.addf %919, %920 : vector<32x512xf32>
    %cst_148 = arith.constant 5.000000e-01 : f32
    %922 = vector.broadcast %cst_148 : f32 to vector<32x512xf32>
    %923 = arith.mulf %922, %921 : vector<32x512xf32>
    %cst_149 = arith.constant 4.471500e-02 : f32
    %924 = vector.broadcast %cst_149 : f32 to vector<32x512xf32>
    %925 = arith.mulf %924, %921 : vector<32x512xf32>
    %926 = arith.mulf %925, %921 : vector<32x512xf32>
    %927 = arith.mulf %926, %921 : vector<32x512xf32>
    %928 = arith.addf %921, %927 : vector<32x512xf32>
    %cst_150 = arith.constant 0.797884583 : f32
    %929 = vector.broadcast %cst_150 : f32 to vector<32x512xf32>
    %930 = arith.mulf %929, %928 : vector<32x512xf32>
    %931 = math.tanh %930 : vector<32x512xf32>
    %cst_151 = arith.constant 1.000000e+00 : f32
    %932 = vector.broadcast %cst_151 : f32 to vector<32x512xf32>
    %933 = arith.addf %932, %931 : vector<32x512xf32>
    %934 = arith.mulf %923, %933 : vector<32x512xf32>
    %935 = vector.broadcast %914 : vector<32x1xf32> to vector<32x512xf32>
    %936 = arith.mulf %934, %935 : vector<32x512xf32>
    %937 = vector.extract_strided_slice %936 {offsets = [0, 0], sizes = [32, 128], strides = [1, 1]} : vector<32x512xf32> to vector<32x128xf32>
    %cst_152 = arith.constant dense<0.000000e+00> : vector<128xf32>
    %938 = vector.multi_reduction <add>, %937, %cst_152 [0] : vector<32x128xf32> to vector<128xf32>
    %939 = vector.shape_cast %938 : vector<128xf32> to vector<1x128xf32>
    %940 = vector.extract_strided_slice %936 {offsets = [0, 128], sizes = [32, 128], strides = [1, 1]} : vector<32x512xf32> to vector<32x128xf32>
    %cst_153 = arith.constant dense<0.000000e+00> : vector<128xf32>
    %941 = vector.multi_reduction <add>, %940, %cst_153 [0] : vector<32x128xf32> to vector<128xf32>
    %942 = vector.shape_cast %941 : vector<128xf32> to vector<1x128xf32>
    %943 = vector.extract_strided_slice %936 {offsets = [0, 256], sizes = [32, 128], strides = [1, 1]} : vector<32x512xf32> to vector<32x128xf32>
    %cst_154 = arith.constant dense<0.000000e+00> : vector<128xf32>
    %944 = vector.multi_reduction <add>, %943, %cst_154 [0] : vector<32x128xf32> to vector<128xf32>
    %945 = vector.shape_cast %944 : vector<128xf32> to vector<1x128xf32>
    %946 = vector.extract_strided_slice %936 {offsets = [0, 384], sizes = [32, 128], strides = [1, 1]} : vector<32x512xf32> to vector<32x128xf32>
    %cst_155 = arith.constant dense<0.000000e+00> : vector<128xf32>
    %947 = vector.multi_reduction <add>, %946, %cst_155 [0] : vector<32x128xf32> to vector<128xf32>
    %948 = vector.shape_cast %947 : vector<128xf32> to vector<1x128xf32>
    %949 = tpu.concatenate %939, %942, %945, %948 in 0 : vector<1x128xf32>, vector<1x128xf32>, vector<1x128xf32>, vector<1x128xf32> -> vector<4x128xf32>
    %950 = vector.broadcast %915 : vector<1x1xf32> to vector<4x128xf32>
    %951 = arith.addf %949, %950 : vector<4x128xf32>
    %c0_156 = arith.constant 0 : index
    %c0_157 = arith.constant 0 : index
    %952 = vector.load %arg12[%c0_156, %c0_157] : memref<4x128xf32, #tpu.memory_space<vmem>>, vector<4x128xf32>
    tpu.vector_store %arg12[%c0_156, %c0_157], %951 {strides = array<i32>} : memref<4x128xf32, #tpu.memory_space<vmem>>, vector<4x128xf32>,
    return
  }
  func.func @transform_0(%arg0: i32) -> (i32, i32) {
    %c0_i32 = arith.constant 0 : i32
    %c0_i32_0 = arith.constant 0 : i32
    return %c0_i32, %arg0 : i32, i32
  }
  func.func @transform_1(%arg0: i32) -> (i32, i32) {
    %c0_i32 = arith.constant 0 : i32
    %c0_i32_0 = arith.constant 0 : i32
    return %c0_i32, %arg0 : i32, i32
  }
  func.func @transform_2(%arg0: i32) -> (i32, i32) {
    %c0_i32 = arith.constant 0 : i32
    %c0_i32_0 = arith.constant 0 : i32
    %c0_i32_1 = arith.constant 0 : i32
    return %c0_i32, %c0_i32_0 : i32, i32
  }
  func.func @transform_3(%arg0: i32) -> (i32, i32) {
    %c0_i32 = arith.constant 0 : i32
    %c0_i32_0 = arith.constant 0 : i32
    %c0_i32_1 = arith.constant 0 : i32
    return %c0_i32, %c0_i32_0 : i32, i32
  }
  func.func @transform_4(%arg0: i32) -> (i32, i32, i32) {
    %c0_i32 = arith.constant 0 : i32
    %c0_i32_0 = arith.constant 0 : i32
    %c0_i32_1 = arith.constant 0 : i32
    %c0_i32_2 = arith.constant 0 : i32
    return %c0_i32, %c0_i32_0, %c0_i32_1 : i32, i32, i32
  }
  func.func @transform_5(%arg0: i32) -> (i32, i32, i32) {
    %c0_i32 = arith.constant 0 : i32
    %c0_i32_0 = arith.constant 0 : i32
    %c0_i32_1 = arith.constant 0 : i32
    %c0_i32_2 = arith.constant 0 : i32
    return %c0_i32, %c0_i32_0, %c0_i32_1 : i32, i32, i32
  }
  func.func @transform_6(%arg0: i32) -> (i32, i32, i32) {
    %c0_i32 = arith.constant 0 : i32
    %c0_i32_0 = arith.constant 0 : i32
    %c0_i32_1 = arith.constant 0 : i32
    %c0_i32_2 = arith.constant 0 : i32
    return %c0_i32, %c0_i32_0, %c0_i32_1 : i32, i32, i32
  }
  func.func @transform_7(%arg0: i32) -> (i32, i32, i32) {
    %c0_i32 = arith.constant 0 : i32
    %c0_i32_0 = arith.constant 0 : i32
    %c0_i32_1 = arith.constant 0 : i32
    %c0_i32_2 = arith.constant 0 : i32
    return %c0_i32, %c0_i32_0, %c0_i32_1 : i32, i32, i32
  }
  func.func @transform_8(%arg0: i32) -> (i32, i32, i32) {
    %c0_i32 = arith.constant 0 : i32
    %c0_i32_0 = arith.constant 0 : i32
    %c0_i32_1 = arith.constant 0 : i32
    %c0_i32_2 = arith.constant 0 : i32
    return %c0_i32, %c0_i32_0, %c0_i32_1 : i32, i32, i32
  }
  func.func @transform_9(%arg0: i32) -> (i32, i32) {
    %c0_i32 = arith.constant 0 : i32
    %c0_i32_0 = arith.constant 0 : i32
    %c0_i32_1 = arith.constant 0 : i32
    return %c0_i32, %c0_i32_0 : i32, i32
  }
  func.func @transform_10(%arg0: i32) -> (i32, i32) {
    %c0_i32 = arith.constant 0 : i32
    %c0_i32_0 = arith.constant 0 : i32
    %c0_i32_1 = arith.constant 0 : i32
    return %c0_i32, %c0_i32_0 : i32, i32
  }
  func.func @transform_11(%arg0: i32) -> (i32, i32) {
    %c0_i32 = arith.constant 0 : i32
    %c0_i32_0 = arith.constant 0 : i32
    return %c0_i32, %arg0 : i32, i32
  }
}

</mosaic_0001>

<llo_original>
// kernel: tpu_custom_call.1
$region0: #{tpu_custom_call.1}
  #allocation0 [shape = 'u32[]', space=smem, size = 0x4, offset = 0x4, fixed_abs, tag = 'smem constant byte address 0x4 - core index']
  #allocation1 [shape = 'u32[144,128]{1,0:T(1,128)}', space=vmem, size = 0x12000, scoped, tag = 'internal scratch']
  %s0 = inlined_call_operand.vmem [shape: f32[32,128], index: 0, kind: input, shape index: {}]
  %s1 = inlined_call_operand.vmem [shape: f32[8,128], index: 1, kind: input, shape index: {}]
  %s2 = inlined_call_operand.vmem [shape: bf16[32,80], index: 2, kind: input, shape index: {}]
  %s3 = inlined_call_operand.vmem [shape: f32[32,4], index: 3, kind: input, shape index: {}]
  %s4 = inlined_call_operand.vmem [shape: bf16[2,96,32], index: 4, kind: input, shape index: {}]
  %s5 = inlined_call_operand.vmem [shape: bf16[2,32,32], index: 5, kind: input, shape index: {}]
  %s6 = inlined_call_operand.vmem [shape: bf16[2,128,32], index: 6, kind: input, shape index: {}]
  %s7 = inlined_call_operand.vmem [shape: bf16[2,32,128], index: 7, kind: input, shape index: {}]
  %s8 = inlined_call_operand.vmem [shape: f32[2,416,1], index: 8, kind: input, shape index: {}]
  %s9 = inlined_call_operand.vmem [shape: bf16[32,32], index: 9, kind: input, shape index: {}]
  %s10 = inlined_call_operand.vmem [shape: f32[32,3], index: 10, kind: input, shape index: {}]
  %s11 = inlined_call_operand.hbm [shape: f32[4,128], index: 11, kind: output, shape index: {}]
  %s12 = sld [smem:[#allocation0]]
  $region54: #{tpu_custom_call.1} parent=0
    _
  %s14 = ssub.s32 1, %s12
  %s15 = scalar_select 0, %s14, %s12
  $region1: #{tpu_custom_call.1} parent=0
    #allocation2 [shape = 'u8[2048]{0}', space=vmem, size = 0x800, scoped, tag = 'output window, operand 0, single buffered']
    #allocation3 [shape = 's32[1]{0}', space=sflag, size = 0x4, scoped, tag = 'scoped memory for tpu_custom_call.1']
    %16 = vsyncpa [#allocation3], 0
    // Predicated region
    $region2: #{tpu_custom_call.1} parent=1 // pred_check
      _
    $region3: #{tpu_custom_call.1} parent=1 // pred_check_branch
      %18 = sbr.rel (0) target = $region5
    $region4: #{tpu_custom_call.1} parent=1 // pred_region
      _
    $region5: #{tpu_custom_call.1} parent=1 // pred_fallthru
      _
    // Predicated region
    $region6: #{tpu_custom_call.1} parent=1 // pred_check
      _
    $region7: #{tpu_custom_call.1} parent=1 // pred_check_branch
      %20 = sbr.rel (0) target = $region9
    $region8: #{tpu_custom_call.1} parent=1 // pred_region
      _
    $region9: #{tpu_custom_call.1} parent=1 // pred_fallthru
      _
    // Predicated region
    $region10: #{tpu_custom_call.1} parent=1 // pred_check
      _
    $region11: #{tpu_custom_call.1} parent=1 // pred_check_branch
      %22 = sbr.rel (0) target = $region13
    $region12: #{tpu_custom_call.1} parent=1 // pred_region
      _
    $region13: #{tpu_custom_call.1} parent=1 // pred_fallthru
      _
    // Predicated region
    $region14: #{tpu_custom_call.1} parent=1 // pred_check
      _
    $region15: #{tpu_custom_call.1} parent=1 // pred_check_branch
      %24 = sbr.rel (0) target = $region17
    $region16: #{tpu_custom_call.1} parent=1 // pred_region
      _
    $region17: #{tpu_custom_call.1} parent=1 // pred_fallthru
      _
    // Predicated region
    $region18: #{tpu_custom_call.1} parent=1 // pred_check
      _
    $region19: #{tpu_custom_call.1} parent=1 // pred_check_branch
      %26 = sbr.rel (0) target = $region21
    $region20: #{tpu_custom_call.1} parent=1 // pred_region
      _
    $region21: #{tpu_custom_call.1} parent=1 // pred_fallthru
      _
    // Predicated region
    $region22: #{tpu_custom_call.1} parent=1 // pred_check
      _
    $region23: #{tpu_custom_call.1} parent=1 // pred_check_branch
      %28 = sbr.rel (0) target = $region25
    $region24: #{tpu_custom_call.1} parent=1 // pred_region
      _
    $region25: #{tpu_custom_call.1} parent=1 // pred_fallthru
      _
    // Predicated region
    $region26: #{tpu_custom_call.1} parent=1 // pred_check
      _
    $region27: #{tpu_custom_call.1} parent=1 // pred_check_branch
      %30 = sbr.rel (0) target = $region29
    $region28: #{tpu_custom_call.1} parent=1 // pred_region
      _
    $region29: #{tpu_custom_call.1} parent=1 // pred_fallthru
      _
    // Predicated region
    $region30: #{tpu_custom_call.1} parent=1 // pred_check
      _
    $region31: #{tpu_custom_call.1} parent=1 // pred_check_branch
      %32 = sbr.rel (0) target = $region33
    $region32: #{tpu_custom_call.1} parent=1 // pred_region
      _
    $region33: #{tpu_custom_call.1} parent=1 // pred_fallthru
      _
    // Predicated region
    $region34: #{tpu_custom_call.1} parent=1 // pred_check
      _
    $region35: #{tpu_custom_call.1} parent=1 // pred_check_branch
      %34 = sbr.rel (0) target = $region37
    $region36: #{tpu_custom_call.1} parent=1 // pred_region
      _
    $region37: #{tpu_custom_call.1} parent=1 // pred_fallthru
      _
    // Predicated region
    $region38: #{tpu_custom_call.1} parent=1 // pred_check
      _
    $region39: #{tpu_custom_call.1} parent=1 // pred_check_branch
      %36 = sbr.rel (0) target = $region41
    $region40: #{tpu_custom_call.1} parent=1 // pred_region
      _
    $region41: #{tpu_custom_call.1} parent=1 // pred_fallthru
      _
    // Predicated region
    $region42: #{tpu_custom_call.1} parent=1 // pred_check
      _
    $region43: #{tpu_custom_call.1} parent=1 // pred_check_branch
      %38 = sbr.rel (0) target = $region45
    $region44: #{tpu_custom_call.1} parent=1 // pred_region
      _
    $region45: #{tpu_custom_call.1} parent=1 // pred_fallthru
      _
    %v40 = vld [vmem:[%s2] sm:$0xf]
    %v41 = vld [vmem:[%s2 + $0x4] sm:$0xf]
    %v42 = vld [vmem:[%s2 + $0x8] sm:$0xf]
    %v43 = vld [vmem:[%s2 + $0xc] sm:$0xf]
    %v44 = vld [vmem:[%s3] sm:$0xff]
    %v45 = vld [vmem:[%s3 + $0x8] sm:$0xff]
    %v46 = vld [vmem:[%s3 + $0x10] sm:$0xff]
    %v47 = vld [vmem:[%s3 + $0x18] sm:$0xff]
    %v48 = vld [vmem:[%s0] sm:$0xff]
    %v49 = vld [vmem:[%s0 + $0x8] sm:$0xff]
    %v50 = vld [vmem:[%s0 + $0x10] sm:$0xff]
    %v51 = vld [vmem:[%s0 + $0x18] sm:$0xff]
    %v52 = vpack.c.bf16 %v48, %v48
    %v53 = vpack.c.bf16 %v49, %v49
    %v54 = vpack.c.bf16 %v50, %v50
    %v55 = vpack.c.bf16 %v51, %v51
    %57 = vset.pattern.permute.xlu0 0
    %58 = vperm.xlu0 %57, %v44
    %v59 = vpop.permute.xlu0 %58
    %62 = vset.pattern.permute.xlu0 0
    %63 = vperm.xlu0 %62, %v45
    %v64 = vpop.permute.xlu0 %63
    %67 = vset.pattern.permute.xlu0 0
    %68 = vperm.xlu0 %67, %v46
    %v69 = vpop.permute.xlu0 %68
    %72 = vset.pattern.permute.xlu0 0
    %73 = vperm.xlu0 %72, %v47
    %v74 = vpop.permute.xlu0 %73
    %v80 = vunpack.c.l.b16 %v40
    %v81 = vunpack.c.l.b16 %v41
    %v82 = vunpack.c.l.b16 %v42
    %v83 = vunpack.c.l.b16 %v43
    %v84 = vpack.c.b16 %v81, %v80
    %v85 = vpack.c.b16 %v83, %v82
    %vm86 = vcmask 64512
    %v88 = vsel %vm86, %v84, 0
    %v91 = vsel %vm86, %v85, 0
    %vm93 = vcmask 1043456
    %v95 = vsel %vm93, %v52, 0
    %v98 = vsel %vm93, %v53, 0
    %v101 = vsel %vm93, %v54, 0
    %v104 = vsel %vm93, %v55, 0
    %106 = vmatprep.subr.bf16.mxu0 %v98
    %107 = vmatpush1.bf16.msra.mxu0 %v95
    %108 = vmatprep.subr.bf16.mxu0 0
    %109 = vmatpush1.bf16.msra.mxu0 0
    %110 = vmatprep.subr.bf16.mxu0 0
    %111 = vmatpush1.bf16.msra.mxu0 0
    %112 = vmatprep.subr.bf16.mxu0 0
    %113 = vmatpush1.bf16.msra.mxu0 0
    %114 = vmatprep.subr.bf16.mxu0 0
    %115 = vmatpush1.bf16.msra.mxu0 0
    %116 = vmatprep.subr.bf16.mxu0 0
    %117 = vmatpush1.bf16.msra.mxu0 0
    %118 = vmatprep.subr.bf16.mxu0 0
    %119 = vmatpush1.bf16.msra.mxu0 0
    %120 = vmatprep.subr.bf16.mxu0 0
    %121 = vmatpush1.bf16.msra.mxu0 0
    %122 = vmatprep.subr.bf16.mxu0 0
    %123 = vmatpush1.bf16.msra.mxu0 0
    %124 = vmatprep.subr.bf16.mxu0 0
    %125 = vmatpush1.bf16.msra.mxu0 0
    %126 = vmatprep.subr.bf16.mxu0 0
    %127 = vmatpush1.bf16.msra.mxu0 0
    %128 = vmatprep.subr.bf16.mxu0 0
    %129 = vmatpush1.bf16.msra.mxu0 0
    %130 = vmatprep.subr.bf16.mxu0 0
    %131 = vmatpush1.bf16.msra.mxu0 0
    %132 = vmatprep.subr.bf16.mxu0 0
    %133 = vmatpush1.bf16.msra.mxu0 0
    %134 = vmatprep.subr.bf16.mxu0 0
    %135 = vmatpush1.bf16.msra.mxu0 0
    %136 = vmatprep.subr.bf16.mxu0 0
    %137 = vmatpush1.bf16.msra.mxu0 0
    %138 = vmatprep.mubr.bf16.mxu0 0
    %139 = vmatmul.mubr.bf16.gmra.mrb[0].mxu0 %v88
    %v140 = vpop.f32.mrb[0].mxu0
    %v141 = vadd.f32 %v59, %v140
    %v142 = vpop.f32.mrb[0].mxu0
    %v143 = vadd.f32 %v59, %v142
    %v144 = vpop.f32.mrb[0].mxu0
    %v145 = vadd.f32 %v64, %v144
    %v146 = vpop.f32.mrb[0].mxu0
    %v147 = vadd.f32 %v64, %v146
    %148 = vmatprep.mubr.bf16.mxu0 0
    %149 = vmatmul.mubr.bf16.gmra.mrb[0].mxu0 %v91
    %v150 = vpop.f32.mrb[0].mxu0
    %v151 = vadd.f32 %v69, %v150
    %v152 = vpop.f32.mrb[0].mxu0
    %v153 = vadd.f32 %v69, %v152
    %v154 = vpop.f32.mrb[0].mxu0
    %v155 = vadd.f32 %v74, %v154
    %v156 = vpop.f32.mrb[0].mxu0
    %v157 = vadd.f32 %v74, %v156
    %158 = vdwg.mxu0
    %159 = vmatprep.subr.bf16.mxu0 %v104
    %160 = vmatpush1.bf16.msra.mxu0 %v101
    %161 = vmatprep.subr.bf16.mxu0 0
    %162 = vmatpush1.bf16.msra.mxu0 0
    %163 = vmatprep.subr.bf16.mxu0 0
    %164 = vmatpush1.bf16.msra.mxu0 0
    %165 = vmatprep.subr.bf16.mxu0 0
    %166 = vmatpush1.bf16.msra.mxu0 0
    %167 = vmatprep.subr.bf16.mxu0 0
    %168 = vmatpush1.bf16.msra.mxu0 0
    %169 = vmatprep.subr.bf16.mxu0 0
    %170 = vmatpush1.bf16.msra.mxu0 0
    %171 = vmatprep.subr.bf16.mxu0 0
    %172 = vmatpush1.bf16.msra.mxu0 0
    %173 = vmatprep.subr.bf16.mxu0 0
    %174 = vmatpush1.bf16.msra.mxu0 0
    %175 = vmatprep.subr.bf16.mxu0 0
    %176 = vmatpush1.bf16.msra.mxu0 0
    %177 = vmatprep.subr.bf16.mxu0 0
    %178 = vmatpush1.bf16.msra.mxu0 0
    %179 = vmatprep.subr.bf16.mxu0 0
    %180 = vmatpush1.bf16.msra.mxu0 0
    %181 = vmatprep.subr.bf16.mxu0 0
    %182 = vmatpush1.bf16.msra.mxu0 0
    %183 = vmatprep.subr.bf16.mxu0 0
    %184 = vmatpush1.bf16.msra.mxu0 0
    %185 = vmatprep.subr.bf16.mxu0 0
    %186 = vmatpush1.bf16.msra.mxu0 0
    %187 = vmatprep.subr.bf16.mxu0 0
    %188 = vmatpush1.bf16.msra.mxu0 0
    %189 = vmatprep.subr.bf16.mxu0 0
    %190 = vmatpush1.bf16.msra.mxu0 0
    %191 = vmatprep.mubr.bf16.mxu0 0
    %192 = vmatmul.mubr.bf16.gmra.mrb[0].mxu0 %v88
    %v193 = vpop.f32.mrb[0].mxu0
    %v194 = vadd.f32 %v59, %v193
    %v195 = vpop.f32.mrb[0].mxu0
    %v196 = vadd.f32 %v59, %v195
    %v197 = vpop.f32.mrb[0].mxu0
    %v198 = vadd.f32 %v64, %v197
    %v199 = vpop.f32.mrb[0].mxu0
    %v200 = vadd.f32 %v64, %v199
    %201 = vmatprep.mubr.bf16.mxu0 0
    %202 = vmatmul.mubr.bf16.gmra.mrb[0].mxu0 %v91
    %v203 = vpop.f32.mrb[0].mxu0
    %v204 = vadd.f32 %v69, %v203
    %v205 = vpop.f32.mrb[0].mxu0
    %v206 = vadd.f32 %v69, %v205
    %v207 = vpop.f32.mrb[0].mxu0
    %v208 = vadd.f32 %v74, %v207
    %v209 = vpop.f32.mrb[0].mxu0
    %v210 = vadd.f32 %v74, %v209
    %211 = vdwg.mxu0
    %v212 = vmul.f32 %v141, 0.5
    %v213 = vmul.f32 %v143, 0.5
    %v214 = vmul.f32 %v194, 0.5
    %v215 = vmul.f32 %v196, 0.5
    %v216 = vmul.f32 %v145, 0.5
    %v217 = vmul.f32 %v147, 0.5
    %v218 = vmul.f32 %v198, 0.5
    %v219 = vmul.f32 %v200, 0.5
    %v220 = vmul.f32 %v151, 0.5
    %v221 = vmul.f32 %v153, 0.5
    %v222 = vmul.f32 %v204, 0.5
    %v223 = vmul.f32 %v206, 0.5
    %v224 = vmul.f32 %v155, 0.5
    %v225 = vmul.f32 %v157, 0.5
    %v226 = vmul.f32 %v208, 0.5
    %v227 = vmul.f32 %v210, 0.5
    %v228 = vmul.f32 %v141, 0.044715
    %v229 = vmul.f32 %v143, 0.044715
    %v230 = vmul.f32 %v194, 0.044715
    %v231 = vmul.f32 %v196, 0.044715
    %v232 = vmul.f32 %v145, 0.044715
    %v233 = vmul.f32 %v147, 0.044715
    %v234 = vmul.f32 %v198, 0.044715
    %v235 = vmul.f32 %v200, 0.044715
    %v236 = vmul.f32 %v151, 0.044715
    %v237 = vmul.f32 %v153, 0.044715
    %v238 = vmul.f32 %v204, 0.044715
    %v239 = vmul.f32 %v206, 0.044715
    %v240 = vmul.f32 %v155, 0.044715
    %v241 = vmul.f32 %v157, 0.044715
    %v242 = vmul.f32 %v208, 0.044715
    %v243 = vmul.f32 %v210, 0.044715
    %v244 = vmul.f32 %v228, %v141
    %v245 = vmul.f32 %v229, %v143
    %v246 = vmul.f32 %v230, %v194
    %v247 = vmul.f32 %v231, %v196
    %v248 = vmul.f32 %v232, %v145
    %v249 = vmul.f32 %v233, %v147
    %v250 = vmul.f32 %v234, %v198
    %v251 = vmul.f32 %v235, %v200
    %v252 = vmul.f32 %v236, %v151
    %v253 = vmul.f32 %v237, %v153
    %v254 = vmul.f32 %v238, %v204
    %v255 = vmul.f32 %v239, %v206
    %v256 = vmul.f32 %v240, %v155
    %v257 = vmul.f32 %v241, %v157
    %v258 = vmul.f32 %v242, %v208
    %v259 = vmul.f32 %v243, %v210
    %v260 = vmul.f32 %v244, %v141
    %v261 = vmul.f32 %v245, %v143
    %v262 = vmul.f32 %v246, %v194
    %v263 = vmul.f32 %v247, %v196
    %v264 = vmul.f32 %v248, %v145
    %v265 = vmul.f32 %v249, %v147
    %v266 = vmul.f32 %v250, %v198
    %v267 = vmul.f32 %v251, %v200
    %v268 = vmul.f32 %v252, %v151
    %v269 = vmul.f32 %v253, %v153
    %v270 = vmul.f32 %v254, %v204
    %v271 = vmul.f32 %v255, %v206
    %v272 = vmul.f32 %v256, %v155
    %v273 = vmul.f32 %v257, %v157
    %v274 = vmul.f32 %v258, %v208
    %v275 = vmul.f32 %v259, %v210
    %v276 = vadd.f32 %v141, %v260
    %v277 = vadd.f32 %v143, %v261
    %v278 = vadd.f32 %v194, %v262
    %v279 = vadd.f32 %v196, %v263
    %v280 = vadd.f32 %v145, %v264
    %v281 = vadd.f32 %v147, %v265
    %v282 = vadd.f32 %v198, %v266
    %v283 = vadd.f32 %v200, %v267
    %v284 = vadd.f32 %v151, %v268
    %v285 = vadd.f32 %v153, %v269
    %v286 = vadd.f32 %v204, %v270
    %v287 = vadd.f32 %v206, %v271
    %v288 = vadd.f32 %v155, %v272
    %v289 = vadd.f32 %v157, %v273
    %v290 = vadd.f32 %v208, %v274
    %v291 = vadd.f32 %v210, %v275
    %v292 = vmul.f32 %v276, 0.7978846
    %v293 = vmul.f32 %v277, 0.7978846
    %v294 = vmul.f32 %v278, 0.7978846
    %v295 = vmul.f32 %v279, 0.7978846
    %v296 = vmul.f32 %v280, 0.7978846
    %v297 = vmul.f32 %v281, 0.7978846
    %v298 = vmul.f32 %v282, 0.7978846
    %v299 = vmul.f32 %v283, 0.7978846
    %v300 = vmul.f32 %v284, 0.7978846
    %v301 = vmul.f32 %v285, 0.7978846
    %v302 = vmul.f32 %v286, 0.7978846
    %v303 = vmul.f32 %v287, 0.7978846
    %v304 = vmul.f32 %v288, 0.7978846
    %v305 = vmul.f32 %v289, 0.7978846
    %v306 = vmul.f32 %v290, 0.7978846
    %v307 = vmul.f32 %v291, 0.7978846
    %v308 = vtanh.pop %v292
    %v309 = vtanh.pop %v293
    %v310 = vtanh.pop %v294
    %v311 = vtanh.pop %v295
    %v312 = vtanh.pop %v296
    %v313 = vtanh.pop %v297
    %v314 = vtanh.pop %v298
    %v315 = vtanh.pop %v299
    %v316 = vtanh.pop %v300
    %v317 = vtanh.pop %v301
    %v318 = vtanh.pop %v302
    %v319 = vtanh.pop %v303
    %v320 = vtanh.pop %v304
    %v321 = vtanh.pop %v305
    %v322 = vtanh.pop %v306
    %v323 = vtanh.pop %v307
    %v324 = vadd.f32 %v308, 1.0
    %v325 = vadd.f32 %v309, 1.0
    %v326 = vadd.f32 %v310, 1.0
    %v327 = vadd.f32 %v311, 1.0
    %v328 = vadd.f32 %v312, 1.0
    %v329 = vadd.f32 %v313, 1.0
    %v330 = vadd.f32 %v314, 1.0
    %v331 = vadd.f32 %v315, 1.0
    %v332 = vadd.f32 %v316, 1.0
    %v333 = vadd.f32 %v317, 1.0
    %v334 = vadd.f32 %v318, 1.0
    %v335 = vadd.f32 %v319, 1.0
    %v336 = vadd.f32 %v320, 1.0
    %v337 = vadd.f32 %v321, 1.0
    %v338 = vadd.f32 %v322, 1.0
    %v339 = vadd.f32 %v323, 1.0
    %v340 = vmul.f32 %v212, %v324
    %v341 = vmul.f32 %v213, %v325
    %v342 = vmul.f32 %v214, %v326
    %v343 = vmul.f32 %v215, %v327
    %v344 = vmul.f32 %v216, %v328
    %v345 = vmul.f32 %v217, %v329
    %v346 = vmul.f32 %v218, %v330
    %v347 = vmul.f32 %v219, %v331
    %v348 = vmul.f32 %v220, %v332
    %v349 = vmul.f32 %v221, %v333
    %v350 = vmul.f32 %v222, %v334
    %v351 = vmul.f32 %v223, %v335
    %v352 = vmul.f32 %v224, %v336
    %v353 = vmul.f32 %v225, %v337
    %v354 = vmul.f32 %v226, %v338
    %v355 = vmul.f32 %v227, %v339
    %v356 = vpack.c.bf16 %v344, %v340
    %v357 = vpack.c.bf16 %v345, %v341
    %v358 = vpack.c.bf16 %v346, %v342
    %v359 = vpack.c.bf16 %v347, %v343
    %v360 = vpack.c.bf16 %v352, %v348
    %v361 = vpack.c.bf16 %v353, %v349
    %v362 = vpack.c.bf16 %v354, %v350
    %v363 = vpack.c.bf16 %v355, %v351
    %364 = vset.pattern.permute.xlu0 1
    %365 = vperm.xlu0 %364, %v44
    %v366 = vpop.permute.xlu0 %365
    %368 = vset.pattern.permute.xlu0 1
    %369 = vperm.xlu0 %368, %v45
    %v370 = vpop.permute.xlu0 %369
    %372 = vset.pattern.permute.xlu0 1
    %373 = vperm.xlu0 %372, %v46
    %v374 = vpop.permute.xlu0 %373
    %376 = vset.pattern.permute.xlu0 1
    %377 = vperm.xlu0 %376, %v47
    %v378 = vpop.permute.xlu0 %377
    %380 = vrot.lane.b32.xlu0 %v84, 120
    %v381 = vpop.permute.xlu0 %380
    %382 = vrot.lane.b32.xlu0 %v85, 120
    %v383 = vpop.permute.xlu0 %382
    %vm384 = vcmask 261120
    %v386 = vsel %vm384, %v381, 0
    %v389 = vsel %vm384, %v383, 0
    %391 = vmatprep.subr.bf16.mxu0 %v357
    %392 = vmatpush1.bf16.msra.mxu0 %v356
    %393 = vmatprep.subr.bf16.mxu0 %v361
    %394 = vmatpush1.bf16.msra.mxu0 %v360
    %395 = vmatprep.subr.bf16.mxu0 0
    %396 = vmatpush1.bf16.msra.mxu0 0
    %397 = vmatprep.subr.bf16.mxu0 0
    %398 = vmatpush1.bf16.msra.mxu0 0
    %399 = vmatprep.subr.bf16.mxu0 0
    %400 = vmatpush1.bf16.msra.mxu0 0
    %401 = vmatprep.subr.bf16.mxu0 0
    %402 = vmatpush1.bf16.msra.mxu0 0
    %403 = vmatprep.subr.bf16.mxu0 0
    %404 = vmatpush1.bf16.msra.mxu0 0
    %405 = vmatprep.subr.bf16.mxu0 0
    %406 = vmatpush1.bf16.msra.mxu0 0
    %407 = vmatprep.subr.bf16.mxu0 0
    %408 = vmatpush1.bf16.msra.mxu0 0
    %409 = vmatprep.subr.bf16.mxu0 0
    %410 = vmatpush1.bf16.msra.mxu0 0
    %411 = vmatprep.subr.bf16.mxu0 0
    %412 = vmatpush1.bf16.msra.mxu0 0
    %413 = vmatprep.subr.bf16.mxu0 0
    %414 = vmatpush1.bf16.msra.mxu0 0
    %415 = vmatprep.subr.bf16.mxu0 0
    %416 = vmatpush1.bf16.msra.mxu0 0
    %417 = vmatprep.subr.bf16.mxu0 0
    %418 = vmatpush1.bf16.msra.mxu0 0
    %419 = vmatprep.subr.bf16.mxu0 0
    %420 = vmatpush1.bf16.msra.mxu0 0
    %421 = vmatprep.subr.bf16.mxu0 0
    %422 = vmatpush1.bf16.msra.mxu0 0
    %423 = vmatprep.mubr.bf16.mxu0 0
    %424 = vmatmul.mubr.bf16.gmra.mrb[0].mxu0 %v386
    %v425 = vpop.f32.mrb[0].mxu0
    %v426 = vadd.f32 %v366, %v425
    %v427 = vpop.f32.mrb[0].mxu0
    %v428 = vadd.f32 %v366, %v427
    %v429 = vpop.f32.mrb[0].mxu0
    %v430 = vadd.f32 %v370, %v429
    %v431 = vpop.f32.mrb[0].mxu0
    %v432 = vadd.f32 %v370, %v431
    %433 = vmatprep.mubr.bf16.mxu0 0
    %434 = vmatmul.mubr.bf16.gmra.mrb[0].mxu0 %v389
    %v435 = vpop.f32.mrb[0].mxu0
    %v436 = vadd.f32 %v374, %v435
    %v437 = vpop.f32.mrb[0].mxu0
    %v438 = vadd.f32 %v374, %v437
    %v439 = vpop.f32.mrb[0].mxu0
    %v440 = vadd.f32 %v378, %v439
    %v441 = vpop.f32.mrb[0].mxu0
    %v442 = vadd.f32 %v378, %v441
    %443 = vdwg.mxu0
    %444 = vmatprep.subr.bf16.mxu0 %v359
    %445 = vmatpush1.bf16.msra.mxu0 %v358
    %446 = vmatprep.subr.bf16.mxu0 %v363
    %447 = vmatpush1.bf16.msra.mxu0 %v362
    %448 = vmatprep.subr.bf16.mxu0 0
    %449 = vmatpush1.bf16.msra.mxu0 0
    %450 = vmatprep.subr.bf16.mxu0 0
    %451 = vmatpush1.bf16.msra.mxu0 0
    %452 = vmatprep.subr.bf16.mxu0 0
    %453 = vmatpush1.bf16.msra.mxu0 0
    %454 = vmatprep.subr.bf16.mxu0 0
    %455 = vmatpush1.bf16.msra.mxu0 0
    %456 = vmatprep.subr.bf16.mxu0 0
    %457 = vmatpush1.bf16.msra.mxu0 0
    %458 = vmatprep.subr.bf16.mxu0 0
    %459 = vmatpush1.bf16.msra.mxu0 0
    %460 = vmatprep.subr.bf16.mxu0 0
    %461 = vmatpush1.bf16.msra.mxu0 0
    %462 = vmatprep.subr.bf16.mxu0 0
    %463 = vmatpush1.bf16.msra.mxu0 0
    %464 = vmatprep.subr.bf16.mxu0 0
    %465 = vmatpush1.bf16.msra.mxu0 0
    %466 = vmatprep.subr.bf16.mxu0 0
    %467 = vmatpush1.bf16.msra.mxu0 0
    %468 = vmatprep.subr.bf16.mxu0 0
    %469 = vmatpush1.bf16.msra.mxu0 0
    %470 = vmatprep.subr.bf16.mxu0 0
    %471 = vmatpush1.bf16.msra.mxu0 0
    %472 = vmatprep.subr.bf16.mxu0 0
    %473 = vmatpush1.bf16.msra.mxu0 0
    %474 = vmatprep.subr.bf16.mxu0 0
    %475 = vmatpush1.bf16.msra.mxu0 0
    %476 = vmatprep.mubr.bf16.mxu0 0
    %477 = vmatmul.mubr.bf16.gmra.mrb[0].mxu0 %v386
    %v478 = vpop.f32.mrb[0].mxu0
    %v479 = vadd.f32 %v366, %v478
    %v480 = vpop.f32.mrb[0].mxu0
    %v481 = vadd.f32 %v366, %v480
    %v482 = vpop.f32.mrb[0].mxu0
    %v483 = vadd.f32 %v370, %v482
    %v484 = vpop.f32.mrb[0].mxu0
    %v485 = vadd.f32 %v370, %v484
    %486 = vmatprep.mubr.bf16.mxu0 0
    %487 = vmatmul.mubr.bf16.gmra.mrb[0].mxu0 %v389
    %v488 = vpop.f32.mrb[0].mxu0
    %v489 = vadd.f32 %v374, %v488
    %v490 = vpop.f32.mrb[0].mxu0
    %v491 = vadd.f32 %v374, %v490
    %v492 = vpop.f32.mrb[0].mxu0
    %v493 = vadd.f32 %v378, %v492
    %v494 = vpop.f32.mrb[0].mxu0
    %v495 = vadd.f32 %v378, %v494
    %496 = vdwg.mxu0
    %v497 = vld [vmem:[%s1] sm:$0xff]
    %v498 = vpack.c.bf16 %v497, %v497
    %499 = vset.pattern.permute.xlu0 2
    %500 = vperm.xlu0 %499, %v44
    %v501 = vpop.permute.xlu0 %500
    %503 = vset.pattern.permute.xlu0 2
    %504 = vperm.xlu0 %503, %v45
    %v505 = vpop.permute.xlu0 %504
    %507 = vset.pattern.permute.xlu0 2
    %508 = vperm.xlu0 %507, %v46
    %v509 = vpop.permute.xlu0 %508
    %511 = vset.pattern.permute.xlu0 2
    %512 = vperm.xlu0 %511, %v47
    %v513 = vpop.permute.xlu0 %512
    %515 = vrot.lane.b32.xlu0 %v84, 88
    %v516 = vpop.permute.xlu0 %515
    %517 = vrot.lane.b32.xlu0 %v85, 88
    %v518 = vpop.permute.xlu0 %517
    %v520 = vsel %vm86, %v516, 0
    %v523 = vsel %vm86, %v518, 0
    %v526 = vsel %vm93, %v498, 0
    %528 = vmatprep.subr.bf16.mxu0 0
    %529 = vmatpush1.bf16.msra.mxu0 %v526
    %530 = vmatprep.subr.bf16.mxu0 0
    %531 = vmatpush1.bf16.msra.mxu0 0
    %532 = vmatprep.subr.bf16.mxu0 0
    %533 = vmatpush1.bf16.msra.mxu0 0
    %534 = vmatprep.subr.bf16.mxu0 0
    %535 = vmatpush1.bf16.msra.mxu0 0
    %536 = vmatprep.subr.bf16.mxu0 0
    %537 = vmatpush1.bf16.msra.mxu0 0
    %538 = vmatprep.subr.bf16.mxu0 0
    %539 = vmatpush1.bf16.msra.mxu0 0
    %540 = vmatprep.subr.bf16.mxu0 0
    %541 = vmatpush1.bf16.msra.mxu0 0
    %542 = vmatprep.subr.bf16.mxu0 0
    %543 = vmatpush1.bf16.msra.mxu0 0
    %544 = vmatprep.subr.bf16.mxu0 0
    %545 = vmatpush1.bf16.msra.mxu0 0
    %546 = vmatprep.subr.bf16.mxu0 0
    %547 = vmatpush1.bf16.msra.mxu0 0
    %548 = vmatprep.subr.bf16.mxu0 0
    %549 = vmatpush1.bf16.msra.mxu0 0
    %550 = vmatprep.subr.bf16.mxu0 0
    %551 = vmatpush1.bf16.msra.mxu0 0
    %552 = vmatprep.subr.bf16.mxu0 0
    %553 = vmatpush1.bf16.msra.mxu0 0
    %554 = vmatprep.subr.bf16.mxu0 0
    %555 = vmatpush1.bf16.msra.mxu0 0
    %556 = vmatprep.subr.bf16.mxu0 0
    %557 = vmatpush1.bf16.msra.mxu0 0
    %558 = vmatprep.subr.bf16.mxu0 0
    %559 = vmatpush1.bf16.msra.mxu0 0
    %560 = vmatprep.mubr.bf16.mxu0 0
    %561 = vmatmul.mubr.bf16.gmra.mrb[0].mxu0 %v520
    %v562 = vpop.f32.mrb[0].mxu0
    %v563 = vadd.f32 %v501, %v562
    %v564 = vpop.f32.mrb[0].mxu0
    %v565 = vpop.f32.mrb[0].mxu0
    %v566 = vadd.f32 %v505, %v565
    %v567 = vpop.f32.mrb[0].mxu0
    %568 = vmatprep.mubr.bf16.mxu0 0
    %569 = vmatmul.mubr.bf16.gmra.mrb[0].mxu0 %v523
    %v570 = vpop.f32.mrb[0].mxu0
    %v571 = vadd.f32 %v509, %v570
    %v572 = vpop.f32.mrb[0].mxu0
    %v573 = vpop.f32.mrb[0].mxu0
    %v574 = vadd.f32 %v513, %v573
    %v575 = vpop.f32.mrb[0].mxu0
    %576 = vdwg.mxu0
    %v577 = vmul.f32 %v563, 0.5
    %v578 = vmul.f32 %v566, 0.5
    %v579 = vmul.f32 %v571, 0.5
    %v580 = vmul.f32 %v574, 0.5
    %v581 = vmul.f32 %v563, 0.044715
    %v582 = vmul.f32 %v566, 0.044715
    %v583 = vmul.f32 %v571, 0.044715
    %v584 = vmul.f32 %v574, 0.044715
    %v585 = vmul.f32 %v581, %v563
    %v586 = vmul.f32 %v582, %v566
    %v587 = vmul.f32 %v583, %v571
    %v588 = vmul.f32 %v584, %v574
    %v589 = vmul.f32 %v585, %v563
    %v590 = vmul.f32 %v586, %v566
    %v591 = vmul.f32 %v587, %v571
    %v592 = vmul.f32 %v588, %v574
    %v593 = vadd.f32 %v563, %v589
    %v594 = vadd.f32 %v566, %v590
    %v595 = vadd.f32 %v571, %v591
    %v596 = vadd.f32 %v574, %v592
    %v597 = vmul.f32 %v593, 0.7978846
    %v598 = vmul.f32 %v594, 0.7978846
    %v599 = vmul.f32 %v595, 0.7978846
    %v600 = vmul.f32 %v596, 0.7978846
    %v601 = vtanh.pop %v597
    %v602 = vtanh.pop %v598
    %v603 = vtanh.pop %v599
    %v604 = vtanh.pop %v600
    %v605 = vadd.f32 %v601, 1.0
    %v606 = vadd.f32 %v602, 1.0
    %v607 = vadd.f32 %v603, 1.0
    %v608 = vadd.f32 %v604, 1.0
    %v609 = vmul.f32 %v577, %v605
    %v610 = vmul.f32 %v578, %v606
    %v611 = vmul.f32 %v579, %v607
    %v612 = vmul.f32 %v580, %v608
    %v613 = vpack.c.bf16 %v610, %v609
    %v614 = vpack.c.bf16 %v612, %v611
    %615 = vset.pattern.permute.xlu0 3
    %616 = vperm.xlu0 %615, %v44
    %v617 = vpop.permute.xlu0 %616
    %619 = vset.pattern.permute.xlu0 3
    %620 = vperm.xlu0 %619, %v45
    %v621 = vpop.permute.xlu0 %620
    %623 = vset.pattern.permute.xlu0 3
    %624 = vperm.xlu0 %623, %v46
    %v625 = vpop.permute.xlu0 %624
    %627 = vset.pattern.permute.xlu0 3
    %628 = vperm.xlu0 %627, %v47
    %v629 = vpop.permute.xlu0 %628
    %631 = vrot.lane.b32.xlu0 %v84, 80
    %v632 = vpop.permute.xlu0 %631
    %633 = vrot.lane.b32.xlu0 %v85, 80
    %v634 = vpop.permute.xlu0 %633
    %v636 = vsel %vm384, %v632, 0
    %v639 = vsel %vm384, %v634, 0
    %641 = vmatprep.subr.bf16.mxu0 0
    %642 = vmatpush1.bf16.msra.mxu0 %v613
    %643 = vmatprep.subr.bf16.mxu0 0
    %644 = vmatpush1.bf16.msra.mxu0 %v614
    %645 = vmatprep.subr.bf16.mxu0 0
    %646 = vmatpush1.bf16.msra.mxu0 0
    %647 = vmatprep.subr.bf16.mxu0 0
    %648 = vmatpush1.bf16.msra.mxu0 0
    %649 = vmatprep.subr.bf16.mxu0 0
    %650 = vmatpush1.bf16.msra.mxu0 0
    %651 = vmatprep.subr.bf16.mxu0 0
    %652 = vmatpush1.bf16.msra.mxu0 0
    %653 = vmatprep.subr.bf16.mxu0 0
    %654 = vmatpush1.bf16.msra.mxu0 0
    %655 = vmatprep.subr.bf16.mxu0 0
    %656 = vmatpush1.bf16.msra.mxu0 0
    %657 = vmatprep.subr.bf16.mxu0 0
    %658 = vmatpush1.bf16.msra.mxu0 0
    %659 = vmatprep.subr.bf16.mxu0 0
    %660 = vmatpush1.bf16.msra.mxu0 0
    %661 = vmatprep.subr.bf16.mxu0 0
    %662 = vmatpush1.bf16.msra.mxu0 0
    %663 = vmatprep.subr.bf16.mxu0 0
    %664 = vmatpush1.bf16.msra.mxu0 0
    %665 = vmatprep.subr.bf16.mxu0 0
    %666 = vmatpush1.bf16.msra.mxu0 0
    %667 = vmatprep.subr.bf16.mxu0 0
    %668 = vmatpush1.bf16.msra.mxu0 0
    %669 = vmatprep.subr.bf16.mxu0 0
    %670 = vmatpush1.bf16.msra.mxu0 0
    %671 = vmatprep.subr.bf16.mxu0 0
    %672 = vmatpush1.bf16.msra.mxu0 0
    %673 = vmatprep.mubr.bf16.mxu0 0
    %674 = vmatmul.mubr.bf16.gmra.mrb[0].mxu0 %v636
    %v675 = vpop.f32.mrb[0].mxu0
    %v676 = vadd.f32 %v617, %v675
    %v677 = vpop.f32.mrb[0].mxu0
    %v678 = vpop.f32.mrb[0].mxu0
    %v679 = vadd.f32 %v621, %v678
    %v680 = vpop.f32.mrb[0].mxu0
    %681 = vmatprep.mubr.bf16.mxu0 0
    %682 = vmatmul.mubr.bf16.gmra.mrb[0].mxu0 %v639
    %v683 = vpop.f32.mrb[0].mxu0
    %v684 = vadd.f32 %v625, %v683
    %v685 = vpop.f32.mrb[0].mxu0
    %v686 = vpop.f32.mrb[0].mxu0
    %v687 = vadd.f32 %v629, %v686
    %v688 = vpop.f32.mrb[0].mxu0
    %689 = vdwg.mxu0
    %v690 = vld [vmem:[%s8] sm:$0xff]
    %v691 = vld [vmem:[%s8 + $0x8] sm:$0xff]
    %v692 = vld [vmem:[%s8 + $0x10] sm:$0xff]
    %v693 = vld [vmem:[%s8 + $0x18] sm:$0xff]
    %v694 = vld [vmem:[%s8 + $0x20] sm:$0xff]
    %v695 = vld [vmem:[%s8 + $0x28] sm:$0xff]
    %v696 = vld [vmem:[%s8 + $0x30] sm:$0xff]
    %v697 = vld [vmem:[%s8 + $0x38] sm:$0xff]
    %v698 = vld [vmem:[%s8 + $0x40] sm:$0xff]
    %v699 = vld [vmem:[%s8 + $0x48] sm:$0xff]
    %v700 = vld [vmem:[%s8 + $0x50] sm:$0xff]
    %v701 = vld [vmem:[%s8 + $0x58] sm:$0xff]
    %v702 = vld [vmem:[%s8 + $0x60] sm:$0xff]
    %v703 = vld [vmem:[%s8 + $0x68] sm:$0xff]
    %v704 = vld [vmem:[%s8 + $0x70] sm:$0xff]
    %v705 = vld [vmem:[%s8 + $0x78] sm:$0xff]
    %v706 = vld [vmem:[%s8 + $0x80] sm:$0xff]
    %v707 = vld [vmem:[%s8 + $0x88] sm:$0xff]
    %v708 = vld [vmem:[%s8 + $0x90] sm:$0xff]
    %v709 = vld [vmem:[%s8 + $0x98] sm:$0xff]
    %v710 = vld [vmem:[%s8 + $0xa0] sm:$0xff]
    %v711 = vld [vmem:[%s8 + $0xa8] sm:$0xff]
    %v712 = vld [vmem:[%s8 + $0xb0] sm:$0xff]
    %v713 = vld [vmem:[%s8 + $0xb8] sm:$0xff]
    %v714 = vld [vmem:[%s8 + $0xc0] sm:$0xff]
    %v715 = vld [vmem:[%s8 + $0xc8] sm:$0xff]
    %v716 = vld [vmem:[%s8 + $0xd0] sm:$0xff]
    %v717 = vld [vmem:[%s8 + $0xd8] sm:$0xff]
    %v718 = vld [vmem:[%s8 + $0xe0] sm:$0xff]
    %v719 = vld [vmem:[%s8 + $0xe8] sm:$0xff]
    %v720 = vld [vmem:[%s8 + $0xf0] sm:$0xff]
    %v721 = vld [vmem:[%s8 + $0xf8] sm:$0xff]
    %v722 = vld [vmem:[%s8 + $0x100] sm:$0xff]
    %v723 = vld [vmem:[%s8 + $0x108] sm:$0xff]
    %v724 = vld [vmem:[%s8 + $0x110] sm:$0xff]
    %v725 = vld [vmem:[%s8 + $0x118] sm:$0xff]
    %v726 = vld [vmem:[%s8 + $0x120] sm:$0xff]
    %v727 = vld [vmem:[%s8 + $0x128] sm:$0xff]
    %v728 = vld [vmem:[%s8 + $0x130] sm:$0xff]
    %v729 = vld [vmem:[%s8 + $0x138] sm:$0xff]
    %v730 = vld [vmem:[%s8 + $0x140] sm:$0xff]
    %v731 = vld [vmem:[%s8 + $0x148] sm:$0xff]
    %v732 = vld [vmem:[%s8 + $0x150] sm:$0xff]
    %v733 = vld [vmem:[%s8 + $0x158] sm:$0xff]
    %v734 = vld [vmem:[%s8 + $0x160] sm:$0xff]
    %v735 = vld [vmem:[%s8 + $0x168] sm:$0xff]
    %v736 = vld [vmem:[%s8 + $0x170] sm:$0xff]
    %v737 = vld [vmem:[%s8 + $0x178] sm:$0xff]
    %v738 = vld [vmem:[%s8 + $0x180] sm:$0xff]
    %v739 = vld [vmem:[%s8 + $0x188] sm:$0xff]
    %v740 = vld [vmem:[%s8 + $0x190] sm:$0xff]
    %v741 = vld [vmem:[%s8 + $0x198] sm:$0xff]
    %v742 = vld [vmem:[%s4] sm:$0xf]
    %v743 = vld [vmem:[%s4 + $0x4] sm:$0xf]
    %v744 = vld [vmem:[%s4 + $0x8] sm:$0xf]
    %v745 = vld [vmem:[%s4 + $0xc] sm:$0xf]
    %v746 = vld [vmem:[%s4 + $0x10] sm:$0xf]
    %v747 = vld [vmem:[%s4 + $0x14] sm:$0xf]
    %v748 = vld [vmem:[%s4 + $0x18] sm:$0xf]
    %v749 = vld [vmem:[%s4 + $0x1c] sm:$0xf]
    %v750 = vld [vmem:[%s4 + $0x20] sm:$0xf]
    %v751 = vld [vmem:[%s4 + $0x24] sm:$0xf]
    %v752 = vld [vmem:[%s4 + $0x28] sm:$0xf]
    %v753 = vld [vmem:[%s4 + $0x2c] sm:$0xf]
    %v754 = vpack.c.bf16 %v430, %v426
    %v755 = vpack.c.bf16 %v432, %v428
    %v756 = vpack.c.bf16 %v483, %v479
    %v757 = vpack.c.bf16 %v485, %v481
    %v758 = vpack.c.bf16 %v679, %v676
    %v759 = vpack.c.bf16 %v440, %v436
    %v760 = vpack.c.bf16 %v442, %v438
    %v761 = vpack.c.bf16 %v493, %v489
    %v762 = vpack.c.bf16 %v495, %v491
    %v763 = vpack.c.bf16 %v687, %v684
    %765 = vset.pattern.permute.xlu0 0
    %766 = vperm.xlu0 %765, %v690
    %v767 = vpop.permute.xlu0 %766
    %770 = vset.pattern.permute.xlu0 0
    %771 = vperm.xlu0 %770, %v691
    %v772 = vpop.permute.xlu0 %771
    %775 = vset.pattern.permute.xlu0 0
    %776 = vperm.xlu0 %775, %v692
    %v777 = vpop.permute.xlu0 %776
    %780 = vset.pattern.permute.xlu0 0
    %781 = vperm.xlu0 %780, %v693
    %v782 = vpop.permute.xlu0 %781
    %785 = vset.pattern.permute.xlu0 0
    %786 = vperm.xlu0 %785, %v694
    %v787 = vpop.permute.xlu0 %786
    %790 = vset.pattern.permute.xlu0 0
    %791 = vperm.xlu0 %790, %v695
    %v792 = vpop.permute.xlu0 %791
    %795 = vset.pattern.permute.xlu0 0
    %796 = vperm.xlu0 %795, %v696
    %v797 = vpop.permute.xlu0 %796
    %800 = vset.pattern.permute.xlu0 0
    %801 = vperm.xlu0 %800, %v697
    %v802 = vpop.permute.xlu0 %801
    %805 = vset.pattern.permute.xlu0 0
    %806 = vperm.xlu0 %805, %v698
    %v807 = vpop.permute.xlu0 %806
    %810 = vset.pattern.permute.xlu0 0
    %811 = vperm.xlu0 %810, %v699
    %v812 = vpop.permute.xlu0 %811
    %815 = vset.pattern.permute.xlu0 0
    %816 = vperm.xlu0 %815, %v700
    %v817 = vpop.permute.xlu0 %816
    %820 = vset.pattern.permute.xlu0 0
    %821 = vperm.xlu0 %820, %v701
    %v822 = vpop.permute.xlu0 %821
    %v836 = vunpack.c.l.b16 %v742
    %v837 = vunpack.c.l.b16 %v743
    %v838 = vunpack.c.l.b16 %v744
    %v839 = vunpack.c.l.b16 %v745
    %v840 = vunpack.c.l.b16 %v746
    %v841 = vunpack.c.l.b16 %v747
    %v842 = vunpack.c.l.b16 %v748
    %v843 = vunpack.c.l.b16 %v749
    %v844 = vunpack.c.l.b16 %v750
    %v845 = vunpack.c.l.b16 %v751
    %v846 = vunpack.c.l.b16 %v752
    %v847 = vunpack.c.l.b16 %v753
    %v848 = vpack.c.b16 %v837, %v836
    %v849 = vpack.c.b16 %v839, %v838
    %v850 = vpack.c.b16 %v841, %v840
    %v851 = vpack.c.b16 %v843, %v842
    %v852 = vpack.c.b16 %v845, %v844
    %v853 = vpack.c.b16 %v847, %v846
    %v855 = vsel %vm384, %v848, 0
    %v858 = vsel %vm384, %v849, 0
    %v861 = vsel %vm384, %v850, 0
    %v864 = vsel %vm384, %v851, 0
    %v867 = vsel %vm384, %v852, 0
    %v870 = vsel %vm384, %v853, 0
    %872 = vmatprep.subr.bf16.mxu0 %v755
    %873 = vmatpush1.bf16.msra.mxu0 %v754
    %874 = vmatprep.subr.bf16.mxu0 %v760
    %875 = vmatpush1.bf16.msra.mxu0 %v759
    %876 = vmatprep.subr.bf16.mxu0 0
    %877 = vmatpush1.bf16.msra.mxu0 0
    %878 = vmatprep.subr.bf16.mxu0 0
    %879 = vmatpush1.bf16.msra.mxu0 0
    %880 = vmatprep.subr.bf16.mxu0 0
    %881 = vmatpush1.bf16.msra.mxu0 0
    %882 = vmatprep.subr.bf16.mxu0 0
    %883 = vmatpush1.bf16.msra.mxu0 0
    %884 = vmatprep.subr.bf16.mxu0 0
    %885 = vmatpush1.bf16.msra.mxu0 0
    %886 = vmatprep.subr.bf16.mxu0 0
    %887 = vmatpush1.bf16.msra.mxu0 0
    %888 = vmatprep.subr.bf16.mxu0 0
    %889 = vmatpush1.bf16.msra.mxu0 0
    %890 = vmatprep.subr.bf16.mxu0 0
    %891 = vmatpush1.bf16.msra.mxu0 0
    %892 = vmatprep.subr.bf16.mxu0 0
    %893 = vmatpush1.bf16.msra.mxu0 0
    %894 = vmatprep.subr.bf16.mxu0 0
    %895 = vmatpush1.bf16.msra.mxu0 0
    %896 = vmatprep.subr.bf16.mxu0 0
    %897 = vmatpush1.bf16.msra.mxu0 0
    %898 = vmatprep.subr.bf16.mxu0 0
    %899 = vmatpush1.bf16.msra.mxu0 0
    %900 = vmatprep.subr.bf16.mxu0 0
    %901 = vmatpush1.bf16.msra.mxu0 0
    %902 = vmatprep.subr.bf16.mxu0 0
    %903 = vmatpush1.bf16.msra.mxu0 0
    %904 = vmatprep.mubr.bf16.mxu0 0
    %905 = vmatmul.mubr.bf16.gmra.mrb[0].mxu0 %v855
    %v906 = vpop.f32.mrb[0].mxu0
    %v907 = vadd.f32 %v767, %v906
    %v908 = vpop.f32.mrb[0].mxu0
    %v909 = vadd.f32 %v767, %v908
    %v910 = vpop.f32.mrb[0].mxu0
    %v911 = vadd.f32 %v772, %v910
    %v912 = vpop.f32.mrb[0].mxu0
    %v913 = vadd.f32 %v772, %v912
    %914 = vmatprep.mubr.bf16.mxu0 0
    %915 = vmatmul.mubr.bf16.gmra.mrb[0].mxu0 %v858
    %v916 = vpop.f32.mrb[0].mxu0
    %v917 = vadd.f32 %v777, %v916
    %v918 = vpop.f32.mrb[0].mxu0
    %v919 = vadd.f32 %v777, %v918
    %v920 = vpop.f32.mrb[0].mxu0
    %v921 = vadd.f32 %v782, %v920
    %v922 = vpop.f32.mrb[0].mxu0
    %v923 = vadd.f32 %v782, %v922
    %924 = vmatprep.mubr.bf16.mxu0 0
    %925 = vmatmul.mubr.bf16.gmra.mrb[0].mxu0 %v861
    %v926 = vpop.f32.mrb[0].mxu0
    %v927 = vadd.f32 %v787, %v926
    %v928 = vpop.f32.mrb[0].mxu0
    %v929 = vadd.f32 %v787, %v928
    %v930 = vpop.f32.mrb[0].mxu0
    %v931 = vadd.f32 %v792, %v930
    %v932 = vpop.f32.mrb[0].mxu0
    %v933 = vadd.f32 %v792, %v932
    %934 = vmatprep.mubr.bf16.mxu0 0
    %935 = vmatmul.mubr.bf16.gmra.mrb[0].mxu0 %v864
    %v936 = vpop.f32.mrb[0].mxu0
    %v937 = vadd.f32 %v797, %v936
    %v938 = vpop.f32.mrb[0].mxu0
    %v939 = vadd.f32 %v797, %v938
    %v940 = vpop.f32.mrb[0].mxu0
    %v941 = vadd.f32 %v802, %v940
    %v942 = vpop.f32.mrb[0].mxu0
    %v943 = vadd.f32 %v802, %v942
    %944 = vmatprep.mubr.bf16.mxu0 0
    %945 = vmatmul.mubr.bf16.gmra.mrb[0].mxu0 %v867
    %v946 = vpop.f32.mrb[0].mxu0
    %v947 = vadd.f32 %v807, %v946
    %v948 = vpop.f32.mrb[0].mxu0
    %v949 = vadd.f32 %v807, %v948
    %v950 = vpop.f32.mrb[0].mxu0
    %v951 = vadd.f32 %v812, %v950
    %v952 = vpop.f32.mrb[0].mxu0
    %v953 = vadd.f32 %v812, %v952
    %954 = vmatprep.mubr.bf16.mxu0 0
    %955 = vmatmul.mubr.bf16.gmra.mrb[0].mxu0 %v870
    %v956 = vpop.f32.mrb[0].mxu0
    %v957 = vadd.f32 %v817, %v956
    %v958 = vpop.f32.mrb[0].mxu0
    %v959 = vadd.f32 %v817, %v958
    %v960 = vpop.f32.mrb[0].mxu0
    %v961 = vadd.f32 %v822, %v960
    %v962 = vpop.f32.mrb[0].mxu0
    %v963 = vadd.f32 %v822, %v962
    %964 = vdwg.mxu0
    %965 = vmatprep.subr.bf16.mxu0 %v757
    %966 = vmatpush1.bf16.msra.mxu0 %v756
    %967 = vmatprep.subr.bf16.mxu0 %v762
    %968 = vmatpush1.bf16.msra.mxu0 %v761
    %969 = vmatprep.subr.bf16.mxu0 0
    %970 = vmatpush1.bf16.msra.mxu0 0
    %971 = vmatprep.subr.bf16.mxu0 0
    %972 = vmatpush1.bf16.msra.mxu0 0
    %973 = vmatprep.subr.bf16.mxu0 0
    %974 = vmatpush1.bf16.msra.mxu0 0
    %975 = vmatprep.subr.bf16.mxu0 0
    %976 = vmatpush1.bf16.msra.mxu0 0
    %977 = vmatprep.subr.bf16.mxu0 0
    %978 = vmatpush1.bf16.msra.mxu0 0
    %979 = vmatprep.subr.bf16.mxu0 0
    %980 = vmatpush1.bf16.msra.mxu0 0
    %981 = vmatprep.subr.bf16.mxu0 0
    %982 = vmatpush1.bf16.msra.mxu0 0
    %983 = vmatprep.subr.bf16.mxu0 0
    %984 = vmatpush1.bf16.msra.mxu0 0
    %985 = vmatprep.subr.bf16.mxu0 0
    %986 = vmatpush1.bf16.msra.mxu0 0
    %987 = vmatprep.subr.bf16.mxu0 0
    %988 = vmatpush1.bf16.msra.mxu0 0
    %989 = vmatprep.subr.bf16.mxu0 0
    %990 = vmatpush1.bf16.msra.mxu0 0
    %991 = vmatprep.subr.bf16.mxu0 0
    %992 = vmatpush1.bf16.msra.mxu0 0
    %993 = vmatprep.subr.bf16.mxu0 0
    %994 = vmatpush1.bf16.msra.mxu0 0
    %995 = vmatprep.subr.bf16.mxu0 0
    %996 = vmatpush1.bf16.msra.mxu0 0
    %997 = vmatprep.mubr.bf16.mxu0 0
    %998 = vmatmul.mubr.bf16.gmra.mrb[0].mxu0 %v855
    %v999 = vpop.f32.mrb[0].mxu0
    %v1000 = vadd.f32 %v767, %v999
    %v1001 = vpop.f32.mrb[0].mxu0
    %v1002 = vadd.f32 %v767, %v1001
    %v1003 = vpop.f32.mrb[0].mxu0
    %v1004 = vadd.f32 %v772, %v1003
    %v1005 = vpop.f32.mrb[0].mxu0
    %v1006 = vadd.f32 %v772, %v1005
    %1007 = vmatprep.mubr.bf16.mxu0 0
    %1008 = vmatmul.mubr.bf16.gmra.mrb[0].mxu0 %v858
    %v1009 = vpop.f32.mrb[0].mxu0
    %v1010 = vadd.f32 %v777, %v1009
    %v1011 = vpop.f32.mrb[0].mxu0
    %v1012 = vadd.f32 %v777, %v1011
    %v1013 = vpop.f32.mrb[0].mxu0
    %v1014 = vadd.f32 %v782, %v1013
    %v1015 = vpop.f32.mrb[0].mxu0
    %v1016 = vadd.f32 %v782, %v1015
    %1017 = vmatprep.mubr.bf16.mxu0 0
    %1018 = vmatmul.mubr.bf16.gmra.mrb[0].mxu0 %v861
    %v1019 = vpop.f32.mrb[0].mxu0
    %v1020 = vadd.f32 %v787, %v1019
    %v1021 = vpop.f32.mrb[0].mxu0
    %v1022 = vadd.f32 %v787, %v1021
    %v1023 = vpop.f32.mrb[0].mxu0
    %v1024 = vadd.f32 %v792, %v1023
    %v1025 = vpop.f32.mrb[0].mxu0
    %v1026 = vadd.f32 %v792, %v1025
    %1027 = vmatprep.mubr.bf16.mxu0 0
    %1028 = vmatmul.mubr.bf16.gmra.mrb[0].mxu0 %v864
    %v1029 = vpop.f32.mrb[0].mxu0
    %v1030 = vadd.f32 %v797, %v1029
    %v1031 = vpop.f32.mrb[0].mxu0
    %v1032 = vadd.f32 %v797, %v1031
    %v1033 = vpop.f32.mrb[0].mxu0
    %v1034 = vadd.f32 %v802, %v1033
    %v1035 = vpop.f32.mrb[0].mxu0
    %v1036 = vadd.f32 %v802, %v1035
    %1037 = vmatprep.mubr.bf16.mxu0 0
    %1038 = vmatmul.mubr.bf16.gmra.mrb[0].mxu0 %v867
    %v1039 = vpop.f32.mrb[0].mxu0
    %v1040 = vadd.f32 %v807, %v1039
    %v1041 = vpop.f32.mrb[0].mxu0
    %v1042 = vadd.f32 %v807, %v1041
    %v1043 = vpop.f32.mrb[0].mxu0
    %v1044 = vadd.f32 %v812, %v1043
    %v1045 = vpop.f32.mrb[0].mxu0
    %v1046 = vadd.f32 %v812, %v1045
    %1047 = vmatprep.mubr.bf16.mxu0 0
    %1048 = vmatmul.mubr.bf16.gmra.mrb[0].mxu0 %v870
    %v1049 = vpop.f32.mrb[0].mxu0
    %v1050 = vadd.f32 %v817, %v1049
    %v1051 = vpop.f32.mrb[0].mxu0
    %v1052 = vadd.f32 %v817, %v1051
    %v1053 = vpop.f32.mrb[0].mxu0
    %v1054 = vadd.f32 %v822, %v1053
    %v1055 = vpop.f32.mrb[0].mxu0
    %v1056 = vadd.f32 %v822, %v1055
    %1057 = vdwg.mxu0
    %1058 = vmatprep.subr.bf16.mxu0 0
    %1059 = vmatpush1.bf16.msra.mxu0 %v758
    %1060 = vmatprep.subr.bf16.mxu0 0
    %1061 = vmatpush1.bf16.msra.mxu0 %v763
    %1062 = vmatprep.subr.bf16.mxu0 0
    %1063 = vmatpush1.bf16.msra.mxu0 0
    %1064 = vmatprep.subr.bf16.mxu0 0
    %1065 = vmatpush1.bf16.msra.mxu0 0
    %1066 = vmatprep.subr.bf16.mxu0 0
    %1067 = vmatpush1.bf16.msra.mxu0 0
    %1068 = vmatprep.subr.bf16.mxu0 0
    %1069 = vmatpush1.bf16.msra.mxu0 0
    %1070 = vmatprep.subr.bf16.mxu0 0
    %1071 = vmatpush1.bf16.msra.mxu0 0
    %1072 = vmatprep.subr.bf16.mxu0 0
    %1073 = vmatpush1.bf16.msra.mxu0 0
    %1074 = vmatprep.subr.bf16.mxu0 0
    %1075 = vmatpush1.bf16.msra.mxu0 0
    %1076 = vmatprep.subr.bf16.mxu0 0
    %1077 = vmatpush1.bf16.msra.mxu0 0
    %1078 = vmatprep.subr.bf16.mxu0 0
    %1079 = vmatpush1.bf16.msra.mxu0 0
    %1080 = vmatprep.subr.bf16.mxu0 0
    %1081 = vmatpush1.bf16.msra.mxu0 0
    %1082 = vmatprep.subr.bf16.mxu0 0
    %1083 = vmatpush1.bf16.msra.mxu0 0
    %1084 = vmatprep.subr.bf16.mxu0 0
    %1085 = vmatpush1.bf16.msra.mxu0 0
    %1086 = vmatprep.subr.bf16.mxu0 0
    %1087 = vmatpush1.bf16.msra.mxu0 0
    %1088 = vmatprep.subr.bf16.mxu0 0
    %1089 = vmatpush1.bf16.msra.mxu0 0
    %1090 = vmatprep.mubr.bf16.mxu0 0
    %1091 = vmatmul.mubr.bf16.gmra.mrb[0].mxu0 %v855
    %v1092 = vpop.f32.mrb[0].mxu0
    %v1093 = vadd.f32 %v767, %v1092
    %v1094 = vpop.f32.mrb[0].mxu0
    %v1095 = vpop.f32.mrb[0].mxu0
    %v1096 = vadd.f32 %v772, %v1095
    %v1097 = vpop.f32.mrb[0].mxu0
    %1098 = vmatprep.mubr.bf16.mxu0 0
    %1099 = vmatmul.mubr.bf16.gmra.mrb[0].mxu0 %v858
    %v1100 = vpop.f32.mrb[0].mxu0
    %v1101 = vadd.f32 %v777, %v1100
    %v1102 = vpop.f32.mrb[0].mxu0
    %v1103 = vpop.f32.mrb[0].mxu0
    %v1104 = vadd.f32 %v782, %v1103
    %v1105 = vpop.f32.mrb[0].mxu0
    %1106 = vmatprep.mubr.bf16.mxu0 0
    %1107 = vmatmul.mubr.bf16.gmra.mrb[0].mxu0 %v861
    %v1108 = vpop.f32.mrb[0].mxu0
    %v1109 = vadd.f32 %v787, %v1108
    %v1110 = vpop.f32.mrb[0].mxu0
    %v1111 = vpop.f32.mrb[0].mxu0
    %v1112 = vadd.f32 %v792, %v1111
    %v1113 = vpop.f32.mrb[0].mxu0
    %1114 = vmatprep.mubr.bf16.mxu0 0
    %1115 = vmatmul.mubr.bf16.gmra.mrb[0].mxu0 %v864
    %v1116 = vpop.f32.mrb[0].mxu0
    %v1117 = vadd.f32 %v797, %v1116
    %v1118 = vpop.f32.mrb[0].mxu0
    %v1119 = vpop.f32.mrb[0].mxu0
    %v1120 = vadd.f32 %v802, %v1119
    %v1121 = vpop.f32.mrb[0].mxu0
    %1122 = vmatprep.mubr.bf16.mxu0 0
    %1123 = vmatmul.mubr.bf16.gmra.mrb[0].mxu0 %v867
    %v1124 = vpop.f32.mrb[0].mxu0
    %v1125 = vadd.f32 %v807, %v1124
    %v1126 = vpop.f32.mrb[0].mxu0
    %v1127 = vpop.f32.mrb[0].mxu0
    %v1128 = vadd.f32 %v812, %v1127
    %v1129 = vpop.f32.mrb[0].mxu0
    %1130 = vmatprep.mubr.bf16.mxu0 0
    %1131 = vmatmul.mubr.bf16.gmra.mrb[0].mxu0 %v870
    %v1132 = vpop.f32.mrb[0].mxu0
    %v1133 = vadd.f32 %v817, %v1132
    %v1134 = vpop.f32.mrb[0].mxu0
    %v1135 = vpop.f32.mrb[0].mxu0
    %v1136 = vadd.f32 %v822, %v1135
    %v1137 = vpop.f32.mrb[0].mxu0
    %1138 = vdwg.mxu0
    %v1139 = vmul.f32 %v907, %v927
    %v1140 = vmul.f32 %v911, %v931
    %v1141 = vmul.f32 %v917, %v937
    %v1142 = vmul.f32 %v921, %v941
    %v1143 = vrot.slane %v1139, 4
    %v1144 = vadd.f32 %v1139, %v1143
    %v1145 = vrot.slane %v1144, 2
    %v1146 = vadd.f32 %v1144, %v1145
    %v1147 = vrot.slane %v1146, 1
    %v1148 = vadd.f32 %v1146, %v1147
    %v1149 = vrot.slane %v1140, 4
    %v1150 = vadd.f32 %v1140, %v1149
    %v1151 = vrot.slane %v1150, 2
    %v1152 = vadd.f32 %v1150, %v1151
    %v1153 = vrot.slane %v1152, 1
    %v1154 = vadd.f32 %v1152, %v1153
    %v1155 = vrot.slane %v1141, 4
    %v1156 = vadd.f32 %v1141, %v1155
    %v1157 = vrot.slane %v1156, 2
    %v1158 = vadd.f32 %v1156, %v1157
    %v1159 = vrot.slane %v1158, 1
    %v1160 = vadd.f32 %v1158, %v1159
    %v1161 = vrot.slane %v1142, 4
    %v1162 = vadd.f32 %v1142, %v1161
    %v1163 = vrot.slane %v1162, 2
    %v1164 = vadd.f32 %v1162, %v1163
    %v1165 = vrot.slane %v1164, 1
    %v1166 = vadd.f32 %v1164, %v1165
    %v1167 = vmul.f32 %v907, %v929
    %v1168 = vmul.f32 %v911, %v933
    %v1169 = vmul.f32 %v917, %v939
    %v1170 = vmul.f32 %v921, %v943
    %v1171 = vrot.slane %v1167, 4
    %v1172 = vadd.f32 %v1167, %v1171
    %v1173 = vrot.slane %v1172, 2
    %v1174 = vadd.f32 %v1172, %v1173
    %v1175 = vrot.slane %v1174, 1
    %v1176 = vadd.f32 %v1174, %v1175
    %v1177 = vrot.slane %v1168, 4
    %v1178 = vadd.f32 %v1168, %v1177
    %v1179 = vrot.slane %v1178, 2
    %v1180 = vadd.f32 %v1178, %v1179
    %v1181 = vrot.slane %v1180, 1
    %v1182 = vadd.f32 %v1180, %v1181
    %v1183 = vrot.slane %v1169, 4
    %v1184 = vadd.f32 %v1169, %v1183
    %v1185 = vrot.slane %v1184, 2
    %v1186 = vadd.f32 %v1184, %v1185
    %v1187 = vrot.slane %v1186, 1
    %v1188 = vadd.f32 %v1186, %v1187
    %v1189 = vrot.slane %v1170, 4
    %v1190 = vadd.f32 %v1170, %v1189
    %v1191 = vrot.slane %v1190, 2
    %v1192 = vadd.f32 %v1190, %v1191
    %v1193 = vrot.slane %v1192, 1
    %v1194 = vadd.f32 %v1192, %v1193
    %v1195 = vmul.f32 %v907, %v1020
    %v1196 = vmul.f32 %v911, %v1024
    %v1197 = vmul.f32 %v917, %v1030
    %v1198 = vmul.f32 %v921, %v1034
    %v1199 = vrot.slane %v1195, 4
    %v1200 = vadd.f32 %v1195, %v1199
    %v1201 = vrot.slane %v1200, 2
    %v1202 = vadd.f32 %v1200, %v1201
    %v1203 = vrot.slane %v1202, 1
    %v1204 = vadd.f32 %v1202, %v1203
    %v1205 = vrot.slane %v1196, 4
    %v1206 = vadd.f32 %v1196, %v1205
    %v1207 = vrot.slane %v1206, 2
    %v1208 = vadd.f32 %v1206, %v1207
    %v1209 = vrot.slane %v1208, 1
    %v1210 = vadd.f32 %v1208, %v1209
    %v1211 = vrot.slane %v1197, 4
    %v1212 = vadd.f32 %v1197, %v1211
    %v1213 = vrot.slane %v1212, 2
    %v1214 = vadd.f32 %v1212, %v1213
    %v1215 = vrot.slane %v1214, 1
    %v1216 = vadd.f32 %v1214, %v1215
    %v1217 = vrot.slane %v1198, 4
    %v1218 = vadd.f32 %v1198, %v1217
    %v1219 = vrot.slane %v1218, 2
    %v1220 = vadd.f32 %v1218, %v1219
    %v1221 = vrot.slane %v1220, 1
    %v1222 = vadd.f32 %v1220, %v1221
    %v1223 = vmul.f32 %v907, %v1022
    %v1224 = vmul.f32 %v911, %v1026
    %v1225 = vmul.f32 %v917, %v1032
    %v1226 = vmul.f32 %v921, %v1036
    %v1227 = vrot.slane %v1223, 4
    %v1228 = vadd.f32 %v1223, %v1227
    %v1229 = vrot.slane %v1228, 2
    %v1230 = vadd.f32 %v1228, %v1229
    %v1231 = vrot.slane %v1230, 1
    %v1232 = vadd.f32 %v1230, %v1231
    %v1233 = vrot.slane %v1224, 4
    %v1234 = vadd.f32 %v1224, %v1233
    %v1235 = vrot.slane %v1234, 2
    %v1236 = vadd.f32 %v1234, %v1235
    %v1237 = vrot.slane %v1236, 1
    %v1238 = vadd.f32 %v1236, %v1237
    %v1239 = vrot.slane %v1225, 4
    %v1240 = vadd.f32 %v1225, %v1239
    %v1241 = vrot.slane %v1240, 2
    %v1242 = vadd.f32 %v1240, %v1241
    %v1243 = vrot.slane %v1242, 1
    %v1244 = vadd.f32 %v1242, %v1243
    %v1245 = vrot.slane %v1226, 4
    %v1246 = vadd.f32 %v1226, %v1245
    %v1247 = vrot.slane %v1246, 2
    %v1248 = vadd.f32 %v1246, %v1247
    %v1249 = vrot.slane %v1248, 1
    %v1250 = vadd.f32 %v1248, %v1249
    %v1251 = vmul.f32 %v907, %v1109
    %v1252 = vmul.f32 %v911, %v1112
    %v1253 = vmul.f32 %v917, %v1117
    %v1254 = vmul.f32 %v921, %v1120
    %v1255 = vrot.slane %v1251, 4
    %v1256 = vadd.f32 %v1251, %v1255
    %v1257 = vrot.slane %v1256, 2
    %v1258 = vadd.f32 %v1256, %v1257
    %v1259 = vrot.slane %v1258, 1
    %v1260 = vadd.f32 %v1258, %v1259
    %v1261 = vrot.slane %v1252, 4
    %v1262 = vadd.f32 %v1252, %v1261
    %v1263 = vrot.slane %v1262, 2
    %v1264 = vadd.f32 %v1262, %v1263
    %v1265 = vrot.slane %v1264, 1
    %v1266 = vadd.f32 %v1264, %v1265
    %v1267 = vrot.slane %v1253, 4
    %v1268 = vadd.f32 %v1253, %v1267
    %v1269 = vrot.slane %v1268, 2
    %v1270 = vadd.f32 %v1268, %v1269
    %v1271 = vrot.slane %v1270, 1
    %v1272 = vadd.f32 %v1270, %v1271
    %v1273 = vrot.slane %v1254, 4
    %v1274 = vadd.f32 %v1254, %v1273
    %v1275 = vrot.slane %v1274, 2
    %v1276 = vadd.f32 %v1274, %v1275
    %v1277 = vrot.slane %v1276, 1
    %v1278 = vadd.f32 %v1276, %v1277
    %v1279 = vmax.f32 %v1148, %v1176
    %v1280 = vmax.f32 %v1154, %v1182
    %v1281 = vmax.f32 %v1160, %v1188
    %v1282 = vmax.f32 %v1166, %v1194
    %v1283 = vmax.f32 %v1279, %v1204
    %v1284 = vmax.f32 %v1280, %v1210
    %v1285 = vmax.f32 %v1281, %v1216
    %v1286 = vmax.f32 %v1282, %v1222
    %v1287 = vmax.f32 %v1283, %v1232
    %v1288 = vmax.f32 %v1284, %v1238
    %v1289 = vmax.f32 %v1285, %v1244
    %v1290 = vmax.f32 %v1286, %v1250
    %v1291 = vmax.f32 %v1287, %v1260
    %v1292 = vmax.f32 %v1288, %v1266
    %v1293 = vmax.f32 %v1289, %v1272
    %v1294 = vmax.f32 %v1290, %v1278
    %v1295 = vsub.f32 %v1148, %v1291
    %v1296 = vsub.f32 %v1154, %v1292
    %v1297 = vsub.f32 %v1160, %v1293
    %v1298 = vsub.f32 %v1166, %v1294
    %v1299 = vmul.f32 %v1295, 1.442695
    %v1300 = vpow.pop %v1299
    %v1301 = vmul.f32 %v1296, 1.442695
    %v1302 = vpow.pop %v1301
    %v1303 = vmul.f32 %v1297, 1.442695
    %v1304 = vpow.pop %v1303
    %v1305 = vmul.f32 %v1298, 1.442695
    %v1306 = vpow.pop %v1305
    %v1307 = vsub.f32 %v1176, %v1291
    %v1308 = vsub.f32 %v1182, %v1292
    %v1309 = vsub.f32 %v1188, %v1293
    %v1310 = vsub.f32 %v1194, %v1294
    %v1311 = vmul.f32 %v1307, 1.442695
    %v1312 = vpow.pop %v1311
    %v1313 = vmul.f32 %v1308, 1.442695
    %v1314 = vpow.pop %v1313
    %v1315 = vmul.f32 %v1309, 1.442695
    %v1316 = vpow.pop %v1315
    %v1317 = vmul.f32 %v1310, 1.442695
    %v1318 = vpow.pop %v1317
    %v1319 = vsub.f32 %v1204, %v1291
    %v1320 = vsub.f32 %v1210, %v1292
    %v1321 = vsub.f32 %v1216, %v1293
    %v1322 = vsub.f32 %v1222, %v1294
    %v1323 = vmul.f32 %v1319, 1.442695
    %v1324 = vpow.pop %v1323
    %v1325 = vmul.f32 %v1320, 1.442695
    %v1326 = vpow.pop %v1325
    %v1327 = vmul.f32 %v1321, 1.442695
    %v1328 = vpow.pop %v1327
    %v1329 = vmul.f32 %v1322, 1.442695
    %v1330 = vpow.pop %v1329
    %v1331 = vsub.f32 %v1232, %v1291
    %v1332 = vsub.f32 %v1238, %v1292
    %v1333 = vsub.f32 %v1244, %v1293
    %v1334 = vsub.f32 %v1250, %v1294
    %v1335 = vmul.f32 %v1331, 1.442695
    %v1336 = vpow.pop %v1335
    %v1337 = vmul.f32 %v1332, 1.442695
    %v1338 = vpow.pop %v1337
    %v1339 = vmul.f32 %v1333, 1.442695
    %v1340 = vpow.pop %v1339
    %v1341 = vmul.f32 %v1334, 1.442695
    %v1342 = vpow.pop %v1341
    %v1343 = vsub.f32 %v1260, %v1291
    %v1344 = vsub.f32 %v1266, %v1292
    %v1345 = vsub.f32 %v1272, %v1293
    %v1346 = vsub.f32 %v1278, %v1294
    %v1347 = vmul.f32 %v1343, 1.442695
    %v1348 = vpow.pop %v1347
    %v1349 = vmul.f32 %v1344, 1.442695
    %v1350 = vpow.pop %v1349
    %v1351 = vmul.f32 %v1345, 1.442695
    %v1352 = vpow.pop %v1351
    %v1353 = vmul.f32 %v1346, 1.442695
    %v1354 = vpow.pop %v1353
    %v1355 = vadd.f32 %v1300, %v1312
    %v1356 = vadd.f32 %v1302, %v1314
    %v1357 = vadd.f32 %v1304, %v1316
    %v1358 = vadd.f32 %v1306, %v1318
    %v1359 = vadd.f32 %v1355, %v1324
    %v1360 = vadd.f32 %v1356, %v1326
    %v1361 = vadd.f32 %v1357, %v1328
    %v1362 = vadd.f32 %v1358, %v1330
    %v1363 = vadd.f32 %v1359, %v1336
    %v1364 = vadd.f32 %v1360, %v1338
    %v1365 = vadd.f32 %v1361, %v1340
    %v1366 = vadd.f32 %v1362, %v1342
    %v1367 = vadd.f32 %v1363, %v1348
    %v1368 = vadd.f32 %v1364, %v1350
    %v1369 = vadd.f32 %v1365, %v1352
    %v1370 = vadd.f32 %v1366, %v1354
    %v1371 = vrcp.pop %v1367
    %v1372 = vrcp.pop %v1368
    %v1373 = vrcp.pop %v1369
    %v1374 = vrcp.pop %v1370
    %v1375 = vmul.f32 %v1300, %v1371
    %v1376 = vmul.f32 %v1302, %v1372
    %v1377 = vmul.f32 %v1304, %v1373
    %v1378 = vmul.f32 %v1306, %v1374
    %v1379 = vmul.f32 %v1375, %v947
    %v1380 = vmul.f32 %v1376, %v951
    %v1381 = vmul.f32 %v1377, %v957
    %v1382 = vmul.f32 %v1378, %v961
    %v1383 = vadd.f32 %v1379, 0.0
    %v1384 = vadd.f32 %v1380, 0.0
    %v1385 = vadd.f32 %v1381, 0.0
    %v1386 = vadd.f32 %v1382, 0.0
    %v1387 = vmul.f32 %v1312, %v1371
    %v1388 = vmul.f32 %v1314, %v1372
    %v1389 = vmul.f32 %v1316, %v1373
    %v1390 = vmul.f32 %v1318, %v1374
    %v1391 = vmul.f32 %v1387, %v949
    %v1392 = vmul.f32 %v1388, %v953
    %v1393 = vmul.f32 %v1389, %v959
    %v1394 = vmul.f32 %v1390, %v963
    %v1395 = vadd.f32 %v1383, %v1391
    %v1396 = vadd.f32 %v1384, %v1392
    %v1397 = vadd.f32 %v1385, %v1393
    %v1398 = vadd.f32 %v1386, %v1394
    %v1399 = vmul.f32 %v1324, %v1371
    %v1400 = vmul.f32 %v1326, %v1372
    %v1401 = vmul.f32 %v1328, %v1373
    %v1402 = vmul.f32 %v1330, %v1374
    %v1403 = vmul.f32 %v1399, %v1040
    %v1404 = vmul.f32 %v1400, %v1044
    %v1405 = vmul.f32 %v1401, %v1050
    %v1406 = vmul.f32 %v1402, %v1054
    %v1407 = vadd.f32 %v1395, %v1403
    %v1408 = vadd.f32 %v1396, %v1404
    %v1409 = vadd.f32 %v1397, %v1405
    %v1410 = vadd.f32 %v1398, %v1406
    %v1411 = vmul.f32 %v1336, %v1371
    %v1412 = vmul.f32 %v1338, %v1372
    %v1413 = vmul.f32 %v1340, %v1373
    %v1414 = vmul.f32 %v1342, %v1374
    %v1415 = vmul.f32 %v1411, %v1042
    %v1416 = vmul.f32 %v1412, %v1046
    %v1417 = vmul.f32 %v1413, %v1052
    %v1418 = vmul.f32 %v1414, %v1056
    %v1419 = vadd.f32 %v1407, %v1415
    %v1420 = vadd.f32 %v1408, %v1416
    %v1421 = vadd.f32 %v1409, %v1417
    %v1422 = vadd.f32 %v1410, %v1418
    %v1423 = vmul.f32 %v1348, %v1371
    %v1424 = vmul.f32 %v1350, %v1372
    %v1425 = vmul.f32 %v1352, %v1373
    %v1426 = vmul.f32 %v1354, %v1374
    %v1427 = vmul.f32 %v1423, %v1125
    %v1428 = vmul.f32 %v1424, %v1128
    %v1429 = vmul.f32 %v1425, %v1133
    %v1430 = vmul.f32 %v1426, %v1136
    %v1431 = vadd.f32 %v1419, %v1427
    %v1432 = vadd.f32 %v1420, %v1428
    %v1433 = vadd.f32 %v1421, %v1429
    %v1434 = vadd.f32 %v1422, %v1430
    %v1435 = vmul.f32 %v909, %v927
    %v1436 = vmul.f32 %v913, %v931
    %v1437 = vmul.f32 %v919, %v937
    %v1438 = vmul.f32 %v923, %v941
    %v1439 = vrot.slane %v1435, 4
    %v1440 = vadd.f32 %v1435, %v1439
    %v1441 = vrot.slane %v1440, 2
    %v1442 = vadd.f32 %v1440, %v1441
    %v1443 = vrot.slane %v1442, 1
    %v1444 = vadd.f32 %v1442, %v1443
    %v1445 = vrot.slane %v1436, 4
    %v1446 = vadd.f32 %v1436, %v1445
    %v1447 = vrot.slane %v1446, 2
    %v1448 = vadd.f32 %v1446, %v1447
    %v1449 = vrot.slane %v1448, 1
    %v1450 = vadd.f32 %v1448, %v1449
    %v1451 = vrot.slane %v1437, 4
    %v1452 = vadd.f32 %v1437, %v1451
    %v1453 = vrot.slane %v1452, 2
    %v1454 = vadd.f32 %v1452, %v1453
    %v1455 = vrot.slane %v1454, 1
    %v1456 = vadd.f32 %v1454, %v1455
    %v1457 = vrot.slane %v1438, 4
    %v1458 = vadd.f32 %v1438, %v1457
    %v1459 = vrot.slane %v1458, 2
    %v1460 = vadd.f32 %v1458, %v1459
    %v1461 = vrot.slane %v1460, 1
    %v1462 = vadd.f32 %v1460, %v1461
    %v1463 = vmul.f32 %v909, %v929
    %v1464 = vmul.f32 %v913, %v933
    %v1465 = vmul.f32 %v919, %v939
    %v1466 = vmul.f32 %v923, %v943
    %v1467 = vrot.slane %v1463, 4
    %v1468 = vadd.f32 %v1463, %v1467
    %v1469 = vrot.slane %v1468, 2
    %v1470 = vadd.f32 %v1468, %v1469
    %v1471 = vrot.slane %v1470, 1
    %v1472 = vadd.f32 %v1470, %v1471
    %v1473 = vrot.slane %v1464, 4
    %v1474 = vadd.f32 %v1464, %v1473
    %v1475 = vrot.slane %v1474, 2
    %v1476 = vadd.f32 %v1474, %v1475
    %v1477 = vrot.slane %v1476, 1
    %v1478 = vadd.f32 %v1476, %v1477
    %v1479 = vrot.slane %v1465, 4
    %v1480 = vadd.f32 %v1465, %v1479
    %v1481 = vrot.slane %v1480, 2
    %v1482 = vadd.f32 %v1480, %v1481
    %v1483 = vrot.slane %v1482, 1
    %v1484 = vadd.f32 %v1482, %v1483
    %v1485 = vrot.slane %v1466, 4
    %v1486 = vadd.f32 %v1466, %v1485
    %v1487 = vrot.slane %v1486, 2
    %v1488 = vadd.f32 %v1486, %v1487
    %v1489 = vrot.slane %v1488, 1
    %v1490 = vadd.f32 %v1488, %v1489
    %v1491 = vmul.f32 %v909, %v1020
    %v1492 = vmul.f32 %v913, %v1024
    %v1493 = vmul.f32 %v919, %v1030
    %v1494 = vmul.f32 %v923, %v1034
    %v1495 = vrot.slane %v1491, 4
    %v1496 = vadd.f32 %v1491, %v1495
    %v1497 = vrot.slane %v1496, 2
    %v1498 = vadd.f32 %v1496, %v1497
    %v1499 = vrot.slane %v1498, 1
    %v1500 = vadd.f32 %v1498, %v1499
    %v1501 = vrot.slane %v1492, 4
    %v1502 = vadd.f32 %v1492, %v1501
    %v1503 = vrot.slane %v1502, 2
    %v1504 = vadd.f32 %v1502, %v1503
    %v1505 = vrot.slane %v1504, 1
    %v1506 = vadd.f32 %v1504, %v1505
    %v1507 = vrot.slane %v1493, 4
    %v1508 = vadd.f32 %v1493, %v1507
    %v1509 = vrot.slane %v1508, 2
    %v1510 = vadd.f32 %v1508, %v1509
    %v1511 = vrot.slane %v1510, 1
    %v1512 = vadd.f32 %v1510, %v1511
    %v1513 = vrot.slane %v1494, 4
    %v1514 = vadd.f32 %v1494, %v1513
    %v1515 = vrot.slane %v1514, 2
    %v1516 = vadd.f32 %v1514, %v1515
    %v1517 = vrot.slane %v1516, 1
    %v1518 = vadd.f32 %v1516, %v1517
    %v1519 = vmul.f32 %v909, %v1022
    %v1520 = vmul.f32 %v913, %v1026
    %v1521 = vmul.f32 %v919, %v1032
    %v1522 = vmul.f32 %v923, %v1036
    %v1523 = vrot.slane %v1519, 4
    %v1524 = vadd.f32 %v1519, %v1523
    %v1525 = vrot.slane %v1524, 2
    %v1526 = vadd.f32 %v1524, %v1525
    %v1527 = vrot.slane %v1526, 1
    %v1528 = vadd.f32 %v1526, %v1527
    %v1529 = vrot.slane %v1520, 4
    %v1530 = vadd.f32 %v1520, %v1529
    %v1531 = vrot.slane %v1530, 2
    %v1532 = vadd.f32 %v1530, %v1531
    %v1533 = vrot.slane %v1532, 1
    %v1534 = vadd.f32 %v1532, %v1533
    %v1535 = vrot.slane %v1521, 4
    %v1536 = vadd.f32 %v1521, %v1535
    %v1537 = vrot.slane %v1536, 2
    %v1538 = vadd.f32 %v1536, %v1537
    %v1539 = vrot.slane %v1538, 1
    %v1540 = vadd.f32 %v1538, %v1539
    %v1541 = vrot.slane %v1522, 4
    %v1542 = vadd.f32 %v1522, %v1541
    %v1543 = vrot.slane %v1542, 2
    %v1544 = vadd.f32 %v1542, %v1543
    %v1545 = vrot.slane %v1544, 1
    %v1546 = vadd.f32 %v1544, %v1545
    %v1547 = vmul.f32 %v909, %v1109
    %v1548 = vmul.f32 %v913, %v1112
    %v1549 = vmul.f32 %v919, %v1117
    %v1550 = vmul.f32 %v923, %v1120
    %v1551 = vrot.slane %v1547, 4
    %v1552 = vadd.f32 %v1547, %v1551
    %v1553 = vrot.slane %v1552, 2
    %v1554 = vadd.f32 %v1552, %v1553
    %v1555 = vrot.slane %v1554, 1
    %v1556 = vadd.f32 %v1554, %v1555
    %v1557 = vrot.slane %v1548, 4
    %v1558 = vadd.f32 %v1548, %v1557
    %v1559 = vrot.slane %v1558, 2
    %v1560 = vadd.f32 %v1558, %v1559
    %v1561 = vrot.slane %v1560, 1
    %v1562 = vadd.f32 %v1560, %v1561
    %v1563 = vrot.slane %v1549, 4
    %v1564 = vadd.f32 %v1549, %v1563
    %v1565 = vrot.slane %v1564, 2
    %v1566 = vadd.f32 %v1564, %v1565
    %v1567 = vrot.slane %v1566, 1
    %v1568 = vadd.f32 %v1566, %v1567
    %v1569 = vrot.slane %v1550, 4
    %v1570 = vadd.f32 %v1550, %v1569
    %v1571 = vrot.slane %v1570, 2
    %v1572 = vadd.f32 %v1570, %v1571
    %v1573 = vrot.slane %v1572, 1
    %v1574 = vadd.f32 %v1572, %v1573
    %v1575 = vmax.f32 %v1444, %v1472
    %v1576 = vmax.f32 %v1450, %v1478
    %v1577 = vmax.f32 %v1456, %v1484
    %v1578 = vmax.f32 %v1462, %v1490
    %v1579 = vmax.f32 %v1575, %v1500
    %v1580 = vmax.f32 %v1576, %v1506
    %v1581 = vmax.f32 %v1577, %v1512
    %v1582 = vmax.f32 %v1578, %v1518
    %v1583 = vmax.f32 %v1579, %v1528
    %v1584 = vmax.f32 %v1580, %v1534
    %v1585 = vmax.f32 %v1581, %v1540
    %v1586 = vmax.f32 %v1582, %v1546
    %v1587 = vmax.f32 %v1583, %v1556
    %v1588 = vmax.f32 %v1584, %v1562
    %v1589 = vmax.f32 %v1585, %v1568
    %v1590 = vmax.f32 %v1586, %v1574
    %v1591 = vsub.f32 %v1444, %v1587
    %v1592 = vsub.f32 %v1450, %v1588
    %v1593 = vsub.f32 %v1456, %v1589
    %v1594 = vsub.f32 %v1462, %v1590
    %v1595 = vmul.f32 %v1591, 1.442695
    %v1596 = vpow.pop %v1595
    %v1597 = vmul.f32 %v1592, 1.442695
    %v1598 = vpow.pop %v1597
    %v1599 = vmul.f32 %v1593, 1.442695
    %v1600 = vpow.pop %v1599
    %v1601 = vmul.f32 %v1594, 1.442695
    %v1602 = vpow.pop %v1601
    %v1603 = vsub.f32 %v1472, %v1587
    %v1604 = vsub.f32 %v1478, %v1588
    %v1605 = vsub.f32 %v1484, %v1589
    %v1606 = vsub.f32 %v1490, %v1590
    %v1607 = vmul.f32 %v1603, 1.442695
    %v1608 = vpow.pop %v1607
    %v1609 = vmul.f32 %v1604, 1.442695
    %v1610 = vpow.pop %v1609
    %v1611 = vmul.f32 %v1605, 1.442695
    %v1612 = vpow.pop %v1611
    %v1613 = vmul.f32 %v1606, 1.442695
    %v1614 = vpow.pop %v1613
    %v1615 = vsub.f32 %v1500, %v1587
    %v1616 = vsub.f32 %v1506, %v1588
    %v1617 = vsub.f32 %v1512, %v1589
    %v1618 = vsub.f32 %v1518, %v1590
    %v1619 = vmul.f32 %v1615, 1.442695
    %v1620 = vpow.pop %v1619
    %v1621 = vmul.f32 %v1616, 1.442695
    %v1622 = vpow.pop %v1621
    %v1623 = vmul.f32 %v1617, 1.442695
    %v1624 = vpow.pop %v1623
    %v1625 = vmul.f32 %v1618, 1.442695
    %v1626 = vpow.pop %v1625
    %v1627 = vsub.f32 %v1528, %v1587
    %v1628 = vsub.f32 %v1534, %v1588
    %v1629 = vsub.f32 %v1540, %v1589
    %v1630 = vsub.f32 %v1546, %v1590
    %v1631 = vmul.f32 %v1627, 1.442695
    %v1632 = vpow.pop %v1631
    %v1633 = vmul.f32 %v1628, 1.442695
    %v1634 = vpow.pop %v1633
    %v1635 = vmul.f32 %v1629, 1.442695
    %v1636 = vpow.pop %v1635
    %v1637 = vmul.f32 %v1630, 1.442695
    %v1638 = vpow.pop %v1637
    %v1639 = vsub.f32 %v1556, %v1587
    %v1640 = vsub.f32 %v1562, %v1588
    %v1641 = vsub.f32 %v1568, %v1589
    %v1642 = vsub.f32 %v1574, %v1590
    %v1643 = vmul.f32 %v1639, 1.442695
    %v1644 = vpow.pop %v1643
    %v1645 = vmul.f32 %v1640, 1.442695
    %v1646 = vpow.pop %v1645
    %v1647 = vmul.f32 %v1641, 1.442695
    %v1648 = vpow.pop %v1647
    %v1649 = vmul.f32 %v1642, 1.442695
    %v1650 = vpow.pop %v1649
    %v1651 = vadd.f32 %v1596, %v1608
    %v1652 = vadd.f32 %v1598, %v1610
    %v1653 = vadd.f32 %v1600, %v1612
    %v1654 = vadd.f32 %v1602, %v1614
    %v1655 = vadd.f32 %v1651, %v1620
    %v1656 = vadd.f32 %v1652, %v1622
    %v1657 = vadd.f32 %v1653, %v1624
    %v1658 = vadd.f32 %v1654, %v1626
    %v1659 = vadd.f32 %v1655, %v1632
    %v1660 = vadd.f32 %v1656, %v1634
    %v1661 = vadd.f32 %v1657, %v1636
    %v1662 = vadd.f32 %v1658, %v1638
    %v1663 = vadd.f32 %v1659, %v1644
    %v1664 = vadd.f32 %v1660, %v1646
    %v1665 = vadd.f32 %v1661, %v1648
    %v1666 = vadd.f32 %v1662, %v1650
    %v1667 = vrcp.pop %v1663
    %v1668 = vrcp.pop %v1664
    %v1669 = vrcp.pop %v1665
    %v1670 = vrcp.pop %v1666
    %v1671 = vmul.f32 %v1596, %v1667
    %v1672 = vmul.f32 %v1598, %v1668
    %v1673 = vmul.f32 %v1600, %v1669
    %v1674 = vmul.f32 %v1602, %v1670
    %v1675 = vmul.f32 %v1671, %v947
    %v1676 = vmul.f32 %v1672, %v951
    %v1677 = vmul.f32 %v1673, %v957
    %v1678 = vmul.f32 %v1674, %v961
    %v1679 = vadd.f32 %v1675, 0.0
    %v1680 = vadd.f32 %v1676, 0.0
    %v1681 = vadd.f32 %v1677, 0.0
    %v1682 = vadd.f32 %v1678, 0.0
    %v1683 = vmul.f32 %v1608, %v1667
    %v1684 = vmul.f32 %v1610, %v1668
    %v1685 = vmul.f32 %v1612, %v1669
    %v1686 = vmul.f32 %v1614, %v1670
    %v1687 = vmul.f32 %v1683, %v949
    %v1688 = vmul.f32 %v1684, %v953
    %v1689 = vmul.f32 %v1685, %v959
    %v1690 = vmul.f32 %v1686, %v963
    %v1691 = vadd.f32 %v1679, %v1687
    %v1692 = vadd.f32 %v1680, %v1688
    %v1693 = vadd.f32 %v1681, %v1689
    %v1694 = vadd.f32 %v1682, %v1690
    %v1695 = vmul.f32 %v1620, %v1667
    %v1696 = vmul.f32 %v1622, %v1668
    %v1697 = vmul.f32 %v1624, %v1669
    %v1698 = vmul.f32 %v1626, %v1670
    %v1699 = vmul.f32 %v1695, %v1040
    %v1700 = vmul.f32 %v1696, %v1044
    %v1701 = vmul.f32 %v1697, %v1050
    %v1702 = vmul.f32 %v1698, %v1054
    %v1703 = vadd.f32 %v1691, %v1699
    %v1704 = vadd.f32 %v1692, %v1700
    %v1705 = vadd.f32 %v1693, %v1701
    %v1706 = vadd.f32 %v1694, %v1702
    %v1707 = vmul.f32 %v1632, %v1667
    %v1708 = vmul.f32 %v1634, %v1668
    %v1709 = vmul.f32 %v1636, %v1669
    %v1710 = vmul.f32 %v1638, %v1670
    %v1711 = vmul.f32 %v1707, %v1042
    %v1712 = vmul.f32 %v1708, %v1046
    %v1713 = vmul.f32 %v1709, %v1052
    %v1714 = vmul.f32 %v1710, %v1056
    %v1715 = vadd.f32 %v1703, %v1711
    %v1716 = vadd.f32 %v1704, %v1712
    %v1717 = vadd.f32 %v1705, %v1713
    %v1718 = vadd.f32 %v1706, %v1714
    %v1719 = vmul.f32 %v1644, %v1667
    %v1720 = vmul.f32 %v1646, %v1668
    %v1721 = vmul.f32 %v1648, %v1669
    %v1722 = vmul.f32 %v1650, %v1670
    %v1723 = vmul.f32 %v1719, %v1125
    %v1724 = vmul.f32 %v1720, %v1128
    %v1725 = vmul.f32 %v1721, %v1133
    %v1726 = vmul.f32 %v1722, %v1136
    %v1727 = vadd.f32 %v1715, %v1723
    %v1728 = vadd.f32 %v1716, %v1724
    %v1729 = vadd.f32 %v1717, %v1725
    %v1730 = vadd.f32 %v1718, %v1726
    %v1731 = vmul.f32 %v1000, %v927
    %v1732 = vmul.f32 %v1004, %v931
    %v1733 = vmul.f32 %v1010, %v937
    %v1734 = vmul.f32 %v1014, %v941
    %v1735 = vrot.slane %v1731, 4
    %v1736 = vadd.f32 %v1731, %v1735
    %v1737 = vrot.slane %v1736, 2
    %v1738 = vadd.f32 %v1736, %v1737
    %v1739 = vrot.slane %v1738, 1
    %v1740 = vadd.f32 %v1738, %v1739
    %v1741 = vrot.slane %v1732, 4
    %v1742 = vadd.f32 %v1732, %v1741
    %v1743 = vrot.slane %v1742, 2
    %v1744 = vadd.f32 %v1742, %v1743
    %v1745 = vrot.slane %v1744, 1
    %v1746 = vadd.f32 %v1744, %v1745
    %v1747 = vrot.slane %v1733, 4
    %v1748 = vadd.f32 %v1733, %v1747
    %v1749 = vrot.slane %v1748, 2
    %v1750 = vadd.f32 %v1748, %v1749
    %v1751 = vrot.slane %v1750, 1
    %v1752 = vadd.f32 %v1750, %v1751
    %v1753 = vrot.slane %v1734, 4
    %v1754 = vadd.f32 %v1734, %v1753
    %v1755 = vrot.slane %v1754, 2
    %v1756 = vadd.f32 %v1754, %v1755
    %v1757 = vrot.slane %v1756, 1
    %v1758 = vadd.f32 %v1756, %v1757
    %v1759 = vmul.f32 %v1000, %v929
    %v1760 = vmul.f32 %v1004, %v933
    %v1761 = vmul.f32 %v1010, %v939
    %v1762 = vmul.f32 %v1014, %v943
    %v1763 = vrot.slane %v1759, 4
    %v1764 = vadd.f32 %v1759, %v1763
    %v1765 = vrot.slane %v1764, 2
    %v1766 = vadd.f32 %v1764, %v1765
    %v1767 = vrot.slane %v1766, 1
    %v1768 = vadd.f32 %v1766, %v1767
    %v1769 = vrot.slane %v1760, 4
    %v1770 = vadd.f32 %v1760, %v1769
    %v1771 = vrot.slane %v1770, 2
    %v1772 = vadd.f32 %v1770, %v1771
    %v1773 = vrot.slane %v1772, 1
    %v1774 = vadd.f32 %v1772, %v1773
    %v1775 = vrot.slane %v1761, 4
    %v1776 = vadd.f32 %v1761, %v1775
    %v1777 = vrot.slane %v1776, 2
    %v1778 = vadd.f32 %v1776, %v1777
    %v1779 = vrot.slane %v1778, 1
    %v1780 = vadd.f32 %v1778, %v1779
    %v1781 = vrot.slane %v1762, 4
    %v1782 = vadd.f32 %v1762, %v1781
    %v1783 = vrot.slane %v1782, 2
    %v1784 = vadd.f32 %v1782, %v1783
    %v1785 = vrot.slane %v1784, 1
    %v1786 = vadd.f32 %v1784, %v1785
    %v1787 = vmul.f32 %v1000, %v1020
    %v1788 = vmul.f32 %v1004, %v1024
    %v1789 = vmul.f32 %v1010, %v1030
    %v1790 = vmul.f32 %v1014, %v1034
    %v1791 = vrot.slane %v1787, 4
    %v1792 = vadd.f32 %v1787, %v1791
    %v1793 = vrot.slane %v1792, 2
    %v1794 = vadd.f32 %v1792, %v1793
    %v1795 = vrot.slane %v1794, 1
    %v1796 = vadd.f32 %v1794, %v1795
    %v1797 = vrot.slane %v1788, 4
    %v1798 = vadd.f32 %v1788, %v1797
    %v1799 = vrot.slane %v1798, 2
    %v1800 = vadd.f32 %v1798, %v1799
    %v1801 = vrot.slane %v1800, 1
    %v1802 = vadd.f32 %v1800, %v1801
    %v1803 = vrot.slane %v1789, 4
    %v1804 = vadd.f32 %v1789, %v1803
    %v1805 = vrot.slane %v1804, 2
    %v1806 = vadd.f32 %v1804, %v1805
    %v1807 = vrot.slane %v1806, 1
    %v1808 = vadd.f32 %v1806, %v1807
    %v1809 = vrot.slane %v1790, 4
    %v1810 = vadd.f32 %v1790, %v1809
    %v1811 = vrot.slane %v1810, 2
    %v1812 = vadd.f32 %v1810, %v1811
    %v1813 = vrot.slane %v1812, 1
    %v1814 = vadd.f32 %v1812, %v1813
    %v1815 = vmul.f32 %v1000, %v1022
    %v1816 = vmul.f32 %v1004, %v1026
    %v1817 = vmul.f32 %v1010, %v1032
    %v1818 = vmul.f32 %v1014, %v1036
    %v1819 = vrot.slane %v1815, 4
    %v1820 = vadd.f32 %v1815, %v1819
    %v1821 = vrot.slane %v1820, 2
    %v1822 = vadd.f32 %v1820, %v1821
    %v1823 = vrot.slane %v1822, 1
    %v1824 = vadd.f32 %v1822, %v1823
    %v1825 = vrot.slane %v1816, 4
    %v1826 = vadd.f32 %v1816, %v1825
    %v1827 = vrot.slane %v1826, 2
    %v1828 = vadd.f32 %v1826, %v1827
    %v1829 = vrot.slane %v1828, 1
    %v1830 = vadd.f32 %v1828, %v1829
    %v1831 = vrot.slane %v1817, 4
    %v1832 = vadd.f32 %v1817, %v1831
    %v1833 = vrot.slane %v1832, 2
    %v1834 = vadd.f32 %v1832, %v1833
    %v1835 = vrot.slane %v1834, 1
    %v1836 = vadd.f32 %v1834, %v1835
    %v1837 = vrot.slane %v1818, 4
    %v1838 = vadd.f32 %v1818, %v1837
    %v1839 = vrot.slane %v1838, 2
    %v1840 = vadd.f32 %v1838, %v1839
    %v1841 = vrot.slane %v1840, 1
    %v1842 = vadd.f32 %v1840, %v1841
    %v1843 = vmul.f32 %v1000, %v1109
    %v1844 = vmul.f32 %v1004, %v1112
    %v1845 = vmul.f32 %v1010, %v1117
    %v1846 = vmul.f32 %v1014, %v1120
    %v1847 = vrot.slane %v1843, 4
    %v1848 = vadd.f32 %v1843, %v1847
    %v1849 = vrot.slane %v1848, 2
    %v1850 = vadd.f32 %v1848, %v1849
    %v1851 = vrot.slane %v1850, 1
    %v1852 = vadd.f32 %v1850, %v1851
    %v1853 = vrot.slane %v1844, 4
    %v1854 = vadd.f32 %v1844, %v1853
    %v1855 = vrot.slane %v1854, 2
    %v1856 = vadd.f32 %v1854, %v1855
    %v1857 = vrot.slane %v1856, 1
    %v1858 = vadd.f32 %v1856, %v1857
    %v1859 = vrot.slane %v1845, 4
    %v1860 = vadd.f32 %v1845, %v1859
    %v1861 = vrot.slane %v1860, 2
    %v1862 = vadd.f32 %v1860, %v1861
    %v1863 = vrot.slane %v1862, 1
    %v1864 = vadd.f32 %v1862, %v1863
    %v1865 = vrot.slane %v1846, 4
    %v1866 = vadd.f32 %v1846, %v1865
    %v1867 = vrot.slane %v1866, 2
    %v1868 = vadd.f32 %v1866, %v1867
    %v1869 = vrot.slane %v1868, 1
    %v1870 = vadd.f32 %v1868, %v1869
    %v1871 = vmax.f32 %v1740, %v1768
    %v1872 = vmax.f32 %v1746, %v1774
    %v1873 = vmax.f32 %v1752, %v1780
    %v1874 = vmax.f32 %v1758, %v1786
    %v1875 = vmax.f32 %v1871, %v1796
    %v1876 = vmax.f32 %v1872, %v1802
    %v1877 = vmax.f32 %v1873, %v1808
    %v1878 = vmax.f32 %v1874, %v1814
    %v1879 = vmax.f32 %v1875, %v1824
    %v1880 = vmax.f32 %v1876, %v1830
    %v1881 = vmax.f32 %v1877, %v1836
    %v1882 = vmax.f32 %v1878, %v1842
    %v1883 = vmax.f32 %v1879, %v1852
    %v1884 = vmax.f32 %v1880, %v1858
    %v1885 = vmax.f32 %v1881, %v1864
    %v1886 = vmax.f32 %v1882, %v1870
    %v1887 = vsub.f32 %v1740, %v1883
    %v1888 = vsub.f32 %v1746, %v1884
    %v1889 = vsub.f32 %v1752, %v1885
    %v1890 = vsub.f32 %v1758, %v1886
    %v1891 = vmul.f32 %v1887, 1.442695
    %v1892 = vpow.pop %v1891
    %v1893 = vmul.f32 %v1888, 1.442695
    %v1894 = vpow.pop %v1893
    %v1895 = vmul.f32 %v1889, 1.442695
    %v1896 = vpow.pop %v1895
    %v1897 = vmul.f32 %v1890, 1.442695
    %v1898 = vpow.pop %v1897
    %v1899 = vsub.f32 %v1768, %v1883
    %v1900 = vsub.f32 %v1774, %v1884
    %v1901 = vsub.f32 %v1780, %v1885
    %v1902 = vsub.f32 %v1786, %v1886
    %v1903 = vmul.f32 %v1899, 1.442695
    %v1904 = vpow.pop %v1903
    %v1905 = vmul.f32 %v1900, 1.442695
    %v1906 = vpow.pop %v1905
    %v1907 = vmul.f32 %v1901, 1.442695
    %v1908 = vpow.pop %v1907
    %v1909 = vmul.f32 %v1902, 1.442695
    %v1910 = vpow.pop %v1909
    %v1911 = vsub.f32 %v1796, %v1883
    %v1912 = vsub.f32 %v1802, %v1884
    %v1913 = vsub.f32 %v1808, %v1885
    %v1914 = vsub.f32 %v1814, %v1886
    %v1915 = vmul.f32 %v1911, 1.442695
    %v1916 = vpow.pop %v1915
    %v1917 = vmul.f32 %v1912, 1.442695
    %v1918 = vpow.pop %v1917
    %v1919 = vmul.f32 %v1913, 1.442695
    %v1920 = vpow.pop %v1919
    %v1921 = vmul.f32 %v1914, 1.442695
    %v1922 = vpow.pop %v1921
    %v1923 = vsub.f32 %v1824, %v1883
    %v1924 = vsub.f32 %v1830, %v1884
    %v1925 = vsub.f32 %v1836, %v1885
    %v1926 = vsub.f32 %v1842, %v1886
    %v1927 = vmul.f32 %v1923, 1.442695
    %v1928 = vpow.pop %v1927
    %v1929 = vmul.f32 %v1924, 1.442695
    %v1930 = vpow.pop %v1929
    %v1931 = vmul.f32 %v1925, 1.442695
    %v1932 = vpow.pop %v1931
    %v1933 = vmul.f32 %v1926, 1.442695
    %v1934 = vpow.pop %v1933
    %v1935 = vsub.f32 %v1852, %v1883
    %v1936 = vsub.f32 %v1858, %v1884
    %v1937 = vsub.f32 %v1864, %v1885
    %v1938 = vsub.f32 %v1870, %v1886
    %v1939 = vmul.f32 %v1935, 1.442695
    %v1940 = vpow.pop %v1939
    %v1941 = vmul.f32 %v1936, 1.442695
    %v1942 = vpow.pop %v1941
    %v1943 = vmul.f32 %v1937, 1.442695
    %v1944 = vpow.pop %v1943
    %v1945 = vmul.f32 %v1938, 1.442695
    %v1946 = vpow.pop %v1945
    %v1947 = vadd.f32 %v1892, %v1904
    %v1948 = vadd.f32 %v1894, %v1906
    %v1949 = vadd.f32 %v1896, %v1908
    %v1950 = vadd.f32 %v1898, %v1910
    %v1951 = vadd.f32 %v1947, %v1916
    %v1952 = vadd.f32 %v1948, %v1918
    %v1953 = vadd.f32 %v1949, %v1920
    %v1954 = vadd.f32 %v1950, %v1922
    %v1955 = vadd.f32 %v1951, %v1928
    %v1956 = vadd.f32 %v1952, %v1930
    %v1957 = vadd.f32 %v1953, %v1932
    %v1958 = vadd.f32 %v1954, %v1934
    %v1959 = vadd.f32 %v1955, %v1940
    %v1960 = vadd.f32 %v1956, %v1942
    %v1961 = vadd.f32 %v1957, %v1944
    %v1962 = vadd.f32 %v1958, %v1946
    %v1963 = vrcp.pop %v1959
    %v1964 = vrcp.pop %v1960
    %v1965 = vrcp.pop %v1961
    %v1966 = vrcp.pop %v1962
    %v1967 = vmul.f32 %v1892, %v1963
    %v1968 = vmul.f32 %v1894, %v1964
    %v1969 = vmul.f32 %v1896, %v1965
    %v1970 = vmul.f32 %v1898, %v1966
    %v1971 = vmul.f32 %v1967, %v947
    %v1972 = vmul.f32 %v1968, %v951
    %v1973 = vmul.f32 %v1969, %v957
    %v1974 = vmul.f32 %v1970, %v961
    %v1975 = vadd.f32 %v1971, 0.0
    %v1976 = vadd.f32 %v1972, 0.0
    %v1977 = vadd.f32 %v1973, 0.0
    %v1978 = vadd.f32 %v1974, 0.0
    %v1979 = vmul.f32 %v1904, %v1963
    %v1980 = vmul.f32 %v1906, %v1964
    %v1981 = vmul.f32 %v1908, %v1965
    %v1982 = vmul.f32 %v1910, %v1966
    %v1983 = vmul.f32 %v1979, %v949
    %v1984 = vmul.f32 %v1980, %v953
    %v1985 = vmul.f32 %v1981, %v959
    %v1986 = vmul.f32 %v1982, %v963
    %v1987 = vadd.f32 %v1975, %v1983
    %v1988 = vadd.f32 %v1976, %v1984
    %v1989 = vadd.f32 %v1977, %v1985
    %v1990 = vadd.f32 %v1978, %v1986
    %v1991 = vmul.f32 %v1916, %v1963
    %v1992 = vmul.f32 %v1918, %v1964
    %v1993 = vmul.f32 %v1920, %v1965
    %v1994 = vmul.f32 %v1922, %v1966
    %v1995 = vmul.f32 %v1991, %v1040
    %v1996 = vmul.f32 %v1992, %v1044
    %v1997 = vmul.f32 %v1993, %v1050
    %v1998 = vmul.f32 %v1994, %v1054
    %v1999 = vadd.f32 %v1987, %v1995
    %v2000 = vadd.f32 %v1988, %v1996
    %v2001 = vadd.f32 %v1989, %v1997
    %v2002 = vadd.f32 %v1990, %v1998
    %v2003 = vmul.f32 %v1928, %v1963
    %v2004 = vmul.f32 %v1930, %v1964
    %v2005 = vmul.f32 %v1932, %v1965
    %v2006 = vmul.f32 %v1934, %v1966
    %v2007 = vmul.f32 %v2003, %v1042
    %v2008 = vmul.f32 %v2004, %v1046
    %v2009 = vmul.f32 %v2005, %v1052
    %v2010 = vmul.f32 %v2006, %v1056
    %v2011 = vadd.f32 %v1999, %v2007
    %v2012 = vadd.f32 %v2000, %v2008
    %v2013 = vadd.f32 %v2001, %v2009
    %v2014 = vadd.f32 %v2002, %v2010
    %v2015 = vmul.f32 %v1940, %v1963
    %v2016 = vmul.f32 %v1942, %v1964
    %v2017 = vmul.f32 %v1944, %v1965
    %v2018 = vmul.f32 %v1946, %v1966
    %v2019 = vmul.f32 %v2015, %v1125
    %v2020 = vmul.f32 %v2016, %v1128
    %v2021 = vmul.f32 %v2017, %v1133
    %v2022 = vmul.f32 %v2018, %v1136
    %v2023 = vadd.f32 %v2011, %v2019
    %v2024 = vadd.f32 %v2012, %v2020
    %v2025 = vadd.f32 %v2013, %v2021
    %v2026 = vadd.f32 %v2014, %v2022
    %v2027 = vmul.f32 %v1002, %v927
    %v2028 = vmul.f32 %v1006, %v931
    %v2029 = vmul.f32 %v1012, %v937
    %v2030 = vmul.f32 %v1016, %v941
    %v2031 = vrot.slane %v2027, 4
    %v2032 = vadd.f32 %v2027, %v2031
    %v2033 = vrot.slane %v2032, 2
    %v2034 = vadd.f32 %v2032, %v2033
    %v2035 = vrot.slane %v2034, 1
    %v2036 = vadd.f32 %v2034, %v2035
    %v2037 = vrot.slane %v2028, 4
    %v2038 = vadd.f32 %v2028, %v2037
    %v2039 = vrot.slane %v2038, 2
    %v2040 = vadd.f32 %v2038, %v2039
    %v2041 = vrot.slane %v2040, 1
    %v2042 = vadd.f32 %v2040, %v2041
    %v2043 = vrot.slane %v2029, 4
    %v2044 = vadd.f32 %v2029, %v2043
    %v2045 = vrot.slane %v2044, 2
    %v2046 = vadd.f32 %v2044, %v2045
    %v2047 = vrot.slane %v2046, 1
    %v2048 = vadd.f32 %v2046, %v2047
    %v2049 = vrot.slane %v2030, 4
    %v2050 = vadd.f32 %v2030, %v2049
    %v2051 = vrot.slane %v2050, 2
    %v2052 = vadd.f32 %v2050, %v2051
    %v2053 = vrot.slane %v2052, 1
    %v2054 = vadd.f32 %v2052, %v2053
    %v2055 = vmul.f32 %v1002, %v929
    %v2056 = vmul.f32 %v1006, %v933
    %v2057 = vmul.f32 %v1012, %v939
    %v2058 = vmul.f32 %v1016, %v943
    %v2059 = vrot.slane %v2055, 4
    %v2060 = vadd.f32 %v2055, %v2059
    %v2061 = vrot.slane %v2060, 2
    %v2062 = vadd.f32 %v2060, %v2061
    %v2063 = vrot.slane %v2062, 1
    %v2064 = vadd.f32 %v2062, %v2063
    %v2065 = vrot.slane %v2056, 4
    %v2066 = vadd.f32 %v2056, %v2065
    %v2067 = vrot.slane %v2066, 2
    %v2068 = vadd.f32 %v2066, %v2067
    %v2069 = vrot.slane %v2068, 1
    %v2070 = vadd.f32 %v2068, %v2069
    %v2071 = vrot.slane %v2057, 4
    %v2072 = vadd.f32 %v2057, %v2071
    %v2073 = vrot.slane %v2072, 2
    %v2074 = vadd.f32 %v2072, %v2073
    %v2075 = vrot.slane %v2074, 1
    %v2076 = vadd.f32 %v2074, %v2075
    %v2077 = vrot.slane %v2058, 4
    %v2078 = vadd.f32 %v2058, %v2077
    %v2079 = vrot.slane %v2078, 2
    %v2080 = vadd.f32 %v2078, %v2079
    %v2081 = vrot.slane %v2080, 1
    %v2082 = vadd.f32 %v2080, %v2081
    %v2083 = vmul.f32 %v1002, %v1020
    %v2084 = vmul.f32 %v1006, %v1024
    %v2085 = vmul.f32 %v1012, %v1030
    %v2086 = vmul.f32 %v1016, %v1034
    %v2087 = vrot.slane %v2083, 4
    %v2088 = vadd.f32 %v2083, %v2087
    %v2089 = vrot.slane %v2088, 2
    %v2090 = vadd.f32 %v2088, %v2089
    %v2091 = vrot.slane %v2090, 1
    %v2092 = vadd.f32 %v2090, %v2091
    %v2093 = vrot.slane %v2084, 4
    %v2094 = vadd.f32 %v2084, %v2093
    %v2095 = vrot.slane %v2094, 2
    %v2096 = vadd.f32 %v2094, %v2095
    %v2097 = vrot.slane %v2096, 1
    %v2098 = vadd.f32 %v2096, %v2097
    %v2099 = vrot.slane %v2085, 4
    %v2100 = vadd.f32 %v2085, %v2099
    %v2101 = vrot.slane %v2100, 2
    %v2102 = vadd.f32 %v2100, %v2101
    %v2103 = vrot.slane %v2102, 1
    %v2104 = vadd.f32 %v2102, %v2103
    %v2105 = vrot.slane %v2086, 4
    %v2106 = vadd.f32 %v2086, %v2105
    %v2107 = vrot.slane %v2106, 2
    %v2108 = vadd.f32 %v2106, %v2107
    %v2109 = vrot.slane %v2108, 1
    %v2110 = vadd.f32 %v2108, %v2109
    %v2111 = vmul.f32 %v1002, %v1022
    %v2112 = vmul.f32 %v1006, %v1026
    %v2113 = vmul.f32 %v1012, %v1032
    %v2114 = vmul.f32 %v1016, %v1036
    %v2115 = vrot.slane %v2111, 4
    %v2116 = vadd.f32 %v2111, %v2115
    %v2117 = vrot.slane %v2116, 2
    %v2118 = vadd.f32 %v2116, %v2117
    %v2119 = vrot.slane %v2118, 1
    %v2120 = vadd.f32 %v2118, %v2119
    %v2121 = vrot.slane %v2112, 4
    %v2122 = vadd.f32 %v2112, %v2121
    %v2123 = vrot.slane %v2122, 2
    %v2124 = vadd.f32 %v2122, %v2123
    %v2125 = vrot.slane %v2124, 1
    %v2126 = vadd.f32 %v2124, %v2125
    %v2127 = vrot.slane %v2113, 4
    %v2128 = vadd.f32 %v2113, %v2127
    %v2129 = vrot.slane %v2128, 2
    %v2130 = vadd.f32 %v2128, %v2129
    %v2131 = vrot.slane %v2130, 1
    %v2132 = vadd.f32 %v2130, %v2131
    %v2133 = vrot.slane %v2114, 4
    %v2134 = vadd.f32 %v2114, %v2133
    %v2135 = vrot.slane %v2134, 2
    %v2136 = vadd.f32 %v2134, %v2135
    %v2137 = vrot.slane %v2136, 1
    %v2138 = vadd.f32 %v2136, %v2137
    %v2139 = vmul.f32 %v1002, %v1109
    %v2140 = vmul.f32 %v1006, %v1112
    %v2141 = vmul.f32 %v1012, %v1117
    %v2142 = vmul.f32 %v1016, %v1120
    %v2143 = vrot.slane %v2139, 4
    %v2144 = vadd.f32 %v2139, %v2143
    %v2145 = vrot.slane %v2144, 2
    %v2146 = vadd.f32 %v2144, %v2145
    %v2147 = vrot.slane %v2146, 1
    %v2148 = vadd.f32 %v2146, %v2147
    %v2149 = vrot.slane %v2140, 4
    %v2150 = vadd.f32 %v2140, %v2149
    %v2151 = vrot.slane %v2150, 2
    %v2152 = vadd.f32 %v2150, %v2151
    %v2153 = vrot.slane %v2152, 1
    %v2154 = vadd.f32 %v2152, %v2153
    %v2155 = vrot.slane %v2141, 4
    %v2156 = vadd.f32 %v2141, %v2155
    %v2157 = vrot.slane %v2156, 2
    %v2158 = vadd.f32 %v2156, %v2157
    %v2159 = vrot.slane %v2158, 1
    %v2160 = vadd.f32 %v2158, %v2159
    %v2161 = vrot.slane %v2142, 4
    %v2162 = vadd.f32 %v2142, %v2161
    %v2163 = vrot.slane %v2162, 2
    %v2164 = vadd.f32 %v2162, %v2163
    %v2165 = vrot.slane %v2164, 1
    %v2166 = vadd.f32 %v2164, %v2165
    %v2167 = vmax.f32 %v2036, %v2064
    %v2168 = vmax.f32 %v2042, %v2070
    %v2169 = vmax.f32 %v2048, %v2076
    %v2170 = vmax.f32 %v2054, %v2082
    %v2171 = vmax.f32 %v2167, %v2092
    %v2172 = vmax.f32 %v2168, %v2098
    %v2173 = vmax.f32 %v2169, %v2104
    %v2174 = vmax.f32 %v2170, %v2110
    %v2175 = vmax.f32 %v2171, %v2120
    %v2176 = vmax.f32 %v2172, %v2126
    %v2177 = vmax.f32 %v2173, %v2132
    %v2178 = vmax.f32 %v2174, %v2138
    %v2179 = vmax.f32 %v2175, %v2148
    %v2180 = vmax.f32 %v2176, %v2154
    %v2181 = vmax.f32 %v2177, %v2160
    %v2182 = vmax.f32 %v2178, %v2166
    %v2183 = vsub.f32 %v2036, %v2179
    %v2184 = vsub.f32 %v2042, %v2180
    %v2185 = vsub.f32 %v2048, %v2181
    %v2186 = vsub.f32 %v2054, %v2182
    %v2187 = vmul.f32 %v2183, 1.442695
    %v2188 = vpow.pop %v2187
    %v2189 = vmul.f32 %v2184, 1.442695
    %v2190 = vpow.pop %v2189
    %v2191 = vmul.f32 %v2185, 1.442695
    %v2192 = vpow.pop %v2191
    %v2193 = vmul.f32 %v2186, 1.442695
    %v2194 = vpow.pop %v2193
    %v2195 = vsub.f32 %v2064, %v2179
    %v2196 = vsub.f32 %v2070, %v2180
    %v2197 = vsub.f32 %v2076, %v2181
    %v2198 = vsub.f32 %v2082, %v2182
    %v2199 = vmul.f32 %v2195, 1.442695
    %v2200 = vpow.pop %v2199
    %v2201 = vmul.f32 %v2196, 1.442695
    %v2202 = vpow.pop %v2201
    %v2203 = vmul.f32 %v2197, 1.442695
    %v2204 = vpow.pop %v2203
    %v2205 = vmul.f32 %v2198, 1.442695
    %v2206 = vpow.pop %v2205
    %v2207 = vsub.f32 %v2092, %v2179
    %v2208 = vsub.f32 %v2098, %v2180
    %v2209 = vsub.f32 %v2104, %v2181
    %v2210 = vsub.f32 %v2110, %v2182
    %v2211 = vmul.f32 %v2207, 1.442695
    %v2212 = vpow.pop %v2211
    %v2213 = vmul.f32 %v2208, 1.442695
    %v2214 = vpow.pop %v2213
    %v2215 = vmul.f32 %v2209, 1.442695
    %v2216 = vpow.pop %v2215
    %v2217 = vmul.f32 %v2210, 1.442695
    %v2218 = vpow.pop %v2217
    %v2219 = vsub.f32 %v2120, %v2179
    %v2220 = vsub.f32 %v2126, %v2180
    %v2221 = vsub.f32 %v2132, %v2181
    %v2222 = vsub.f32 %v2138, %v2182
    %v2223 = vmul.f32 %v2219, 1.442695
    %v2224 = vpow.pop %v2223
    %v2225 = vmul.f32 %v2220, 1.442695
    %v2226 = vpow.pop %v2225
    %v2227 = vmul.f32 %v2221, 1.442695
    %v2228 = vpow.pop %v2227
    %v2229 = vmul.f32 %v2222, 1.442695
    %v2230 = vpow.pop %v2229
    %v2231 = vsub.f32 %v2148, %v2179
    %v2232 = vsub.f32 %v2154, %v2180
    %v2233 = vsub.f32 %v2160, %v2181
    %v2234 = vsub.f32 %v2166, %v2182
    %v2235 = vmul.f32 %v2231, 1.442695
    %v2236 = vpow.pop %v2235
    %v2237 = vmul.f32 %v2232, 1.442695
    %v2238 = vpow.pop %v2237
    %v2239 = vmul.f32 %v2233, 1.442695
    %v2240 = vpow.pop %v2239
    %v2241 = vmul.f32 %v2234, 1.442695
    %v2242 = vpow.pop %v2241
    %v2243 = vadd.f32 %v2188, %v2200
    %v2244 = vadd.f32 %v2190, %v2202
    %v2245 = vadd.f32 %v2192, %v2204
    %v2246 = vadd.f32 %v2194, %v2206
    %v2247 = vadd.f32 %v2243, %v2212
    %v2248 = vadd.f32 %v2244, %v2214
    %v2249 = vadd.f32 %v2245, %v2216
    %v2250 = vadd.f32 %v2246, %v2218
    %v2251 = vadd.f32 %v2247, %v2224
    %v2252 = vadd.f32 %v2248, %v2226
    %v2253 = vadd.f32 %v2249, %v2228
    %v2254 = vadd.f32 %v2250, %v2230
    %v2255 = vadd.f32 %v2251, %v2236
    %v2256 = vadd.f32 %v2252, %v2238
    %v2257 = vadd.f32 %v2253, %v2240
    %v2258 = vadd.f32 %v2254, %v2242
    %v2259 = vrcp.pop %v2255
    %v2260 = vrcp.pop %v2256
    %v2261 = vrcp.pop %v2257
    %v2262 = vrcp.pop %v2258
    %v2263 = vmul.f32 %v2188, %v2259
    %v2264 = vmul.f32 %v2190, %v2260
    %v2265 = vmul.f32 %v2192, %v2261
    %v2266 = vmul.f32 %v2194, %v2262
    %v2267 = vmul.f32 %v2263, %v947
    %v2268 = vmul.f32 %v2264, %v951
    %v2269 = vmul.f32 %v2265, %v957
    %v2270 = vmul.f32 %v2266, %v961
    %v2271 = vadd.f32 %v2267, 0.0
    %v2272 = vadd.f32 %v2268, 0.0
    %v2273 = vadd.f32 %v2269, 0.0
    %v2274 = vadd.f32 %v2270, 0.0
    %v2275 = vmul.f32 %v2200, %v2259
    %v2276 = vmul.f32 %v2202, %v2260
    %v2277 = vmul.f32 %v2204, %v2261
    %v2278 = vmul.f32 %v2206, %v2262
    %v2279 = vmul.f32 %v2275, %v949
    %v2280 = vmul.f32 %v2276, %v953
    %v2281 = vmul.f32 %v2277, %v959
    %v2282 = vmul.f32 %v2278, %v963
    %v2283 = vadd.f32 %v2271, %v2279
    %v2284 = vadd.f32 %v2272, %v2280
    %v2285 = vadd.f32 %v2273, %v2281
    %v2286 = vadd.f32 %v2274, %v2282
    %v2287 = vmul.f32 %v2212, %v2259
    %v2288 = vmul.f32 %v2214, %v2260
    %v2289 = vmul.f32 %v2216, %v2261
    %v2290 = vmul.f32 %v2218, %v2262
    %v2291 = vmul.f32 %v2287, %v1040
    %v2292 = vmul.f32 %v2288, %v1044
    %v2293 = vmul.f32 %v2289, %v1050
    %v2294 = vmul.f32 %v2290, %v1054
    %v2295 = vadd.f32 %v2283, %v2291
    %v2296 = vadd.f32 %v2284, %v2292
    %v2297 = vadd.f32 %v2285, %v2293
    %v2298 = vadd.f32 %v2286, %v2294
    %v2299 = vmul.f32 %v2224, %v2259
    %v2300 = vmul.f32 %v2226, %v2260
    %v2301 = vmul.f32 %v2228, %v2261
    %v2302 = vmul.f32 %v2230, %v2262
    %v2303 = vmul.f32 %v2299, %v1042
    %v2304 = vmul.f32 %v2300, %v1046
    %v2305 = vmul.f32 %v2301, %v1052
    %v2306 = vmul.f32 %v2302, %v1056
    %v2307 = vadd.f32 %v2295, %v2303
    %v2308 = vadd.f32 %v2296, %v2304
    %v2309 = vadd.f32 %v2297, %v2305
    %v2310 = vadd.f32 %v2298, %v2306
    %v2311 = vmul.f32 %v2236, %v2259
    %v2312 = vmul.f32 %v2238, %v2260
    %v2313 = vmul.f32 %v2240, %v2261
    %v2314 = vmul.f32 %v2242, %v2262
    %v2315 = vmul.f32 %v2311, %v1125
    %v2316 = vmul.f32 %v2312, %v1128
    %v2317 = vmul.f32 %v2313, %v1133
    %v2318 = vmul.f32 %v2314, %v1136
    %v2319 = vadd.f32 %v2307, %v2315
    %v2320 = vadd.f32 %v2308, %v2316
    %v2321 = vadd.f32 %v2309, %v2317
    %v2322 = vadd.f32 %v2310, %v2318
    %v2323 = vmul.f32 %v1093, %v927
    %v2324 = vmul.f32 %v1096, %v931
    %v2325 = vmul.f32 %v1101, %v937
    %v2326 = vmul.f32 %v1104, %v941
    %v2327 = vrot.slane %v2323, 4
    %v2328 = vadd.f32 %v2323, %v2327
    %v2329 = vrot.slane %v2328, 2
    %v2330 = vadd.f32 %v2328, %v2329
    %v2331 = vrot.slane %v2330, 1
    %v2332 = vadd.f32 %v2330, %v2331
    %v2333 = vrot.slane %v2324, 4
    %v2334 = vadd.f32 %v2324, %v2333
    %v2335 = vrot.slane %v2334, 2
    %v2336 = vadd.f32 %v2334, %v2335
    %v2337 = vrot.slane %v2336, 1
    %v2338 = vadd.f32 %v2336, %v2337
    %v2339 = vrot.slane %v2325, 4
    %v2340 = vadd.f32 %v2325, %v2339
    %v2341 = vrot.slane %v2340, 2
    %v2342 = vadd.f32 %v2340, %v2341
    %v2343 = vrot.slane %v2342, 1
    %v2344 = vadd.f32 %v2342, %v2343
    %v2345 = vrot.slane %v2326, 4
    %v2346 = vadd.f32 %v2326, %v2345
    %v2347 = vrot.slane %v2346, 2
    %v2348 = vadd.f32 %v2346, %v2347
    %v2349 = vrot.slane %v2348, 1
    %v2350 = vadd.f32 %v2348, %v2349
    %v2351 = vmul.f32 %v1093, %v929
    %v2352 = vmul.f32 %v1096, %v933
    %v2353 = vmul.f32 %v1101, %v939
    %v2354 = vmul.f32 %v1104, %v943
    %v2355 = vrot.slane %v2351, 4
    %v2356 = vadd.f32 %v2351, %v2355
    %v2357 = vrot.slane %v2356, 2
    %v2358 = vadd.f32 %v2356, %v2357
    %v2359 = vrot.slane %v2358, 1
    %v2360 = vadd.f32 %v2358, %v2359
    %v2361 = vrot.slane %v2352, 4
    %v2362 = vadd.f32 %v2352, %v2361
    %v2363 = vrot.slane %v2362, 2
    %v2364 = vadd.f32 %v2362, %v2363
    %v2365 = vrot.slane %v2364, 1
    %v2366 = vadd.f32 %v2364, %v2365
    %v2367 = vrot.slane %v2353, 4
    %v2368 = vadd.f32 %v2353, %v2367
    %v2369 = vrot.slane %v2368, 2
    %v2370 = vadd.f32 %v2368, %v2369
    %v2371 = vrot.slane %v2370, 1
    %v2372 = vadd.f32 %v2370, %v2371
    %v2373 = vrot.slane %v2354, 4
    %v2374 = vadd.f32 %v2354, %v2373
    %v2375 = vrot.slane %v2374, 2
    %v2376 = vadd.f32 %v2374, %v2375
    %v2377 = vrot.slane %v2376, 1
    %v2378 = vadd.f32 %v2376, %v2377
    %v2379 = vmul.f32 %v1093, %v1020
    %v2380 = vmul.f32 %v1096, %v1024
    %v2381 = vmul.f32 %v1101, %v1030
    %v2382 = vmul.f32 %v1104, %v1034
    %v2383 = vrot.slane %v2379, 4
    %v2384 = vadd.f32 %v2379, %v2383
    %v2385 = vrot.slane %v2384, 2
    %v2386 = vadd.f32 %v2384, %v2385
    %v2387 = vrot.slane %v2386, 1
    %v2388 = vadd.f32 %v2386, %v2387
    %v2389 = vrot.slane %v2380, 4
    %v2390 = vadd.f32 %v2380, %v2389
    %v2391 = vrot.slane %v2390, 2
    %v2392 = vadd.f32 %v2390, %v2391
    %v2393 = vrot.slane %v2392, 1
    %v2394 = vadd.f32 %v2392, %v2393
    %v2395 = vrot.slane %v2381, 4
    %v2396 = vadd.f32 %v2381, %v2395
    %v2397 = vrot.slane %v2396, 2
    %v2398 = vadd.f32 %v2396, %v2397
    %v2399 = vrot.slane %v2398, 1
    %v2400 = vadd.f32 %v2398, %v2399
    %v2401 = vrot.slane %v2382, 4
    %v2402 = vadd.f32 %v2382, %v2401
    %v2403 = vrot.slane %v2402, 2
    %v2404 = vadd.f32 %v2402, %v2403
    %v2405 = vrot.slane %v2404, 1
    %v2406 = vadd.f32 %v2404, %v2405
    %v2407 = vmul.f32 %v1093, %v1022
    %v2408 = vmul.f32 %v1096, %v1026
    %v2409 = vmul.f32 %v1101, %v1032
    %v2410 = vmul.f32 %v1104, %v1036
    %v2411 = vrot.slane %v2407, 4
    %v2412 = vadd.f32 %v2407, %v2411
    %v2413 = vrot.slane %v2412, 2
    %v2414 = vadd.f32 %v2412, %v2413
    %v2415 = vrot.slane %v2414, 1
    %v2416 = vadd.f32 %v2414, %v2415
    %v2417 = vrot.slane %v2408, 4
    %v2418 = vadd.f32 %v2408, %v2417
    %v2419 = vrot.slane %v2418, 2
    %v2420 = vadd.f32 %v2418, %v2419
    %v2421 = vrot.slane %v2420, 1
    %v2422 = vadd.f32 %v2420, %v2421
    %v2423 = vrot.slane %v2409, 4
    %v2424 = vadd.f32 %v2409, %v2423
    %v2425 = vrot.slane %v2424, 2
    %v2426 = vadd.f32 %v2424, %v2425
    %v2427 = vrot.slane %v2426, 1
    %v2428 = vadd.f32 %v2426, %v2427
    %v2429 = vrot.slane %v2410, 4
    %v2430 = vadd.f32 %v2410, %v2429
    %v2431 = vrot.slane %v2430, 2
    %v2432 = vadd.f32 %v2430, %v2431
    %v2433 = vrot.slane %v2432, 1
    %v2434 = vadd.f32 %v2432, %v2433
    %v2435 = vmul.f32 %v1093, %v1109
    %v2436 = vmul.f32 %v1096, %v1112
    %v2437 = vmul.f32 %v1101, %v1117
    %v2438 = vmul.f32 %v1104, %v1120
    %v2439 = vrot.slane %v2435, 4
    %v2440 = vadd.f32 %v2435, %v2439
    %v2441 = vrot.slane %v2440, 2
    %v2442 = vadd.f32 %v2440, %v2441
    %v2443 = vrot.slane %v2442, 1
    %v2444 = vadd.f32 %v2442, %v2443
    %v2445 = vrot.slane %v2436, 4
    %v2446 = vadd.f32 %v2436, %v2445
    %v2447 = vrot.slane %v2446, 2
    %v2448 = vadd.f32 %v2446, %v2447
    %v2449 = vrot.slane %v2448, 1
    %v2450 = vadd.f32 %v2448, %v2449
    %v2451 = vrot.slane %v2437, 4
    %v2452 = vadd.f32 %v2437, %v2451
    %v2453 = vrot.slane %v2452, 2
    %v2454 = vadd.f32 %v2452, %v2453
    %v2455 = vrot.slane %v2454, 1
    %v2456 = vadd.f32 %v2454, %v2455
    %v2457 = vrot.slane %v2438, 4
    %v2458 = vadd.f32 %v2438, %v2457
    %v2459 = vrot.slane %v2458, 2
    %v2460 = vadd.f32 %v2458, %v2459
    %v2461 = vrot.slane %v2460, 1
    %v2462 = vadd.f32 %v2460, %v2461
    %v2463 = vmax.f32 %v2332, %v2360
    %v2464 = vmax.f32 %v2338, %v2366
    %v2465 = vmax.f32 %v2344, %v2372
    %v2466 = vmax.f32 %v2350, %v2378
    %v2467 = vmax.f32 %v2463, %v2388
    %v2468 = vmax.f32 %v2464, %v2394
    %v2469 = vmax.f32 %v2465, %v2400
    %v2470 = vmax.f32 %v2466, %v2406
    %v2471 = vmax.f32 %v2467, %v2416
    %v2472 = vmax.f32 %v2468, %v2422
    %v2473 = vmax.f32 %v2469, %v2428
    %v2474 = vmax.f32 %v2470, %v2434
    %v2475 = vmax.f32 %v2471, %v2444
    %v2476 = vmax.f32 %v2472, %v2450
    %v2477 = vmax.f32 %v2473, %v2456
    %v2478 = vmax.f32 %v2474, %v2462
    %v2479 = vsub.f32 %v2332, %v2475
    %v2480 = vsub.f32 %v2338, %v2476
    %v2481 = vsub.f32 %v2344, %v2477
    %v2482 = vsub.f32 %v2350, %v2478
    %v2483 = vmul.f32 %v2479, 1.442695
    %v2484 = vpow.pop %v2483
    %v2485 = vmul.f32 %v2480, 1.442695
    %v2486 = vpow.pop %v2485
    %v2487 = vmul.f32 %v2481, 1.442695
    %v2488 = vpow.pop %v2487
    %v2489 = vmul.f32 %v2482, 1.442695
    %v2490 = vpow.pop %v2489
    %v2491 = vsub.f32 %v2360, %v2475
    %v2492 = vsub.f32 %v2366, %v2476
    %v2493 = vsub.f32 %v2372, %v2477
    %v2494 = vsub.f32 %v2378, %v2478
    %v2495 = vmul.f32 %v2491, 1.442695
    %v2496 = vpow.pop %v2495
    %v2497 = vmul.f32 %v2492, 1.442695
    %v2498 = vpow.pop %v2497
    %v2499 = vmul.f32 %v2493, 1.442695
    %v2500 = vpow.pop %v2499
    %v2501 = vmul.f32 %v2494, 1.442695
    %v2502 = vpow.pop %v2501
    %v2503 = vsub.f32 %v2388, %v2475
    %v2504 = vsub.f32 %v2394, %v2476
    %v2505 = vsub.f32 %v2400, %v2477
    %v2506 = vsub.f32 %v2406, %v2478
    %v2507 = vmul.f32 %v2503, 1.442695
    %v2508 = vpow.pop %v2507
    %v2509 = vmul.f32 %v2504, 1.442695
    %v2510 = vpow.pop %v2509
    %v2511 = vmul.f32 %v2505, 1.442695
    %v2512 = vpow.pop %v2511
    %v2513 = vmul.f32 %v2506, 1.442695
    %v2514 = vpow.pop %v2513
    %v2515 = vsub.f32 %v2416, %v2475
    %v2516 = vsub.f32 %v2422, %v2476
    %v2517 = vsub.f32 %v2428, %v2477
    %v2518 = vsub.f32 %v2434, %v2478
    %v2519 = vmul.f32 %v2515, 1.442695
    %v2520 = vpow.pop %v2519
    %v2521 = vmul.f32 %v2516, 1.442695
    %v2522 = vpow.pop %v2521
    %v2523 = vmul.f32 %v2517, 1.442695
    %v2524 = vpow.pop %v2523
    %v2525 = vmul.f32 %v2518, 1.442695
    %v2526 = vpow.pop %v2525
    %v2527 = vsub.f32 %v2444, %v2475
    %v2528 = vsub.f32 %v2450, %v2476
    %v2529 = vsub.f32 %v2456, %v2477
    %v2530 = vsub.f32 %v2462, %v2478
    %v2531 = vmul.f32 %v2527, 1.442695
    %v2532 = vpow.pop %v2531
    %v2533 = vmul.f32 %v2528, 1.442695
    %v2534 = vpow.pop %v2533
    %v2535 = vmul.f32 %v2529, 1.442695
    %v2536 = vpow.pop %v2535
    %v2537 = vmul.f32 %v2530, 1.442695
    %v2538 = vpow.pop %v2537
    %v2539 = vadd.f32 %v2484, %v2496
    %v2540 = vadd.f32 %v2486, %v2498
    %v2541 = vadd.f32 %v2488, %v2500
    %v2542 = vadd.f32 %v2490, %v2502
    %v2543 = vadd.f32 %v2539, %v2508
    %v2544 = vadd.f32 %v2540, %v2510
    %v2545 = vadd.f32 %v2541, %v2512
    %v2546 = vadd.f32 %v2542, %v2514
    %v2547 = vadd.f32 %v2543, %v2520
    %v2548 = vadd.f32 %v2544, %v2522
    %v2549 = vadd.f32 %v2545, %v2524
    %v2550 = vadd.f32 %v2546, %v2526
    %v2551 = vadd.f32 %v2547, %v2532
    %v2552 = vadd.f32 %v2548, %v2534
    %v2553 = vadd.f32 %v2549, %v2536
    %v2554 = vadd.f32 %v2550, %v2538
    %v2555 = vrcp.pop %v2551
    %v2556 = vrcp.pop %v2552
    %v2557 = vrcp.pop %v2553
    %v2558 = vrcp.pop %v2554
    %v2559 = vmul.f32 %v2484, %v2555
    %v2560 = vmul.f32 %v2486, %v2556
    %v2561 = vmul.f32 %v2488, %v2557
    %v2562 = vmul.f32 %v2490, %v2558
    %v2563 = vmul.f32 %v2559, %v947
    %v2564 = vmul.f32 %v2560, %v951
    %v2565 = vmul.f32 %v2561, %v957
    %v2566 = vmul.f32 %v2562, %v961
    %v2567 = vadd.f32 %v2563, 0.0
    %v2568 = vadd.f32 %v2564, 0.0
    %v2569 = vadd.f32 %v2565, 0.0
    %v2570 = vadd.f32 %v2566, 0.0
    %v2571 = vmul.f32 %v2496, %v2555
    %v2572 = vmul.f32 %v2498, %v2556
    %v2573 = vmul.f32 %v2500, %v2557
    %v2574 = vmul.f32 %v2502, %v2558
    %v2575 = vmul.f32 %v2571, %v949
    %v2576 = vmul.f32 %v2572, %v953
    %v2577 = vmul.f32 %v2573, %v959
    %v2578 = vmul.f32 %v2574, %v963
    %v2579 = vadd.f32 %v2567, %v2575
    %v2580 = vadd.f32 %v2568, %v2576
    %v2581 = vadd.f32 %v2569, %v2577
    %v2582 = vadd.f32 %v2570, %v2578
    %v2583 = vmul.f32 %v2508, %v2555
    %v2584 = vmul.f32 %v2510, %v2556
    %v2585 = vmul.f32 %v2512, %v2557
    %v2586 = vmul.f32 %v2514, %v2558
    %v2587 = vmul.f32 %v2583, %v1040
    %v2588 = vmul.f32 %v2584, %v1044
    %v2589 = vmul.f32 %v2585, %v1050
    %v2590 = vmul.f32 %v2586, %v1054
    %v2591 = vadd.f32 %v2579, %v2587
    %v2592 = vadd.f32 %v2580, %v2588
    %v2593 = vadd.f32 %v2581, %v2589
    %v2594 = vadd.f32 %v2582, %v2590
    %v2595 = vmul.f32 %v2520, %v2555
    %v2596 = vmul.f32 %v2522, %v2556
    %v2597 = vmul.f32 %v2524, %v2557
    %v2598 = vmul.f32 %v2526, %v2558
    %v2599 = vmul.f32 %v2595, %v1042
    %v2600 = vmul.f32 %v2596, %v1046
    %v2601 = vmul.f32 %v2597, %v1052
    %v2602 = vmul.f32 %v2598, %v1056
    %v2603 = vadd.f32 %v2591, %v2599
    %v2604 = vadd.f32 %v2592, %v2600
    %v2605 = vadd.f32 %v2593, %v2601
    %v2606 = vadd.f32 %v2594, %v2602
    %v2607 = vmul.f32 %v2532, %v2555
    %v2608 = vmul.f32 %v2534, %v2556
    %v2609 = vmul.f32 %v2536, %v2557
    %v2610 = vmul.f32 %v2538, %v2558
    %v2611 = vmul.f32 %v2607, %v1125
    %v2612 = vmul.f32 %v2608, %v1128
    %v2613 = vmul.f32 %v2609, %v1133
    %v2614 = vmul.f32 %v2610, %v1136
    %v2615 = vadd.f32 %v2603, %v2611
    %v2616 = vadd.f32 %v2604, %v2612
    %v2617 = vadd.f32 %v2605, %v2613
    %v2618 = vadd.f32 %v2606, %v2614
    %v2619 = vld [vmem:[%s5] sm:$0xf]
    %v2620 = vld [vmem:[%s5 + $0x4] sm:$0xf]
    %v2621 = vld [vmem:[%s5 + $0x8] sm:$0xf]
    %v2622 = vld [vmem:[%s5 + $0xc] sm:$0xf]
    %v2623 = vpack.c.bf16 %v1432, %v1431
    %v2624 = vpack.c.bf16 %v1728, %v1727
    %v2625 = vpack.c.bf16 %v2024, %v2023
    %v2626 = vpack.c.bf16 %v2320, %v2319
    %v2627 = vpack.c.bf16 %v2616, %v2615
    %v2628 = vpack.c.bf16 %v1434, %v1433
    %v2629 = vpack.c.bf16 %v1730, %v1729
    %v2630 = vpack.c.bf16 %v2026, %v2025
    %v2631 = vpack.c.bf16 %v2322, %v2321
    %v2632 = vpack.c.bf16 %v2618, %v2617
    %2634 = vset.pattern.permute.xlu0 0
    %2635 = vperm.xlu0 %2634, %v702
    %v2636 = vpop.permute.xlu0 %2635
    %2639 = vset.pattern.permute.xlu0 0
    %2640 = vperm.xlu0 %2639, %v703
    %v2641 = vpop.permute.xlu0 %2640
    %2644 = vset.pattern.permute.xlu0 0
    %2645 = vperm.xlu0 %2644, %v704
    %v2646 = vpop.permute.xlu0 %2645
    %2649 = vset.pattern.permute.xlu0 0
    %2650 = vperm.xlu0 %2649, %v705
    %v2651 = vpop.permute.xlu0 %2650
    %v2657 = vunpack.c.l.b16 %v2619
    %v2658 = vunpack.c.l.b16 %v2620
    %v2659 = vunpack.c.l.b16 %v2621
    %v2660 = vunpack.c.l.b16 %v2622
    %v2661 = vpack.c.b16 %v2658, %v2657
    %v2662 = vpack.c.b16 %v2660, %v2659
    %v2664 = vsel %vm384, %v2661, 0
    %v2667 = vsel %vm384, %v2662, 0
    %2669 = vmatprep.subr.bf16.mxu0 %v2624
    %2670 = vmatpush1.bf16.msra.mxu0 %v2623
    %2671 = vmatprep.subr.bf16.mxu0 %v2629
    %2672 = vmatpush1.bf16.msra.mxu0 %v2628
    %2673 = vmatprep.subr.bf16.mxu0 0
    %2674 = vmatpush1.bf16.msra.mxu0 0
    %2675 = vmatprep.subr.bf16.mxu0 0
    %2676 = vmatpush1.bf16.msra.mxu0 0
    %2677 = vmatprep.subr.bf16.mxu0 0
    %2678 = vmatpush1.bf16.msra.mxu0 0
    %2679 = vmatprep.subr.bf16.mxu0 0
    %2680 = vmatpush1.bf16.msra.mxu0 0
    %2681 = vmatprep.subr.bf16.mxu0 0
    %2682 = vmatpush1.bf16.msra.mxu0 0
    %2683 = vmatprep.subr.bf16.mxu0 0
    %2684 = vmatpush1.bf16.msra.mxu0 0
    %2685 = vmatprep.subr.bf16.mxu0 0
    %2686 = vmatpush1.bf16.msra.mxu0 0
    %2687 = vmatprep.subr.bf16.mxu0 0
    %2688 = vmatpush1.bf16.msra.mxu0 0
    %2689 = vmatprep.subr.bf16.mxu0 0
    %2690 = vmatpush1.bf16.msra.mxu0 0
    %2691 = vmatprep.subr.bf16.mxu0 0
    %2692 = vmatpush1.bf16.msra.mxu0 0
    %2693 = vmatprep.subr.bf16.mxu0 0
    %2694 = vmatpush1.bf16.msra.mxu0 0
    %2695 = vmatprep.subr.bf16.mxu0 0
    %2696 = vmatpush1.bf16.msra.mxu0 0
    %2697 = vmatprep.subr.bf16.mxu0 0
    %2698 = vmatpush1.bf16.msra.mxu0 0
    %2699 = vmatprep.subr.bf16.mxu0 0
    %2700 = vmatpush1.bf16.msra.mxu0 0
    %2701 = vmatprep.mubr.bf16.mxu0 0
    %2702 = vmatmul.mubr.bf16.gmra.mrb[0].mxu0 %v2664
    %v2703 = vpop.f32.mrb[0].mxu0
    %v2704 = vadd.f32 %v2636, %v2703
    %v2705 = vpop.f32.mrb[0].mxu0
    %v2706 = vadd.f32 %v2636, %v2705
    %v2707 = vpop.f32.mrb[0].mxu0
    %v2708 = vadd.f32 %v2641, %v2707
    %v2709 = vpop.f32.mrb[0].mxu0
    %v2710 = vadd.f32 %v2641, %v2709
    %2711 = vmatprep.mubr.bf16.mxu0 0
    %2712 = vmatmul.mubr.bf16.gmra.mrb[0].mxu0 %v2667
    %v2713 = vpop.f32.mrb[0].mxu0
    %v2714 = vadd.f32 %v2646, %v2713
    %v2715 = vpop.f32.mrb[0].mxu0
    %v2716 = vadd.f32 %v2646, %v2715
    %v2717 = vpop.f32.mrb[0].mxu0
    %v2718 = vadd.f32 %v2651, %v2717
    %v2719 = vpop.f32.mrb[0].mxu0
    %v2720 = vadd.f32 %v2651, %v2719
    %2721 = vdwg.mxu0
    %2722 = vmatprep.subr.bf16.mxu0 %v2626
    %2723 = vmatpush1.bf16.msra.mxu0 %v2625
    %2724 = vmatprep.subr.bf16.mxu0 %v2631
    %2725 = vmatpush1.bf16.msra.mxu0 %v2630
    %2726 = vmatprep.subr.bf16.mxu0 0
    %2727 = vmatpush1.bf16.msra.mxu0 0
    %2728 = vmatprep.subr.bf16.mxu0 0
    %2729 = vmatpush1.bf16.msra.mxu0 0
    %2730 = vmatprep.subr.bf16.mxu0 0
    %2731 = vmatpush1.bf16.msra.mxu0 0
    %2732 = vmatprep.subr.bf16.mxu0 0
    %2733 = vmatpush1.bf16.msra.mxu0 0
    %2734 = vmatprep.subr.bf16.mxu0 0
    %2735 = vmatpush1.bf16.msra.mxu0 0
    %2736 = vmatprep.subr.bf16.mxu0 0
    %2737 = vmatpush1.bf16.msra.mxu0 0
    %2738 = vmatprep.subr.bf16.mxu0 0
    %2739 = vmatpush1.bf16.msra.mxu0 0
    %2740 = vmatprep.subr.bf16.mxu0 0
    %2741 = vmatpush1.bf16.msra.mxu0 0
    %2742 = vmatprep.subr.bf16.mxu0 0
    %2743 = vmatpush1.bf16.msra.mxu0 0
    %2744 = vmatprep.subr.bf16.mxu0 0
    %2745 = vmatpush1.bf16.msra.mxu0 0
    %2746 = vmatprep.subr.bf16.mxu0 0
    %2747 = vmatpush1.bf16.msra.mxu0 0
    %2748 = vmatprep.subr.bf16.mxu0 0
    %2749 = vmatpush1.bf16.msra.mxu0 0
    %2750 = vmatprep.subr.bf16.mxu0 0
    %2751 = vmatpush1.bf16.msra.mxu0 0
    %2752 = vmatprep.subr.bf16.mxu0 0
    %2753 = vmatpush1.bf16.msra.mxu0 0
    %2754 = vmatprep.mubr.bf16.mxu0 0
    %2755 = vmatmul.mubr.bf16.gmra.mrb[0].mxu0 %v2664
    %v2756 = vpop.f32.mrb[0].mxu0
    %v2757 = vadd.f32 %v2636, %v2756
    %v2758 = vpop.f32.mrb[0].mxu0
    %v2759 = vadd.f32 %v2636, %v2758
    %v2760 = vpop.f32.mrb[0].mxu0
    %v2761 = vadd.f32 %v2641, %v2760
    %v2762 = vpop.f32.mrb[0].mxu0
    %v2763 = vadd.f32 %v2641, %v2762
    %2764 = vmatprep.mubr.bf16.mxu0 0
    %2765 = vmatmul.mubr.bf16.gmra.mrb[0].mxu0 %v2667
    %v2766 = vpop.f32.mrb[0].mxu0
    %v2767 = vadd.f32 %v2646, %v2766
    %v2768 = vpop.f32.mrb[0].mxu0
    %v2769 = vadd.f32 %v2646, %v2768
    %v2770 = vpop.f32.mrb[0].mxu0
    %v2771 = vadd.f32 %v2651, %v2770
    %v2772 = vpop.f32.mrb[0].mxu0
    %v2773 = vadd.f32 %v2651, %v2772
    %2774 = vdwg.mxu0
    %2775 = vmatprep.subr.bf16.mxu0 0
    %2776 = vmatpush1.bf16.msra.mxu0 %v2627
    %2777 = vmatprep.subr.bf16.mxu0 0
    %2778 = vmatpush1.bf16.msra.mxu0 %v2632
    %2779 = vmatprep.subr.bf16.mxu0 0
    %2780 = vmatpush1.bf16.msra.mxu0 0
    %2781 = vmatprep.subr.bf16.mxu0 0
    %2782 = vmatpush1.bf16.msra.mxu0 0
    %2783 = vmatprep.subr.bf16.mxu0 0
    %2784 = vmatpush1.bf16.msra.mxu0 0
    %2785 = vmatprep.subr.bf16.mxu0 0
    %2786 = vmatpush1.bf16.msra.mxu0 0
    %2787 = vmatprep.subr.bf16.mxu0 0
    %2788 = vmatpush1.bf16.msra.mxu0 0
    %2789 = vmatprep.subr.bf16.mxu0 0
    %2790 = vmatpush1.bf16.msra.mxu0 0
    %2791 = vmatprep.subr.bf16.mxu0 0
    %2792 = vmatpush1.bf16.msra.mxu0 0
    %2793 = vmatprep.subr.bf16.mxu0 0
    %2794 = vmatpush1.bf16.msra.mxu0 0
    %2795 = vmatprep.subr.bf16.mxu0 0
    %2796 = vmatpush1.bf16.msra.mxu0 0
    %2797 = vmatprep.subr.bf16.mxu0 0
    %2798 = vmatpush1.bf16.msra.mxu0 0
    %2799 = vmatprep.subr.bf16.mxu0 0
    %2800 = vmatpush1.bf16.msra.mxu0 0
    %2801 = vmatprep.subr.bf16.mxu0 0
    %2802 = vmatpush1.bf16.msra.mxu0 0
    %2803 = vmatprep.subr.bf16.mxu0 0
    %2804 = vmatpush1.bf16.msra.mxu0 0
    %2805 = vmatprep.subr.bf16.mxu0 0
    %2806 = vmatpush1.bf16.msra.mxu0 0
    %2807 = vmatprep.mubr.bf16.mxu0 0
    %2808 = vmatmul.mubr.bf16.gmra.mrb[0].mxu0 %v2664
    %v2809 = vpop.f32.mrb[0].mxu0
    %v2810 = vadd.f32 %v2636, %v2809
    %v2811 = vpop.f32.mrb[0].mxu0
    %v2812 = vpop.f32.mrb[0].mxu0
    %v2813 = vadd.f32 %v2641, %v2812
    %v2814 = vpop.f32.mrb[0].mxu0
    %2815 = vmatprep.mubr.bf16.mxu0 0
    %2816 = vmatmul.mubr.bf16.gmra.mrb[0].mxu0 %v2667
    %v2817 = vpop.f32.mrb[0].mxu0
    %v2818 = vadd.f32 %v2646, %v2817
    %v2819 = vpop.f32.mrb[0].mxu0
    %v2820 = vpop.f32.mrb[0].mxu0
    %v2821 = vadd.f32 %v2651, %v2820
    %v2822 = vpop.f32.mrb[0].mxu0
    %2823 = vdwg.mxu0
    %v2824 = vadd.f32 %v426, %v2704
    %v2825 = vadd.f32 %v428, %v2706
    %v2826 = vadd.f32 %v479, %v2757
    %v2827 = vadd.f32 %v481, %v2759
    %v2828 = vadd.f32 %v676, %v2810
    %v2829 = vadd.f32 %v430, %v2708
    %v2830 = vadd.f32 %v432, %v2710
    %v2831 = vadd.f32 %v483, %v2761
    %v2832 = vadd.f32 %v485, %v2763
    %v2833 = vadd.f32 %v679, %v2813
    %v2834 = vadd.f32 %v436, %v2714
    %v2835 = vadd.f32 %v438, %v2716
    %v2836 = vadd.f32 %v489, %v2767
    %v2837 = vadd.f32 %v491, %v2769
    %v2838 = vadd.f32 %v684, %v2818
    %v2839 = vadd.f32 %v440, %v2718
    %v2840 = vadd.f32 %v442, %v2720
    %v2841 = vadd.f32 %v493, %v2771
    %v2842 = vadd.f32 %v495, %v2773
    %v2843 = vadd.f32 %v687, %v2821
    %v2844 = vadd.f32 %v2824, %v2829
    %v2845 = vadd.f32 %v2844, %v2834
    %v2846 = vadd.f32 %v2845, %v2839
    %v2847 = vrot.slane %v2846, 4
    %v2848 = vadd.f32 %v2846, %v2847
    %v2849 = vrot.slane %v2848, 2
    %v2850 = vadd.f32 %v2848, %v2849
    %v2851 = vrot.slane %v2850, 1
    %v2852 = vadd.f32 %v2850, %v2851
    %v2853 = vadd.f32 %v2825, %v2830
    %v2854 = vadd.f32 %v2853, %v2835
    %v2855 = vadd.f32 %v2854, %v2840
    %v2856 = vrot.slane %v2855, 4
    %v2857 = vadd.f32 %v2855, %v2856
    %v2858 = vrot.slane %v2857, 2
    %v2859 = vadd.f32 %v2857, %v2858
    %v2860 = vrot.slane %v2859, 1
    %v2861 = vadd.f32 %v2859, %v2860
    %v2862 = vadd.f32 %v2826, %v2831
    %v2863 = vadd.f32 %v2862, %v2836
    %v2864 = vadd.f32 %v2863, %v2841
    %v2865 = vrot.slane %v2864, 4
    %v2866 = vadd.f32 %v2864, %v2865
    %v2867 = vrot.slane %v2866, 2
    %v2868 = vadd.f32 %v2866, %v2867
    %v2869 = vrot.slane %v2868, 1
    %v2870 = vadd.f32 %v2868, %v2869
    %v2871 = vadd.f32 %v2827, %v2832
    %v2872 = vadd.f32 %v2871, %v2837
    %v2873 = vadd.f32 %v2872, %v2842
    %v2874 = vrot.slane %v2873, 4
    %v2875 = vadd.f32 %v2873, %v2874
    %v2876 = vrot.slane %v2875, 2
    %v2877 = vadd.f32 %v2875, %v2876
    %v2878 = vrot.slane %v2877, 1
    %v2879 = vadd.f32 %v2877, %v2878
    %v2880 = vadd.f32 %v2828, %v2833
    %v2881 = vadd.f32 %v2880, %v2838
    %v2882 = vadd.f32 %v2881, %v2843
    %v2883 = vrot.slane %v2882, 4
    %v2884 = vadd.f32 %v2882, %v2883
    %v2885 = vrot.slane %v2884, 2
    %v2886 = vadd.f32 %v2884, %v2885
    %v2887 = vrot.slane %v2886, 1
    %v2888 = vadd.f32 %v2886, %v2887
    %v2889 = vrcp.pop 32.0
    %v2890 = vmul.f32 %v2852, %v2889
    %v2891 = vmul.f32 %v2861, %v2889
    %v2892 = vmul.f32 %v2870, %v2889
    %v2893 = vmul.f32 %v2879, %v2889
    %v2894 = vmul.f32 %v2888, %v2889
    %v2895 = vsub.f32 %v2824, %v2890
    %v2896 = vsub.f32 %v2825, %v2891
    %v2897 = vsub.f32 %v2826, %v2892
    %v2898 = vsub.f32 %v2827, %v2893
    %v2899 = vsub.f32 %v2828, %v2894
    %v2900 = vsub.f32 %v2829, %v2890
    %v2901 = vsub.f32 %v2830, %v2891
    %v2902 = vsub.f32 %v2831, %v2892
    %v2903 = vsub.f32 %v2832, %v2893
    %v2904 = vsub.f32 %v2833, %v2894
    %v2905 = vsub.f32 %v2834, %v2890
    %v2906 = vsub.f32 %v2835, %v2891
    %v2907 = vsub.f32 %v2836, %v2892
    %v2908 = vsub.f32 %v2837, %v2893
    %v2909 = vsub.f32 %v2838, %v2894
    %v2910 = vsub.f32 %v2839, %v2890
    %v2911 = vsub.f32 %v2840, %v2891
    %v2912 = vsub.f32 %v2841, %v2892
    %v2913 = vsub.f32 %v2842, %v2893
    %v2914 = vsub.f32 %v2843, %v2894
    %v2915 = vmul.f32 %v2895, %v2895
    %v2916 = vmul.f32 %v2896, %v2896
    %v2917 = vmul.f32 %v2897, %v2897
    %v2918 = vmul.f32 %v2898, %v2898
    %v2919 = vmul.f32 %v2899, %v2899
    %v2920 = vmul.f32 %v2900, %v2900
    %v2921 = vmul.f32 %v2901, %v2901
    %v2922 = vmul.f32 %v2902, %v2902
    %v2923 = vmul.f32 %v2903, %v2903
    %v2924 = vmul.f32 %v2904, %v2904
    %v2925 = vmul.f32 %v2905, %v2905
    %v2926 = vmul.f32 %v2906, %v2906
    %v2927 = vmul.f32 %v2907, %v2907
    %v2928 = vmul.f32 %v2908, %v2908
    %v2929 = vmul.f32 %v2909, %v2909
    %v2930 = vmul.f32 %v2910, %v2910
    %v2931 = vmul.f32 %v2911, %v2911
    %v2932 = vmul.f32 %v2912, %v2912
    %v2933 = vmul.f32 %v2913, %v2913
    %v2934 = vmul.f32 %v2914, %v2914
    %v2935 = vadd.f32 %v2915, %v2920
    %v2936 = vadd.f32 %v2935, %v2925
    %v2937 = vadd.f32 %v2936, %v2930
    %v2938 = vrot.slane %v2937, 4
    %v2939 = vadd.f32 %v2937, %v2938
    %v2940 = vrot.slane %v2939, 2
    %v2941 = vadd.f32 %v2939, %v2940
    %v2942 = vrot.slane %v2941, 1
    %v2943 = vadd.f32 %v2941, %v2942
    %v2944 = vadd.f32 %v2916, %v2921
    %v2945 = vadd.f32 %v2944, %v2926
    %v2946 = vadd.f32 %v2945, %v2931
    %v2947 = vrot.slane %v2946, 4
    %v2948 = vadd.f32 %v2946, %v2947
    %v2949 = vrot.slane %v2948, 2
    %v2950 = vadd.f32 %v2948, %v2949
    %v2951 = vrot.slane %v2950, 1
    %v2952 = vadd.f32 %v2950, %v2951
    %v2953 = vadd.f32 %v2917, %v2922
    %v2954 = vadd.f32 %v2953, %v2927
    %v2955 = vadd.f32 %v2954, %v2932
    %v2956 = vrot.slane %v2955, 4
    %v2957 = vadd.f32 %v2955, %v2956
    %v2958 = vrot.slane %v2957, 2
    %v2959 = vadd.f32 %v2957, %v2958
    %v2960 = vrot.slane %v2959, 1
    %v2961 = vadd.f32 %v2959, %v2960
    %v2962 = vadd.f32 %v2918, %v2923
    %v2963 = vadd.f32 %v2962, %v2928
    %v2964 = vadd.f32 %v2963, %v2933
    %v2965 = vrot.slane %v2964, 4
    %v2966 = vadd.f32 %v2964, %v2965
    %v2967 = vrot.slane %v2966, 2
    %v2968 = vadd.f32 %v2966, %v2967
    %v2969 = vrot.slane %v2968, 1
    %v2970 = vadd.f32 %v2968, %v2969
    %v2971 = vadd.f32 %v2919, %v2924
    %v2972 = vadd.f32 %v2971, %v2929
    %v2973 = vadd.f32 %v2972, %v2934
    %v2974 = vrot.slane %v2973, 4
    %v2975 = vadd.f32 %v2973, %v2974
    %v2976 = vrot.slane %v2975, 2
    %v2977 = vadd.f32 %v2975, %v2976
    %v2978 = vrot.slane %v2977, 1
    %v2979 = vadd.f32 %v2977, %v2978
    %v2980 = vmul.f32 %v2943, %v2889
    %v2981 = vmul.f32 %v2952, %v2889
    %v2982 = vmul.f32 %v2961, %v2889
    %v2983 = vmul.f32 %v2970, %v2889
    %v2984 = vmul.f32 %v2979, %v2889
    %v2985 = vadd.f32 %v2980, 1e-05
    %v2986 = vadd.f32 %v2981, 1e-05
    %v2987 = vadd.f32 %v2982, 1e-05
    %v2988 = vadd.f32 %v2983, 1e-05
    %v2989 = vadd.f32 %v2984, 1e-05
    %v2990 = vrsqrt.pop %v2985
    %v2991 = vrsqrt.pop %v2986
    %v2992 = vrsqrt.pop %v2987
    %v2993 = vrsqrt.pop %v2988
    %v2994 = vrsqrt.pop %v2989
    %v2995 = vmul.f32 %v2895, %v2990
    %v2996 = vmul.f32 %v2896, %v2991
    %v2997 = vmul.f32 %v2897, %v2992
    %v2998 = vmul.f32 %v2898, %v2993
    %v2999 = vmul.f32 %v2899, %v2994
    %v3000 = vmul.f32 %v2900, %v2990
    %v3001 = vmul.f32 %v2901, %v2991
    %v3002 = vmul.f32 %v2902, %v2992
    %v3003 = vmul.f32 %v2903, %v2993
    %v3004 = vmul.f32 %v2904, %v2994
    %v3005 = vmul.f32 %v2905, %v2990
    %v3006 = vmul.f32 %v2906, %v2991
    %v3007 = vmul.f32 %v2907, %v2992
    %v3008 = vmul.f32 %v2908, %v2993
    %v3009 = vmul.f32 %v2909, %v2994
    %v3010 = vmul.f32 %v2910, %v2990
    %v3011 = vmul.f32 %v2911, %v2991
    %v3012 = vmul.f32 %v2912, %v2992
    %v3013 = vmul.f32 %v2913, %v2993
    %v3014 = vmul.f32 %v2914, %v2994
    %3016 = vset.pattern.permute.xlu0 0
    %3017 = vperm.xlu0 %3016, %v726
    %v3018 = vpop.permute.xlu0 %3017
    %3021 = vset.pattern.permute.xlu0 0
    %3022 = vperm.xlu0 %3021, %v727
    %v3023 = vpop.permute.xlu0 %3022
    %3026 = vset.pattern.permute.xlu0 0
    %3027 = vperm.xlu0 %3026, %v728
    %v3028 = vpop.permute.xlu0 %3027
    %3031 = vset.pattern.permute.xlu0 0
    %3032 = vperm.xlu0 %3031, %v729
    %v3033 = vpop.permute.xlu0 %3032
    %v3035 = vmul.f32 %v2995, %v3018
    %v3036 = vmul.f32 %v2996, %v3018
    %v3037 = vmul.f32 %v2997, %v3018
    %v3038 = vmul.f32 %v2998, %v3018
    %v3039 = vmul.f32 %v2999, %v3018
    %v3040 = vmul.f32 %v3000, %v3023
    %v3041 = vmul.f32 %v3001, %v3023
    %v3042 = vmul.f32 %v3002, %v3023
    %v3043 = vmul.f32 %v3003, %v3023
    %v3044 = vmul.f32 %v3004, %v3023
    %v3045 = vmul.f32 %v3005, %v3028
    %v3046 = vmul.f32 %v3006, %v3028
    %v3047 = vmul.f32 %v3007, %v3028
    %v3048 = vmul.f32 %v3008, %v3028
    %v3049 = vmul.f32 %v3009, %v3028
    %v3050 = vmul.f32 %v3010, %v3033
    %v3051 = vmul.f32 %v3011, %v3033
    %v3052 = vmul.f32 %v3012, %v3033
    %v3053 = vmul.f32 %v3013, %v3033
    %v3054 = vmul.f32 %v3014, %v3033
    %3056 = vset.pattern.permute.xlu0 0
    %3057 = vperm.xlu0 %3056, %v730
    %v3058 = vpop.permute.xlu0 %3057
    %3061 = vset.pattern.permute.xlu0 0
    %3062 = vperm.xlu0 %3061, %v731
    %v3063 = vpop.permute.xlu0 %3062
    %3066 = vset.pattern.permute.xlu0 0
    %3067 = vperm.xlu0 %3066, %v732
    %v3068 = vpop.permute.xlu0 %3067
    %3071 = vset.pattern.permute.xlu0 0
    %3072 = vperm.xlu0 %3071, %v733
    %v3073 = vpop.permute.xlu0 %3072
    %v3075 = vadd.f32 %v3035, %v3058
    %v3076 = vadd.f32 %v3036, %v3058
    %v3077 = vadd.f32 %v3037, %v3058
    %v3078 = vadd.f32 %v3038, %v3058
    %v3079 = vadd.f32 %v3039, %v3058
    %v3080 = vadd.f32 %v3040, %v3063
    %v3081 = vadd.f32 %v3041, %v3063
    %v3082 = vadd.f32 %v3042, %v3063
    %v3083 = vadd.f32 %v3043, %v3063
    %v3084 = vadd.f32 %v3044, %v3063
    %v3085 = vadd.f32 %v3045, %v3068
    %v3086 = vadd.f32 %v3046, %v3068
    %v3087 = vadd.f32 %v3047, %v3068
    %v3088 = vadd.f32 %v3048, %v3068
    %v3089 = vadd.f32 %v3049, %v3068
    %v3090 = vadd.f32 %v3050, %v3073
    %v3091 = vadd.f32 %v3051, %v3073
    %v3092 = vadd.f32 %v3052, %v3073
    %v3093 = vadd.f32 %v3053, %v3073
    %v3094 = vadd.f32 %v3054, %v3073
    %v3095 = vld [vmem:[%s6] sm:$0xf]
    %v3096 = vld [vmem:[%s6 + $0x4] sm:$0xf]
    %v3097 = vld [vmem:[%s6 + $0x8] sm:$0xf]
    %v3098 = vld [vmem:[%s6 + $0xc] sm:$0xf]
    %v3099 = vld [vmem:[%s6 + $0x10] sm:$0xf]
    %v3100 = vld [vmem:[%s6 + $0x14] sm:$0xf]
    %v3101 = vld [vmem:[%s6 + $0x18] sm:$0xf]
    %v3102 = vld [vmem:[%s6 + $0x1c] sm:$0xf]
    %v3103 = vld [vmem:[%s6 + $0x20] sm:$0xf]
    %v3104 = vld [vmem:[%s6 + $0x24] sm:$0xf]
    %v3105 = vld [vmem:[%s6 + $0x28] sm:$0xf]
    %v3106 = vld [vmem:[%s6 + $0x2c] sm:$0xf]
    %v3107 = vld [vmem:[%s6 + $0x30] sm:$0xf]
    %v3108 = vld [vmem:[%s6 + $0x34] sm:$0xf]
    %v3109 = vld [vmem:[%s6 + $0x38] sm:$0xf]
    %v3110 = vld [vmem:[%s6 + $0x3c] sm:$0xf]
    %v3111 = vpack.c.bf16 %v3080, %v3075
    %v3112 = vpack.c.bf16 %v3081, %v3076
    %v3113 = vpack.c.bf16 %v3082, %v3077
    %v3114 = vpack.c.bf16 %v3083, %v3078
    %v3115 = vpack.c.bf16 %v3084, %v3079
    %v3116 = vpack.c.bf16 %v3090, %v3085
    %v3117 = vpack.c.bf16 %v3091, %v3086
    %v3118 = vpack.c.bf16 %v3092, %v3087
    %v3119 = vpack.c.bf16 %v3093, %v3088
    %v3120 = vpack.c.bf16 %v3094, %v3089
    %3122 = vset.pattern.permute.xlu0 0
    %3123 = vperm.xlu0 %3122, %v706
    %v3124 = vpop.permute.xlu0 %3123
    %3127 = vset.pattern.permute.xlu0 0
    %3128 = vperm.xlu0 %3127, %v707
    %v3129 = vpop.permute.xlu0 %3128
    %3132 = vset.pattern.permute.xlu0 0
    %3133 = vperm.xlu0 %3132, %v708
    %v3134 = vpop.permute.xlu0 %3133
    %3137 = vset.pattern.permute.xlu0 0
    %3138 = vperm.xlu0 %3137, %v709
    %v3139 = vpop.permute.xlu0 %3138
    %3142 = vset.pattern.permute.xlu0 0
    %3143 = vperm.xlu0 %3142, %v710
    %v3144 = vpop.permute.xlu0 %3143
    %3147 = vset.pattern.permute.xlu0 0
    %3148 = vperm.xlu0 %3147, %v711
    %v3149 = vpop.permute.xlu0 %3148
    %3152 = vset.pattern.permute.xlu0 0
    %3153 = vperm.xlu0 %3152, %v712
    %v3154 = vpop.permute.xlu0 %3153
    %3157 = vset.pattern.permute.xlu0 0
    %3158 = vperm.xlu0 %3157, %v713
    %v3159 = vpop.permute.xlu0 %3158
    %3162 = vset.pattern.permute.xlu0 0
    %3163 = vperm.xlu0 %3162, %v714
    %v3164 = vpop.permute.xlu0 %3163
    %3167 = vset.pattern.permute.xlu0 0
    %3168 = vperm.xlu0 %3167, %v715
    %v3169 = vpop.permute.xlu0 %3168
    %3172 = vset.pattern.permute.xlu0 0
    %3173 = vperm.xlu0 %3172, %v716
    %v3174 = vpop.permute.xlu0 %3173
    %3177 = vset.pattern.permute.xlu0 0
    %3178 = vperm.xlu0 %3177, %v717
    %v3179 = vpop.permute.xlu0 %3178
    %3182 = vset.pattern.permute.xlu0 0
    %3183 = vperm.xlu0 %3182, %v718
    %v3184 = vpop.permute.xlu0 %3183
    %3187 = vset.pattern.permute.xlu0 0
    %3188 = vperm.xlu0 %3187, %v719
    %v3189 = vpop.permute.xlu0 %3188
    %3192 = vset.pattern.permute.xlu0 0
    %3193 = vperm.xlu0 %3192, %v720
    %v3194 = vpop.permute.xlu0 %3193
    %3197 = vset.pattern.permute.xlu0 0
    %3198 = vperm.xlu0 %3197, %v721
    %v3199 = vpop.permute.xlu0 %3198
    %v3217 = vunpack.c.l.b16 %v3095
    %v3218 = vunpack.c.l.b16 %v3096
    %v3219 = vunpack.c.l.b16 %v3097
    %v3220 = vunpack.c.l.b16 %v3098
    %v3221 = vunpack.c.l.b16 %v3099
    %v3222 = vunpack.c.l.b16 %v3100
    %v3223 = vunpack.c.l.b16 %v3101
    %v3224 = vunpack.c.l.b16 %v3102
    %v3225 = vunpack.c.l.b16 %v3103
    %v3226 = vunpack.c.l.b16 %v3104
    %v3227 = vunpack.c.l.b16 %v3105
    %v3228 = vunpack.c.l.b16 %v3106
    %v3229 = vunpack.c.l.b16 %v3107
    %v3230 = vunpack.c.l.b16 %v3108
    %v3231 = vunpack.c.l.b16 %v3109
    %v3232 = vunpack.c.l.b16 %v3110
    %v3233 = vpack.c.b16 %v3218, %v3217
    %v3234 = vpack.c.b16 %v3220, %v3219
    %v3235 = vpack.c.b16 %v3222, %v3221
    %v3236 = vpack.c.b16 %v3224, %v3223
    %v3237 = vpack.c.b16 %v3226, %v3225
    %v3238 = vpack.c.b16 %v3228, %v3227
    %v3239 = vpack.c.b16 %v3230, %v3229
    %v3240 = vpack.c.b16 %v3232, %v3231
    %v3242 = vsel %vm384, %v3233, 0
    %v3245 = vsel %vm384, %v3234, 0
    %v3248 = vsel %vm384, %v3235, 0
    %v3251 = vsel %vm384, %v3236, 0
    %v3254 = vsel %vm384, %v3237, 0
    %v3257 = vsel %vm384, %v3238, 0
    %v3260 = vsel %vm384, %v3239, 0
    %v3263 = vsel %vm384, %v3240, 0
    %3265 = vmatprep.subr.bf16.mxu0 %v3112
    %3266 = vmatpush1.bf16.msra.mxu0 %v3111
    %3267 = vmatprep.subr.bf16.mxu0 %v3117
    %3268 = vmatpush1.bf16.msra.mxu0 %v3116
    %3269 = vmatprep.subr.bf16.mxu0 0
    %3270 = vmatpush1.bf16.msra.mxu0 0
    %3271 = vmatprep.subr.bf16.mxu0 0
    %3272 = vmatpush1.bf16.msra.mxu0 0
    %3273 = vmatprep.subr.bf16.mxu0 0
    %3274 = vmatpush1.bf16.msra.mxu0 0
    %3275 = vmatprep.subr.bf16.mxu0 0
    %3276 = vmatpush1.bf16.msra.mxu0 0
    %3277 = vmatprep.subr.bf16.mxu0 0
    %3278 = vmatpush1.bf16.msra.mxu0 0
    %3279 = vmatprep.subr.bf16.mxu0 0
    %3280 = vmatpush1.bf16.msra.mxu0 0
    %3281 = vmatprep.subr.bf16.mxu0 0
    %3282 = vmatpush1.bf16.msra.mxu0 0
    %3283 = vmatprep.subr.bf16.mxu0 0
    %3284 = vmatpush1.bf16.msra.mxu0 0
    %3285 = vmatprep.subr.bf16.mxu0 0
    %3286 = vmatpush1.bf16.msra.mxu0 0
    %3287 = vmatprep.subr.bf16.mxu0 0
    %3288 = vmatpush1.bf16.msra.mxu0 0
    %3289 = vmatprep.subr.bf16.mxu0 0
    %3290 = vmatpush1.bf16.msra.mxu0 0
    %3291 = vmatprep.subr.bf16.mxu0 0
    %3292 = vmatpush1.bf16.msra.mxu0 0
    %3293 = vmatprep.subr.bf16.mxu0 0
    %3294 = vmatpush1.bf16.msra.mxu0 0
    %3295 = vmatprep.subr.bf16.mxu0 0
    %3296 = vmatpush1.bf16.msra.mxu0 0
    %3297 = vmatprep.mubr.bf16.mxu0 0
    %3298 = vmatmul.mubr.bf16.gmra.mrb[0].mxu0 %v3242
    %v3299 = vpop.f32.mrb[0].mxu0
    %v3300 = vadd.f32 %v3124, %v3299
    %v3301 = vpop.f32.mrb[0].mxu0
    %v3302 = vadd.f32 %v3124, %v3301
    %v3303 = vpop.f32.mrb[0].mxu0
    %v3304 = vadd.f32 %v3129, %v3303
    %v3305 = vpop.f32.mrb[0].mxu0
    %v3306 = vadd.f32 %v3129, %v3305
    %3307 = vmatprep.mubr.bf16.mxu0 0
    %3308 = vmatmul.mubr.bf16.gmra.mrb[0].mxu0 %v3245
    %v3309 = vpop.f32.mrb[0].mxu0
    %v3310 = vadd.f32 %v3134, %v3309
    %v3311 = vpop.f32.mrb[0].mxu0
    %v3312 = vadd.f32 %v3134, %v3311
    %v3313 = vpop.f32.mrb[0].mxu0
    %v3314 = vadd.f32 %v3139, %v3313
    %v3315 = vpop.f32.mrb[0].mxu0
    %v3316 = vadd.f32 %v3139, %v3315
    %3317 = vmatprep.mubr.bf16.mxu0 0
    %3318 = vmatmul.mubr.bf16.gmra.mrb[0].mxu0 %v3248
    %v3319 = vpop.f32.mrb[0].mxu0
    %v3320 = vadd.f32 %v3144, %v3319
    %v3321 = vpop.f32.mrb[0].mxu0
    %v3322 = vadd.f32 %v3144, %v3321
    %v3323 = vpop.f32.mrb[0].mxu0
    %v3324 = vadd.f32 %v3149, %v3323
    %v3325 = vpop.f32.mrb[0].mxu0
    %v3326 = vadd.f32 %v3149, %v3325
    %3327 = vmatprep.mubr.bf16.mxu0 0
    %3328 = vmatmul.mubr.bf16.gmra.mrb[0].mxu0 %v3251
    %v3329 = vpop.f32.mrb[0].mxu0
    %v3330 = vadd.f32 %v3154, %v3329
    %v3331 = vpop.f32.mrb[0].mxu0
    %v3332 = vadd.f32 %v3154, %v3331
    %v3333 = vpop.f32.mrb[0].mxu0
    %v3334 = vadd.f32 %v3159, %v3333
    %v3335 = vpop.f32.mrb[0].mxu0
    %v3336 = vadd.f32 %v3159, %v3335
    %3337 = vmatprep.mubr.bf16.mxu0 0
    %3338 = vmatmul.mubr.bf16.gmra.mrb[0].mxu0 %v3254
    %v3339 = vpop.f32.mrb[0].mxu0
    %v3340 = vadd.f32 %v3164, %v3339
    %v3341 = vpop.f32.mrb[0].mxu0
    %v3342 = vadd.f32 %v3164, %v3341
    %v3343 = vpop.f32.mrb[0].mxu0
    %v3344 = vadd.f32 %v3169, %v3343
    %v3345 = vpop.f32.mrb[0].mxu0
    %v3346 = vadd.f32 %v3169, %v3345
    %3347 = vmatprep.mubr.bf16.mxu0 0
    %3348 = vmatmul.mubr.bf16.gmra.mrb[0].mxu0 %v3257
    %v3349 = vpop.f32.mrb[0].mxu0
    %v3350 = vadd.f32 %v3174, %v3349
    %v3351 = vpop.f32.mrb[0].mxu0
    %v3352 = vadd.f32 %v3174, %v3351
    %v3353 = vpop.f32.mrb[0].mxu0
    %v3354 = vadd.f32 %v3179, %v3353
    %v3355 = vpop.f32.mrb[0].mxu0
    %v3356 = vadd.f32 %v3179, %v3355
    %3357 = vmatprep.mubr.bf16.mxu0 0
    %3358 = vmatmul.mubr.bf16.gmra.mrb[0].mxu0 %v3260
    %v3359 = vpop.f32.mrb[0].mxu0
    %v3360 = vadd.f32 %v3184, %v3359
    %v3361 = vpop.f32.mrb[0].mxu0
    %v3362 = vadd.f32 %v3184, %v3361
    %v3363 = vpop.f32.mrb[0].mxu0
    %v3364 = vadd.f32 %v3189, %v3363
    %v3365 = vpop.f32.mrb[0].mxu0
    %v3366 = vadd.f32 %v3189, %v3365
    %3367 = vmatprep.mubr.bf16.mxu0 0
    %3368 = vmatmul.mubr.bf16.gmra.mrb[0].mxu0 %v3263
    %v3369 = vpop.f32.mrb[0].mxu0
    %v3370 = vadd.f32 %v3194, %v3369
    %v3371 = vpop.f32.mrb[0].mxu0
    %v3372 = vadd.f32 %v3194, %v3371
    %v3373 = vpop.f32.mrb[0].mxu0
    %v3374 = vadd.f32 %v3199, %v3373
    %v3375 = vpop.f32.mrb[0].mxu0
    %v3376 = vadd.f32 %v3199, %v3375
    %3377 = vdwg.mxu0
    %3378 = vmatprep.subr.bf16.mxu0 %v3114
    %3379 = vmatpush1.bf16.msra.mxu0 %v3113
    %3380 = vmatprep.subr.bf16.mxu0 %v3119
    %3381 = vmatpush1.bf16.msra.mxu0 %v3118
    %3382 = vmatprep.subr.bf16.mxu0 0
    %3383 = vmatpush1.bf16.msra.mxu0 0
    %3384 = vmatprep.subr.bf16.mxu0 0
    %3385 = vmatpush1.bf16.msra.mxu0 0
    %3386 = vmatprep.subr.bf16.mxu0 0
    %3387 = vmatpush1.bf16.msra.mxu0 0
    %3388 = vmatprep.subr.bf16.mxu0 0
    %3389 = vmatpush1.bf16.msra.mxu0 0
    %3390 = vmatprep.subr.bf16.mxu0 0
    %3391 = vmatpush1.bf16.msra.mxu0 0
    %3392 = vmatprep.subr.bf16.mxu0 0
    %3393 = vmatpush1.bf16.msra.mxu0 0
    %3394 = vmatprep.subr.bf16.mxu0 0
    %3395 = vmatpush1.bf16.msra.mxu0 0
    %3396 = vmatprep.subr.bf16.mxu0 0
    %3397 = vmatpush1.bf16.msra.mxu0 0
    %3398 = vmatprep.subr.bf16.mxu0 0
    %3399 = vmatpush1.bf16.msra.mxu0 0
    %3400 = vmatprep.subr.bf16.mxu0 0
    %3401 = vmatpush1.bf16.msra.mxu0 0
    %3402 = vmatprep.subr.bf16.mxu0 0
    %3403 = vmatpush1.bf16.msra.mxu0 0
    %3404 = vmatprep.subr.bf16.mxu0 0
    %3405 = vmatpush1.bf16.msra.mxu0 0
    %3406 = vmatprep.subr.bf16.mxu0 0
    %3407 = vmatpush1.bf16.msra.mxu0 0
    %3408 = vmatprep.subr.bf16.mxu0 0
    %3409 = vmatpush1.bf16.msra.mxu0 0
    %3410 = vmatprep.mubr.bf16.mxu0 0
    %3411 = vmatmul.mubr.bf16.gmra.mrb[0].mxu0 %v3242
    %v3412 = vpop.f32.mrb[0].mxu0
    %v3413 = vadd.f32 %v3124, %v3412
    %v3414 = vpop.f32.mrb[0].mxu0
    %v3415 = vadd.f32 %v3124, %v3414
    %v3416 = vpop.f32.mrb[0].mxu0
    %v3417 = vadd.f32 %v3129, %v3416
    %v3418 = vpop.f32.mrb[0].mxu0
    %v3419 = vadd.f32 %v3129, %v3418
    %3420 = vmatprep.mubr.bf16.mxu0 0
    %3421 = vmatmul.mubr.bf16.gmra.mrb[0].mxu0 %v3245
    %v3422 = vpop.f32.mrb[0].mxu0
    %v3423 = vadd.f32 %v3134, %v3422
    %v3424 = vpop.f32.mrb[0].mxu0
    %v3425 = vadd.f32 %v3134, %v3424
    %v3426 = vpop.f32.mrb[0].mxu0
    %v3427 = vadd.f32 %v3139, %v3426
    %v3428 = vpop.f32.mrb[0].mxu0
    %v3429 = vadd.f32 %v3139, %v3428
    %3430 = vmatprep.mubr.bf16.mxu0 0
    %3431 = vmatmul.mubr.bf16.gmra.mrb[0].mxu0 %v3248
    %v3432 = vpop.f32.mrb[0].mxu0
    %v3433 = vadd.f32 %v3144, %v3432
    %v3434 = vpop.f32.mrb[0].mxu0
    %v3435 = vadd.f32 %v3144, %v3434
    %v3436 = vpop.f32.mrb[0].mxu0
    %v3437 = vadd.f32 %v3149, %v3436
    %v3438 = vpop.f32.mrb[0].mxu0
    %v3439 = vadd.f32 %v3149, %v3438
    %3440 = vmatprep.mubr.bf16.mxu0 0
    %3441 = vmatmul.mubr.bf16.gmra.mrb[0].mxu0 %v3251
    %v3442 = vpop.f32.mrb[0].mxu0
    %v3443 = vadd.f32 %v3154, %v3442
    %v3444 = vpop.f32.mrb[0].mxu0
    %v3445 = vadd.f32 %v3154, %v3444
    %v3446 = vpop.f32.mrb[0].mxu0
    %v3447 = vadd.f32 %v3159, %v3446
    %v3448 = vpop.f32.mrb[0].mxu0
    %v3449 = vadd.f32 %v3159, %v3448
    %3450 = vmatprep.mubr.bf16.mxu0 0
    %3451 = vmatmul.mubr.bf16.gmra.mrb[0].mxu0 %v3254
    %v3452 = vpop.f32.mrb[0].mxu0
    %v3453 = vadd.f32 %v3164, %v3452
    %v3454 = vpop.f32.mrb[0].mxu0
    %v3455 = vadd.f32 %v3164, %v3454
    %v3456 = vpop.f32.mrb[0].mxu0
    %v3457 = vadd.f32 %v3169, %v3456
    %v3458 = vpop.f32.mrb[0].mxu0
    %v3459 = vadd.f32 %v3169, %v3458
    %3460 = vmatprep.mubr.bf16.mxu0 0
    %3461 = vmatmul.mubr.bf16.gmra.mrb[0].mxu0 %v3257
    %v3462 = vpop.f32.mrb[0].mxu0
    %v3463 = vadd.f32 %v3174, %v3462
    %v3464 = vpop.f32.mrb[0].mxu0
    %v3465 = vadd.f32 %v3174, %v3464
    %v3466 = vpop.f32.mrb[0].mxu0
    %v3467 = vadd.f32 %v3179, %v3466
    %v3468 = vpop.f32.mrb[0].mxu0
    %v3469 = vadd.f32 %v3179, %v3468
    %3470 = vmatprep.mubr.bf16.mxu0 0
    %3471 = vmatmul.mubr.bf16.gmra.mrb[0].mxu0 %v3260
    %v3472 = vpop.f32.mrb[0].mxu0
    %v3473 = vadd.f32 %v3184, %v3472
    %v3474 = vpop.f32.mrb[0].mxu0
    %v3475 = vadd.f32 %v3184, %v3474
    %v3476 = vpop.f32.mrb[0].mxu0
    %v3477 = vadd.f32 %v3189, %v3476
    %v3478 = vpop.f32.mrb[0].mxu0
    %v3479 = vadd.f32 %v3189, %v3478
    %3480 = vmatprep.mubr.bf16.mxu0 0
    %3481 = vmatmul.mubr.bf16.gmra.mrb[0].mxu0 %v3263
    %v3482 = vpop.f32.mrb[0].mxu0
    %v3483 = vadd.f32 %v3194, %v3482
    %v3484 = vpop.f32.mrb[0].mxu0
    %v3485 = vadd.f32 %v3194, %v3484
    %v3486 = vpop.f32.mrb[0].mxu0
    %v3487 = vadd.f32 %v3199, %v3486
    %v3488 = vpop.f32.mrb[0].mxu0
    %v3489 = vadd.f32 %v3199, %v3488
    %3490 = vdwg.mxu0
    %3491 = vmatprep.subr.bf16.mxu0 0
    %3492 = vmatpush1.bf16.msra.mxu0 %v3115
    %3493 = vmatprep.subr.bf16.mxu0 0
    %3494 = vmatpush1.bf16.msra.mxu0 %v3120
    %3495 = vmatprep.subr.bf16.mxu0 0
    %3496 = vmatpush1.bf16.msra.mxu0 0
    %3497 = vmatprep.subr.bf16.mxu0 0
    %3498 = vmatpush1.bf16.msra.mxu0 0
    %3499 = vmatprep.subr.bf16.mxu0 0
    %3500 = vmatpush1.bf16.msra.mxu0 0
    %3501 = vmatprep.subr.bf16.mxu0 0
    %3502 = vmatpush1.bf16.msra.mxu0 0
    %3503 = vmatprep.subr.bf16.mxu0 0
    %3504 = vmatpush1.bf16.msra.mxu0 0
    %3505 = vmatprep.subr.bf16.mxu0 0
    %3506 = vmatpush1.bf16.msra.mxu0 0
    %3507 = vmatprep.subr.bf16.mxu0 0
    %3508 = vmatpush1.bf16.msra.mxu0 0
    %3509 = vmatprep.subr.bf16.mxu0 0
    %3510 = vmatpush1.bf16.msra.mxu0 0
    %3511 = vmatprep.subr.bf16.mxu0 0
    %3512 = vmatpush1.bf16.msra.mxu0 0
    %3513 = vmatprep.subr.bf16.mxu0 0
    %3514 = vmatpush1.bf16.msra.mxu0 0
    %3515 = vmatprep.subr.bf16.mxu0 0
    %3516 = vmatpush1.bf16.msra.mxu0 0
    %3517 = vmatprep.subr.bf16.mxu0 0
    %3518 = vmatpush1.bf16.msra.mxu0 0
    %3519 = vmatprep.subr.bf16.mxu0 0
    %3520 = vmatpush1.bf16.msra.mxu0 0
    %3521 = vmatprep.subr.bf16.mxu0 0
    %3522 = vmatpush1.bf16.msra.mxu0 0
    %3523 = vmatprep.mubr.bf16.mxu0 0
    %3524 = vmatmul.mubr.bf16.gmra.mrb[0].mxu0 %v3242
    %v3525 = vpop.f32.mrb[0].mxu0
    %v3526 = vadd.f32 %v3124, %v3525
    %v3527 = vpop.f32.mrb[0].mxu0
    %v3528 = vpop.f32.mrb[0].mxu0
    %v3529 = vadd.f32 %v3129, %v3528
    %v3530 = vpop.f32.mrb[0].mxu0
    %3531 = vmatprep.mubr.bf16.mxu0 0
    %3532 = vmatmul.mubr.bf16.gmra.mrb[0].mxu0 %v3245
    %v3533 = vpop.f32.mrb[0].mxu0
    %v3534 = vadd.f32 %v3134, %v3533
    %v3535 = vpop.f32.mrb[0].mxu0
    %v3536 = vpop.f32.mrb[0].mxu0
    %v3537 = vadd.f32 %v3139, %v3536
    %v3538 = vpop.f32.mrb[0].mxu0
    %3539 = vmatprep.mubr.bf16.mxu0 0
    %3540 = vmatmul.mubr.bf16.gmra.mrb[0].mxu0 %v3248
    %v3541 = vpop.f32.mrb[0].mxu0
    %v3542 = vadd.f32 %v3144, %v3541
    %v3543 = vpop.f32.mrb[0].mxu0
    %v3544 = vpop.f32.mrb[0].mxu0
    %v3545 = vadd.f32 %v3149, %v3544
    %v3546 = vpop.f32.mrb[0].mxu0
    %3547 = vmatprep.mubr.bf16.mxu0 0
    %3548 = vmatmul.mubr.bf16.gmra.mrb[0].mxu0 %v3251
    %v3549 = vpop.f32.mrb[0].mxu0
    %v3550 = vadd.f32 %v3154, %v3549
    %v3551 = vpop.f32.mrb[0].mxu0
    %v3552 = vpop.f32.mrb[0].mxu0
    %v3553 = vadd.f32 %v3159, %v3552
    %v3554 = vpop.f32.mrb[0].mxu0
    %3555 = vmatprep.mubr.bf16.mxu0 0
    %3556 = vmatmul.mubr.bf16.gmra.mrb[0].mxu0 %v3254
    %v3557 = vpop.f32.mrb[0].mxu0
    %v3558 = vadd.f32 %v3164, %v3557
    %v3559 = vpop.f32.mrb[0].mxu0
    %v3560 = vpop.f32.mrb[0].mxu0
    %v3561 = vadd.f32 %v3169, %v3560
    %v3562 = vpop.f32.mrb[0].mxu0
    %3563 = vmatprep.mubr.bf16.mxu0 0
    %3564 = vmatmul.mubr.bf16.gmra.mrb[0].mxu0 %v3257
    %v3565 = vpop.f32.mrb[0].mxu0
    %v3566 = vadd.f32 %v3174, %v3565
    %v3567 = vpop.f32.mrb[0].mxu0
    %v3568 = vpop.f32.mrb[0].mxu0
    %v3569 = vadd.f32 %v3179, %v3568
    %v3570 = vpop.f32.mrb[0].mxu0
    %3571 = vmatprep.mubr.bf16.mxu0 0
    %3572 = vmatmul.mubr.bf16.gmra.mrb[0].mxu0 %v3260
    %v3573 = vpop.f32.mrb[0].mxu0
    %v3574 = vadd.f32 %v3184, %v3573
    %v3575 = vpop.f32.mrb[0].mxu0
    %v3576 = vpop.f32.mrb[0].mxu0
    %v3577 = vadd.f32 %v3189, %v3576
    %v3578 = vpop.f32.mrb[0].mxu0
    %3579 = vmatprep.mubr.bf16.mxu0 0
    %3580 = vmatmul.mubr.bf16.gmra.mrb[0].mxu0 %v3263
    %v3581 = vpop.f32.mrb[0].mxu0
    %v3582 = vadd.f32 %v3194, %v3581
    %v3583 = vpop.f32.mrb[0].mxu0
    %v3584 = vpop.f32.mrb[0].mxu0
    %v3585 = vadd.f32 %v3199, %v3584
    %v3586 = vpop.f32.mrb[0].mxu0
    %3587 = vdwg.mxu0
    %v3588 = vmul.f32 %v3300, 0.5
    %v3589 = vmul.f32 %v3302, 0.5
    %v3590 = vmul.f32 %v3413, 0.5
    %v3591 = vmul.f32 %v3415, 0.5
    %v3592 = vmul.f32 %v3526, 0.5
    %v3593 = vmul.f32 %v3304, 0.5
    %v3594 = vmul.f32 %v3306, 0.5
    %v3595 = vmul.f32 %v3417, 0.5
    %v3596 = vmul.f32 %v3419, 0.5
    %v3597 = vmul.f32 %v3529, 0.5
    %v3598 = vmul.f32 %v3310, 0.5
    %v3599 = vmul.f32 %v3312, 0.5
    %v3600 = vmul.f32 %v3423, 0.5
    %v3601 = vmul.f32 %v3425, 0.5
    %v3602 = vmul.f32 %v3534, 0.5
    %v3603 = vmul.f32 %v3314, 0.5
    %v3604 = vmul.f32 %v3316, 0.5
    %v3605 = vmul.f32 %v3427, 0.5
    %v3606 = vmul.f32 %v3429, 0.5
    %v3607 = vmul.f32 %v3537, 0.5
    %v3608 = vmul.f32 %v3320, 0.5
    %v3609 = vmul.f32 %v3322, 0.5
    %v3610 = vmul.f32 %v3433, 0.5
    %v3611 = vmul.f32 %v3435, 0.5
    %v3612 = vmul.f32 %v3542, 0.5
    %v3613 = vmul.f32 %v3324, 0.5
    %v3614 = vmul.f32 %v3326, 0.5
    %v3615 = vmul.f32 %v3437, 0.5
    %v3616 = vmul.f32 %v3439, 0.5
    %v3617 = vmul.f32 %v3545, 0.5
    %v3618 = vmul.f32 %v3330, 0.5
    %v3619 = vmul.f32 %v3332, 0.5
    %v3620 = vmul.f32 %v3443, 0.5
    %v3621 = vmul.f32 %v3445, 0.5
    %v3622 = vmul.f32 %v3550, 0.5
    %v3623 = vmul.f32 %v3334, 0.5
    %v3624 = vmul.f32 %v3336, 0.5
    %v3625 = vmul.f32 %v3447, 0.5
    %v3626 = vmul.f32 %v3449, 0.5
    %v3627 = vmul.f32 %v3553, 0.5
    %v3628 = vmul.f32 %v3340, 0.5
    %v3629 = vmul.f32 %v3342, 0.5
    %v3630 = vmul.f32 %v3453, 0.5
    %v3631 = vmul.f32 %v3455, 0.5
    %v3632 = vmul.f32 %v3558, 0.5
    %v3633 = vmul.f32 %v3344, 0.5
    %v3634 = vmul.f32 %v3346, 0.5
    %v3635 = vmul.f32 %v3457, 0.5
    %v3636 = vmul.f32 %v3459, 0.5
    %v3637 = vmul.f32 %v3561, 0.5
    %v3638 = vmul.f32 %v3350, 0.5
    %v3639 = vmul.f32 %v3352, 0.5
    %v3640 = vmul.f32 %v3463, 0.5
    %v3641 = vmul.f32 %v3465, 0.5
    %v3642 = vmul.f32 %v3566, 0.5
    %v3643 = vmul.f32 %v3354, 0.5
    %v3644 = vmul.f32 %v3356, 0.5
    %v3645 = vmul.f32 %v3467, 0.5
    %v3646 = vmul.f32 %v3469, 0.5
    %v3647 = vmul.f32 %v3569, 0.5
    %v3648 = vmul.f32 %v3360, 0.5
    %v3649 = vmul.f32 %v3362, 0.5
    %v3650 = vmul.f32 %v3473, 0.5
    %v3651 = vmul.f32 %v3475, 0.5
    %v3652 = vmul.f32 %v3574, 0.5
    %v3653 = vmul.f32 %v3364, 0.5
    %v3654 = vmul.f32 %v3366, 0.5
    %v3655 = vmul.f32 %v3477, 0.5
    %v3656 = vmul.f32 %v3479, 0.5
    %v3657 = vmul.f32 %v3577, 0.5
    %v3658 = vmul.f32 %v3370, 0.5
    %v3659 = vmul.f32 %v3372, 0.5
    %v3660 = vmul.f32 %v3483, 0.5
    %v3661 = vmul.f32 %v3485, 0.5
    %v3662 = vmul.f32 %v3582, 0.5
    %v3663 = vmul.f32 %v3374, 0.5
    %v3664 = vmul.f32 %v3376, 0.5
    %v3665 = vmul.f32 %v3487, 0.5
    %v3666 = vmul.f32 %v3489, 0.5
    %v3667 = vmul.f32 %v3585, 0.5
    %v3668 = vmul.f32 %v3300, 0.044715
    %v3669 = vmul.f32 %v3302, 0.044715
    %v3670 = vmul.f32 %v3413, 0.044715
    %v3671 = vmul.f32 %v3415, 0.044715
    %v3672 = vmul.f32 %v3526, 0.044715
    %v3673 = vmul.f32 %v3304, 0.044715
    %v3674 = vmul.f32 %v3306, 0.044715
    %v3675 = vmul.f32 %v3417, 0.044715
    %v3676 = vmul.f32 %v3419, 0.044715
    %v3677 = vmul.f32 %v3529, 0.044715
    %v3678 = vmul.f32 %v3310, 0.044715
    %v3679 = vmul.f32 %v3312, 0.044715
    %v3680 = vmul.f32 %v3423, 0.044715
    %v3681 = vmul.f32 %v3425, 0.044715
    %v3682 = vmul.f32 %v3534, 0.044715
    %v3683 = vmul.f32 %v3314, 0.044715
    %v3684 = vmul.f32 %v3316, 0.044715
    %v3685 = vmul.f32 %v3427, 0.044715
    %v3686 = vmul.f32 %v3429, 0.044715
    %v3687 = vmul.f32 %v3537, 0.044715
    %v3688 = vmul.f32 %v3320, 0.044715
    %v3689 = vmul.f32 %v3322, 0.044715
    %v3690 = vmul.f32 %v3433, 0.044715
    %v3691 = vmul.f32 %v3435, 0.044715
    %v3692 = vmul.f32 %v3542, 0.044715
    %v3693 = vmul.f32 %v3324, 0.044715
    %v3694 = vmul.f32 %v3326, 0.044715
    %v3695 = vmul.f32 %v3437, 0.044715
    %v3696 = vmul.f32 %v3439, 0.044715
    %v3697 = vmul.f32 %v3545, 0.044715
    %v3698 = vmul.f32 %v3330, 0.044715
    %v3699 = vmul.f32 %v3332, 0.044715
    %v3700 = vmul.f32 %v3443, 0.044715
    %v3701 = vmul.f32 %v3445, 0.044715
    %v3702 = vmul.f32 %v3550, 0.044715
    %v3703 = vmul.f32 %v3334, 0.044715
    %v3704 = vmul.f32 %v3336, 0.044715
    %v3705 = vmul.f32 %v3447, 0.044715
    %v3706 = vmul.f32 %v3449, 0.044715
    %v3707 = vmul.f32 %v3553, 0.044715
    %v3708 = vmul.f32 %v3340, 0.044715
    %v3709 = vmul.f32 %v3342, 0.044715
    %v3710 = vmul.f32 %v3453, 0.044715
    %v3711 = vmul.f32 %v3455, 0.044715
    %v3712 = vmul.f32 %v3558, 0.044715
    %v3713 = vmul.f32 %v3344, 0.044715
    %v3714 = vmul.f32 %v3346, 0.044715
    %v3715 = vmul.f32 %v3457, 0.044715
    %v3716 = vmul.f32 %v3459, 0.044715
    %v3717 = vmul.f32 %v3561, 0.044715
    %v3718 = vmul.f32 %v3350, 0.044715
    %v3719 = vmul.f32 %v3352, 0.044715
    %v3720 = vmul.f32 %v3463, 0.044715
    %v3721 = vmul.f32 %v3465, 0.044715
    %v3722 = vmul.f32 %v3566, 0.044715
    %v3723 = vmul.f32 %v3354, 0.044715
    %v3724 = vmul.f32 %v3356, 0.044715
    %v3725 = vmul.f32 %v3467, 0.044715
    %v3726 = vmul.f32 %v3469, 0.044715
    %v3727 = vmul.f32 %v3569, 0.044715
    %v3728 = vmul.f32 %v3360, 0.044715
    %v3729 = vmul.f32 %v3362, 0.044715
    %v3730 = vmul.f32 %v3473, 0.044715
    %v3731 = vmul.f32 %v3475, 0.044715
    %v3732 = vmul.f32 %v3574, 0.044715
    %v3733 = vmul.f32 %v3364, 0.044715
    %v3734 = vmul.f32 %v3366, 0.044715
    %v3735 = vmul.f32 %v3477, 0.044715
    %v3736 = vmul.f32 %v3479, 0.044715
    %v3737 = vmul.f32 %v3577, 0.044715
    %v3738 = vmul.f32 %v3370, 0.044715
    %v3739 = vmul.f32 %v3372, 0.044715
    %v3740 = vmul.f32 %v3483, 0.044715
    %v3741 = vmul.f32 %v3485, 0.044715
    %v3742 = vmul.f32 %v3582, 0.044715
    %v3743 = vmul.f32 %v3374, 0.044715
    %v3744 = vmul.f32 %v3376, 0.044715
    %v3745 = vmul.f32 %v3487, 0.044715
    %v3746 = vmul.f32 %v3489, 0.044715
    %v3747 = vmul.f32 %v3585, 0.044715
    %v3748 = vmul.f32 %v3668, %v3300
    %v3749 = vmul.f32 %v3669, %v3302
    %v3750 = vmul.f32 %v3670, %v3413
    %v3751 = vmul.f32 %v3671, %v3415
    %v3752 = vmul.f32 %v3672, %v3526
    %v3753 = vmul.f32 %v3673, %v3304
    %v3754 = vmul.f32 %v3674, %v3306
    %v3755 = vmul.f32 %v3675, %v3417
    %v3756 = vmul.f32 %v3676, %v3419
    %v3757 = vmul.f32 %v3677, %v3529
    %v3758 = vmul.f32 %v3678, %v3310
    %v3759 = vmul.f32 %v3679, %v3312
    %v3760 = vmul.f32 %v3680, %v3423
    %v3761 = vmul.f32 %v3681, %v3425
    %v3762 = vmul.f32 %v3682, %v3534
    %v3763 = vmul.f32 %v3683, %v3314
    %v3764 = vmul.f32 %v3684, %v3316
    %v3765 = vmul.f32 %v3685, %v3427
    %v3766 = vmul.f32 %v3686, %v3429
    %v3767 = vmul.f32 %v3687, %v3537
    %v3768 = vmul.f32 %v3688, %v3320
    %v3769 = vmul.f32 %v3689, %v3322
    %v3770 = vmul.f32 %v3690, %v3433
    %v3771 = vmul.f32 %v3691, %v3435
    %v3772 = vmul.f32 %v3692, %v3542
    %v3773 = vmul.f32 %v3693, %v3324
    %v3774 = vmul.f32 %v3694, %v3326
    %v3775 = vmul.f32 %v3695, %v3437
    %v3776 = vmul.f32 %v3696, %v3439
    %v3777 = vmul.f32 %v3697, %v3545
    %v3778 = vmul.f32 %v3698, %v3330
    %v3779 = vmul.f32 %v3699, %v3332
    %v3780 = vmul.f32 %v3700, %v3443
    %v3781 = vmul.f32 %v3701, %v3445
    %v3782 = vmul.f32 %v3702, %v3550
    %v3783 = vmul.f32 %v3703, %v3334
    %v3784 = vmul.f32 %v3704, %v3336
    %v3785 = vmul.f32 %v3705, %v3447
    %v3786 = vmul.f32 %v3706, %v3449
    %v3787 = vmul.f32 %v3707, %v3553
    %v3788 = vmul.f32 %v3708, %v3340
    %v3789 = vmul.f32 %v3709, %v3342
    %v3790 = vmul.f32 %v3710, %v3453
    %v3791 = vmul.f32 %v3711, %v3455
    %v3792 = vmul.f32 %v3712, %v3558
    %v3793 = vmul.f32 %v3713, %v3344
    %v3794 = vmul.f32 %v3714, %v3346
    %v3795 = vmul.f32 %v3715, %v3457
    %v3796 = vmul.f32 %v3716, %v3459
    %v3797 = vmul.f32 %v3717, %v3561
    %v3798 = vmul.f32 %v3718, %v3350
    %v3799 = vmul.f32 %v3719, %v3352
    %v3800 = vmul.f32 %v3720, %v3463
    %v3801 = vmul.f32 %v3721, %v3465
    %v3802 = vmul.f32 %v3722, %v3566
    %v3803 = vmul.f32 %v3723, %v3354
    %v3804 = vmul.f32 %v3724, %v3356
    %v3805 = vmul.f32 %v3725, %v3467
    %v3806 = vmul.f32 %v3726, %v3469
    %v3807 = vmul.f32 %v3727, %v3569
    %v3808 = vmul.f32 %v3728, %v3360
    %v3809 = vmul.f32 %v3729, %v3362
    %v3810 = vmul.f32 %v3730, %v3473
    %v3811 = vmul.f32 %v3731, %v3475
    %v3812 = vmul.f32 %v3732, %v3574
    %v3813 = vmul.f32 %v3733, %v3364
    %v3814 = vmul.f32 %v3734, %v3366
    %v3815 = vmul.f32 %v3735, %v3477
    %v3816 = vmul.f32 %v3736, %v3479
    %v3817 = vmul.f32 %v3737, %v3577
    %v3818 = vmul.f32 %v3738, %v3370
    %v3819 = vmul.f32 %v3739, %v3372
    %v3820 = vmul.f32 %v3740, %v3483
    %v3821 = vmul.f32 %v3741, %v3485
    %v3822 = vmul.f32 %v3742, %v3582
    %v3823 = vmul.f32 %v3743, %v3374
    %v3824 = vmul.f32 %v3744, %v3376
    %v3825 = vmul.f32 %v3745, %v3487
    %v3826 = vmul.f32 %v3746, %v3489
    %v3827 = vmul.f32 %v3747, %v3585
    %v3828 = vmul.f32 %v3748, %v3300
    %v3829 = vmul.f32 %v3749, %v3302
    %v3830 = vmul.f32 %v3750, %v3413
    %v3831 = vmul.f32 %v3751, %v3415
    %v3832 = vmul.f32 %v3752, %v3526
    %v3833 = vmul.f32 %v3753, %v3304
    %v3834 = vmul.f32 %v3754, %v3306
    %v3835 = vmul.f32 %v3755, %v3417
    %v3836 = vmul.f32 %v3756, %v3419
    %v3837 = vmul.f32 %v3757, %v3529
    %v3838 = vmul.f32 %v3758, %v3310
    %v3839 = vmul.f32 %v3759, %v3312
    %v3840 = vmul.f32 %v3760, %v3423
    %v3841 = vmul.f32 %v3761, %v3425
    %v3842 = vmul.f32 %v3762, %v3534
    %v3843 = vmul.f32 %v3763, %v3314
    %v3844 = vmul.f32 %v3764, %v3316
    %v3845 = vmul.f32 %v3765, %v3427
    %v3846 = vmul.f32 %v3766, %v3429
    %v3847 = vmul.f32 %v3767, %v3537
    %v3848 = vmul.f32 %v3768, %v3320
    %v3849 = vmul.f32 %v3769, %v3322
    %v3850 = vmul.f32 %v3770, %v3433
    %v3851 = vmul.f32 %v3771, %v3435
    %v3852 = vmul.f32 %v3772, %v3542
    %v3853 = vmul.f32 %v3773, %v3324
    %v3854 = vmul.f32 %v3774, %v3326
    %v3855 = vmul.f32 %v3775, %v3437
    %v3856 = vmul.f32 %v3776, %v3439
    %v3857 = vmul.f32 %v3777, %v3545
    %v3858 = vmul.f32 %v3778, %v3330
    %v3859 = vmul.f32 %v3779, %v3332
    %v3860 = vmul.f32 %v3780, %v3443
    %v3861 = vmul.f32 %v3781, %v3445
    %v3862 = vmul.f32 %v3782, %v3550
    %v3863 = vmul.f32 %v3783, %v3334
    %v3864 = vmul.f32 %v3784, %v3336
    %v3865 = vmul.f32 %v3785, %v3447
    %v3866 = vmul.f32 %v3786, %v3449
    %v3867 = vmul.f32 %v3787, %v3553
    %v3868 = vmul.f32 %v3788, %v3340
    %v3869 = vmul.f32 %v3789, %v3342
    %v3870 = vmul.f32 %v3790, %v3453
    %v3871 = vmul.f32 %v3791, %v3455
    %v3872 = vmul.f32 %v3792, %v3558
    %v3873 = vmul.f32 %v3793, %v3344
    %v3874 = vmul.f32 %v3794, %v3346
    %v3875 = vmul.f32 %v3795, %v3457
    %v3876 = vmul.f32 %v3796, %v3459
    %v3877 = vmul.f32 %v3797, %v3561
    %v3878 = vmul.f32 %v3798, %v3350
    %v3879 = vmul.f32 %v3799, %v3352
    %v3880 = vmul.f32 %v3800, %v3463
    %v3881 = vmul.f32 %v3801, %v3465
    %v3882 = vmul.f32 %v3802, %v3566
    %v3883 = vmul.f32 %v3803, %v3354
    %v3884 = vmul.f32 %v3804, %v3356
    %v3885 = vmul.f32 %v3805, %v3467
    %v3886 = vmul.f32 %v3806, %v3469
    %v3887 = vmul.f32 %v3807, %v3569
    %v3888 = vmul.f32 %v3808, %v3360
    %v3889 = vmul.f32 %v3809, %v3362
    %v3890 = vmul.f32 %v3810, %v3473
    %v3891 = vmul.f32 %v3811, %v3475
    %v3892 = vmul.f32 %v3812, %v3574
    %v3893 = vmul.f32 %v3813, %v3364
    %v3894 = vmul.f32 %v3814, %v3366
    %v3895 = vmul.f32 %v3815, %v3477
    %v3896 = vmul.f32 %v3816, %v3479
    %v3897 = vmul.f32 %v3817, %v3577
    %v3898 = vmul.f32 %v3818, %v3370
    %v3899 = vmul.f32 %v3819, %v3372
    %v3900 = vmul.f32 %v3820, %v3483
    %v3901 = vmul.f32 %v3821, %v3485
    %v3902 = vmul.f32 %v3822, %v3582
    %v3903 = vmul.f32 %v3823, %v3374
    %v3904 = vmul.f32 %v3824, %v3376
    %v3905 = vmul.f32 %v3825, %v3487
    %v3906 = vmul.f32 %v3826, %v3489
    %v3907 = vmul.f32 %v3827, %v3585
    %v3908 = vadd.f32 %v3300, %v3828
    %v3909 = vadd.f32 %v3302, %v3829
    %v3910 = vadd.f32 %v3413, %v3830
    %v3911 = vadd.f32 %v3415, %v3831
    %v3912 = vadd.f32 %v3526, %v3832
    %v3913 = vadd.f32 %v3304, %v3833
    %v3914 = vadd.f32 %v3306, %v3834
    %v3915 = vadd.f32 %v3417, %v3835
    %v3916 = vadd.f32 %v3419, %v3836
    %v3917 = vadd.f32 %v3529, %v3837
    %v3918 = vadd.f32 %v3310, %v3838
    %v3919 = vadd.f32 %v3312, %v3839
    %v3920 = vadd.f32 %v3423, %v3840
    %v3921 = vadd.f32 %v3425, %v3841
    %v3922 = vadd.f32 %v3534, %v3842
    %v3923 = vadd.f32 %v3314, %v3843
    %v3924 = vadd.f32 %v3316, %v3844
    %v3925 = vadd.f32 %v3427, %v3845
    %v3926 = vadd.f32 %v3429, %v3846
    %v3927 = vadd.f32 %v3537, %v3847
    %v3928 = vadd.f32 %v3320, %v3848
    %v3929 = vadd.f32 %v3322, %v3849
    %v3930 = vadd.f32 %v3433, %v3850
    %v3931 = vadd.f32 %v3435, %v3851
    %v3932 = vadd.f32 %v3542, %v3852
    %v3933 = vadd.f32 %v3324, %v3853
    %v3934 = vadd.f32 %v3326, %v3854
    %v3935 = vadd.f32 %v3437, %v3855
    %v3936 = vadd.f32 %v3439, %v3856
    %v3937 = vadd.f32 %v3545, %v3857
    %v3938 = vadd.f32 %v3330, %v3858
    %v3939 = vadd.f32 %v3332, %v3859
    %v3940 = vadd.f32 %v3443, %v3860
    %v3941 = vadd.f32 %v3445, %v3861
    %v3942 = vadd.f32 %v3550, %v3862
    %v3943 = vadd.f32 %v3334, %v3863
    %v3944 = vadd.f32 %v3336, %v3864
    %v3945 = vadd.f32 %v3447, %v3865
    %v3946 = vadd.f32 %v3449, %v3866
    %v3947 = vadd.f32 %v3553, %v3867
    %v3948 = vadd.f32 %v3340, %v3868
    %v3949 = vadd.f32 %v3342, %v3869
    %v3950 = vadd.f32 %v3453, %v3870
    %v3951 = vadd.f32 %v3455, %v3871
    %v3952 = vadd.f32 %v3558, %v3872
    %v3953 = vadd.f32 %v3344, %v3873
    %v3954 = vadd.f32 %v3346, %v3874
    %v3955 = vadd.f32 %v3457, %v3875
    %v3956 = vadd.f32 %v3459, %v3876
    %v3957 = vadd.f32 %v3561, %v3877
    %v3958 = vadd.f32 %v3350, %v3878
    %v3959 = vadd.f32 %v3352, %v3879
    %v3960 = vadd.f32 %v3463, %v3880
    %v3961 = vadd.f32 %v3465, %v3881
    %v3962 = vadd.f32 %v3566, %v3882
    %v3963 = vadd.f32 %v3354, %v3883
    %v3964 = vadd.f32 %v3356, %v3884
    %v3965 = vadd.f32 %v3467, %v3885
    %v3966 = vadd.f32 %v3469, %v3886
    %v3967 = vadd.f32 %v3569, %v3887
    %v3968 = vadd.f32 %v3360, %v3888
    %v3969 = vadd.f32 %v3362, %v3889
    %v3970 = vadd.f32 %v3473, %v3890
    %v3971 = vadd.f32 %v3475, %v3891
    %v3972 = vadd.f32 %v3574, %v3892
    %v3973 = vadd.f32 %v3364, %v3893
    %v3974 = vadd.f32 %v3366, %v3894
    %v3975 = vadd.f32 %v3477, %v3895
    %v3976 = vadd.f32 %v3479, %v3896
    %v3977 = vadd.f32 %v3577, %v3897
    %v3978 = vadd.f32 %v3370, %v3898
    %v3979 = vadd.f32 %v3372, %v3899
    %v3980 = vadd.f32 %v3483, %v3900
    %v3981 = vadd.f32 %v3485, %v3901
    %v3982 = vadd.f32 %v3582, %v3902
    %v3983 = vadd.f32 %v3374, %v3903
    %v3984 = vadd.f32 %v3376, %v3904
    %v3985 = vadd.f32 %v3487, %v3905
    %v3986 = vadd.f32 %v3489, %v3906
    %v3987 = vadd.f32 %v3585, %v3907
    %v3988 = vmul.f32 %v3908, 0.7978846
    %v3989 = vmul.f32 %v3909, 0.7978846
    %v3990 = vmul.f32 %v3910, 0.7978846
    %v3991 = vmul.f32 %v3911, 0.7978846
    %v3992 = vmul.f32 %v3912, 0.7978846
    %v3993 = vmul.f32 %v3913, 0.7978846
    %v3994 = vmul.f32 %v3914, 0.7978846
    %v3995 = vmul.f32 %v3915, 0.7978846
    %v3996 = vmul.f32 %v3916, 0.7978846
    %v3997 = vmul.f32 %v3917, 0.7978846
    %v3998 = vmul.f32 %v3918, 0.7978846
    %v3999 = vmul.f32 %v3919, 0.7978846
    %v4000 = vmul.f32 %v3920, 0.7978846
    %v4001 = vmul.f32 %v3921, 0.7978846
    %v4002 = vmul.f32 %v3922, 0.7978846
    %v4003 = vmul.f32 %v3923, 0.7978846
    %v4004 = vmul.f32 %v3924, 0.7978846
    %v4005 = vmul.f32 %v3925, 0.7978846
    %v4006 = vmul.f32 %v3926, 0.7978846
    %v4007 = vmul.f32 %v3927, 0.7978846
    %v4008 = vmul.f32 %v3928, 0.7978846
    %v4009 = vmul.f32 %v3929, 0.7978846
    %v4010 = vmul.f32 %v3930, 0.7978846
    %v4011 = vmul.f32 %v3931, 0.7978846
    %v4012 = vmul.f32 %v3932, 0.7978846
    %v4013 = vmul.f32 %v3933, 0.7978846
    %v4014 = vmul.f32 %v3934, 0.7978846
    %v4015 = vmul.f32 %v3935, 0.7978846
    %v4016 = vmul.f32 %v3936, 0.7978846
    %v4017 = vmul.f32 %v3937, 0.7978846
    %v4018 = vmul.f32 %v3938, 0.7978846
    %v4019 = vmul.f32 %v3939, 0.7978846
    %v4020 = vmul.f32 %v3940, 0.7978846
    %v4021 = vmul.f32 %v3941, 0.7978846
    %v4022 = vmul.f32 %v3942, 0.7978846
    %v4023 = vmul.f32 %v3943, 0.7978846
    %v4024 = vmul.f32 %v3944, 0.7978846
    %v4025 = vmul.f32 %v3945, 0.7978846
    %v4026 = vmul.f32 %v3946, 0.7978846
    %v4027 = vmul.f32 %v3947, 0.7978846
    %v4028 = vmul.f32 %v3948, 0.7978846
    %v4029 = vmul.f32 %v3949, 0.7978846
    %v4030 = vmul.f32 %v3950, 0.7978846
    %v4031 = vmul.f32 %v3951, 0.7978846
    %v4032 = vmul.f32 %v3952, 0.7978846
    %v4033 = vmul.f32 %v3953, 0.7978846
    %v4034 = vmul.f32 %v3954, 0.7978846
    %v4035 = vmul.f32 %v3955, 0.7978846
    %v4036 = vmul.f32 %v3956, 0.7978846
    %v4037 = vmul.f32 %v3957, 0.7978846
    %v4038 = vmul.f32 %v3958, 0.7978846
    %v4039 = vmul.f32 %v3959, 0.7978846
    %v4040 = vmul.f32 %v3960, 0.7978846
    %v4041 = vmul.f32 %v3961, 0.7978846
    %v4042 = vmul.f32 %v3962, 0.7978846
    %v4043 = vmul.f32 %v3963, 0.7978846
    %v4044 = vmul.f32 %v3964, 0.7978846
    %v4045 = vmul.f32 %v3965, 0.7978846
    %v4046 = vmul.f32 %v3966, 0.7978846
    %v4047 = vmul.f32 %v3967, 0.7978846
    %v4048 = vmul.f32 %v3968, 0.7978846
    %v4049 = vmul.f32 %v3969, 0.7978846
    %v4050 = vmul.f32 %v3970, 0.7978846
    %v4051 = vmul.f32 %v3971, 0.7978846
    %v4052 = vmul.f32 %v3972, 0.7978846
    %v4053 = vmul.f32 %v3973, 0.7978846
    %v4054 = vmul.f32 %v3974, 0.7978846
    %v4055 = vmul.f32 %v3975, 0.7978846
    %v4056 = vmul.f32 %v3976, 0.7978846
    %v4057 = vmul.f32 %v3977, 0.7978846
    %v4058 = vmul.f32 %v3978, 0.7978846
    %v4059 = vmul.f32 %v3979, 0.7978846
    %v4060 = vmul.f32 %v3980, 0.7978846
    %v4061 = vmul.f32 %v3981, 0.7978846
    %v4062 = vmul.f32 %v3982, 0.7978846
    %v4063 = vmul.f32 %v3983, 0.7978846
    %v4064 = vmul.f32 %v3984, 0.7978846
    %v4065 = vmul.f32 %v3985, 0.7978846
    %v4066 = vmul.f32 %v3986, 0.7978846
    %v4067 = vmul.f32 %v3987, 0.7978846
    %v4068 = vtanh.pop %v3988
    %v4069 = vtanh.pop %v3989
    %v4070 = vtanh.pop %v3990
    %v4071 = vtanh.pop %v3991
    %v4072 = vtanh.pop %v3992
    %v4073 = vtanh.pop %v3993
    %v4074 = vtanh.pop %v3994
    %v4075 = vtanh.pop %v3995
    %v4076 = vtanh.pop %v3996
    %v4077 = vtanh.pop %v3997
    %v4078 = vtanh.pop %v3998
    %v4079 = vtanh.pop %v3999
    %v4080 = vtanh.pop %v4000
    %v4081 = vtanh.pop %v4001
    %v4082 = vtanh.pop %v4002
    %v4083 = vtanh.pop %v4003
    %v4084 = vtanh.pop %v4004
    %v4085 = vtanh.pop %v4005
    %v4086 = vtanh.pop %v4006
    %v4087 = vtanh.pop %v4007
    %v4088 = vtanh.pop %v4008
    %v4089 = vtanh.pop %v4009
    %v4090 = vtanh.pop %v4010
    %v4091 = vtanh.pop %v4011
    %v4092 = vtanh.pop %v4012
    %v4093 = vtanh.pop %v4013
    %v4094 = vtanh.pop %v4014
    %v4095 = vtanh.pop %v4015
    %v4096 = vtanh.pop %v4016
    %v4097 = vtanh.pop %v4017
    %v4098 = vtanh.pop %v4018
    %v4099 = vtanh.pop %v4019
    %v4100 = vtanh.pop %v4020
    %v4101 = vtanh.pop %v4021
    %v4102 = vtanh.pop %v4022
    %v4103 = vtanh.pop %v4023
    %v4104 = vtanh.pop %v4024
    %v4105 = vtanh.pop %v4025
    %v4106 = vtanh.pop %v4026
    %v4107 = vtanh.pop %v4027
    %v4108 = vtanh.pop %v4028
    %v4109 = vtanh.pop %v4029
    %v4110 = vtanh.pop %v4030
    %v4111 = vtanh.pop %v4031
    %v4112 = vtanh.pop %v4032
    %v4113 = vtanh.pop %v4033
    %v4114 = vtanh.pop %v4034
    %v4115 = vtanh.pop %v4035
    %v4116 = vtanh.pop %v4036
    %v4117 = vtanh.pop %v4037
    %v4118 = vtanh.pop %v4038
    %v4119 = vtanh.pop %v4039
    %v4120 = vtanh.pop %v4040
    %v4121 = vtanh.pop %v4041
    %v4122 = vtanh.pop %v4042
    %v4123 = vtanh.pop %v4043
    %v4124 = vtanh.pop %v4044
    %v4125 = vtanh.pop %v4045
    %v4126 = vtanh.pop %v4046
    %v4127 = vtanh.pop %v4047
    %v4128 = vtanh.pop %v4048
    %v4129 = vtanh.pop %v4049
    %v4130 = vtanh.pop %v4050
    %v4131 = vtanh.pop %v4051
    %v4132 = vtanh.pop %v4052
    %v4133 = vtanh.pop %v4053
    %v4134 = vtanh.pop %v4054
    %v4135 = vtanh.pop %v4055
    %v4136 = vtanh.pop %v4056
    %v4137 = vtanh.pop %v4057
    %v4138 = vtanh.pop %v4058
    %v4139 = vtanh.pop %v4059
    %v4140 = vtanh.pop %v4060
    %v4141 = vtanh.pop %v4061
    %v4142 = vtanh.pop %v4062
    %v4143 = vtanh.pop %v4063
    %v4144 = vtanh.pop %v4064
    %v4145 = vtanh.pop %v4065
    %v4146 = vtanh.pop %v4066
    %v4147 = vtanh.pop %v4067
    %v4148 = vadd.f32 %v4068, 1.0
    %v4149 = vadd.f32 %v4069, 1.0
    %v4150 = vadd.f32 %v4070, 1.0
    %v4151 = vadd.f32 %v4071, 1.0
    %v4152 = vadd.f32 %v4072, 1.0
    %v4153 = vadd.f32 %v4073, 1.0
    %v4154 = vadd.f32 %v4074, 1.0
    %v4155 = vadd.f32 %v4075, 1.0
    %v4156 = vadd.f32 %v4076, 1.0
    %v4157 = vadd.f32 %v4077, 1.0
    %v4158 = vadd.f32 %v4078, 1.0
    %v4159 = vadd.f32 %v4079, 1.0
    %v4160 = vadd.f32 %v4080, 1.0
    %v4161 = vadd.f32 %v4081, 1.0
    %v4162 = vadd.f32 %v4082, 1.0
    %v4163 = vadd.f32 %v4083, 1.0
    %v4164 = vadd.f32 %v4084, 1.0
    %v4165 = vadd.f32 %v4085, 1.0
    %v4166 = vadd.f32 %v4086, 1.0
    %v4167 = vadd.f32 %v4087, 1.0
    %v4168 = vadd.f32 %v4088, 1.0
    %v4169 = vadd.f32 %v4089, 1.0
    %v4170 = vadd.f32 %v4090, 1.0
    %v4171 = vadd.f32 %v4091, 1.0
    %v4172 = vadd.f32 %v4092, 1.0
    %v4173 = vadd.f32 %v4093, 1.0
    %v4174 = vadd.f32 %v4094, 1.0
    %v4175 = vadd.f32 %v4095, 1.0
    %v4176 = vadd.f32 %v4096, 1.0
    %v4177 = vadd.f32 %v4097, 1.0
    %v4178 = vadd.f32 %v4098, 1.0
    %v4179 = vadd.f32 %v4099, 1.0
    %v4180 = vadd.f32 %v4100, 1.0
    %v4181 = vadd.f32 %v4101, 1.0
    %v4182 = vadd.f32 %v4102, 1.0
    %v4183 = vadd.f32 %v4103, 1.0
    %v4184 = vadd.f32 %v4104, 1.0
    %v4185 = vadd.f32 %v4105, 1.0
    %v4186 = vadd.f32 %v4106, 1.0
    %v4187 = vadd.f32 %v4107, 1.0
    %v4188 = vadd.f32 %v4108, 1.0
    %v4189 = vadd.f32 %v4109, 1.0
    %v4190 = vadd.f32 %v4110, 1.0
    %v4191 = vadd.f32 %v4111, 1.0
    %v4192 = vadd.f32 %v4112, 1.0
    %v4193 = vadd.f32 %v4113, 1.0
    %v4194 = vadd.f32 %v4114, 1.0
    %v4195 = vadd.f32 %v4115, 1.0
    %v4196 = vadd.f32 %v4116, 1.0
    %v4197 = vadd.f32 %v4117, 1.0
    %v4198 = vadd.f32 %v4118, 1.0
    %v4199 = vadd.f32 %v4119, 1.0
    %v4200 = vadd.f32 %v4120, 1.0
    %v4201 = vadd.f32 %v4121, 1.0
    %v4202 = vadd.f32 %v4122, 1.0
    %v4203 = vadd.f32 %v4123, 1.0
    %v4204 = vadd.f32 %v4124, 1.0
    %v4205 = vadd.f32 %v4125, 1.0
    %v4206 = vadd.f32 %v4126, 1.0
    %v4207 = vadd.f32 %v4127, 1.0
    %v4208 = vadd.f32 %v4128, 1.0
    %v4209 = vadd.f32 %v4129, 1.0
    %v4210 = vadd.f32 %v4130, 1.0
    %v4211 = vadd.f32 %v4131, 1.0
    %v4212 = vadd.f32 %v4132, 1.0
    %v4213 = vadd.f32 %v4133, 1.0
    %v4214 = vadd.f32 %v4134, 1.0
    %v4215 = vadd.f32 %v4135, 1.0
    %v4216 = vadd.f32 %v4136, 1.0
    %v4217 = vadd.f32 %v4137, 1.0
    %v4218 = vadd.f32 %v4138, 1.0
    %v4219 = vadd.f32 %v4139, 1.0
    %v4220 = vadd.f32 %v4140, 1.0
    %v4221 = vadd.f32 %v4141, 1.0
    %v4222 = vadd.f32 %v4142, 1.0
    %v4223 = vadd.f32 %v4143, 1.0
    %v4224 = vadd.f32 %v4144, 1.0
    %v4225 = vadd.f32 %v4145, 1.0
    %v4226 = vadd.f32 %v4146, 1.0
    %v4227 = vadd.f32 %v4147, 1.0
    %v4228 = vmul.f32 %v3588, %v4148
    %v4229 = vmul.f32 %v3589, %v4149
    %v4230 = vmul.f32 %v3590, %v4150
    %v4231 = vmul.f32 %v3591, %v4151
    %v4232 = vmul.f32 %v3592, %v4152
    %v4233 = vmul.f32 %v3593, %v4153
    %v4234 = vmul.f32 %v3594, %v4154
    %v4235 = vmul.f32 %v3595, %v4155
    %v4236 = vmul.f32 %v3596, %v4156
    %v4237 = vmul.f32 %v3597, %v4157
    %v4238 = vmul.f32 %v3598, %v4158
    %v4239 = vmul.f32 %v3599, %v4159
    %v4240 = vmul.f32 %v3600, %v4160
    %v4241 = vmul.f32 %v3601, %v4161
    %v4242 = vmul.f32 %v3602, %v4162
    %v4243 = vmul.f32 %v3603, %v4163
    %v4244 = vmul.f32 %v3604, %v4164
    %v4245 = vmul.f32 %v3605, %v4165
    %v4246 = vmul.f32 %v3606, %v4166
    %v4247 = vmul.f32 %v3607, %v4167
    %v4248 = vmul.f32 %v3608, %v4168
    %v4249 = vmul.f32 %v3609, %v4169
    %v4250 = vmul.f32 %v3610, %v4170
    %v4251 = vmul.f32 %v3611, %v4171
    %v4252 = vmul.f32 %v3612, %v4172
    %v4253 = vmul.f32 %v3613, %v4173
    %v4254 = vmul.f32 %v3614, %v4174
    %v4255 = vmul.f32 %v3615, %v4175
    %v4256 = vmul.f32 %v3616, %v4176
    %v4257 = vmul.f32 %v3617, %v4177
    %v4258 = vmul.f32 %v3618, %v4178
    %v4259 = vmul.f32 %v3619, %v4179
    %v4260 = vmul.f32 %v3620, %v4180
    %v4261 = vmul.f32 %v3621, %v4181
    %v4262 = vmul.f32 %v3622, %v4182
    %v4263 = vmul.f32 %v3623, %v4183
    %v4264 = vmul.f32 %v3624, %v4184
    %v4265 = vmul.f32 %v3625, %v4185
    %v4266 = vmul.f32 %v3626, %v4186
    %v4267 = vmul.f32 %v3627, %v4187
    %v4268 = vmul.f32 %v3628, %v4188
    %v4269 = vmul.f32 %v3629, %v4189
    %v4270 = vmul.f32 %v3630, %v4190
    %v4271 = vmul.f32 %v3631, %v4191
    %v4272 = vmul.f32 %v3632, %v4192
    %v4273 = vmul.f32 %v3633, %v4193
    %v4274 = vmul.f32 %v3634, %v4194
    %v4275 = vmul.f32 %v3635, %v4195
    %v4276 = vmul.f32 %v3636, %v4196
    %v4277 = vmul.f32 %v3637, %v4197
    %v4278 = vmul.f32 %v3638, %v4198
    %v4279 = vmul.f32 %v3639, %v4199
    %v4280 = vmul.f32 %v3640, %v4200
    %v4281 = vmul.f32 %v3641, %v4201
    %v4282 = vmul.f32 %v3642, %v4202
    %v4283 = vmul.f32 %v3643, %v4203
    %v4284 = vmul.f32 %v3644, %v4204
    %v4285 = vmul.f32 %v3645, %v4205
    %v4286 = vmul.f32 %v3646, %v4206
    %v4287 = vmul.f32 %v3647, %v4207
    %v4288 = vmul.f32 %v3648, %v4208
    %v4289 = vmul.f32 %v3649, %v4209
    %v4290 = vmul.f32 %v3650, %v4210
    %v4291 = vmul.f32 %v3651, %v4211
    %v4292 = vmul.f32 %v3652, %v4212
    %v4293 = vmul.f32 %v3653, %v4213
    %v4294 = vmul.f32 %v3654, %v4214
    %v4295 = vmul.f32 %v3655, %v4215
    %v4296 = vmul.f32 %v3656, %v4216
    %v4297 = vmul.f32 %v3657, %v4217
    %v4298 = vmul.f32 %v3658, %v4218
    %v4299 = vmul.f32 %v3659, %v4219
    %v4300 = vmul.f32 %v3660, %v4220
    %v4301 = vmul.f32 %v3661, %v4221
    %v4302 = vmul.f32 %v3662, %v4222
    %v4303 = vmul.f32 %v3663, %v4223
    %v4304 = vmul.f32 %v3664, %v4224
    %v4305 = vmul.f32 %v3665, %v4225
    %v4306 = vmul.f32 %v3666, %v4226
    %v4307 = vmul.f32 %v3667, %v4227
    %v4308 = vld [vmem:[%s7] sm:$0xf]
    %v4309 = vld [vmem:[%s7 + $0x4] sm:$0xf]
    %v4310 = vld [vmem:[%s7 + $0x8] sm:$0xf]
    %v4311 = vld [vmem:[%s7 + $0xc] sm:$0xf]
    %v4312 = vpack.c.bf16 %v4233, %v4228
    %v4313 = vpack.c.bf16 %v4234, %v4229
    %v4314 = vpack.c.bf16 %v4235, %v4230
    %v4315 = vpack.c.bf16 %v4236, %v4231
    %v4316 = vpack.c.bf16 %v4237, %v4232
    %v4317 = vpack.c.bf16 %v4243, %v4238
    %v4318 = vpack.c.bf16 %v4244, %v4239
    %v4319 = vpack.c.bf16 %v4245, %v4240
    %v4320 = vpack.c.bf16 %v4246, %v4241
    %v4321 = vpack.c.bf16 %v4247, %v4242
    %v4322 = vpack.c.bf16 %v4253, %v4248
    %v4323 = vpack.c.bf16 %v4254, %v4249
    %v4324 = vpack.c.bf16 %v4255, %v4250
    %v4325 = vpack.c.bf16 %v4256, %v4251
    %v4326 = vpack.c.bf16 %v4257, %v4252
    %v4327 = vpack.c.bf16 %v4263, %v4258
    %v4328 = vpack.c.bf16 %v4264, %v4259
    %v4329 = vpack.c.bf16 %v4265, %v4260
    %v4330 = vpack.c.bf16 %v4266, %v4261
    %v4331 = vpack.c.bf16 %v4267, %v4262
    %v4332 = vpack.c.bf16 %v4273, %v4268
    %v4333 = vpack.c.bf16 %v4274, %v4269
    %v4334 = vpack.c.bf16 %v4275, %v4270
    %v4335 = vpack.c.bf16 %v4276, %v4271
    %v4336 = vpack.c.bf16 %v4277, %v4272
    %v4337 = vpack.c.bf16 %v4283, %v4278
    %v4338 = vpack.c.bf16 %v4284, %v4279
    %v4339 = vpack.c.bf16 %v4285, %v4280
    %v4340 = vpack.c.bf16 %v4286, %v4281
    %v4341 = vpack.c.bf16 %v4287, %v4282
    %v4342 = vpack.c.bf16 %v4293, %v4288
    %v4343 = vpack.c.bf16 %v4294, %v4289
    %v4344 = vpack.c.bf16 %v4295, %v4290
    %v4345 = vpack.c.bf16 %v4296, %v4291
    %v4346 = vpack.c.bf16 %v4297, %v4292
    %v4347 = vpack.c.bf16 %v4303, %v4298
    %v4348 = vpack.c.bf16 %v4304, %v4299
    %v4349 = vpack.c.bf16 %v4305, %v4300
    %v4350 = vpack.c.bf16 %v4306, %v4301
    %v4351 = vpack.c.bf16 %v4307, %v4302
    %4353 = vset.pattern.permute.xlu0 0
    %4354 = vperm.xlu0 %4353, %v722
    %v4355 = vpop.permute.xlu0 %4354
    %4358 = vset.pattern.permute.xlu0 0
    %4359 = vperm.xlu0 %4358, %v723
    %v4360 = vpop.permute.xlu0 %4359
    %4363 = vset.pattern.permute.xlu0 0
    %4364 = vperm.xlu0 %4363, %v724
    %v4365 = vpop.permute.xlu0 %4364
    %4368 = vset.pattern.permute.xlu0 0
    %4369 = vperm.xlu0 %4368, %v725
    %v4370 = vpop.permute.xlu0 %4369
    %v4376 = vunpack.c.l.b16 %v4308
    %v4377 = vunpack.c.l.b16 %v4309
    %v4378 = vunpack.c.l.b16 %v4310
    %v4379 = vunpack.c.l.b16 %v4311
    %v4380 = vpack.c.b16 %v4377, %v4376
    %v4381 = vpack.c.b16 %v4379, %v4378
    %4384 = vmatprep.subr.bf16.mxu0 %v4313
    %4385 = vmatpush1.bf16.msra.mxu0 %v4312
    %4386 = vmatprep.subr.bf16.mxu0 %v4318
    %4387 = vmatpush1.bf16.msra.mxu0 %v4317
    %4388 = vmatprep.subr.bf16.mxu0 %v4323
    %4389 = vmatpush1.bf16.msra.mxu0 %v4322
    %4390 = vmatprep.subr.bf16.mxu0 %v4328
    %4391 = vmatpush1.bf16.msra.mxu0 %v4327
    %4392 = vmatprep.subr.bf16.mxu0 %v4333
    %4393 = vmatpush1.bf16.msra.mxu0 %v4332
    %4394 = vmatprep.subr.bf16.mxu0 %v4338
    %4395 = vmatpush1.bf16.msra.mxu0 %v4337
    %4396 = vmatprep.subr.bf16.mxu0 %v4343
    %4397 = vmatpush1.bf16.msra.mxu0 %v4342
    %4398 = vmatprep.subr.bf16.mxu0 %v4348
    %4399 = vmatpush1.bf16.msra.mxu0 %v4347
    %4400 = vmatprep.subr.bf16.mxu0 0
    %4401 = vmatpush1.bf16.msra.mxu0 0
    %4402 = vmatprep.subr.bf16.mxu0 0
    %4403 = vmatpush1.bf16.msra.mxu0 0
    %4404 = vmatprep.subr.bf16.mxu0 0
    %4405 = vmatpush1.bf16.msra.mxu0 0
    %4406 = vmatprep.subr.bf16.mxu0 0
    %4407 = vmatpush1.bf16.msra.mxu0 0
    %4408 = vmatprep.subr.bf16.mxu0 0
    %4409 = vmatpush1.bf16.msra.mxu0 0
    %4410 = vmatprep.subr.bf16.mxu0 0
    %4411 = vmatpush1.bf16.msra.mxu0 0
    %4412 = vmatprep.subr.bf16.mxu0 0
    %4413 = vmatpush1.bf16.msra.mxu0 0
    %4414 = vmatprep.subr.bf16.mxu0 0
    %4415 = vmatpush1.bf16.msra.mxu0 0
    %4416 = vmatprep.mubr.bf16.mxu0 0
    %4417 = vmatmul.mubr.bf16.gmra.mrb[0].mxu0 %v4380
    %v4418 = vpop.f32.mrb[0].mxu0
    %v4419 = vadd.f32 %v4355, %v4418
    %v4420 = vpop.f32.mrb[0].mxu0
    %v4421 = vadd.f32 %v4355, %v4420
    %v4422 = vpop.f32.mrb[0].mxu0
    %v4423 = vadd.f32 %v4360, %v4422
    %v4424 = vpop.f32.mrb[0].mxu0
    %v4425 = vadd.f32 %v4360, %v4424
    %4426 = vmatprep.mubr.bf16.mxu0 0
    %4427 = vmatmul.mubr.bf16.gmra.mrb[0].mxu0 %v4381
    %v4428 = vpop.f32.mrb[0].mxu0
    %v4429 = vadd.f32 %v4365, %v4428
    %v4430 = vpop.f32.mrb[0].mxu0
    %v4431 = vadd.f32 %v4365, %v4430
    %v4432 = vpop.f32.mrb[0].mxu0
    %v4433 = vadd.f32 %v4370, %v4432
    %v4434 = vpop.f32.mrb[0].mxu0
    %v4435 = vadd.f32 %v4370, %v4434
    %4436 = vdwg.mxu0
    %4437 = vmatprep.subr.bf16.mxu0 %v4315
    %4438 = vmatpush1.bf16.msra.mxu0 %v4314
    %4439 = vmatprep.subr.bf16.mxu0 %v4320
    %4440 = vmatpush1.bf16.msra.mxu0 %v4319
    %4441 = vmatprep.subr.bf16.mxu0 %v4325
    %4442 = vmatpush1.bf16.msra.mxu0 %v4324
    %4443 = vmatprep.subr.bf16.mxu0 %v4330
    %4444 = vmatpush1.bf16.msra.mxu0 %v4329
    %4445 = vmatprep.subr.bf16.mxu0 %v4335
    %4446 = vmatpush1.bf16.msra.mxu0 %v4334
    %4447 = vmatprep.subr.bf16.mxu0 %v4340
    %4448 = vmatpush1.bf16.msra.mxu0 %v4339
    %4449 = vmatprep.subr.bf16.mxu0 %v4345
    %4450 = vmatpush1.bf16.msra.mxu0 %v4344
    %4451 = vmatprep.subr.bf16.mxu0 %v4350
    %4452 = vmatpush1.bf16.msra.mxu0 %v4349
    %4453 = vmatprep.subr.bf16.mxu0 0
    %4454 = vmatpush1.bf16.msra.mxu0 0
    %4455 = vmatprep.subr.bf16.mxu0 0
    %4456 = vmatpush1.bf16.msra.mxu0 0
    %4457 = vmatprep.subr.bf16.mxu0 0
    %4458 = vmatpush1.bf16.msra.mxu0 0
    %4459 = vmatprep.subr.bf16.mxu0 0
    %4460 = vmatpush1.bf16.msra.mxu0 0
    %4461 = vmatprep.subr.bf16.mxu0 0
    %4462 = vmatpush1.bf16.msra.mxu0 0
    %4463 = vmatprep.subr.bf16.mxu0 0
    %4464 = vmatpush1.bf16.msra.mxu0 0
    %4465 = vmatprep.subr.bf16.mxu0 0
    %4466 = vmatpush1.bf16.msra.mxu0 0
    %4467 = vmatprep.subr.bf16.mxu0 0
    %4468 = vmatpush1.bf16.msra.mxu0 0
    %4469 = vmatprep.mubr.bf16.mxu0 0
    %4470 = vmatmul.mubr.bf16.gmra.mrb[0].mxu0 %v4380
    %v4471 = vpop.f32.mrb[0].mxu0
    %v4472 = vadd.f32 %v4355, %v4471
    %v4473 = vpop.f32.mrb[0].mxu0
    %v4474 = vadd.f32 %v4355, %v4473
    %v4475 = vpop.f32.mrb[0].mxu0
    %v4476 = vadd.f32 %v4360, %v4475
    %v4477 = vpop.f32.mrb[0].mxu0
    %v4478 = vadd.f32 %v4360, %v4477
    %4479 = vmatprep.mubr.bf16.mxu0 0
    %4480 = vmatmul.mubr.bf16.gmra.mrb[0].mxu0 %v4381
    %v4481 = vpop.f32.mrb[0].mxu0
    %v4482 = vadd.f32 %v4365, %v4481
    %v4483 = vpop.f32.mrb[0].mxu0
    %v4484 = vadd.f32 %v4365, %v4483
    %v4485 = vpop.f32.mrb[0].mxu0
    %v4486 = vadd.f32 %v4370, %v4485
    %v4487 = vpop.f32.mrb[0].mxu0
    %v4488 = vadd.f32 %v4370, %v4487
    %4489 = vdwg.mxu0
    %4490 = vmatprep.subr.bf16.mxu0 0
    %4491 = vmatpush1.bf16.msra.mxu0 %v4316
    %4492 = vmatprep.subr.bf16.mxu0 0
    %4493 = vmatpush1.bf16.msra.mxu0 %v4321
    %4494 = vmatprep.subr.bf16.mxu0 0
    %4495 = vmatpush1.bf16.msra.mxu0 %v4326
    %4496 = vmatprep.subr.bf16.mxu0 0
    %4497 = vmatpush1.bf16.msra.mxu0 %v4331
    %4498 = vmatprep.subr.bf16.mxu0 0
    %4499 = vmatpush1.bf16.msra.mxu0 %v4336
    %4500 = vmatprep.subr.bf16.mxu0 0
    %4501 = vmatpush1.bf16.msra.mxu0 %v4341
    %4502 = vmatprep.subr.bf16.mxu0 0
    %4503 = vmatpush1.bf16.msra.mxu0 %v4346
    %4504 = vmatprep.subr.bf16.mxu0 0
    %4505 = vmatpush1.bf16.msra.mxu0 %v4351
    %4506 = vmatprep.subr.bf16.mxu0 0
    %4507 = vmatpush1.bf16.msra.mxu0 0
    %4508 = vmatprep.subr.bf16.mxu0 0
    %4509 = vmatpush1.bf16.msra.mxu0 0
    %4510 = vmatprep.subr.bf16.mxu0 0
    %4511 = vmatpush1.bf16.msra.mxu0 0
    %4512 = vmatprep.subr.bf16.mxu0 0
    %4513 = vmatpush1.bf16.msra.mxu0 0
    %4514 = vmatprep.subr.bf16.mxu0 0
    %4515 = vmatpush1.bf16.msra.mxu0 0
    %4516 = vmatprep.subr.bf16.mxu0 0
    %4517 = vmatpush1.bf16.msra.mxu0 0
    %4518 = vmatprep.subr.bf16.mxu0 0
    %4519 = vmatpush1.bf16.msra.mxu0 0
    %4520 = vmatprep.subr.bf16.mxu0 0
    %4521 = vmatpush1.bf16.msra.mxu0 0
    %4522 = vmatprep.mubr.bf16.mxu0 0
    %4523 = vmatmul.mubr.bf16.gmra.mrb[0].mxu0 %v4380
    %v4524 = vpop.f32.mrb[0].mxu0
    %v4525 = vadd.f32 %v4355, %v4524
    %v4526 = vpop.f32.mrb[0].mxu0
    %v4527 = vpop.f32.mrb[0].mxu0
    %v4528 = vadd.f32 %v4360, %v4527
    %v4529 = vpop.f32.mrb[0].mxu0
    %4530 = vmatprep.mubr.bf16.mxu0 0
    %4531 = vmatmul.mubr.bf16.gmra.mrb[0].mxu0 %v4381
    %v4532 = vpop.f32.mrb[0].mxu0
    %v4533 = vadd.f32 %v4365, %v4532
    %v4534 = vpop.f32.mrb[0].mxu0
    %v4535 = vpop.f32.mrb[0].mxu0
    %v4536 = vadd.f32 %v4370, %v4535
    %v4537 = vpop.f32.mrb[0].mxu0
    %4538 = vdwg.mxu0
    %v4539 = vadd.f32 %v3075, %v4419
    %v4540 = vadd.f32 %v3076, %v4421
    %v4541 = vadd.f32 %v3077, %v4472
    %v4542 = vadd.f32 %v3078, %v4474
    %v4543 = vadd.f32 %v3079, %v4525
    %v4544 = vadd.f32 %v3080, %v4423
    %v4545 = vadd.f32 %v3081, %v4425
    %v4546 = vadd.f32 %v3082, %v4476
    %v4547 = vadd.f32 %v3083, %v4478
    %v4548 = vadd.f32 %v3084, %v4528
    %v4549 = vadd.f32 %v3085, %v4429
    %v4550 = vadd.f32 %v3086, %v4431
    %v4551 = vadd.f32 %v3087, %v4482
    %v4552 = vadd.f32 %v3088, %v4484
    %v4553 = vadd.f32 %v3089, %v4533
    %v4554 = vadd.f32 %v3090, %v4433
    %v4555 = vadd.f32 %v3091, %v4435
    %v4556 = vadd.f32 %v3092, %v4486
    %v4557 = vadd.f32 %v3093, %v4488
    %v4558 = vadd.f32 %v3094, %v4536
    %v4559 = vadd.f32 %v4539, %v4544
    %v4560 = vadd.f32 %v4559, %v4549
    %v4561 = vadd.f32 %v4560, %v4554
    %v4562 = vrot.slane %v4561, 4
    %v4563 = vadd.f32 %v4561, %v4562
    %v4564 = vrot.slane %v4563, 2
    %v4565 = vadd.f32 %v4563, %v4564
    %v4566 = vrot.slane %v4565, 1
    %v4567 = vadd.f32 %v4565, %v4566
    %v4568 = vadd.f32 %v4540, %v4545
    %v4569 = vadd.f32 %v4568, %v4550
    %v4570 = vadd.f32 %v4569, %v4555
    %v4571 = vrot.slane %v4570, 4
    %v4572 = vadd.f32 %v4570, %v4571
    %v4573 = vrot.slane %v4572, 2
    %v4574 = vadd.f32 %v4572, %v4573
    %v4575 = vrot.slane %v4574, 1
    %v4576 = vadd.f32 %v4574, %v4575
    %v4577 = vadd.f32 %v4541, %v4546
    %v4578 = vadd.f32 %v4577, %v4551
    %v4579 = vadd.f32 %v4578, %v4556
    %v4580 = vrot.slane %v4579, 4
    %v4581 = vadd.f32 %v4579, %v4580
    %v4582 = vrot.slane %v4581, 2
    %v4583 = vadd.f32 %v4581, %v4582
    %v4584 = vrot.slane %v4583, 1
    %v4585 = vadd.f32 %v4583, %v4584
    %v4586 = vadd.f32 %v4542, %v4547
    %v4587 = vadd.f32 %v4586, %v4552
    %v4588 = vadd.f32 %v4587, %v4557
    %v4589 = vrot.slane %v4588, 4
    %v4590 = vadd.f32 %v4588, %v4589
    %v4591 = vrot.slane %v4590, 2
    %v4592 = vadd.f32 %v4590, %v4591
    %v4593 = vrot.slane %v4592, 1
    %v4594 = vadd.f32 %v4592, %v4593
    %v4595 = vadd.f32 %v4543, %v4548
    %v4596 = vadd.f32 %v4595, %v4553
    %v4597 = vadd.f32 %v4596, %v4558
    %v4598 = vrot.slane %v4597, 4
    %v4599 = vadd.f32 %v4597, %v4598
    %v4600 = vrot.slane %v4599, 2
    %v4601 = vadd.f32 %v4599, %v4600
    %v4602 = vrot.slane %v4601, 1
    %v4603 = vadd.f32 %v4601, %v4602
    %v4604 = vmul.f32 %v4567, %v2889
    %v4605 = vmul.f32 %v4576, %v2889
    %v4606 = vmul.f32 %v4585, %v2889
    %v4607 = vmul.f32 %v4594, %v2889
    %v4608 = vmul.f32 %v4603, %v2889
    %v4609 = vsub.f32 %v4539, %v4604
    %v4610 = vsub.f32 %v4540, %v4605
    %v4611 = vsub.f32 %v4541, %v4606
    %v4612 = vsub.f32 %v4542, %v4607
    %v4613 = vsub.f32 %v4543, %v4608
    %v4614 = vsub.f32 %v4544, %v4604
    %v4615 = vsub.f32 %v4545, %v4605
    %v4616 = vsub.f32 %v4546, %v4606
    %v4617 = vsub.f32 %v4547, %v4607
    %v4618 = vsub.f32 %v4548, %v4608
    %v4619 = vsub.f32 %v4549, %v4604
    %v4620 = vsub.f32 %v4550, %v4605
    %v4621 = vsub.f32 %v4551, %v4606
    %v4622 = vsub.f32 %v4552, %v4607
    %v4623 = vsub.f32 %v4553, %v4608
    %v4624 = vsub.f32 %v4554, %v4604
    %v4625 = vsub.f32 %v4555, %v4605
    %v4626 = vsub.f32 %v4556, %v4606
    %v4627 = vsub.f32 %v4557, %v4607
    %v4628 = vsub.f32 %v4558, %v4608
    %v4629 = vmul.f32 %v4609, %v4609
    %v4630 = vmul.f32 %v4610, %v4610
    %v4631 = vmul.f32 %v4611, %v4611
    %v4632 = vmul.f32 %v4612, %v4612
    %v4633 = vmul.f32 %v4613, %v4613
    %v4634 = vmul.f32 %v4614, %v4614
    %v4635 = vmul.f32 %v4615, %v4615
    %v4636 = vmul.f32 %v4616, %v4616
    %v4637 = vmul.f32 %v4617, %v4617
    %v4638 = vmul.f32 %v4618, %v4618
    %v4639 = vmul.f32 %v4619, %v4619
    %v4640 = vmul.f32 %v4620, %v4620
    %v4641 = vmul.f32 %v4621, %v4621
    %v4642 = vmul.f32 %v4622, %v4622
    %v4643 = vmul.f32 %v4623, %v4623
    %v4644 = vmul.f32 %v4624, %v4624
    %v4645 = vmul.f32 %v4625, %v4625
    %v4646 = vmul.f32 %v4626, %v4626
    %v4647 = vmul.f32 %v4627, %v4627
    %v4648 = vmul.f32 %v4628, %v4628
    %v4649 = vadd.f32 %v4629, %v4634
    %v4650 = vadd.f32 %v4649, %v4639
    %v4651 = vadd.f32 %v4650, %v4644
    %v4652 = vrot.slane %v4651, 4
    %v4653 = vadd.f32 %v4651, %v4652
    %v4654 = vrot.slane %v4653, 2
    %v4655 = vadd.f32 %v4653, %v4654
    %v4656 = vrot.slane %v4655, 1
    %v4657 = vadd.f32 %v4655, %v4656
    %v4658 = vadd.f32 %v4630, %v4635
    %v4659 = vadd.f32 %v4658, %v4640
    %v4660 = vadd.f32 %v4659, %v4645
    %v4661 = vrot.slane %v4660, 4
    %v4662 = vadd.f32 %v4660, %v4661
    %v4663 = vrot.slane %v4662, 2
    %v4664 = vadd.f32 %v4662, %v4663
    %v4665 = vrot.slane %v4664, 1
    %v4666 = vadd.f32 %v4664, %v4665
    %v4667 = vadd.f32 %v4631, %v4636
    %v4668 = vadd.f32 %v4667, %v4641
    %v4669 = vadd.f32 %v4668, %v4646
    %v4670 = vrot.slane %v4669, 4
    %v4671 = vadd.f32 %v4669, %v4670
    %v4672 = vrot.slane %v4671, 2
    %v4673 = vadd.f32 %v4671, %v4672
    %v4674 = vrot.slane %v4673, 1
    %v4675 = vadd.f32 %v4673, %v4674
    %v4676 = vadd.f32 %v4632, %v4637
    %v4677 = vadd.f32 %v4676, %v4642
    %v4678 = vadd.f32 %v4677, %v4647
    %v4679 = vrot.slane %v4678, 4
    %v4680 = vadd.f32 %v4678, %v4679
    %v4681 = vrot.slane %v4680, 2
    %v4682 = vadd.f32 %v4680, %v4681
    %v4683 = vrot.slane %v4682, 1
    %v4684 = vadd.f32 %v4682, %v4683
    %v4685 = vadd.f32 %v4633, %v4638
    %v4686 = vadd.f32 %v4685, %v4643
    %v4687 = vadd.f32 %v4686, %v4648
    %v4688 = vrot.slane %v4687, 4
    %v4689 = vadd.f32 %v4687, %v4688
    %v4690 = vrot.slane %v4689, 2
    %v4691 = vadd.f32 %v4689, %v4690
    %v4692 = vrot.slane %v4691, 1
    %v4693 = vadd.f32 %v4691, %v4692
    %v4694 = vmul.f32 %v4657, %v2889
    %v4695 = vmul.f32 %v4666, %v2889
    %v4696 = vmul.f32 %v4675, %v2889
    %v4697 = vmul.f32 %v4684, %v2889
    %v4698 = vmul.f32 %v4693, %v2889
    %v4699 = vadd.f32 %v4694, 1e-05
    %v4700 = vadd.f32 %v4695, 1e-05
    %v4701 = vadd.f32 %v4696, 1e-05
    %v4702 = vadd.f32 %v4697, 1e-05
    %v4703 = vadd.f32 %v4698, 1e-05
    %v4704 = vrsqrt.pop %v4699
    %v4705 = vrsqrt.pop %v4700
    %v4706 = vrsqrt.pop %v4701
    %v4707 = vrsqrt.pop %v4702
    %v4708 = vrsqrt.pop %v4703
    %v4709 = vmul.f32 %v4609, %v4704
    %v4710 = vmul.f32 %v4610, %v4705
    %v4711 = vmul.f32 %v4611, %v4706
    %v4712 = vmul.f32 %v4612, %v4707
    %v4713 = vmul.f32 %v4613, %v4708
    %v4714 = vmul.f32 %v4614, %v4704
    %v4715 = vmul.f32 %v4615, %v4705
    %v4716 = vmul.f32 %v4616, %v4706
    %v4717 = vmul.f32 %v4617, %v4707
    %v4718 = vmul.f32 %v4618, %v4708
    %v4719 = vmul.f32 %v4619, %v4704
    %v4720 = vmul.f32 %v4620, %v4705
    %v4721 = vmul.f32 %v4621, %v4706
    %v4722 = vmul.f32 %v4622, %v4707
    %v4723 = vmul.f32 %v4623, %v4708
    %v4724 = vmul.f32 %v4624, %v4704
    %v4725 = vmul.f32 %v4625, %v4705
    %v4726 = vmul.f32 %v4626, %v4706
    %v4727 = vmul.f32 %v4627, %v4707
    %v4728 = vmul.f32 %v4628, %v4708
    %4730 = vset.pattern.permute.xlu0 0
    %4731 = vperm.xlu0 %4730, %v734
    %v4732 = vpop.permute.xlu0 %4731
    %4735 = vset.pattern.permute.xlu0 0
    %4736 = vperm.xlu0 %4735, %v735
    %v4737 = vpop.permute.xlu0 %4736
    %4740 = vset.pattern.permute.xlu0 0
    %4741 = vperm.xlu0 %4740, %v736
    %v4742 = vpop.permute.xlu0 %4741
    %4745 = vset.pattern.permute.xlu0 0
    %4746 = vperm.xlu0 %4745, %v737
    %v4747 = vpop.permute.xlu0 %4746
    %v4749 = vmul.f32 %v4709, %v4732
    %v4750 = vmul.f32 %v4710, %v4732
    %v4751 = vmul.f32 %v4711, %v4732
    %v4752 = vmul.f32 %v4712, %v4732
    %v4753 = vmul.f32 %v4713, %v4732
    %v4754 = vmul.f32 %v4714, %v4737
    %v4755 = vmul.f32 %v4715, %v4737
    %v4756 = vmul.f32 %v4716, %v4737
    %v4757 = vmul.f32 %v4717, %v4737
    %v4758 = vmul.f32 %v4718, %v4737
    %v4759 = vmul.f32 %v4719, %v4742
    %v4760 = vmul.f32 %v4720, %v4742
    %v4761 = vmul.f32 %v4721, %v4742
    %v4762 = vmul.f32 %v4722, %v4742
    %v4763 = vmul.f32 %v4723, %v4742
    %v4764 = vmul.f32 %v4724, %v4747
    %v4765 = vmul.f32 %v4725, %v4747
    %v4766 = vmul.f32 %v4726, %v4747
    %v4767 = vmul.f32 %v4727, %v4747
    %v4768 = vmul.f32 %v4728, %v4747
    %4770 = vset.pattern.permute.xlu0 0
    %4771 = vperm.xlu0 %4770, %v738
    %v4772 = vpop.permute.xlu0 %4771
    %4775 = vset.pattern.permute.xlu0 0
    %4776 = vperm.xlu0 %4775, %v739
    %v4777 = vpop.permute.xlu0 %4776
    %4780 = vset.pattern.permute.xlu0 0
    %4781 = vperm.xlu0 %4780, %v740
    %v4782 = vpop.permute.xlu0 %4781
    %4785 = vset.pattern.permute.xlu0 0
    %4786 = vperm.xlu0 %4785, %v741
    %v4787 = vpop.permute.xlu0 %4786
    %v4789 = vadd.f32 %v4749, %v4772
    %v4790 = vadd.f32 %v4750, %v4772
    %v4791 = vadd.f32 %v4751, %v4772
    %v4792 = vadd.f32 %v4752, %v4772
    %v4793 = vadd.f32 %v4753, %v4772
    %v4794 = vadd.f32 %v4754, %v4777
    %v4795 = vadd.f32 %v4755, %v4777
    %v4796 = vadd.f32 %v4756, %v4777
    %v4797 = vadd.f32 %v4757, %v4777
    %v4798 = vadd.f32 %v4758, %v4777
    %v4799 = vadd.f32 %v4759, %v4782
    %v4800 = vadd.f32 %v4760, %v4782
    %v4801 = vadd.f32 %v4761, %v4782
    %v4802 = vadd.f32 %v4762, %v4782
    %v4803 = vadd.f32 %v4763, %v4782
    %v4804 = vadd.f32 %v4764, %v4787
    %v4805 = vadd.f32 %v4765, %v4787
    %v4806 = vadd.f32 %v4766, %v4787
    %v4807 = vadd.f32 %v4767, %v4787
    %v4808 = vadd.f32 %v4768, %v4787
    %s4809 = scalar_lea.vmem %s8, 416
    %v4810 = vld [vmem:[%s4809] sm:$0xff]
    %v4811 = vld [vmem:[%s4809 + $0x8] sm:$0xff]
    %v4812 = vld [vmem:[%s4809 + $0x10] sm:$0xff]
    %v4813 = vld [vmem:[%s4809 + $0x18] sm:$0xff]
    %v4814 = vld [vmem:[%s4809 + $0x20] sm:$0xff]
    %v4815 = vld [vmem:[%s4809 + $0x28] sm:$0xff]
    %v4816 = vld [vmem:[%s4809 + $0x30] sm:$0xff]
    %v4817 = vld [vmem:[%s4809 + $0x38] sm:$0xff]
    %v4818 = vld [vmem:[%s4809 + $0x40] sm:$0xff]
    %v4819 = vld [vmem:[%s4809 + $0x48] sm:$0xff]
    %v4820 = vld [vmem:[%s4809 + $0x50] sm:$0xff]
    %v4821 = vld [vmem:[%s4809 + $0x58] sm:$0xff]
    %v4822 = vld [vmem:[%s4809 + $0x60] sm:$0xff]
    %v4823 = vld [vmem:[%s4809 + $0x68] sm:$0xff]
    %v4824 = vld [vmem:[%s4809 + $0x70] sm:$0xff]
    %v4825 = vld [vmem:[%s4809 + $0x78] sm:$0xff]
    %v4826 = vld [vmem:[%s4809 + $0x80] sm:$0xff]
    %v4827 = vld [vmem:[%s4809 + $0x88] sm:$0xff]
    %v4828 = vld [vmem:[%s4809 + $0x90] sm:$0xff]
    %v4829 = vld [vmem:[%s4809 + $0x98] sm:$0xff]
    %v4830 = vld [vmem:[%s4809 + $0xa0] sm:$0xff]
    %v4831 = vld [vmem:[%s4809 + $0xa8] sm:$0xff]
    %v4832 = vld [vmem:[%s4809 + $0xb0] sm:$0xff]
    %v4833 = vld [vmem:[%s4809 + $0xb8] sm:$0xff]
    %v4834 = vld [vmem:[%s4809 + $0xc0] sm:$0xff]
    %v4835 = vld [vmem:[%s4809 + $0xc8] sm:$0xff]
    %v4836 = vld [vmem:[%s4809 + $0xd0] sm:$0xff]
    %v4837 = vld [vmem:[%s4809 + $0xd8] sm:$0xff]
    %v4838 = vld [vmem:[%s4809 + $0xe0] sm:$0xff]
    %v4839 = vld [vmem:[%s4809 + $0xe8] sm:$0xff]
    %v4840 = vld [vmem:[%s4809 + $0xf0] sm:$0xff]
    %v4841 = vld [vmem:[%s4809 + $0xf8] sm:$0xff]
    %v4842 = vld [vmem:[%s4809 + $0x100] sm:$0xff]
    %v4843 = vld [vmem:[%s4809 + $0x108] sm:$0xff]
    %v4844 = vld [vmem:[%s4809 + $0x110] sm:$0xff]
    %v4845 = vld [vmem:[%s4809 + $0x118] sm:$0xff]
    %v4846 = vld [vmem:[%s4809 + $0x120] sm:$0xff]
    %v4847 = vld [vmem:[%s4809 + $0x128] sm:$0xff]
    %v4848 = vld [vmem:[%s4809 + $0x130] sm:$0xff]
    %v4849 = vld [vmem:[%s4809 + $0x138] sm:$0xff]
    %v4850 = vld [vmem:[%s4809 + $0x140] sm:$0xff]
    %v4851 = vld [vmem:[%s4809 + $0x148] sm:$0xff]
    %v4852 = vld [vmem:[%s4809 + $0x150] sm:$0xff]
    %v4853 = vld [vmem:[%s4809 + $0x158] sm:$0xff]
    %v4854 = vld [vmem:[%s4809 + $0x160] sm:$0xff]
    %v4855 = vld [vmem:[%s4809 + $0x168] sm:$0xff]
    %v4856 = vld [vmem:[%s4809 + $0x170] sm:$0xff]
    %v4857 = vld [vmem:[%s4809 + $0x178] sm:$0xff]
    %v4858 = vld [vmem:[%s4809 + $0x180] sm:$0xff]
    %v4859 = vld [vmem:[%s4809 + $0x188] sm:$0xff]
    %v4860 = vld [vmem:[%s4809 + $0x190] sm:$0xff]
    %v4861 = vld [vmem:[%s4809 + $0x198] sm:$0xff]
    %s4862 = scalar_lea.vmem %s4, 48
    %v4863 = vld [vmem:[%s4862] sm:$0xf]
    %v4864 = vld [vmem:[%s4862 + $0x4] sm:$0xf]
    %v4865 = vld [vmem:[%s4862 + $0x8] sm:$0xf]
    %v4866 = vld [vmem:[%s4862 + $0xc] sm:$0xf]
    %v4867 = vld [vmem:[%s4862 + $0x10] sm:$0xf]
    %v4868 = vld [vmem:[%s4862 + $0x14] sm:$0xf]
    %v4869 = vld [vmem:[%s4862 + $0x18] sm:$0xf]
    %v4870 = vld [vmem:[%s4862 + $0x1c] sm:$0xf]
    %v4871 = vld [vmem:[%s4862 + $0x20] sm:$0xf]
    %v4872 = vld [vmem:[%s4862 + $0x24] sm:$0xf]
    %v4873 = vld [vmem:[%s4862 + $0x28] sm:$0xf]
    %v4874 = vld [vmem:[%s4862 + $0x2c] sm:$0xf]
    %v4875 = vpack.c.bf16 %v4794, %v4789
    %v4876 = vpack.c.bf16 %v4795, %v4790
    %v4877 = vpack.c.bf16 %v4796, %v4791
    %v4878 = vpack.c.bf16 %v4797, %v4792
    %v4879 = vpack.c.bf16 %v4798, %v4793
    %v4880 = vpack.c.bf16 %v4804, %v4799
    %v4881 = vpack.c.bf16 %v4805, %v4800
    %v4882 = vpack.c.bf16 %v4806, %v4801
    %v4883 = vpack.c.bf16 %v4807, %v4802
    %v4884 = vpack.c.bf16 %v4808, %v4803
    %4886 = vset.pattern.permute.xlu0 0
    %4887 = vperm.xlu0 %4886, %v4810
    %v4888 = vpop.permute.xlu0 %4887
    %4891 = vset.pattern.permute.xlu0 0
    %4892 = vperm.xlu0 %4891, %v4811
    %v4893 = vpop.permute.xlu0 %4892
    %4896 = vset.pattern.permute.xlu0 0
    %4897 = vperm.xlu0 %4896, %v4812
    %v4898 = vpop.permute.xlu0 %4897
    %4901 = vset.pattern.permute.xlu0 0
    %4902 = vperm.xlu0 %4901, %v4813
    %v4903 = vpop.permute.xlu0 %4902
    %4906 = vset.pattern.permute.xlu0 0
    %4907 = vperm.xlu0 %4906, %v4814
    %v4908 = vpop.permute.xlu0 %4907
    %4911 = vset.pattern.permute.xlu0 0
    %4912 = vperm.xlu0 %4911, %v4815
    %v4913 = vpop.permute.xlu0 %4912
    %4916 = vset.pattern.permute.xlu0 0
    %4917 = vperm.xlu0 %4916, %v4816
    %v4918 = vpop.permute.xlu0 %4917
    %4921 = vset.pattern.permute.xlu0 0
    %4922 = vperm.xlu0 %4921, %v4817
    %v4923 = vpop.permute.xlu0 %4922
    %4926 = vset.pattern.permute.xlu0 0
    %4927 = vperm.xlu0 %4926, %v4818
    %v4928 = vpop.permute.xlu0 %4927
    %4931 = vset.pattern.permute.xlu0 0
    %4932 = vperm.xlu0 %4931, %v4819
    %v4933 = vpop.permute.xlu0 %4932
    %4936 = vset.pattern.permute.xlu0 0
    %4937 = vperm.xlu0 %4936, %v4820
    %v4938 = vpop.permute.xlu0 %4937
    %4941 = vset.pattern.permute.xlu0 0
    %4942 = vperm.xlu0 %4941, %v4821
    %v4943 = vpop.permute.xlu0 %4942
    %v4957 = vunpack.c.l.b16 %v4863
    %v4958 = vunpack.c.l.b16 %v4864
    %v4959 = vunpack.c.l.b16 %v4865
    %v4960 = vunpack.c.l.b16 %v4866
    %v4961 = vunpack.c.l.b16 %v4867
    %v4962 = vunpack.c.l.b16 %v4868
    %v4963 = vunpack.c.l.b16 %v4869
    %v4964 = vunpack.c.l.b16 %v4870
    %v4965 = vunpack.c.l.b16 %v4871
    %v4966 = vunpack.c.l.b16 %v4872
    %v4967 = vunpack.c.l.b16 %v4873
    %v4968 = vunpack.c.l.b16 %v4874
    %v4969 = vpack.c.b16 %v4958, %v4957
    %v4970 = vpack.c.b16 %v4960, %v4959
    %v4971 = vpack.c.b16 %v4962, %v4961
    %v4972 = vpack.c.b16 %v4964, %v4963
    %v4973 = vpack.c.b16 %v4966, %v4965
    %v4974 = vpack.c.b16 %v4968, %v4967
    %v4976 = vsel %vm384, %v4969, 0
    %v4979 = vsel %vm384, %v4970, 0
    %v4982 = vsel %vm384, %v4971, 0
    %v4985 = vsel %vm384, %v4972, 0
    %v4988 = vsel %vm384, %v4973, 0
    %v4991 = vsel %vm384, %v4974, 0
    %4993 = vmatprep.subr.bf16.mxu0 %v4876
    %4994 = vmatpush1.bf16.msra.mxu0 %v4875
    %4995 = vmatprep.subr.bf16.mxu0 %v4881
    %4996 = vmatpush1.bf16.msra.mxu0 %v4880
    %4997 = vmatprep.subr.bf16.mxu0 0
    %4998 = vmatpush1.bf16.msra.mxu0 0
    %4999 = vmatprep.subr.bf16.mxu0 0
    %5000 = vmatpush1.bf16.msra.mxu0 0
    %5001 = vmatprep.subr.bf16.mxu0 0
    %5002 = vmatpush1.bf16.msra.mxu0 0
    %5003 = vmatprep.subr.bf16.mxu0 0
    %5004 = vmatpush1.bf16.msra.mxu0 0
    %5005 = vmatprep.subr.bf16.mxu0 0
    %5006 = vmatpush1.bf16.msra.mxu0 0
    %5007 = vmatprep.subr.bf16.mxu0 0
    %5008 = vmatpush1.bf16.msra.mxu0 0
    %5009 = vmatprep.subr.bf16.mxu0 0
    %5010 = vmatpush1.bf16.msra.mxu0 0
    %5011 = vmatprep.subr.bf16.mxu0 0
    %5012 = vmatpush1.bf16.msra.mxu0 0
    %5013 = vmatprep.subr.bf16.mxu0 0
    %5014 = vmatpush1.bf16.msra.mxu0 0
    %5015 = vmatprep.subr.bf16.mxu0 0
    %5016 = vmatpush1.bf16.msra.mxu0 0
    %5017 = vmatprep.subr.bf16.mxu0 0
    %5018 = vmatpush1.bf16.msra.mxu0 0
    %5019 = vmatprep.subr.bf16.mxu0 0
    %5020 = vmatpush1.bf16.msra.mxu0 0
    %5021 = vmatprep.subr.bf16.mxu0 0
    %5022 = vmatpush1.bf16.msra.mxu0 0
    %5023 = vmatprep.subr.bf16.mxu0 0
    %5024 = vmatpush1.bf16.msra.mxu0 0
    %5025 = vmatprep.mubr.bf16.mxu0 0
    %5026 = vmatmul.mubr.bf16.gmra.mrb[0].mxu0 %v4976
    %v5027 = vpop.f32.mrb[0].mxu0
    %v5028 = vadd.f32 %v4888, %v5027
    %v5029 = vpop.f32.mrb[0].mxu0
    %v5030 = vadd.f32 %v4888, %v5029
    %v5031 = vpop.f32.mrb[0].mxu0
    %v5032 = vadd.f32 %v4893, %v5031
    %v5033 = vpop.f32.mrb[0].mxu0
    %v5034 = vadd.f32 %v4893, %v5033
    %5035 = vmatprep.mubr.bf16.mxu0 0
    %5036 = vmatmul.mubr.bf16.gmra.mrb[0].mxu0 %v4979
    %v5037 = vpop.f32.mrb[0].mxu0
    %v5038 = vadd.f32 %v4898, %v5037
    %v5039 = vpop.f32.mrb[0].mxu0
    %v5040 = vadd.f32 %v4898, %v5039
    %v5041 = vpop.f32.mrb[0].mxu0
    %v5042 = vadd.f32 %v4903, %v5041
    %v5043 = vpop.f32.mrb[0].mxu0
    %v5044 = vadd.f32 %v4903, %v5043
    %5045 = vmatprep.mubr.bf16.mxu0 0
    %5046 = vmatmul.mubr.bf16.gmra.mrb[0].mxu0 %v4982
    %v5047 = vpop.f32.mrb[0].mxu0
    %v5048 = vadd.f32 %v4908, %v5047
    %v5049 = vpop.f32.mrb[0].mxu0
    %v5050 = vadd.f32 %v4908, %v5049
    %v5051 = vpop.f32.mrb[0].mxu0
    %v5052 = vadd.f32 %v4913, %v5051
    %v5053 = vpop.f32.mrb[0].mxu0
    %v5054 = vadd.f32 %v4913, %v5053
    %5055 = vmatprep.mubr.bf16.mxu0 0
    %5056 = vmatmul.mubr.bf16.gmra.mrb[0].mxu0 %v4985
    %v5057 = vpop.f32.mrb[0].mxu0
    %v5058 = vadd.f32 %v4918, %v5057
    %v5059 = vpop.f32.mrb[0].mxu0
    %v5060 = vadd.f32 %v4918, %v5059
    %v5061 = vpop.f32.mrb[0].mxu0
    %v5062 = vadd.f32 %v4923, %v5061
    %v5063 = vpop.f32.mrb[0].mxu0
    %v5064 = vadd.f32 %v4923, %v5063
    %5065 = vmatprep.mubr.bf16.mxu0 0
    %5066 = vmatmul.mubr.bf16.gmra.mrb[0].mxu0 %v4988
    %v5067 = vpop.f32.mrb[0].mxu0
    %v5068 = vadd.f32 %v4928, %v5067
    %v5069 = vpop.f32.mrb[0].mxu0
    %v5070 = vadd.f32 %v4928, %v5069
    %v5071 = vpop.f32.mrb[0].mxu0
    %v5072 = vadd.f32 %v4933, %v5071
    %v5073 = vpop.f32.mrb[0].mxu0
    %v5074 = vadd.f32 %v4933, %v5073
    %5075 = vmatprep.mubr.bf16.mxu0 0
    %5076 = vmatmul.mubr.bf16.gmra.mrb[0].mxu0 %v4991
    %v5077 = vpop.f32.mrb[0].mxu0
    %v5078 = vadd.f32 %v4938, %v5077
    %v5079 = vpop.f32.mrb[0].mxu0
    %v5080 = vadd.f32 %v4938, %v5079
    %v5081 = vpop.f32.mrb[0].mxu0
    %v5082 = vadd.f32 %v4943, %v5081
    %v5083 = vpop.f32.mrb[0].mxu0
    %v5084 = vadd.f32 %v4943, %v5083
    %5085 = vdwg.mxu0
    %5086 = vmatprep.subr.bf16.mxu0 %v4878
    %5087 = vmatpush1.bf16.msra.mxu0 %v4877
    %5088 = vmatprep.subr.bf16.mxu0 %v4883
    %5089 = vmatpush1.bf16.msra.mxu0 %v4882
    %5090 = vmatprep.subr.bf16.mxu0 0
    %5091 = vmatpush1.bf16.msra.mxu0 0
    %5092 = vmatprep.subr.bf16.mxu0 0
    %5093 = vmatpush1.bf16.msra.mxu0 0
    %5094 = vmatprep.subr.bf16.mxu0 0
    %5095 = vmatpush1.bf16.msra.mxu0 0
    %5096 = vmatprep.subr.bf16.mxu0 0
    %5097 = vmatpush1.bf16.msra.mxu0 0
    %5098 = vmatprep.subr.bf16.mxu0 0
    %5099 = vmatpush1.bf16.msra.mxu0 0
    %5100 = vmatprep.subr.bf16.mxu0 0
    %5101 = vmatpush1.bf16.msra.mxu0 0
    %5102 = vmatprep.subr.bf16.mxu0 0
    %5103 = vmatpush1.bf16.msra.mxu0 0
    %5104 = vmatprep.subr.bf16.mxu0 0
    %5105 = vmatpush1.bf16.msra.mxu0 0
    %5106 = vmatprep.subr.bf16.mxu0 0
    %5107 = vmatpush1.bf16.msra.mxu0 0
    %5108 = vmatprep.subr.bf16.mxu0 0
    %5109 = vmatpush1.bf16.msra.mxu0 0
    %5110 = vmatprep.subr.bf16.mxu0 0
    %5111 = vmatpush1.bf16.msra.mxu0 0
    %5112 = vmatprep.subr.bf16.mxu0 0
    %5113 = vmatpush1.bf16.msra.mxu0 0
    %5114 = vmatprep.subr.bf16.mxu0 0
    %5115 = vmatpush1.bf16.msra.mxu0 0
    %5116 = vmatprep.subr.bf16.mxu0 0
    %5117 = vmatpush1.bf16.msra.mxu0 0
    %5118 = vmatprep.mubr.bf16.mxu0 0
    %5119 = vmatmul.mubr.bf16.gmra.mrb[0].mxu0 %v4976
    %v5120 = vpop.f32.mrb[0].mxu0
    %v5121 = vadd.f32 %v4888, %v5120
    %v5122 = vpop.f32.mrb[0].mxu0
    %v5123 = vadd.f32 %v4888, %v5122
    %v5124 = vpop.f32.mrb[0].mxu0
    %v5125 = vadd.f32 %v4893, %v5124
    %v5126 = vpop.f32.mrb[0].mxu0
    %v5127 = vadd.f32 %v4893, %v5126
    %5128 = vmatprep.mubr.bf16.mxu0 0
    %5129 = vmatmul.mubr.bf16.gmra.mrb[0].mxu0 %v4979
    %v5130 = vpop.f32.mrb[0].mxu0
    %v5131 = vadd.f32 %v4898, %v5130
    %v5132 = vpop.f32.mrb[0].mxu0
    %v5133 = vadd.f32 %v4898, %v5132
    %v5134 = vpop.f32.mrb[0].mxu0
    %v5135 = vadd.f32 %v4903, %v5134
    %v5136 = vpop.f32.mrb[0].mxu0
    %v5137 = vadd.f32 %v4903, %v5136
    %5138 = vmatprep.mubr.bf16.mxu0 0
    %5139 = vmatmul.mubr.bf16.gmra.mrb[0].mxu0 %v4982
    %v5140 = vpop.f32.mrb[0].mxu0
    %v5141 = vadd.f32 %v4908, %v5140
    %v5142 = vpop.f32.mrb[0].mxu0
    %v5143 = vadd.f32 %v4908, %v5142
    %v5144 = vpop.f32.mrb[0].mxu0
    %v5145 = vadd.f32 %v4913, %v5144
    %v5146 = vpop.f32.mrb[0].mxu0
    %v5147 = vadd.f32 %v4913, %v5146
    %5148 = vmatprep.mubr.bf16.mxu0 0
    %5149 = vmatmul.mubr.bf16.gmra.mrb[0].mxu0 %v4985
    %v5150 = vpop.f32.mrb[0].mxu0
    %v5151 = vadd.f32 %v4918, %v5150
    %v5152 = vpop.f32.mrb[0].mxu0
    %v5153 = vadd.f32 %v4918, %v5152
    %v5154 = vpop.f32.mrb[0].mxu0
    %v5155 = vadd.f32 %v4923, %v5154
    %v5156 = vpop.f32.mrb[0].mxu0
    %v5157 = vadd.f32 %v4923, %v5156
    %5158 = vmatprep.mubr.bf16.mxu0 0
    %5159 = vmatmul.mubr.bf16.gmra.mrb[0].mxu0 %v4988
    %v5160 = vpop.f32.mrb[0].mxu0
    %v5161 = vadd.f32 %v4928, %v5160
    %v5162 = vpop.f32.mrb[0].mxu0
    %v5163 = vadd.f32 %v4928, %v5162
    %v5164 = vpop.f32.mrb[0].mxu0
    %v5165 = vadd.f32 %v4933, %v5164
    %v5166 = vpop.f32.mrb[0].mxu0
    %v5167 = vadd.f32 %v4933, %v5166
    %5168 = vmatprep.mubr.bf16.mxu0 0
    %5169 = vmatmul.mubr.bf16.gmra.mrb[0].mxu0 %v4991
    %v5170 = vpop.f32.mrb[0].mxu0
    %v5171 = vadd.f32 %v4938, %v5170
    %v5172 = vpop.f32.mrb[0].mxu0
    %v5173 = vadd.f32 %v4938, %v5172
    %v5174 = vpop.f32.mrb[0].mxu0
    %v5175 = vadd.f32 %v4943, %v5174
    %v5176 = vpop.f32.mrb[0].mxu0
    %v5177 = vadd.f32 %v4943, %v5176
    %5178 = vdwg.mxu0
    %5179 = vmatprep.subr.bf16.mxu0 0
    %5180 = vmatpush1.bf16.msra.mxu0 %v4879
    %5181 = vmatprep.subr.bf16.mxu0 0
    %5182 = vmatpush1.bf16.msra.mxu0 %v4884
    %5183 = vmatprep.subr.bf16.mxu0 0
    %5184 = vmatpush1.bf16.msra.mxu0 0
    %5185 = vmatprep.subr.bf16.mxu0 0
    %5186 = vmatpush1.bf16.msra.mxu0 0
    %5187 = vmatprep.subr.bf16.mxu0 0
    %5188 = vmatpush1.bf16.msra.mxu0 0
    %5189 = vmatprep.subr.bf16.mxu0 0
    %5190 = vmatpush1.bf16.msra.mxu0 0
    %5191 = vmatprep.subr.bf16.mxu0 0
    %5192 = vmatpush1.bf16.msra.mxu0 0
    %5193 = vmatprep.subr.bf16.mxu0 0
    %5194 = vmatpush1.bf16.msra.mxu0 0
    %5195 = vmatprep.subr.bf16.mxu0 0
    %5196 = vmatpush1.bf16.msra.mxu0 0
    %5197 = vmatprep.subr.bf16.mxu0 0
    %5198 = vmatpush1.bf16.msra.mxu0 0
    %5199 = vmatprep.subr.bf16.mxu0 0
    %5200 = vmatpush1.bf16.msra.mxu0 0
    %5201 = vmatprep.subr.bf16.mxu0 0
    %5202 = vmatpush1.bf16.msra.mxu0 0
    %5203 = vmatprep.subr.bf16.mxu0 0
    %5204 = vmatpush1.bf16.msra.mxu0 0
    %5205 = vmatprep.subr.bf16.mxu0 0
    %5206 = vmatpush1.bf16.msra.mxu0 0
    %5207 = vmatprep.subr.bf16.mxu0 0
    %5208 = vmatpush1.bf16.msra.mxu0 0
    %5209 = vmatprep.subr.bf16.mxu0 0
    %5210 = vmatpush1.bf16.msra.mxu0 0
    %5211 = vmatprep.mubr.bf16.mxu0 0
    %5212 = vmatmul.mubr.bf16.gmra.mrb[0].mxu0 %v4976
    %v5213 = vpop.f32.mrb[0].mxu0
    %v5214 = vpop.f32.mrb[0].mxu0
    %v5215 = vpop.f32.mrb[0].mxu0
    %v5216 = vpop.f32.mrb[0].mxu0
    %5217 = vmatprep.mubr.bf16.mxu0 0
    %5218 = vmatmul.mubr.bf16.gmra.mrb[0].mxu0 %v4979
    %v5219 = vpop.f32.mrb[0].mxu0
    %v5220 = vpop.f32.mrb[0].mxu0
    %v5221 = vpop.f32.mrb[0].mxu0
    %v5222 = vpop.f32.mrb[0].mxu0
    %5223 = vmatprep.mubr.bf16.mxu0 0
    %5224 = vmatmul.mubr.bf16.gmra.mrb[0].mxu0 %v4982
    %v5225 = vpop.f32.mrb[0].mxu0
    %v5226 = vadd.f32 %v4908, %v5225
    %v5227 = vpop.f32.mrb[0].mxu0
    %v5228 = vpop.f32.mrb[0].mxu0
    %v5229 = vadd.f32 %v4913, %v5228
    %v5230 = vpop.f32.mrb[0].mxu0
    %5231 = vmatprep.mubr.bf16.mxu0 0
    %5232 = vmatmul.mubr.bf16.gmra.mrb[0].mxu0 %v4985
    %v5233 = vpop.f32.mrb[0].mxu0
    %v5234 = vadd.f32 %v4918, %v5233
    %v5235 = vpop.f32.mrb[0].mxu0
    %v5236 = vpop.f32.mrb[0].mxu0
    %v5237 = vadd.f32 %v4923, %v5236
    %v5238 = vpop.f32.mrb[0].mxu0
    %5239 = vmatprep.mubr.bf16.mxu0 0
    %5240 = vmatmul.mubr.bf16.gmra.mrb[0].mxu0 %v4988
    %v5241 = vpop.f32.mrb[0].mxu0
    %v5242 = vadd.f32 %v4928, %v5241
    %v5243 = vpop.f32.mrb[0].mxu0
    %v5244 = vpop.f32.mrb[0].mxu0
    %v5245 = vadd.f32 %v4933, %v5244
    %v5246 = vpop.f32.mrb[0].mxu0
    %5247 = vmatprep.mubr.bf16.mxu0 0
    %5248 = vmatmul.mubr.bf16.gmra.mrb[0].mxu0 %v4991
    %v5249 = vpop.f32.mrb[0].mxu0
    %v5250 = vadd.f32 %v4938, %v5249
    %v5251 = vpop.f32.mrb[0].mxu0
    %v5252 = vpop.f32.mrb[0].mxu0
    %v5253 = vadd.f32 %v4943, %v5252
    %v5254 = vpop.f32.mrb[0].mxu0
    %5255 = vdwg.mxu0
    %v5256 = vmul.f32 %v5028, %v5048
    %v5257 = vmul.f32 %v5032, %v5052
    %v5258 = vmul.f32 %v5038, %v5058
    %v5259 = vmul.f32 %v5042, %v5062
    %v5260 = vrot.slane %v5256, 4
    %v5261 = vadd.f32 %v5256, %v5260
    %v5262 = vrot.slane %v5261, 2
    %v5263 = vadd.f32 %v5261, %v5262
    %v5264 = vrot.slane %v5263, 1
    %v5265 = vadd.f32 %v5263, %v5264
    %v5266 = vrot.slane %v5257, 4
    %v5267 = vadd.f32 %v5257, %v5266
    %v5268 = vrot.slane %v5267, 2
    %v5269 = vadd.f32 %v5267, %v5268
    %v5270 = vrot.slane %v5269, 1
    %v5271 = vadd.f32 %v5269, %v5270
    %v5272 = vrot.slane %v5258, 4
    %v5273 = vadd.f32 %v5258, %v5272
    %v5274 = vrot.slane %v5273, 2
    %v5275 = vadd.f32 %v5273, %v5274
    %v5276 = vrot.slane %v5275, 1
    %v5277 = vadd.f32 %v5275, %v5276
    %v5278 = vrot.slane %v5259, 4
    %v5279 = vadd.f32 %v5259, %v5278
    %v5280 = vrot.slane %v5279, 2
    %v5281 = vadd.f32 %v5279, %v5280
    %v5282 = vrot.slane %v5281, 1
    %v5283 = vadd.f32 %v5281, %v5282
    %v5284 = vmul.f32 %v5028, %v5050
    %v5285 = vmul.f32 %v5032, %v5054
    %v5286 = vmul.f32 %v5038, %v5060
    %v5287 = vmul.f32 %v5042, %v5064
    %v5288 = vrot.slane %v5284, 4
    %v5289 = vadd.f32 %v5284, %v5288
    %v5290 = vrot.slane %v5289, 2
    %v5291 = vadd.f32 %v5289, %v5290
    %v5292 = vrot.slane %v5291, 1
    %v5293 = vadd.f32 %v5291, %v5292
    %v5294 = vrot.slane %v5285, 4
    %v5295 = vadd.f32 %v5285, %v5294
    %v5296 = vrot.slane %v5295, 2
    %v5297 = vadd.f32 %v5295, %v5296
    %v5298 = vrot.slane %v5297, 1
    %v5299 = vadd.f32 %v5297, %v5298
    %v5300 = vrot.slane %v5286, 4
    %v5301 = vadd.f32 %v5286, %v5300
    %v5302 = vrot.slane %v5301, 2
    %v5303 = vadd.f32 %v5301, %v5302
    %v5304 = vrot.slane %v5303, 1
    %v5305 = vadd.f32 %v5303, %v5304
    %v5306 = vrot.slane %v5287, 4
    %v5307 = vadd.f32 %v5287, %v5306
    %v5308 = vrot.slane %v5307, 2
    %v5309 = vadd.f32 %v5307, %v5308
    %v5310 = vrot.slane %v5309, 1
    %v5311 = vadd.f32 %v5309, %v5310
    %v5312 = vmul.f32 %v5028, %v5141
    %v5313 = vmul.f32 %v5032, %v5145
    %v5314 = vmul.f32 %v5038, %v5151
    %v5315 = vmul.f32 %v5042, %v5155
    %v5316 = vrot.slane %v5312, 4
    %v5317 = vadd.f32 %v5312, %v5316
    %v5318 = vrot.slane %v5317, 2
    %v5319 = vadd.f32 %v5317, %v5318
    %v5320 = vrot.slane %v5319, 1
    %v5321 = vadd.f32 %v5319, %v5320
    %v5322 = vrot.slane %v5313, 4
    %v5323 = vadd.f32 %v5313, %v5322
    %v5324 = vrot.slane %v5323, 2
    %v5325 = vadd.f32 %v5323, %v5324
    %v5326 = vrot.slane %v5325, 1
    %v5327 = vadd.f32 %v5325, %v5326
    %v5328 = vrot.slane %v5314, 4
    %v5329 = vadd.f32 %v5314, %v5328
    %v5330 = vrot.slane %v5329, 2
    %v5331 = vadd.f32 %v5329, %v5330
    %v5332 = vrot.slane %v5331, 1
    %v5333 = vadd.f32 %v5331, %v5332
    %v5334 = vrot.slane %v5315, 4
    %v5335 = vadd.f32 %v5315, %v5334
    %v5336 = vrot.slane %v5335, 2
    %v5337 = vadd.f32 %v5335, %v5336
    %v5338 = vrot.slane %v5337, 1
    %v5339 = vadd.f32 %v5337, %v5338
    %v5340 = vmul.f32 %v5028, %v5143
    %v5341 = vmul.f32 %v5032, %v5147
    %v5342 = vmul.f32 %v5038, %v5153
    %v5343 = vmul.f32 %v5042, %v5157
    %v5344 = vrot.slane %v5340, 4
    %v5345 = vadd.f32 %v5340, %v5344
    %v5346 = vrot.slane %v5345, 2
    %v5347 = vadd.f32 %v5345, %v5346
    %v5348 = vrot.slane %v5347, 1
    %v5349 = vadd.f32 %v5347, %v5348
    %v5350 = vrot.slane %v5341, 4
    %v5351 = vadd.f32 %v5341, %v5350
    %v5352 = vrot.slane %v5351, 2
    %v5353 = vadd.f32 %v5351, %v5352
    %v5354 = vrot.slane %v5353, 1
    %v5355 = vadd.f32 %v5353, %v5354
    %v5356 = vrot.slane %v5342, 4
    %v5357 = vadd.f32 %v5342, %v5356
    %v5358 = vrot.slane %v5357, 2
    %v5359 = vadd.f32 %v5357, %v5358
    %v5360 = vrot.slane %v5359, 1
    %v5361 = vadd.f32 %v5359, %v5360
    %v5362 = vrot.slane %v5343, 4
    %v5363 = vadd.f32 %v5343, %v5362
    %v5364 = vrot.slane %v5363, 2
    %v5365 = vadd.f32 %v5363, %v5364
    %v5366 = vrot.slane %v5365, 1
    %v5367 = vadd.f32 %v5365, %v5366
    %v5368 = vmul.f32 %v5028, %v5226
    %v5369 = vmul.f32 %v5032, %v5229
    %v5370 = vmul.f32 %v5038, %v5234
    %v5371 = vmul.f32 %v5042, %v5237
    %v5372 = vrot.slane %v5368, 4
    %v5373 = vadd.f32 %v5368, %v5372
    %v5374 = vrot.slane %v5373, 2
    %v5375 = vadd.f32 %v5373, %v5374
    %v5376 = vrot.slane %v5375, 1
    %v5377 = vadd.f32 %v5375, %v5376
    %v5378 = vrot.slane %v5369, 4
    %v5379 = vadd.f32 %v5369, %v5378
    %v5380 = vrot.slane %v5379, 2
    %v5381 = vadd.f32 %v5379, %v5380
    %v5382 = vrot.slane %v5381, 1
    %v5383 = vadd.f32 %v5381, %v5382
    %v5384 = vrot.slane %v5370, 4
    %v5385 = vadd.f32 %v5370, %v5384
    %v5386 = vrot.slane %v5385, 2
    %v5387 = vadd.f32 %v5385, %v5386
    %v5388 = vrot.slane %v5387, 1
    %v5389 = vadd.f32 %v5387, %v5388
    %v5390 = vrot.slane %v5371, 4
    %v5391 = vadd.f32 %v5371, %v5390
    %v5392 = vrot.slane %v5391, 2
    %v5393 = vadd.f32 %v5391, %v5392
    %v5394 = vrot.slane %v5393, 1
    %v5395 = vadd.f32 %v5393, %v5394
    %v5396 = vmax.f32 %v5265, %v5293
    %v5397 = vmax.f32 %v5271, %v5299
    %v5398 = vmax.f32 %v5277, %v5305
    %v5399 = vmax.f32 %v5283, %v5311
    %v5400 = vmax.f32 %v5396, %v5321
    %v5401 = vmax.f32 %v5397, %v5327
    %v5402 = vmax.f32 %v5398, %v5333
    %v5403 = vmax.f32 %v5399, %v5339
    %v5404 = vmax.f32 %v5400, %v5349
    %v5405 = vmax.f32 %v5401, %v5355
    %v5406 = vmax.f32 %v5402, %v5361
    %v5407 = vmax.f32 %v5403, %v5367
    %v5408 = vmax.f32 %v5404, %v5377
    %v5409 = vmax.f32 %v5405, %v5383
    %v5410 = vmax.f32 %v5406, %v5389
    %v5411 = vmax.f32 %v5407, %v5395
    %v5412 = vsub.f32 %v5265, %v5408
    %v5413 = vsub.f32 %v5271, %v5409
    %v5414 = vsub.f32 %v5277, %v5410
    %v5415 = vsub.f32 %v5283, %v5411
    %v5416 = vmul.f32 %v5412, 1.442695
    %v5417 = vpow.pop %v5416
    %v5418 = vmul.f32 %v5413, 1.442695
    %v5419 = vpow.pop %v5418
    %v5420 = vmul.f32 %v5414, 1.442695
    %v5421 = vpow.pop %v5420
    %v5422 = vmul.f32 %v5415, 1.442695
    %v5423 = vpow.pop %v5422
    %v5424 = vsub.f32 %v5293, %v5408
    %v5425 = vsub.f32 %v5299, %v5409
    %v5426 = vsub.f32 %v5305, %v5410
    %v5427 = vsub.f32 %v5311, %v5411
    %v5428 = vmul.f32 %v5424, 1.442695
    %v5429 = vpow.pop %v5428
    %v5430 = vmul.f32 %v5425, 1.442695
    %v5431 = vpow.pop %v5430
    %v5432 = vmul.f32 %v5426, 1.442695
    %v5433 = vpow.pop %v5432
    %v5434 = vmul.f32 %v5427, 1.442695
    %v5435 = vpow.pop %v5434
    %v5436 = vsub.f32 %v5321, %v5408
    %v5437 = vsub.f32 %v5327, %v5409
    %v5438 = vsub.f32 %v5333, %v5410
    %v5439 = vsub.f32 %v5339, %v5411
    %v5440 = vmul.f32 %v5436, 1.442695
    %v5441 = vpow.pop %v5440
    %v5442 = vmul.f32 %v5437, 1.442695
    %v5443 = vpow.pop %v5442
    %v5444 = vmul.f32 %v5438, 1.442695
    %v5445 = vpow.pop %v5444
    %v5446 = vmul.f32 %v5439, 1.442695
    %v5447 = vpow.pop %v5446
    %v5448 = vsub.f32 %v5349, %v5408
    %v5449 = vsub.f32 %v5355, %v5409
    %v5450 = vsub.f32 %v5361, %v5410
    %v5451 = vsub.f32 %v5367, %v5411
    %v5452 = vmul.f32 %v5448, 1.442695
    %v5453 = vpow.pop %v5452
    %v5454 = vmul.f32 %v5449, 1.442695
    %v5455 = vpow.pop %v5454
    %v5456 = vmul.f32 %v5450, 1.442695
    %v5457 = vpow.pop %v5456
    %v5458 = vmul.f32 %v5451, 1.442695
    %v5459 = vpow.pop %v5458
    %v5460 = vsub.f32 %v5377, %v5408
    %v5461 = vsub.f32 %v5383, %v5409
    %v5462 = vsub.f32 %v5389, %v5410
    %v5463 = vsub.f32 %v5395, %v5411
    %v5464 = vmul.f32 %v5460, 1.442695
    %v5465 = vpow.pop %v5464
    %v5466 = vmul.f32 %v5461, 1.442695
    %v5467 = vpow.pop %v5466
    %v5468 = vmul.f32 %v5462, 1.442695
    %v5469 = vpow.pop %v5468
    %v5470 = vmul.f32 %v5463, 1.442695
    %v5471 = vpow.pop %v5470
    %v5472 = vadd.f32 %v5417, %v5429
    %v5473 = vadd.f32 %v5419, %v5431
    %v5474 = vadd.f32 %v5421, %v5433
    %v5475 = vadd.f32 %v5423, %v5435
    %v5476 = vadd.f32 %v5472, %v5441
    %v5477 = vadd.f32 %v5473, %v5443
    %v5478 = vadd.f32 %v5474, %v5445
    %v5479 = vadd.f32 %v5475, %v5447
    %v5480 = vadd.f32 %v5476, %v5453
    %v5481 = vadd.f32 %v5477, %v5455
    %v5482 = vadd.f32 %v5478, %v5457
    %v5483 = vadd.f32 %v5479, %v5459
    %v5484 = vadd.f32 %v5480, %v5465
    %v5485 = vadd.f32 %v5481, %v5467
    %v5486 = vadd.f32 %v5482, %v5469
    %v5487 = vadd.f32 %v5483, %v5471
    %v5488 = vrcp.pop %v5484
    %v5489 = vrcp.pop %v5485
    %v5490 = vrcp.pop %v5486
    %v5491 = vrcp.pop %v5487
    %v5492 = vmul.f32 %v5417, %v5488
    %v5493 = vmul.f32 %v5419, %v5489
    %v5494 = vmul.f32 %v5421, %v5490
    %v5495 = vmul.f32 %v5423, %v5491
    %v5496 = vmul.f32 %v5492, %v5068
    %v5497 = vmul.f32 %v5493, %v5072
    %v5498 = vmul.f32 %v5494, %v5078
    %v5499 = vmul.f32 %v5495, %v5082
    %v5500 = vadd.f32 %v5496, 0.0
    %v5501 = vadd.f32 %v5497, 0.0
    %v5502 = vadd.f32 %v5498, 0.0
    %v5503 = vadd.f32 %v5499, 0.0
    %v5504 = vmul.f32 %v5429, %v5488
    %v5505 = vmul.f32 %v5431, %v5489
    %v5506 = vmul.f32 %v5433, %v5490
    %v5507 = vmul.f32 %v5435, %v5491
    %v5508 = vmul.f32 %v5504, %v5070
    %v5509 = vmul.f32 %v5505, %v5074
    %v5510 = vmul.f32 %v5506, %v5080
    %v5511 = vmul.f32 %v5507, %v5084
    %v5512 = vadd.f32 %v5500, %v5508
    %v5513 = vadd.f32 %v5501, %v5509
    %v5514 = vadd.f32 %v5502, %v5510
    %v5515 = vadd.f32 %v5503, %v5511
    %v5516 = vmul.f32 %v5441, %v5488
    %v5517 = vmul.f32 %v5443, %v5489
    %v5518 = vmul.f32 %v5445, %v5490
    %v5519 = vmul.f32 %v5447, %v5491
    %v5520 = vmul.f32 %v5516, %v5161
    %v5521 = vmul.f32 %v5517, %v5165
    %v5522 = vmul.f32 %v5518, %v5171
    %v5523 = vmul.f32 %v5519, %v5175
    %v5524 = vadd.f32 %v5512, %v5520
    %v5525 = vadd.f32 %v5513, %v5521
    %v5526 = vadd.f32 %v5514, %v5522
    %v5527 = vadd.f32 %v5515, %v5523
    %v5528 = vmul.f32 %v5453, %v5488
    %v5529 = vmul.f32 %v5455, %v5489
    %v5530 = vmul.f32 %v5457, %v5490
    %v5531 = vmul.f32 %v5459, %v5491
    %v5532 = vmul.f32 %v5528, %v5163
    %v5533 = vmul.f32 %v5529, %v5167
    %v5534 = vmul.f32 %v5530, %v5173
    %v5535 = vmul.f32 %v5531, %v5177
    %v5536 = vadd.f32 %v5524, %v5532
    %v5537 = vadd.f32 %v5525, %v5533
    %v5538 = vadd.f32 %v5526, %v5534
    %v5539 = vadd.f32 %v5527, %v5535
    %v5540 = vmul.f32 %v5465, %v5488
    %v5541 = vmul.f32 %v5467, %v5489
    %v5542 = vmul.f32 %v5469, %v5490
    %v5543 = vmul.f32 %v5471, %v5491
    %v5544 = vmul.f32 %v5540, %v5242
    %v5545 = vmul.f32 %v5541, %v5245
    %v5546 = vmul.f32 %v5542, %v5250
    %v5547 = vmul.f32 %v5543, %v5253
    %v5548 = vadd.f32 %v5536, %v5544
    %v5549 = vadd.f32 %v5537, %v5545
    %v5550 = vadd.f32 %v5538, %v5546
    %v5551 = vadd.f32 %v5539, %v5547
    %v5552 = vmul.f32 %v5030, %v5048
    %v5553 = vmul.f32 %v5034, %v5052
    %v5554 = vmul.f32 %v5040, %v5058
    %v5555 = vmul.f32 %v5044, %v5062
    %v5556 = vrot.slane %v5552, 4
    %v5557 = vadd.f32 %v5552, %v5556
    %v5558 = vrot.slane %v5557, 2
    %v5559 = vadd.f32 %v5557, %v5558
    %v5560 = vrot.slane %v5559, 1
    %v5561 = vadd.f32 %v5559, %v5560
    %v5562 = vrot.slane %v5553, 4
    %v5563 = vadd.f32 %v5553, %v5562
    %v5564 = vrot.slane %v5563, 2
    %v5565 = vadd.f32 %v5563, %v5564
    %v5566 = vrot.slane %v5565, 1
    %v5567 = vadd.f32 %v5565, %v5566
    %v5568 = vrot.slane %v5554, 4
    %v5569 = vadd.f32 %v5554, %v5568
    %v5570 = vrot.slane %v5569, 2
    %v5571 = vadd.f32 %v5569, %v5570
    %v5572 = vrot.slane %v5571, 1
    %v5573 = vadd.f32 %v5571, %v5572
    %v5574 = vrot.slane %v5555, 4
    %v5575 = vadd.f32 %v5555, %v5574
    %v5576 = vrot.slane %v5575, 2
    %v5577 = vadd.f32 %v5575, %v5576
    %v5578 = vrot.slane %v5577, 1
    %v5579 = vadd.f32 %v5577, %v5578
    %v5580 = vmul.f32 %v5030, %v5050
    %v5581 = vmul.f32 %v5034, %v5054
    %v5582 = vmul.f32 %v5040, %v5060
    %v5583 = vmul.f32 %v5044, %v5064
    %v5584 = vrot.slane %v5580, 4
    %v5585 = vadd.f32 %v5580, %v5584
    %v5586 = vrot.slane %v5585, 2
    %v5587 = vadd.f32 %v5585, %v5586
    %v5588 = vrot.slane %v5587, 1
    %v5589 = vadd.f32 %v5587, %v5588
    %v5590 = vrot.slane %v5581, 4
    %v5591 = vadd.f32 %v5581, %v5590
    %v5592 = vrot.slane %v5591, 2
    %v5593 = vadd.f32 %v5591, %v5592
    %v5594 = vrot.slane %v5593, 1
    %v5595 = vadd.f32 %v5593, %v5594
    %v5596 = vrot.slane %v5582, 4
    %v5597 = vadd.f32 %v5582, %v5596
    %v5598 = vrot.slane %v5597, 2
    %v5599 = vadd.f32 %v5597, %v5598
    %v5600 = vrot.slane %v5599, 1
    %v5601 = vadd.f32 %v5599, %v5600
    %v5602 = vrot.slane %v5583, 4
    %v5603 = vadd.f32 %v5583, %v5602
    %v5604 = vrot.slane %v5603, 2
    %v5605 = vadd.f32 %v5603, %v5604
    %v5606 = vrot.slane %v5605, 1
    %v5607 = vadd.f32 %v5605, %v5606
    %v5608 = vmul.f32 %v5030, %v5141
    %v5609 = vmul.f32 %v5034, %v5145
    %v5610 = vmul.f32 %v5040, %v5151
    %v5611 = vmul.f32 %v5044, %v5155
    %v5612 = vrot.slane %v5608, 4
    %v5613 = vadd.f32 %v5608, %v5612
    %v5614 = vrot.slane %v5613, 2
    %v5615 = vadd.f32 %v5613, %v5614
    %v5616 = vrot.slane %v5615, 1
    %v5617 = vadd.f32 %v5615, %v5616
    %v5618 = vrot.slane %v5609, 4
    %v5619 = vadd.f32 %v5609, %v5618
    %v5620 = vrot.slane %v5619, 2
    %v5621 = vadd.f32 %v5619, %v5620
    %v5622 = vrot.slane %v5621, 1
    %v5623 = vadd.f32 %v5621, %v5622
    %v5624 = vrot.slane %v5610, 4
    %v5625 = vadd.f32 %v5610, %v5624
    %v5626 = vrot.slane %v5625, 2
    %v5627 = vadd.f32 %v5625, %v5626
    %v5628 = vrot.slane %v5627, 1
    %v5629 = vadd.f32 %v5627, %v5628
    %v5630 = vrot.slane %v5611, 4
    %v5631 = vadd.f32 %v5611, %v5630
    %v5632 = vrot.slane %v5631, 2
    %v5633 = vadd.f32 %v5631, %v5632
    %v5634 = vrot.slane %v5633, 1
    %v5635 = vadd.f32 %v5633, %v5634
    %v5636 = vmul.f32 %v5030, %v5143
    %v5637 = vmul.f32 %v5034, %v5147
    %v5638 = vmul.f32 %v5040, %v5153
    %v5639 = vmul.f32 %v5044, %v5157
    %v5640 = vrot.slane %v5636, 4
    %v5641 = vadd.f32 %v5636, %v5640
    %v5642 = vrot.slane %v5641, 2
    %v5643 = vadd.f32 %v5641, %v5642
    %v5644 = vrot.slane %v5643, 1
    %v5645 = vadd.f32 %v5643, %v5644
    %v5646 = vrot.slane %v5637, 4
    %v5647 = vadd.f32 %v5637, %v5646
    %v5648 = vrot.slane %v5647, 2
    %v5649 = vadd.f32 %v5647, %v5648
    %v5650 = vrot.slane %v5649, 1
    %v5651 = vadd.f32 %v5649, %v5650
    %v5652 = vrot.slane %v5638, 4
    %v5653 = vadd.f32 %v5638, %v5652
    %v5654 = vrot.slane %v5653, 2
    %v5655 = vadd.f32 %v5653, %v5654
    %v5656 = vrot.slane %v5655, 1
    %v5657 = vadd.f32 %v5655, %v5656
    %v5658 = vrot.slane %v5639, 4
    %v5659 = vadd.f32 %v5639, %v5658
    %v5660 = vrot.slane %v5659, 2
    %v5661 = vadd.f32 %v5659, %v5660
    %v5662 = vrot.slane %v5661, 1
    %v5663 = vadd.f32 %v5661, %v5662
    %v5664 = vmul.f32 %v5030, %v5226
    %v5665 = vmul.f32 %v5034, %v5229
    %v5666 = vmul.f32 %v5040, %v5234
    %v5667 = vmul.f32 %v5044, %v5237
    %v5668 = vrot.slane %v5664, 4
    %v5669 = vadd.f32 %v5664, %v5668
    %v5670 = vrot.slane %v5669, 2
    %v5671 = vadd.f32 %v5669, %v5670
    %v5672 = vrot.slane %v5671, 1
    %v5673 = vadd.f32 %v5671, %v5672
    %v5674 = vrot.slane %v5665, 4
    %v5675 = vadd.f32 %v5665, %v5674
    %v5676 = vrot.slane %v5675, 2
    %v5677 = vadd.f32 %v5675, %v5676
    %v5678 = vrot.slane %v5677, 1
    %v5679 = vadd.f32 %v5677, %v5678
    %v5680 = vrot.slane %v5666, 4
    %v5681 = vadd.f32 %v5666, %v5680
    %v5682 = vrot.slane %v5681, 2
    %v5683 = vadd.f32 %v5681, %v5682
    %v5684 = vrot.slane %v5683, 1
    %v5685 = vadd.f32 %v5683, %v5684
    %v5686 = vrot.slane %v5667, 4
    %v5687 = vadd.f32 %v5667, %v5686
    %v5688 = vrot.slane %v5687, 2
    %v5689 = vadd.f32 %v5687, %v5688
    %v5690 = vrot.slane %v5689, 1
    %v5691 = vadd.f32 %v5689, %v5690
    %v5692 = vmax.f32 %v5561, %v5589
    %v5693 = vmax.f32 %v5567, %v5595
    %v5694 = vmax.f32 %v5573, %v5601
    %v5695 = vmax.f32 %v5579, %v5607
    %v5696 = vmax.f32 %v5692, %v5617
    %v5697 = vmax.f32 %v5693, %v5623
    %v5698 = vmax.f32 %v5694, %v5629
    %v5699 = vmax.f32 %v5695, %v5635
    %v5700 = vmax.f32 %v5696, %v5645
    %v5701 = vmax.f32 %v5697, %v5651
    %v5702 = vmax.f32 %v5698, %v5657
    %v5703 = vmax.f32 %v5699, %v5663
    %v5704 = vmax.f32 %v5700, %v5673
    %v5705 = vmax.f32 %v5701, %v5679
    %v5706 = vmax.f32 %v5702, %v5685
    %v5707 = vmax.f32 %v5703, %v5691
    %v5708 = vsub.f32 %v5561, %v5704
    %v5709 = vsub.f32 %v5567, %v5705
    %v5710 = vsub.f32 %v5573, %v5706
    %v5711 = vsub.f32 %v5579, %v5707
    %v5712 = vmul.f32 %v5708, 1.442695
    %v5713 = vpow.pop %v5712
    %v5714 = vmul.f32 %v5709, 1.442695
    %v5715 = vpow.pop %v5714
    %v5716 = vmul.f32 %v5710, 1.442695
    %v5717 = vpow.pop %v5716
    %v5718 = vmul.f32 %v5711, 1.442695
    %v5719 = vpow.pop %v5718
    %v5720 = vsub.f32 %v5589, %v5704
    %v5721 = vsub.f32 %v5595, %v5705
    %v5722 = vsub.f32 %v5601, %v5706
    %v5723 = vsub.f32 %v5607, %v5707
    %v5724 = vmul.f32 %v5720, 1.442695
    %v5725 = vpow.pop %v5724
    %v5726 = vmul.f32 %v5721, 1.442695
    %v5727 = vpow.pop %v5726
    %v5728 = vmul.f32 %v5722, 1.442695
    %v5729 = vpow.pop %v5728
    %v5730 = vmul.f32 %v5723, 1.442695
    %v5731 = vpow.pop %v5730
    %v5732 = vsub.f32 %v5617, %v5704
    %v5733 = vsub.f32 %v5623, %v5705
    %v5734 = vsub.f32 %v5629, %v5706
    %v5735 = vsub.f32 %v5635, %v5707
    %v5736 = vmul.f32 %v5732, 1.442695
    %v5737 = vpow.pop %v5736
    %v5738 = vmul.f32 %v5733, 1.442695
    %v5739 = vpow.pop %v5738
    %v5740 = vmul.f32 %v5734, 1.442695
    %v5741 = vpow.pop %v5740
    %v5742 = vmul.f32 %v5735, 1.442695
    %v5743 = vpow.pop %v5742
    %v5744 = vsub.f32 %v5645, %v5704
    %v5745 = vsub.f32 %v5651, %v5705
    %v5746 = vsub.f32 %v5657, %v5706
    %v5747 = vsub.f32 %v5663, %v5707
    %v5748 = vmul.f32 %v5744, 1.442695
    %v5749 = vpow.pop %v5748
    %v5750 = vmul.f32 %v5745, 1.442695
    %v5751 = vpow.pop %v5750
    %v5752 = vmul.f32 %v5746, 1.442695
    %v5753 = vpow.pop %v5752
    %v5754 = vmul.f32 %v5747, 1.442695
    %v5755 = vpow.pop %v5754
    %v5756 = vsub.f32 %v5673, %v5704
    %v5757 = vsub.f32 %v5679, %v5705
    %v5758 = vsub.f32 %v5685, %v5706
    %v5759 = vsub.f32 %v5691, %v5707
    %v5760 = vmul.f32 %v5756, 1.442695
    %v5761 = vpow.pop %v5760
    %v5762 = vmul.f32 %v5757, 1.442695
    %v5763 = vpow.pop %v5762
    %v5764 = vmul.f32 %v5758, 1.442695
    %v5765 = vpow.pop %v5764
    %v5766 = vmul.f32 %v5759, 1.442695
    %v5767 = vpow.pop %v5766
    %v5768 = vadd.f32 %v5713, %v5725
    %v5769 = vadd.f32 %v5715, %v5727
    %v5770 = vadd.f32 %v5717, %v5729
    %v5771 = vadd.f32 %v5719, %v5731
    %v5772 = vadd.f32 %v5768, %v5737
    %v5773 = vadd.f32 %v5769, %v5739
    %v5774 = vadd.f32 %v5770, %v5741
    %v5775 = vadd.f32 %v5771, %v5743
    %v5776 = vadd.f32 %v5772, %v5749
    %v5777 = vadd.f32 %v5773, %v5751
    %v5778 = vadd.f32 %v5774, %v5753
    %v5779 = vadd.f32 %v5775, %v5755
    %v5780 = vadd.f32 %v5776, %v5761
    %v5781 = vadd.f32 %v5777, %v5763
    %v5782 = vadd.f32 %v5778, %v5765
    %v5783 = vadd.f32 %v5779, %v5767
    %v5784 = vrcp.pop %v5780
    %v5785 = vrcp.pop %v5781
    %v5786 = vrcp.pop %v5782
    %v5787 = vrcp.pop %v5783
    %v5788 = vmul.f32 %v5713, %v5784
    %v5789 = vmul.f32 %v5715, %v5785
    %v5790 = vmul.f32 %v5717, %v5786
    %v5791 = vmul.f32 %v5719, %v5787
    %v5792 = vmul.f32 %v5788, %v5068
    %v5793 = vmul.f32 %v5789, %v5072
    %v5794 = vmul.f32 %v5790, %v5078
    %v5795 = vmul.f32 %v5791, %v5082
    %v5796 = vadd.f32 %v5792, 0.0
    %v5797 = vadd.f32 %v5793, 0.0
    %v5798 = vadd.f32 %v5794, 0.0
    %v5799 = vadd.f32 %v5795, 0.0
    %v5800 = vmul.f32 %v5725, %v5784
    %v5801 = vmul.f32 %v5727, %v5785
    %v5802 = vmul.f32 %v5729, %v5786
    %v5803 = vmul.f32 %v5731, %v5787
    %v5804 = vmul.f32 %v5800, %v5070
    %v5805 = vmul.f32 %v5801, %v5074
    %v5806 = vmul.f32 %v5802, %v5080
    %v5807 = vmul.f32 %v5803, %v5084
    %v5808 = vadd.f32 %v5796, %v5804
    %v5809 = vadd.f32 %v5797, %v5805
    %v5810 = vadd.f32 %v5798, %v5806
    %v5811 = vadd.f32 %v5799, %v5807
    %v5812 = vmul.f32 %v5737, %v5784
    %v5813 = vmul.f32 %v5739, %v5785
    %v5814 = vmul.f32 %v5741, %v5786
    %v5815 = vmul.f32 %v5743, %v5787
    %v5816 = vmul.f32 %v5812, %v5161
    %v5817 = vmul.f32 %v5813, %v5165
    %v5818 = vmul.f32 %v5814, %v5171
    %v5819 = vmul.f32 %v5815, %v5175
    %v5820 = vadd.f32 %v5808, %v5816
    %v5821 = vadd.f32 %v5809, %v5817
    %v5822 = vadd.f32 %v5810, %v5818
    %v5823 = vadd.f32 %v5811, %v5819
    %v5824 = vmul.f32 %v5749, %v5784
    %v5825 = vmul.f32 %v5751, %v5785
    %v5826 = vmul.f32 %v5753, %v5786
    %v5827 = vmul.f32 %v5755, %v5787
    %v5828 = vmul.f32 %v5824, %v5163
    %v5829 = vmul.f32 %v5825, %v5167
    %v5830 = vmul.f32 %v5826, %v5173
    %v5831 = vmul.f32 %v5827, %v5177
    %v5832 = vadd.f32 %v5820, %v5828
    %v5833 = vadd.f32 %v5821, %v5829
    %v5834 = vadd.f32 %v5822, %v5830
    %v5835 = vadd.f32 %v5823, %v5831
    %v5836 = vmul.f32 %v5761, %v5784
    %v5837 = vmul.f32 %v5763, %v5785
    %v5838 = vmul.f32 %v5765, %v5786
    %v5839 = vmul.f32 %v5767, %v5787
    %v5840 = vmul.f32 %v5836, %v5242
    %v5841 = vmul.f32 %v5837, %v5245
    %v5842 = vmul.f32 %v5838, %v5250
    %v5843 = vmul.f32 %v5839, %v5253
    %v5844 = vadd.f32 %v5832, %v5840
    %v5845 = vadd.f32 %v5833, %v5841
    %v5846 = vadd.f32 %v5834, %v5842
    %v5847 = vadd.f32 %v5835, %v5843
    %v5848 = vmul.f32 %v5121, %v5048
    %v5849 = vmul.f32 %v5125, %v5052
    %v5850 = vmul.f32 %v5131, %v5058
    %v5851 = vmul.f32 %v5135, %v5062
    %v5852 = vrot.slane %v5848, 4
    %v5853 = vadd.f32 %v5848, %v5852
    %v5854 = vrot.slane %v5853, 2
    %v5855 = vadd.f32 %v5853, %v5854
    %v5856 = vrot.slane %v5855, 1
    %v5857 = vadd.f32 %v5855, %v5856
    %v5858 = vrot.slane %v5849, 4
    %v5859 = vadd.f32 %v5849, %v5858
    %v5860 = vrot.slane %v5859, 2
    %v5861 = vadd.f32 %v5859, %v5860
    %v5862 = vrot.slane %v5861, 1
    %v5863 = vadd.f32 %v5861, %v5862
    %v5864 = vrot.slane %v5850, 4
    %v5865 = vadd.f32 %v5850, %v5864
    %v5866 = vrot.slane %v5865, 2
    %v5867 = vadd.f32 %v5865, %v5866
    %v5868 = vrot.slane %v5867, 1
    %v5869 = vadd.f32 %v5867, %v5868
    %v5870 = vrot.slane %v5851, 4
    %v5871 = vadd.f32 %v5851, %v5870
    %v5872 = vrot.slane %v5871, 2
    %v5873 = vadd.f32 %v5871, %v5872
    %v5874 = vrot.slane %v5873, 1
    %v5875 = vadd.f32 %v5873, %v5874
    %v5876 = vmul.f32 %v5121, %v5050
    %v5877 = vmul.f32 %v5125, %v5054
    %v5878 = vmul.f32 %v5131, %v5060
    %v5879 = vmul.f32 %v5135, %v5064
    %v5880 = vrot.slane %v5876, 4
    %v5881 = vadd.f32 %v5876, %v5880
    %v5882 = vrot.slane %v5881, 2
    %v5883 = vadd.f32 %v5881, %v5882
    %v5884 = vrot.slane %v5883, 1
    %v5885 = vadd.f32 %v5883, %v5884
    %v5886 = vrot.slane %v5877, 4
    %v5887 = vadd.f32 %v5877, %v5886
    %v5888 = vrot.slane %v5887, 2
    %v5889 = vadd.f32 %v5887, %v5888
    %v5890 = vrot.slane %v5889, 1
    %v5891 = vadd.f32 %v5889, %v5890
    %v5892 = vrot.slane %v5878, 4
    %v5893 = vadd.f32 %v5878, %v5892
    %v5894 = vrot.slane %v5893, 2
    %v5895 = vadd.f32 %v5893, %v5894
    %v5896 = vrot.slane %v5895, 1
    %v5897 = vadd.f32 %v5895, %v5896
    %v5898 = vrot.slane %v5879, 4
    %v5899 = vadd.f32 %v5879, %v5898
    %v5900 = vrot.slane %v5899, 2
    %v5901 = vadd.f32 %v5899, %v5900
    %v5902 = vrot.slane %v5901, 1
    %v5903 = vadd.f32 %v5901, %v5902
    %v5904 = vmul.f32 %v5121, %v5141
    %v5905 = vmul.f32 %v5125, %v5145
    %v5906 = vmul.f32 %v5131, %v5151
    %v5907 = vmul.f32 %v5135, %v5155
    %v5908 = vrot.slane %v5904, 4
    %v5909 = vadd.f32 %v5904, %v5908
    %v5910 = vrot.slane %v5909, 2
    %v5911 = vadd.f32 %v5909, %v5910
    %v5912 = vrot.slane %v5911, 1
    %v5913 = vadd.f32 %v5911, %v5912
    %v5914 = vrot.slane %v5905, 4
    %v5915 = vadd.f32 %v5905, %v5914
    %v5916 = vrot.slane %v5915, 2
    %v5917 = vadd.f32 %v5915, %v5916
    %v5918 = vrot.slane %v5917, 1
    %v5919 = vadd.f32 %v5917, %v5918
    %v5920 = vrot.slane %v5906, 4
    %v5921 = vadd.f32 %v5906, %v5920
    %v5922 = vrot.slane %v5921, 2
    %v5923 = vadd.f32 %v5921, %v5922
    %v5924 = vrot.slane %v5923, 1
    %v5925 = vadd.f32 %v5923, %v5924
    %v5926 = vrot.slane %v5907, 4
    %v5927 = vadd.f32 %v5907, %v5926
    %v5928 = vrot.slane %v5927, 2
    %v5929 = vadd.f32 %v5927, %v5928
    %v5930 = vrot.slane %v5929, 1
    %v5931 = vadd.f32 %v5929, %v5930
    %v5932 = vmul.f32 %v5121, %v5143
    %v5933 = vmul.f32 %v5125, %v5147
    %v5934 = vmul.f32 %v5131, %v5153
    %v5935 = vmul.f32 %v5135, %v5157
    %v5936 = vrot.slane %v5932, 4
    %v5937 = vadd.f32 %v5932, %v5936
    %v5938 = vrot.slane %v5937, 2
    %v5939 = vadd.f32 %v5937, %v5938
    %v5940 = vrot.slane %v5939, 1
    %v5941 = vadd.f32 %v5939, %v5940
    %v5942 = vrot.slane %v5933, 4
    %v5943 = vadd.f32 %v5933, %v5942
    %v5944 = vrot.slane %v5943, 2
    %v5945 = vadd.f32 %v5943, %v5944
    %v5946 = vrot.slane %v5945, 1
    %v5947 = vadd.f32 %v5945, %v5946
    %v5948 = vrot.slane %v5934, 4
    %v5949 = vadd.f32 %v5934, %v5948
    %v5950 = vrot.slane %v5949, 2
    %v5951 = vadd.f32 %v5949, %v5950
    %v5952 = vrot.slane %v5951, 1
    %v5953 = vadd.f32 %v5951, %v5952
    %v5954 = vrot.slane %v5935, 4
    %v5955 = vadd.f32 %v5935, %v5954
    %v5956 = vrot.slane %v5955, 2
    %v5957 = vadd.f32 %v5955, %v5956
    %v5958 = vrot.slane %v5957, 1
    %v5959 = vadd.f32 %v5957, %v5958
    %v5960 = vmul.f32 %v5121, %v5226
    %v5961 = vmul.f32 %v5125, %v5229
    %v5962 = vmul.f32 %v5131, %v5234
    %v5963 = vmul.f32 %v5135, %v5237
    %v5964 = vrot.slane %v5960, 4
    %v5965 = vadd.f32 %v5960, %v5964
    %v5966 = vrot.slane %v5965, 2
    %v5967 = vadd.f32 %v5965, %v5966
    %v5968 = vrot.slane %v5967, 1
    %v5969 = vadd.f32 %v5967, %v5968
    %v5970 = vrot.slane %v5961, 4
    %v5971 = vadd.f32 %v5961, %v5970
    %v5972 = vrot.slane %v5971, 2
    %v5973 = vadd.f32 %v5971, %v5972
    %v5974 = vrot.slane %v5973, 1
    %v5975 = vadd.f32 %v5973, %v5974
    %v5976 = vrot.slane %v5962, 4
    %v5977 = vadd.f32 %v5962, %v5976
    %v5978 = vrot.slane %v5977, 2
    %v5979 = vadd.f32 %v5977, %v5978
    %v5980 = vrot.slane %v5979, 1
    %v5981 = vadd.f32 %v5979, %v5980
    %v5982 = vrot.slane %v5963, 4
    %v5983 = vadd.f32 %v5963, %v5982
    %v5984 = vrot.slane %v5983, 2
    %v5985 = vadd.f32 %v5983, %v5984
    %v5986 = vrot.slane %v5985, 1
    %v5987 = vadd.f32 %v5985, %v5986
    %v5988 = vmax.f32 %v5857, %v5885
    %v5989 = vmax.f32 %v5863, %v5891
    %v5990 = vmax.f32 %v5869, %v5897
    %v5991 = vmax.f32 %v5875, %v5903
    %v5992 = vmax.f32 %v5988, %v5913
    %v5993 = vmax.f32 %v5989, %v5919
    %v5994 = vmax.f32 %v5990, %v5925
    %v5995 = vmax.f32 %v5991, %v5931
    %v5996 = vmax.f32 %v5992, %v5941
    %v5997 = vmax.f32 %v5993, %v5947
    %v5998 = vmax.f32 %v5994, %v5953
    %v5999 = vmax.f32 %v5995, %v5959
    %v6000 = vmax.f32 %v5996, %v5969
    %v6001 = vmax.f32 %v5997, %v5975
    %v6002 = vmax.f32 %v5998, %v5981
    %v6003 = vmax.f32 %v5999, %v5987
    %v6004 = vsub.f32 %v5857, %v6000
    %v6005 = vsub.f32 %v5863, %v6001
    %v6006 = vsub.f32 %v5869, %v6002
    %v6007 = vsub.f32 %v5875, %v6003
    %v6008 = vmul.f32 %v6004, 1.442695
    %v6009 = vpow.pop %v6008
    %v6010 = vmul.f32 %v6005, 1.442695
    %v6011 = vpow.pop %v6010
    %v6012 = vmul.f32 %v6006, 1.442695
    %v6013 = vpow.pop %v6012
    %v6014 = vmul.f32 %v6007, 1.442695
    %v6015 = vpow.pop %v6014
    %v6016 = vsub.f32 %v5885, %v6000
    %v6017 = vsub.f32 %v5891, %v6001
    %v6018 = vsub.f32 %v5897, %v6002
    %v6019 = vsub.f32 %v5903, %v6003
    %v6020 = vmul.f32 %v6016, 1.442695
    %v6021 = vpow.pop %v6020
    %v6022 = vmul.f32 %v6017, 1.442695
    %v6023 = vpow.pop %v6022
    %v6024 = vmul.f32 %v6018, 1.442695
    %v6025 = vpow.pop %v6024
    %v6026 = vmul.f32 %v6019, 1.442695
    %v6027 = vpow.pop %v6026
    %v6028 = vsub.f32 %v5913, %v6000
    %v6029 = vsub.f32 %v5919, %v6001
    %v6030 = vsub.f32 %v5925, %v6002
    %v6031 = vsub.f32 %v5931, %v6003
    %v6032 = vmul.f32 %v6028, 1.442695
    %v6033 = vpow.pop %v6032
    %v6034 = vmul.f32 %v6029, 1.442695
    %v6035 = vpow.pop %v6034
    %v6036 = vmul.f32 %v6030, 1.442695
    %v6037 = vpow.pop %v6036
    %v6038 = vmul.f32 %v6031, 1.442695
    %v6039 = vpow.pop %v6038
    %v6040 = vsub.f32 %v5941, %v6000
    %v6041 = vsub.f32 %v5947, %v6001
    %v6042 = vsub.f32 %v5953, %v6002
    %v6043 = vsub.f32 %v5959, %v6003
    %v6044 = vmul.f32 %v6040, 1.442695
    %v6045 = vpow.pop %v6044
    %v6046 = vmul.f32 %v6041, 1.442695
    %v6047 = vpow.pop %v6046
    %v6048 = vmul.f32 %v6042, 1.442695
    %v6049 = vpow.pop %v6048
    %v6050 = vmul.f32 %v6043, 1.442695
    %v6051 = vpow.pop %v6050
    %v6052 = vsub.f32 %v5969, %v6000
    %v6053 = vsub.f32 %v5975, %v6001
    %v6054 = vsub.f32 %v5981, %v6002
    %v6055 = vsub.f32 %v5987, %v6003
    %v6056 = vmul.f32 %v6052, 1.442695
    %v6057 = vpow.pop %v6056
    %v6058 = vmul.f32 %v6053, 1.442695
    %v6059 = vpow.pop %v6058
    %v6060 = vmul.f32 %v6054, 1.442695
    %v6061 = vpow.pop %v6060
    %v6062 = vmul.f32 %v6055, 1.442695
    %v6063 = vpow.pop %v6062
    %v6064 = vadd.f32 %v6009, %v6021
    %v6065 = vadd.f32 %v6011, %v6023
    %v6066 = vadd.f32 %v6013, %v6025
    %v6067 = vadd.f32 %v6015, %v6027
    %v6068 = vadd.f32 %v6064, %v6033
    %v6069 = vadd.f32 %v6065, %v6035
    %v6070 = vadd.f32 %v6066, %v6037
    %v6071 = vadd.f32 %v6067, %v6039
    %v6072 = vadd.f32 %v6068, %v6045
    %v6073 = vadd.f32 %v6069, %v6047
    %v6074 = vadd.f32 %v6070, %v6049
    %v6075 = vadd.f32 %v6071, %v6051
    %v6076 = vadd.f32 %v6072, %v6057
    %v6077 = vadd.f32 %v6073, %v6059
    %v6078 = vadd.f32 %v6074, %v6061
    %v6079 = vadd.f32 %v6075, %v6063
    %v6080 = vrcp.pop %v6076
    %v6081 = vrcp.pop %v6077
    %v6082 = vrcp.pop %v6078
    %v6083 = vrcp.pop %v6079
    %v6084 = vmul.f32 %v6009, %v6080
    %v6085 = vmul.f32 %v6011, %v6081
    %v6086 = vmul.f32 %v6013, %v6082
    %v6087 = vmul.f32 %v6015, %v6083
    %v6088 = vmul.f32 %v6084, %v5068
    %v6089 = vmul.f32 %v6085, %v5072
    %v6090 = vmul.f32 %v6086, %v5078
    %v6091 = vmul.f32 %v6087, %v5082
    %v6092 = vadd.f32 %v6088, 0.0
    %v6093 = vadd.f32 %v6089, 0.0
    %v6094 = vadd.f32 %v6090, 0.0
    %v6095 = vadd.f32 %v6091, 0.0
    %v6096 = vmul.f32 %v6021, %v6080
    %v6097 = vmul.f32 %v6023, %v6081
    %v6098 = vmul.f32 %v6025, %v6082
    %v6099 = vmul.f32 %v6027, %v6083
    %v6100 = vmul.f32 %v6096, %v5070
    %v6101 = vmul.f32 %v6097, %v5074
    %v6102 = vmul.f32 %v6098, %v5080
    %v6103 = vmul.f32 %v6099, %v5084
    %v6104 = vadd.f32 %v6092, %v6100
    %v6105 = vadd.f32 %v6093, %v6101
    %v6106 = vadd.f32 %v6094, %v6102
    %v6107 = vadd.f32 %v6095, %v6103
    %v6108 = vmul.f32 %v6033, %v6080
    %v6109 = vmul.f32 %v6035, %v6081
    %v6110 = vmul.f32 %v6037, %v6082
    %v6111 = vmul.f32 %v6039, %v6083
    %v6112 = vmul.f32 %v6108, %v5161
    %v6113 = vmul.f32 %v6109, %v5165
    %v6114 = vmul.f32 %v6110, %v5171
    %v6115 = vmul.f32 %v6111, %v5175
    %v6116 = vadd.f32 %v6104, %v6112
    %v6117 = vadd.f32 %v6105, %v6113
    %v6118 = vadd.f32 %v6106, %v6114
    %v6119 = vadd.f32 %v6107, %v6115
    %v6120 = vmul.f32 %v6045, %v6080
    %v6121 = vmul.f32 %v6047, %v6081
    %v6122 = vmul.f32 %v6049, %v6082
    %v6123 = vmul.f32 %v6051, %v6083
    %v6124 = vmul.f32 %v6120, %v5163
    %v6125 = vmul.f32 %v6121, %v5167
    %v6126 = vmul.f32 %v6122, %v5173
    %v6127 = vmul.f32 %v6123, %v5177
    %v6128 = vadd.f32 %v6116, %v6124
    %v6129 = vadd.f32 %v6117, %v6125
    %v6130 = vadd.f32 %v6118, %v6126
    %v6131 = vadd.f32 %v6119, %v6127
    %v6132 = vmul.f32 %v6057, %v6080
    %v6133 = vmul.f32 %v6059, %v6081
    %v6134 = vmul.f32 %v6061, %v6082
    %v6135 = vmul.f32 %v6063, %v6083
    %v6136 = vmul.f32 %v6132, %v5242
    %v6137 = vmul.f32 %v6133, %v5245
    %v6138 = vmul.f32 %v6134, %v5250
    %v6139 = vmul.f32 %v6135, %v5253
    %v6140 = vadd.f32 %v6128, %v6136
    %v6141 = vadd.f32 %v6129, %v6137
    %v6142 = vadd.f32 %v6130, %v6138
    %v6143 = vadd.f32 %v6131, %v6139
    %v6144 = vmul.f32 %v5123, %v5048
    %v6145 = vmul.f32 %v5127, %v5052
    %v6146 = vmul.f32 %v5133, %v5058
    %v6147 = vmul.f32 %v5137, %v5062
    %v6148 = vrot.slane %v6144, 4
    %v6149 = vadd.f32 %v6144, %v6148
    %v6150 = vrot.slane %v6149, 2
    %v6151 = vadd.f32 %v6149, %v6150
    %v6152 = vrot.slane %v6151, 1
    %v6153 = vadd.f32 %v6151, %v6152
    %v6154 = vrot.slane %v6145, 4
    %v6155 = vadd.f32 %v6145, %v6154
    %v6156 = vrot.slane %v6155, 2
    %v6157 = vadd.f32 %v6155, %v6156
    %v6158 = vrot.slane %v6157, 1
    %v6159 = vadd.f32 %v6157, %v6158
    %v6160 = vrot.slane %v6146, 4
    %v6161 = vadd.f32 %v6146, %v6160
    %v6162 = vrot.slane %v6161, 2
    %v6163 = vadd.f32 %v6161, %v6162
    %v6164 = vrot.slane %v6163, 1
    %v6165 = vadd.f32 %v6163, %v6164
    %v6166 = vrot.slane %v6147, 4
    %v6167 = vadd.f32 %v6147, %v6166
    %v6168 = vrot.slane %v6167, 2
    %v6169 = vadd.f32 %v6167, %v6168
    %v6170 = vrot.slane %v6169, 1
    %v6171 = vadd.f32 %v6169, %v6170
    %v6172 = vmul.f32 %v5123, %v5050
    %v6173 = vmul.f32 %v5127, %v5054
    %v6174 = vmul.f32 %v5133, %v5060
    %v6175 = vmul.f32 %v5137, %v5064
    %v6176 = vrot.slane %v6172, 4
    %v6177 = vadd.f32 %v6172, %v6176
    %v6178 = vrot.slane %v6177, 2
    %v6179 = vadd.f32 %v6177, %v6178
    %v6180 = vrot.slane %v6179, 1
    %v6181 = vadd.f32 %v6179, %v6180
    %v6182 = vrot.slane %v6173, 4
    %v6183 = vadd.f32 %v6173, %v6182
    %v6184 = vrot.slane %v6183, 2
    %v6185 = vadd.f32 %v6183, %v6184
    %v6186 = vrot.slane %v6185, 1
    %v6187 = vadd.f32 %v6185, %v6186
    %v6188 = vrot.slane %v6174, 4
    %v6189 = vadd.f32 %v6174, %v6188
    %v6190 = vrot.slane %v6189, 2
    %v6191 = vadd.f32 %v6189, %v6190
    %v6192 = vrot.slane %v6191, 1
    %v6193 = vadd.f32 %v6191, %v6192
    %v6194 = vrot.slane %v6175, 4
    %v6195 = vadd.f32 %v6175, %v6194
    %v6196 = vrot.slane %v6195, 2
    %v6197 = vadd.f32 %v6195, %v6196
    %v6198 = vrot.slane %v6197, 1
    %v6199 = vadd.f32 %v6197, %v6198
    %v6200 = vmul.f32 %v5123, %v5141
    %v6201 = vmul.f32 %v5127, %v5145
    %v6202 = vmul.f32 %v5133, %v5151
    %v6203 = vmul.f32 %v5137, %v5155
    %v6204 = vrot.slane %v6200, 4
    %v6205 = vadd.f32 %v6200, %v6204
    %v6206 = vrot.slane %v6205, 2
    %v6207 = vadd.f32 %v6205, %v6206
    %v6208 = vrot.slane %v6207, 1
    %v6209 = vadd.f32 %v6207, %v6208
    %v6210 = vrot.slane %v6201, 4
    %v6211 = vadd.f32 %v6201, %v6210
    %v6212 = vrot.slane %v6211, 2
    %v6213 = vadd.f32 %v6211, %v6212
    %v6214 = vrot.slane %v6213, 1
    %v6215 = vadd.f32 %v6213, %v6214
    %v6216 = vrot.slane %v6202, 4
    %v6217 = vadd.f32 %v6202, %v6216
    %v6218 = vrot.slane %v6217, 2
    %v6219 = vadd.f32 %v6217, %v6218
    %v6220 = vrot.slane %v6219, 1
    %v6221 = vadd.f32 %v6219, %v6220
    %v6222 = vrot.slane %v6203, 4
    %v6223 = vadd.f32 %v6203, %v6222
    %v6224 = vrot.slane %v6223, 2
    %v6225 = vadd.f32 %v6223, %v6224
    %v6226 = vrot.slane %v6225, 1
    %v6227 = vadd.f32 %v6225, %v6226
    %v6228 = vmul.f32 %v5123, %v5143
    %v6229 = vmul.f32 %v5127, %v5147
    %v6230 = vmul.f32 %v5133, %v5153
    %v6231 = vmul.f32 %v5137, %v5157
    %v6232 = vrot.slane %v6228, 4
    %v6233 = vadd.f32 %v6228, %v6232
    %v6234 = vrot.slane %v6233, 2
    %v6235 = vadd.f32 %v6233, %v6234
    %v6236 = vrot.slane %v6235, 1
    %v6237 = vadd.f32 %v6235, %v6236
    %v6238 = vrot.slane %v6229, 4
    %v6239 = vadd.f32 %v6229, %v6238
    %v6240 = vrot.slane %v6239, 2
    %v6241 = vadd.f32 %v6239, %v6240
    %v6242 = vrot.slane %v6241, 1
    %v6243 = vadd.f32 %v6241, %v6242
    %v6244 = vrot.slane %v6230, 4
    %v6245 = vadd.f32 %v6230, %v6244
    %v6246 = vrot.slane %v6245, 2
    %v6247 = vadd.f32 %v6245, %v6246
    %v6248 = vrot.slane %v6247, 1
    %v6249 = vadd.f32 %v6247, %v6248
    %v6250 = vrot.slane %v6231, 4
    %v6251 = vadd.f32 %v6231, %v6250
    %v6252 = vrot.slane %v6251, 2
    %v6253 = vadd.f32 %v6251, %v6252
    %v6254 = vrot.slane %v6253, 1
    %v6255 = vadd.f32 %v6253, %v6254
    %v6256 = vmul.f32 %v5123, %v5226
    %v6257 = vmul.f32 %v5127, %v5229
    %v6258 = vmul.f32 %v5133, %v5234
    %v6259 = vmul.f32 %v5137, %v5237
    %v6260 = vrot.slane %v6256, 4
    %v6261 = vadd.f32 %v6256, %v6260
    %v6262 = vrot.slane %v6261, 2
    %v6263 = vadd.f32 %v6261, %v6262
    %v6264 = vrot.slane %v6263, 1
    %v6265 = vadd.f32 %v6263, %v6264
    %v6266 = vrot.slane %v6257, 4
    %v6267 = vadd.f32 %v6257, %v6266
    %v6268 = vrot.slane %v6267, 2
    %v6269 = vadd.f32 %v6267, %v6268
    %v6270 = vrot.slane %v6269, 1
    %v6271 = vadd.f32 %v6269, %v6270
    %v6272 = vrot.slane %v6258, 4
    %v6273 = vadd.f32 %v6258, %v6272
    %v6274 = vrot.slane %v6273, 2
    %v6275 = vadd.f32 %v6273, %v6274
    %v6276 = vrot.slane %v6275, 1
    %v6277 = vadd.f32 %v6275, %v6276
    %v6278 = vrot.slane %v6259, 4
    %v6279 = vadd.f32 %v6259, %v6278
    %v6280 = vrot.slane %v6279, 2
    %v6281 = vadd.f32 %v6279, %v6280
    %v6282 = vrot.slane %v6281, 1
    %v6283 = vadd.f32 %v6281, %v6282
    %v6284 = vmax.f32 %v6153, %v6181
    %v6285 = vmax.f32 %v6159, %v6187
    %v6286 = vmax.f32 %v6165, %v6193
    %v6287 = vmax.f32 %v6171, %v6199
    %v6288 = vmax.f32 %v6284, %v6209
    %v6289 = vmax.f32 %v6285, %v6215
    %v6290 = vmax.f32 %v6286, %v6221
    %v6291 = vmax.f32 %v6287, %v6227
    %v6292 = vmax.f32 %v6288, %v6237
    %v6293 = vmax.f32 %v6289, %v6243
    %v6294 = vmax.f32 %v6290, %v6249
    %v6295 = vmax.f32 %v6291, %v6255
    %v6296 = vmax.f32 %v6292, %v6265
    %v6297 = vmax.f32 %v6293, %v6271
    %v6298 = vmax.f32 %v6294, %v6277
    %v6299 = vmax.f32 %v6295, %v6283
    %v6300 = vsub.f32 %v6153, %v6296
    %v6301 = vsub.f32 %v6159, %v6297
    %v6302 = vsub.f32 %v6165, %v6298
    %v6303 = vsub.f32 %v6171, %v6299
    %v6304 = vmul.f32 %v6300, 1.442695
    %v6305 = vpow.pop %v6304
    %v6306 = vmul.f32 %v6301, 1.442695
    %v6307 = vpow.pop %v6306
    %v6308 = vmul.f32 %v6302, 1.442695
    %v6309 = vpow.pop %v6308
    %v6310 = vmul.f32 %v6303, 1.442695
    %v6311 = vpow.pop %v6310
    %v6312 = vsub.f32 %v6181, %v6296
    %v6313 = vsub.f32 %v6187, %v6297
    %v6314 = vsub.f32 %v6193, %v6298
    %v6315 = vsub.f32 %v6199, %v6299
    %v6316 = vmul.f32 %v6312, 1.442695
    %v6317 = vpow.pop %v6316
    %v6318 = vmul.f32 %v6313, 1.442695
    %v6319 = vpow.pop %v6318
    %v6320 = vmul.f32 %v6314, 1.442695
    %v6321 = vpow.pop %v6320
    %v6322 = vmul.f32 %v6315, 1.442695
    %v6323 = vpow.pop %v6322
    %v6324 = vsub.f32 %v6209, %v6296
    %v6325 = vsub.f32 %v6215, %v6297
    %v6326 = vsub.f32 %v6221, %v6298
    %v6327 = vsub.f32 %v6227, %v6299
    %v6328 = vmul.f32 %v6324, 1.442695
    %v6329 = vpow.pop %v6328
    %v6330 = vmul.f32 %v6325, 1.442695
    %v6331 = vpow.pop %v6330
    %v6332 = vmul.f32 %v6326, 1.442695
    %v6333 = vpow.pop %v6332
    %v6334 = vmul.f32 %v6327, 1.442695
    %v6335 = vpow.pop %v6334
    %v6336 = vsub.f32 %v6237, %v6296
    %v6337 = vsub.f32 %v6243, %v6297
    %v6338 = vsub.f32 %v6249, %v6298
    %v6339 = vsub.f32 %v6255, %v6299
    %v6340 = vmul.f32 %v6336, 1.442695
    %v6341 = vpow.pop %v6340
    %v6342 = vmul.f32 %v6337, 1.442695
    %v6343 = vpow.pop %v6342
    %v6344 = vmul.f32 %v6338, 1.442695
    %v6345 = vpow.pop %v6344
    %v6346 = vmul.f32 %v6339, 1.442695
    %v6347 = vpow.pop %v6346
    %v6348 = vsub.f32 %v6265, %v6296
    %v6349 = vsub.f32 %v6271, %v6297
    %v6350 = vsub.f32 %v6277, %v6298
    %v6351 = vsub.f32 %v6283, %v6299
    %v6352 = vmul.f32 %v6348, 1.442695
    %v6353 = vpow.pop %v6352
    %v6354 = vmul.f32 %v6349, 1.442695
    %v6355 = vpow.pop %v6354
    %v6356 = vmul.f32 %v6350, 1.442695
    %v6357 = vpow.pop %v6356
    %v6358 = vmul.f32 %v6351, 1.442695
    %v6359 = vpow.pop %v6358
    %v6360 = vadd.f32 %v6305, %v6317
    %v6361 = vadd.f32 %v6307, %v6319
    %v6362 = vadd.f32 %v6309, %v6321
    %v6363 = vadd.f32 %v6311, %v6323
    %v6364 = vadd.f32 %v6360, %v6329
    %v6365 = vadd.f32 %v6361, %v6331
    %v6366 = vadd.f32 %v6362, %v6333
    %v6367 = vadd.f32 %v6363, %v6335
    %v6368 = vadd.f32 %v6364, %v6341
    %v6369 = vadd.f32 %v6365, %v6343
    %v6370 = vadd.f32 %v6366, %v6345
    %v6371 = vadd.f32 %v6367, %v6347
    %v6372 = vadd.f32 %v6368, %v6353
    %v6373 = vadd.f32 %v6369, %v6355
    %v6374 = vadd.f32 %v6370, %v6357
    %v6375 = vadd.f32 %v6371, %v6359
    %v6376 = vrcp.pop %v6372
    %v6377 = vrcp.pop %v6373
    %v6378 = vrcp.pop %v6374
    %v6379 = vrcp.pop %v6375
    %v6380 = vmul.f32 %v6305, %v6376
    %v6381 = vmul.f32 %v6307, %v6377
    %v6382 = vmul.f32 %v6309, %v6378
    %v6383 = vmul.f32 %v6311, %v6379
    %v6384 = vmul.f32 %v6380, %v5068
    %v6385 = vmul.f32 %v6381, %v5072
    %v6386 = vmul.f32 %v6382, %v5078
    %v6387 = vmul.f32 %v6383, %v5082
    %v6388 = vadd.f32 %v6384, 0.0
    %v6389 = vadd.f32 %v6385, 0.0
    %v6390 = vadd.f32 %v6386, 0.0
    %v6391 = vadd.f32 %v6387, 0.0
    %v6392 = vmul.f32 %v6317, %v6376
    %v6393 = vmul.f32 %v6319, %v6377
    %v6394 = vmul.f32 %v6321, %v6378
    %v6395 = vmul.f32 %v6323, %v6379
    %v6396 = vmul.f32 %v6392, %v5070
    %v6397 = vmul.f32 %v6393, %v5074
    %v6398 = vmul.f32 %v6394, %v5080
    %v6399 = vmul.f32 %v6395, %v5084
    %v6400 = vadd.f32 %v6388, %v6396
    %v6401 = vadd.f32 %v6389, %v6397
    %v6402 = vadd.f32 %v6390, %v6398
    %v6403 = vadd.f32 %v6391, %v6399
    %v6404 = vmul.f32 %v6329, %v6376
    %v6405 = vmul.f32 %v6331, %v6377
    %v6406 = vmul.f32 %v6333, %v6378
    %v6407 = vmul.f32 %v6335, %v6379
    %v6408 = vmul.f32 %v6404, %v5161
    %v6409 = vmul.f32 %v6405, %v5165
    %v6410 = vmul.f32 %v6406, %v5171
    %v6411 = vmul.f32 %v6407, %v5175
    %v6412 = vadd.f32 %v6400, %v6408
    %v6413 = vadd.f32 %v6401, %v6409
    %v6414 = vadd.f32 %v6402, %v6410
    %v6415 = vadd.f32 %v6403, %v6411
    %v6416 = vmul.f32 %v6341, %v6376
    %v6417 = vmul.f32 %v6343, %v6377
    %v6418 = vmul.f32 %v6345, %v6378
    %v6419 = vmul.f32 %v6347, %v6379
    %v6420 = vmul.f32 %v6416, %v5163
    %v6421 = vmul.f32 %v6417, %v5167
    %v6422 = vmul.f32 %v6418, %v5173
    %v6423 = vmul.f32 %v6419, %v5177
    %v6424 = vadd.f32 %v6412, %v6420
    %v6425 = vadd.f32 %v6413, %v6421
    %v6426 = vadd.f32 %v6414, %v6422
    %v6427 = vadd.f32 %v6415, %v6423
    %v6428 = vmul.f32 %v6353, %v6376
    %v6429 = vmul.f32 %v6355, %v6377
    %v6430 = vmul.f32 %v6357, %v6378
    %v6431 = vmul.f32 %v6359, %v6379
    %v6432 = vmul.f32 %v6428, %v5242
    %v6433 = vmul.f32 %v6429, %v5245
    %v6434 = vmul.f32 %v6430, %v5250
    %v6435 = vmul.f32 %v6431, %v5253
    %v6436 = vadd.f32 %v6424, %v6432
    %v6437 = vadd.f32 %v6425, %v6433
    %v6438 = vadd.f32 %v6426, %v6434
    %v6439 = vadd.f32 %v6427, %v6435
    %s6440 = scalar_lea.vmem %s5, 16
    %v6441 = vld [vmem:[%s6440] sm:$0xf]
    %v6442 = vld [vmem:[%s6440 + $0x4] sm:$0xf]
    %v6443 = vld [vmem:[%s6440 + $0x8] sm:$0xf]
    %v6444 = vld [vmem:[%s6440 + $0xc] sm:$0xf]
    %v6445 = vpack.c.bf16 %v5549, %v5548
    %v6446 = vpack.c.bf16 %v5845, %v5844
    %v6447 = vpack.c.bf16 %v6141, %v6140
    %v6448 = vpack.c.bf16 %v6437, %v6436
    %v6449 = vpack.c.bf16 %v5551, %v5550
    %v6450 = vpack.c.bf16 %v5847, %v5846
    %v6451 = vpack.c.bf16 %v6143, %v6142
    %v6452 = vpack.c.bf16 %v6439, %v6438
    %6454 = vset.pattern.permute.xlu0 0
    %6455 = vperm.xlu0 %6454, %v4822
    %v6456 = vpop.permute.xlu0 %6455
    %6459 = vset.pattern.permute.xlu0 0
    %6460 = vperm.xlu0 %6459, %v4823
    %v6461 = vpop.permute.xlu0 %6460
    %6464 = vset.pattern.permute.xlu0 0
    %6465 = vperm.xlu0 %6464, %v4824
    %v6466 = vpop.permute.xlu0 %6465
    %6469 = vset.pattern.permute.xlu0 0
    %6470 = vperm.xlu0 %6469, %v4825
    %v6471 = vpop.permute.xlu0 %6470
    %v6477 = vunpack.c.l.b16 %v6441
    %v6478 = vunpack.c.l.b16 %v6442
    %v6479 = vunpack.c.l.b16 %v6443
    %v6480 = vunpack.c.l.b16 %v6444
    %v6481 = vpack.c.b16 %v6478, %v6477
    %v6482 = vpack.c.b16 %v6480, %v6479
    %v6484 = vsel %vm384, %v6481, 0
    %v6487 = vsel %vm384, %v6482, 0
    %6489 = vmatprep.subr.bf16.mxu0 %v6446
    %6490 = vmatpush1.bf16.msra.mxu0 %v6445
    %6491 = vmatprep.subr.bf16.mxu0 %v6450
    %6492 = vmatpush1.bf16.msra.mxu0 %v6449
    %6493 = vmatprep.subr.bf16.mxu0 0
    %6494 = vmatpush1.bf16.msra.mxu0 0
    %6495 = vmatprep.subr.bf16.mxu0 0
    %6496 = vmatpush1.bf16.msra.mxu0 0
    %6497 = vmatprep.subr.bf16.mxu0 0
    %6498 = vmatpush1.bf16.msra.mxu0 0
    %6499 = vmatprep.subr.bf16.mxu0 0
    %6500 = vmatpush1.bf16.msra.mxu0 0
    %6501 = vmatprep.subr.bf16.mxu0 0
    %6502 = vmatpush1.bf16.msra.mxu0 0
    %6503 = vmatprep.subr.bf16.mxu0 0
    %6504 = vmatpush1.bf16.msra.mxu0 0
    %6505 = vmatprep.subr.bf16.mxu0 0
    %6506 = vmatpush1.bf16.msra.mxu0 0
    %6507 = vmatprep.subr.bf16.mxu0 0
    %6508 = vmatpush1.bf16.msra.mxu0 0
    %6509 = vmatprep.subr.bf16.mxu0 0
    %6510 = vmatpush1.bf16.msra.mxu0 0
    %6511 = vmatprep.subr.bf16.mxu0 0
    %6512 = vmatpush1.bf16.msra.mxu0 0
    %6513 = vmatprep.subr.bf16.mxu0 0
    %6514 = vmatpush1.bf16.msra.mxu0 0
    %6515 = vmatprep.subr.bf16.mxu0 0
    %6516 = vmatpush1.bf16.msra.mxu0 0
    %6517 = vmatprep.subr.bf16.mxu0 0
    %6518 = vmatpush1.bf16.msra.mxu0 0
    %6519 = vmatprep.subr.bf16.mxu0 0
    %6520 = vmatpush1.bf16.msra.mxu0 0
    %6521 = vmatprep.mubr.bf16.mxu0 0
    %6522 = vmatmul.mubr.bf16.gmra.mrb[0].mxu0 %v6484
    %v6523 = vpop.f32.mrb[0].mxu0
    %v6524 = vadd.f32 %v6456, %v6523
    %v6525 = vpop.f32.mrb[0].mxu0
    %v6526 = vadd.f32 %v6456, %v6525
    %v6527 = vpop.f32.mrb[0].mxu0
    %v6528 = vadd.f32 %v6461, %v6527
    %v6529 = vpop.f32.mrb[0].mxu0
    %v6530 = vadd.f32 %v6461, %v6529
    %6531 = vmatprep.mubr.bf16.mxu0 0
    %6532 = vmatmul.mubr.bf16.gmra.mrb[0].mxu0 %v6487
    %v6533 = vpop.f32.mrb[0].mxu0
    %v6534 = vadd.f32 %v6466, %v6533
    %v6535 = vpop.f32.mrb[0].mxu0
    %v6536 = vadd.f32 %v6466, %v6535
    %v6537 = vpop.f32.mrb[0].mxu0
    %v6538 = vadd.f32 %v6471, %v6537
    %v6539 = vpop.f32.mrb[0].mxu0
    %v6540 = vadd.f32 %v6471, %v6539
    %6541 = vdwg.mxu0
    %6542 = vmatprep.subr.bf16.mxu0 %v6448
    %6543 = vmatpush1.bf16.msra.mxu0 %v6447
    %6544 = vmatprep.subr.bf16.mxu0 %v6452
    %6545 = vmatpush1.bf16.msra.mxu0 %v6451
    %6546 = vmatprep.subr.bf16.mxu0 0
    %6547 = vmatpush1.bf16.msra.mxu0 0
    %6548 = vmatprep.subr.bf16.mxu0 0
    %6549 = vmatpush1.bf16.msra.mxu0 0
    %6550 = vmatprep.subr.bf16.mxu0 0
    %6551 = vmatpush1.bf16.msra.mxu0 0
    %6552 = vmatprep.subr.bf16.mxu0 0
    %6553 = vmatpush1.bf16.msra.mxu0 0
    %6554 = vmatprep.subr.bf16.mxu0 0
    %6555 = vmatpush1.bf16.msra.mxu0 0
    %6556 = vmatprep.subr.bf16.mxu0 0
    %6557 = vmatpush1.bf16.msra.mxu0 0
    %6558 = vmatprep.subr.bf16.mxu0 0
    %6559 = vmatpush1.bf16.msra.mxu0 0
    %6560 = vmatprep.subr.bf16.mxu0 0
    %6561 = vmatpush1.bf16.msra.mxu0 0
    %6562 = vmatprep.subr.bf16.mxu0 0
    %6563 = vmatpush1.bf16.msra.mxu0 0
    %6564 = vmatprep.subr.bf16.mxu0 0
    %6565 = vmatpush1.bf16.msra.mxu0 0
    %6566 = vmatprep.subr.bf16.mxu0 0
    %6567 = vmatpush1.bf16.msra.mxu0 0
    %6568 = vmatprep.subr.bf16.mxu0 0
    %6569 = vmatpush1.bf16.msra.mxu0 0
    %6570 = vmatprep.subr.bf16.mxu0 0
    %6571 = vmatpush1.bf16.msra.mxu0 0
    %6572 = vmatprep.subr.bf16.mxu0 0
    %6573 = vmatpush1.bf16.msra.mxu0 0
    %6574 = vmatprep.mubr.bf16.mxu0 0
    %6575 = vmatmul.mubr.bf16.gmra.mrb[0].mxu0 %v6484
    %v6576 = vpop.f32.mrb[0].mxu0
    %v6577 = vadd.f32 %v6456, %v6576
    %v6578 = vpop.f32.mrb[0].mxu0
    %v6579 = vadd.f32 %v6456, %v6578
    %v6580 = vpop.f32.mrb[0].mxu0
    %v6581 = vadd.f32 %v6461, %v6580
    %v6582 = vpop.f32.mrb[0].mxu0
    %v6583 = vadd.f32 %v6461, %v6582
    %6584 = vmatprep.mubr.bf16.mxu0 0
    %6585 = vmatmul.mubr.bf16.gmra.mrb[0].mxu0 %v6487
    %v6586 = vpop.f32.mrb[0].mxu0
    %v6587 = vadd.f32 %v6466, %v6586
    %v6588 = vpop.f32.mrb[0].mxu0
    %v6589 = vadd.f32 %v6466, %v6588
    %v6590 = vpop.f32.mrb[0].mxu0
    %v6591 = vadd.f32 %v6471, %v6590
    %v6592 = vpop.f32.mrb[0].mxu0
    %v6593 = vadd.f32 %v6471, %v6592
    %6594 = vdwg.mxu0
    %v6595 = vadd.f32 %v4789, %v6524
    %v6596 = vadd.f32 %v4790, %v6526
    %v6597 = vadd.f32 %v4791, %v6577
    %v6598 = vadd.f32 %v4792, %v6579
    %v6599 = vadd.f32 %v4794, %v6528
    %v6600 = vadd.f32 %v4795, %v6530
    %v6601 = vadd.f32 %v4796, %v6581
    %v6602 = vadd.f32 %v4797, %v6583
    %v6603 = vadd.f32 %v4799, %v6534
    %v6604 = vadd.f32 %v4800, %v6536
    %v6605 = vadd.f32 %v4801, %v6587
    %v6606 = vadd.f32 %v4802, %v6589
    %v6607 = vadd.f32 %v4804, %v6538
    %v6608 = vadd.f32 %v4805, %v6540
    %v6609 = vadd.f32 %v4806, %v6591
    %v6610 = vadd.f32 %v4807, %v6593
    %v6611 = vadd.f32 %v6595, %v6599
    %v6612 = vadd.f32 %v6611, %v6603
    %v6613 = vadd.f32 %v6612, %v6607
    %v6614 = vrot.slane %v6613, 4
    %v6615 = vadd.f32 %v6613, %v6614
    %v6616 = vrot.slane %v6615, 2
    %v6617 = vadd.f32 %v6615, %v6616
    %v6618 = vrot.slane %v6617, 1
    %v6619 = vadd.f32 %v6617, %v6618
    %v6620 = vadd.f32 %v6596, %v6600
    %v6621 = vadd.f32 %v6620, %v6604
    %v6622 = vadd.f32 %v6621, %v6608
    %v6623 = vrot.slane %v6622, 4
    %v6624 = vadd.f32 %v6622, %v6623
    %v6625 = vrot.slane %v6624, 2
    %v6626 = vadd.f32 %v6624, %v6625
    %v6627 = vrot.slane %v6626, 1
    %v6628 = vadd.f32 %v6626, %v6627
    %v6629 = vadd.f32 %v6597, %v6601
    %v6630 = vadd.f32 %v6629, %v6605
    %v6631 = vadd.f32 %v6630, %v6609
    %v6632 = vrot.slane %v6631, 4
    %v6633 = vadd.f32 %v6631, %v6632
    %v6634 = vrot.slane %v6633, 2
    %v6635 = vadd.f32 %v6633, %v6634
    %v6636 = vrot.slane %v6635, 1
    %v6637 = vadd.f32 %v6635, %v6636
    %v6638 = vadd.f32 %v6598, %v6602
    %v6639 = vadd.f32 %v6638, %v6606
    %v6640 = vadd.f32 %v6639, %v6610
    %v6641 = vrot.slane %v6640, 4
    %v6642 = vadd.f32 %v6640, %v6641
    %v6643 = vrot.slane %v6642, 2
    %v6644 = vadd.f32 %v6642, %v6643
    %v6645 = vrot.slane %v6644, 1
    %v6646 = vadd.f32 %v6644, %v6645
    %v6647 = vmul.f32 %v6619, %v2889
    %v6648 = vmul.f32 %v6628, %v2889
    %v6649 = vmul.f32 %v6637, %v2889
    %v6650 = vmul.f32 %v6646, %v2889
    %v6651 = vsub.f32 %v6595, %v6647
    %v6652 = vsub.f32 %v6596, %v6648
    %v6653 = vsub.f32 %v6597, %v6649
    %v6654 = vsub.f32 %v6598, %v6650
    %v6655 = vsub.f32 %v6599, %v6647
    %v6656 = vsub.f32 %v6600, %v6648
    %v6657 = vsub.f32 %v6601, %v6649
    %v6658 = vsub.f32 %v6602, %v6650
    %v6659 = vsub.f32 %v6603, %v6647
    %v6660 = vsub.f32 %v6604, %v6648
    %v6661 = vsub.f32 %v6605, %v6649
    %v6662 = vsub.f32 %v6606, %v6650
    %v6663 = vsub.f32 %v6607, %v6647
    %v6664 = vsub.f32 %v6608, %v6648
    %v6665 = vsub.f32 %v6609, %v6649
    %v6666 = vsub.f32 %v6610, %v6650
    %v6667 = vmul.f32 %v6651, %v6651
    %v6668 = vmul.f32 %v6652, %v6652
    %v6669 = vmul.f32 %v6653, %v6653
    %v6670 = vmul.f32 %v6654, %v6654
    %v6671 = vmul.f32 %v6655, %v6655
    %v6672 = vmul.f32 %v6656, %v6656
    %v6673 = vmul.f32 %v6657, %v6657
    %v6674 = vmul.f32 %v6658, %v6658
    %v6675 = vmul.f32 %v6659, %v6659
    %v6676 = vmul.f32 %v6660, %v6660
    %v6677 = vmul.f32 %v6661, %v6661
    %v6678 = vmul.f32 %v6662, %v6662
    %v6679 = vmul.f32 %v6663, %v6663
    %v6680 = vmul.f32 %v6664, %v6664
    %v6681 = vmul.f32 %v6665, %v6665
    %v6682 = vmul.f32 %v6666, %v6666
    %v6683 = vadd.f32 %v6667, %v6671
    %v6684 = vadd.f32 %v6683, %v6675
    %v6685 = vadd.f32 %v6684, %v6679
    %v6686 = vrot.slane %v6685, 4
    %v6687 = vadd.f32 %v6685, %v6686
    %v6688 = vrot.slane %v6687, 2
    %v6689 = vadd.f32 %v6687, %v6688
    %v6690 = vrot.slane %v6689, 1
    %v6691 = vadd.f32 %v6689, %v6690
    %v6692 = vadd.f32 %v6668, %v6672
    %v6693 = vadd.f32 %v6692, %v6676
    %v6694 = vadd.f32 %v6693, %v6680
    %v6695 = vrot.slane %v6694, 4
    %v6696 = vadd.f32 %v6694, %v6695
    %v6697 = vrot.slane %v6696, 2
    %v6698 = vadd.f32 %v6696, %v6697
    %v6699 = vrot.slane %v6698, 1
    %v6700 = vadd.f32 %v6698, %v6699
    %v6701 = vadd.f32 %v6669, %v6673
    %v6702 = vadd.f32 %v6701, %v6677
    %v6703 = vadd.f32 %v6702, %v6681
    %v6704 = vrot.slane %v6703, 4
    %v6705 = vadd.f32 %v6703, %v6704
    %v6706 = vrot.slane %v6705, 2
    %v6707 = vadd.f32 %v6705, %v6706
    %v6708 = vrot.slane %v6707, 1
    %v6709 = vadd.f32 %v6707, %v6708
    %v6710 = vadd.f32 %v6670, %v6674
    %v6711 = vadd.f32 %v6710, %v6678
    %v6712 = vadd.f32 %v6711, %v6682
    %v6713 = vrot.slane %v6712, 4
    %v6714 = vadd.f32 %v6712, %v6713
    %v6715 = vrot.slane %v6714, 2
    %v6716 = vadd.f32 %v6714, %v6715
    %v6717 = vrot.slane %v6716, 1
    %v6718 = vadd.f32 %v6716, %v6717
    %v6719 = vmul.f32 %v6691, %v2889
    %v6720 = vmul.f32 %v6700, %v2889
    %v6721 = vmul.f32 %v6709, %v2889
    %v6722 = vmul.f32 %v6718, %v2889
    %v6723 = vadd.f32 %v6719, 1e-05
    %v6724 = vadd.f32 %v6720, 1e-05
    %v6725 = vadd.f32 %v6721, 1e-05
    %v6726 = vadd.f32 %v6722, 1e-05
    %v6727 = vrsqrt.pop %v6723
    %v6728 = vrsqrt.pop %v6724
    %v6729 = vrsqrt.pop %v6725
    %v6730 = vrsqrt.pop %v6726
    %v6731 = vmul.f32 %v6651, %v6727
    %v6732 = vmul.f32 %v6652, %v6728
    %v6733 = vmul.f32 %v6653, %v6729
    %v6734 = vmul.f32 %v6654, %v6730
    %v6735 = vmul.f32 %v6655, %v6727
    %v6736 = vmul.f32 %v6656, %v6728
    %v6737 = vmul.f32 %v6657, %v6729
    %v6738 = vmul.f32 %v6658, %v6730
    %v6739 = vmul.f32 %v6659, %v6727
    %v6740 = vmul.f32 %v6660, %v6728
    %v6741 = vmul.f32 %v6661, %v6729
    %v6742 = vmul.f32 %v6662, %v6730
    %v6743 = vmul.f32 %v6663, %v6727
    %v6744 = vmul.f32 %v6664, %v6728
    %v6745 = vmul.f32 %v6665, %v6729
    %v6746 = vmul.f32 %v6666, %v6730
    %6748 = vset.pattern.permute.xlu0 0
    %6749 = vperm.xlu0 %6748, %v4846
    %v6750 = vpop.permute.xlu0 %6749
    %6753 = vset.pattern.permute.xlu0 0
    %6754 = vperm.xlu0 %6753, %v4847
    %v6755 = vpop.permute.xlu0 %6754
    %6758 = vset.pattern.permute.xlu0 0
    %6759 = vperm.xlu0 %6758, %v4848
    %v6760 = vpop.permute.xlu0 %6759
    %6763 = vset.pattern.permute.xlu0 0
    %6764 = vperm.xlu0 %6763, %v4849
    %v6765 = vpop.permute.xlu0 %6764
    %v6767 = vmul.f32 %v6731, %v6750
    %v6768 = vmul.f32 %v6732, %v6750
    %v6769 = vmul.f32 %v6733, %v6750
    %v6770 = vmul.f32 %v6734, %v6750
    %v6771 = vmul.f32 %v6735, %v6755
    %v6772 = vmul.f32 %v6736, %v6755
    %v6773 = vmul.f32 %v6737, %v6755
    %v6774 = vmul.f32 %v6738, %v6755
    %v6775 = vmul.f32 %v6739, %v6760
    %v6776 = vmul.f32 %v6740, %v6760
    %v6777 = vmul.f32 %v6741, %v6760
    %v6778 = vmul.f32 %v6742, %v6760
    %v6779 = vmul.f32 %v6743, %v6765
    %v6780 = vmul.f32 %v6744, %v6765
    %v6781 = vmul.f32 %v6745, %v6765
    %v6782 = vmul.f32 %v6746, %v6765
    %6784 = vset.pattern.permute.xlu0 0
    %6785 = vperm.xlu0 %6784, %v4850
    %v6786 = vpop.permute.xlu0 %6785
    %6789 = vset.pattern.permute.xlu0 0
    %6790 = vperm.xlu0 %6789, %v4851
    %v6791 = vpop.permute.xlu0 %6790
    %6794 = vset.pattern.permute.xlu0 0
    %6795 = vperm.xlu0 %6794, %v4852
    %v6796 = vpop.permute.xlu0 %6795
    %6799 = vset.pattern.permute.xlu0 0
    %6800 = vperm.xlu0 %6799, %v4853
    %v6801 = vpop.permute.xlu0 %6800
    %v6803 = vadd.f32 %v6767, %v6786
    %v6804 = vadd.f32 %v6768, %v6786
    %v6805 = vadd.f32 %v6769, %v6786
    %v6806 = vadd.f32 %v6770, %v6786
    %v6807 = vadd.f32 %v6771, %v6791
    %v6808 = vadd.f32 %v6772, %v6791
    %v6809 = vadd.f32 %v6773, %v6791
    %v6810 = vadd.f32 %v6774, %v6791
    %v6811 = vadd.f32 %v6775, %v6796
    %v6812 = vadd.f32 %v6776, %v6796
    %v6813 = vadd.f32 %v6777, %v6796
    %v6814 = vadd.f32 %v6778, %v6796
    %v6815 = vadd.f32 %v6779, %v6801
    %v6816 = vadd.f32 %v6780, %v6801
    %v6817 = vadd.f32 %v6781, %v6801
    %v6818 = vadd.f32 %v6782, %v6801
    %s6819 = scalar_lea.vmem %s6, 64
    %v6820 = vld [vmem:[%s6819] sm:$0xf]
    %v6821 = vld [vmem:[%s6819 + $0x4] sm:$0xf]
    %v6822 = vld [vmem:[%s6819 + $0x8] sm:$0xf]
    %v6823 = vld [vmem:[%s6819 + $0xc] sm:$0xf]
    %v6824 = vld [vmem:[%s6819 + $0x10] sm:$0xf]
    %v6825 = vld [vmem:[%s6819 + $0x14] sm:$0xf]
    %v6826 = vld [vmem:[%s6819 + $0x18] sm:$0xf]
    %v6827 = vld [vmem:[%s6819 + $0x1c] sm:$0xf]
    %v6828 = vld [vmem:[%s6819 + $0x20] sm:$0xf]
    %v6829 = vld [vmem:[%s6819 + $0x24] sm:$0xf]
    %v6830 = vld [vmem:[%s6819 + $0x28] sm:$0xf]
    %v6831 = vld [vmem:[%s6819 + $0x2c] sm:$0xf]
    %v6832 = vld [vmem:[%s6819 + $0x30] sm:$0xf]
    %v6833 = vld [vmem:[%s6819 + $0x34] sm:$0xf]
    %v6834 = vld [vmem:[%s6819 + $0x38] sm:$0xf]
    %v6835 = vld [vmem:[%s6819 + $0x3c] sm:$0xf]
    %v6836 = vpack.c.bf16 %v6807, %v6803
    %v6837 = vpack.c.bf16 %v6808, %v6804
    %v6838 = vpack.c.bf16 %v6809, %v6805
    %v6839 = vpack.c.bf16 %v6810, %v6806
    %v6840 = vpack.c.bf16 %v6815, %v6811
    %v6841 = vpack.c.bf16 %v6816, %v6812
    %v6842 = vpack.c.bf16 %v6817, %v6813
    %v6843 = vpack.c.bf16 %v6818, %v6814
    %6845 = vset.pattern.permute.xlu0 0
    %6846 = vperm.xlu0 %6845, %v4826
    %v6847 = vpop.permute.xlu0 %6846
    %6850 = vset.pattern.permute.xlu0 0
    %6851 = vperm.xlu0 %6850, %v4827
    %v6852 = vpop.permute.xlu0 %6851
    %6855 = vset.pattern.permute.xlu0 0
    %6856 = vperm.xlu0 %6855, %v4828
    %v6857 = vpop.permute.xlu0 %6856
    %6860 = vset.pattern.permute.xlu0 0
    %6861 = vperm.xlu0 %6860, %v4829
    %v6862 = vpop.permute.xlu0 %6861
    %6865 = vset.pattern.permute.xlu0 0
    %6866 = vperm.xlu0 %6865, %v4830
    %v6867 = vpop.permute.xlu0 %6866
    %6870 = vset.pattern.permute.xlu0 0
    %6871 = vperm.xlu0 %6870, %v4831
    %v6872 = vpop.permute.xlu0 %6871
    %6875 = vset.pattern.permute.xlu0 0
    %6876 = vperm.xlu0 %6875, %v4832
    %v6877 = vpop.permute.xlu0 %6876
    %6880 = vset.pattern.permute.xlu0 0
    %6881 = vperm.xlu0 %6880, %v4833
    %v6882 = vpop.permute.xlu0 %6881
    %6885 = vset.pattern.permute.xlu0 0
    %6886 = vperm.xlu0 %6885, %v4834
    %v6887 = vpop.permute.xlu0 %6886
    %6890 = vset.pattern.permute.xlu0 0
    %6891 = vperm.xlu0 %6890, %v4835
    %v6892 = vpop.permute.xlu0 %6891
    %6895 = vset.pattern.permute.xlu0 0
    %6896 = vperm.xlu0 %6895, %v4836
    %v6897 = vpop.permute.xlu0 %6896
    %6900 = vset.pattern.permute.xlu0 0
    %6901 = vperm.xlu0 %6900, %v4837
    %v6902 = vpop.permute.xlu0 %6901
    %6905 = vset.pattern.permute.xlu0 0
    %6906 = vperm.xlu0 %6905, %v4838
    %v6907 = vpop.permute.xlu0 %6906
    %6910 = vset.pattern.permute.xlu0 0
    %6911 = vperm.xlu0 %6910, %v4839
    %v6912 = vpop.permute.xlu0 %6911
    %6915 = vset.pattern.permute.xlu0 0
    %6916 = vperm.xlu0 %6915, %v4840
    %v6917 = vpop.permute.xlu0 %6916
    %6920 = vset.pattern.permute.xlu0 0
    %6921 = vperm.xlu0 %6920, %v4841
    %v6922 = vpop.permute.xlu0 %6921
    %v6940 = vunpack.c.l.b16 %v6820
    %v6941 = vunpack.c.l.b16 %v6821
    %v6942 = vunpack.c.l.b16 %v6822
    %v6943 = vunpack.c.l.b16 %v6823
    %v6944 = vunpack.c.l.b16 %v6824
    %v6945 = vunpack.c.l.b16 %v6825
    %v6946 = vunpack.c.l.b16 %v6826
    %v6947 = vunpack.c.l.b16 %v6827
    %v6948 = vunpack.c.l.b16 %v6828
    %v6949 = vunpack.c.l.b16 %v6829
    %v6950 = vunpack.c.l.b16 %v6830
    %v6951 = vunpack.c.l.b16 %v6831
    %v6952 = vunpack.c.l.b16 %v6832
    %v6953 = vunpack.c.l.b16 %v6833
    %v6954 = vunpack.c.l.b16 %v6834
    %v6955 = vunpack.c.l.b16 %v6835
    %v6956 = vpack.c.b16 %v6941, %v6940
    %v6957 = vpack.c.b16 %v6943, %v6942
    %v6958 = vpack.c.b16 %v6945, %v6944
    %v6959 = vpack.c.b16 %v6947, %v6946
    %v6960 = vpack.c.b16 %v6949, %v6948
    %v6961 = vpack.c.b16 %v6951, %v6950
    %v6962 = vpack.c.b16 %v6953, %v6952
    %v6963 = vpack.c.b16 %v6955, %v6954
    %v6965 = vsel %vm384, %v6956, 0
    %v6968 = vsel %vm384, %v6957, 0
    %v6971 = vsel %vm384, %v6958, 0
    %v6974 = vsel %vm384, %v6959, 0
    %v6977 = vsel %vm384, %v6960, 0
    %v6980 = vsel %vm384, %v6961, 0
    %v6983 = vsel %vm384, %v6962, 0
    %v6986 = vsel %vm384, %v6963, 0
    %6988 = vmatprep.subr.bf16.mxu0 %v6837
    %6989 = vmatpush1.bf16.msra.mxu0 %v6836
    %6990 = vmatprep.subr.bf16.mxu0 %v6841
    %6991 = vmatpush1.bf16.msra.mxu0 %v6840
    %6992 = vmatprep.subr.bf16.mxu0 0
    %6993 = vmatpush1.bf16.msra.mxu0 0
    %6994 = vmatprep.subr.bf16.mxu0 0
    %6995 = vmatpush1.bf16.msra.mxu0 0
    %6996 = vmatprep.subr.bf16.mxu0 0
    %6997 = vmatpush1.bf16.msra.mxu0 0
    %6998 = vmatprep.subr.bf16.mxu0 0
    %6999 = vmatpush1.bf16.msra.mxu0 0
    %7000 = vmatprep.subr.bf16.mxu0 0
    %7001 = vmatpush1.bf16.msra.mxu0 0
    %7002 = vmatprep.subr.bf16.mxu0 0
    %7003 = vmatpush1.bf16.msra.mxu0 0
    %7004 = vmatprep.subr.bf16.mxu0 0
    %7005 = vmatpush1.bf16.msra.mxu0 0
    %7006 = vmatprep.subr.bf16.mxu0 0
    %7007 = vmatpush1.bf16.msra.mxu0 0
    %7008 = vmatprep.subr.bf16.mxu0 0
    %7009 = vmatpush1.bf16.msra.mxu0 0
    %7010 = vmatprep.subr.bf16.mxu0 0
    %7011 = vmatpush1.bf16.msra.mxu0 0
    %7012 = vmatprep.subr.bf16.mxu0 0
    %7013 = vmatpush1.bf16.msra.mxu0 0
    %7014 = vmatprep.subr.bf16.mxu0 0
    %7015 = vmatpush1.bf16.msra.mxu0 0
    %7016 = vmatprep.subr.bf16.mxu0 0
    %7017 = vmatpush1.bf16.msra.mxu0 0
    %7018 = vmatprep.subr.bf16.mxu0 0
    %7019 = vmatpush1.bf16.msra.mxu0 0
    %7020 = vmatprep.mubr.bf16.mxu0 0
    %7021 = vmatmul.mubr.bf16.gmra.mrb[0].mxu0 %v6965
    %v7022 = vpop.f32.mrb[0].mxu0
    %v7023 = vadd.f32 %v6847, %v7022
    %v7024 = vpop.f32.mrb[0].mxu0
    %v7025 = vadd.f32 %v6847, %v7024
    %v7026 = vpop.f32.mrb[0].mxu0
    %v7027 = vadd.f32 %v6852, %v7026
    %v7028 = vpop.f32.mrb[0].mxu0
    %v7029 = vadd.f32 %v6852, %v7028
    %7030 = vmatprep.mubr.bf16.mxu0 0
    %7031 = vmatmul.mubr.bf16.gmra.mrb[0].mxu0 %v6968
    %v7032 = vpop.f32.mrb[0].mxu0
    %v7033 = vadd.f32 %v6857, %v7032
    %v7034 = vpop.f32.mrb[0].mxu0
    %v7035 = vadd.f32 %v6857, %v7034
    %v7036 = vpop.f32.mrb[0].mxu0
    %v7037 = vadd.f32 %v6862, %v7036
    %v7038 = vpop.f32.mrb[0].mxu0
    %v7039 = vadd.f32 %v6862, %v7038
    %7040 = vmatprep.mubr.bf16.mxu0 0
    %7041 = vmatmul.mubr.bf16.gmra.mrb[0].mxu0 %v6971
    %v7042 = vpop.f32.mrb[0].mxu0
    %v7043 = vadd.f32 %v6867, %v7042
    %v7044 = vpop.f32.mrb[0].mxu0
    %v7045 = vadd.f32 %v6867, %v7044
    %v7046 = vpop.f32.mrb[0].mxu0
    %v7047 = vadd.f32 %v6872, %v7046
    %v7048 = vpop.f32.mrb[0].mxu0
    %v7049 = vadd.f32 %v6872, %v7048
    %7050 = vmatprep.mubr.bf16.mxu0 0
    %7051 = vmatmul.mubr.bf16.gmra.mrb[0].mxu0 %v6974
    %v7052 = vpop.f32.mrb[0].mxu0
    %v7053 = vadd.f32 %v6877, %v7052
    %v7054 = vpop.f32.mrb[0].mxu0
    %v7055 = vadd.f32 %v6877, %v7054
    %v7056 = vpop.f32.mrb[0].mxu0
    %v7057 = vadd.f32 %v6882, %v7056
    %v7058 = vpop.f32.mrb[0].mxu0
    %v7059 = vadd.f32 %v6882, %v7058
    %7060 = vmatprep.mubr.bf16.mxu0 0
    %7061 = vmatmul.mubr.bf16.gmra.mrb[0].mxu0 %v6977
    %v7062 = vpop.f32.mrb[0].mxu0
    %v7063 = vadd.f32 %v6887, %v7062
    %v7064 = vpop.f32.mrb[0].mxu0
    %v7065 = vadd.f32 %v6887, %v7064
    %v7066 = vpop.f32.mrb[0].mxu0
    %v7067 = vadd.f32 %v6892, %v7066
    %v7068 = vpop.f32.mrb[0].mxu0
    %v7069 = vadd.f32 %v6892, %v7068
    %7070 = vmatprep.mubr.bf16.mxu0 0
    %7071 = vmatmul.mubr.bf16.gmra.mrb[0].mxu0 %v6980
    %v7072 = vpop.f32.mrb[0].mxu0
    %v7073 = vadd.f32 %v6897, %v7072
    %v7074 = vpop.f32.mrb[0].mxu0
    %v7075 = vadd.f32 %v6897, %v7074
    %v7076 = vpop.f32.mrb[0].mxu0
    %v7077 = vadd.f32 %v6902, %v7076
    %v7078 = vpop.f32.mrb[0].mxu0
    %v7079 = vadd.f32 %v6902, %v7078
    %7080 = vmatprep.mubr.bf16.mxu0 0
    %7081 = vmatmul.mubr.bf16.gmra.mrb[0].mxu0 %v6983
    %v7082 = vpop.f32.mrb[0].mxu0
    %v7083 = vadd.f32 %v6907, %v7082
    %v7084 = vpop.f32.mrb[0].mxu0
    %v7085 = vadd.f32 %v6907, %v7084
    %v7086 = vpop.f32.mrb[0].mxu0
    %v7087 = vadd.f32 %v6912, %v7086
    %v7088 = vpop.f32.mrb[0].mxu0
    %v7089 = vadd.f32 %v6912, %v7088
    %7090 = vmatprep.mubr.bf16.mxu0 0
    %7091 = vmatmul.mubr.bf16.gmra.mrb[0].mxu0 %v6986
    %v7092 = vpop.f32.mrb[0].mxu0
    %v7093 = vadd.f32 %v6917, %v7092
    %v7094 = vpop.f32.mrb[0].mxu0
    %v7095 = vadd.f32 %v6917, %v7094
    %v7096 = vpop.f32.mrb[0].mxu0
    %v7097 = vadd.f32 %v6922, %v7096
    %v7098 = vpop.f32.mrb[0].mxu0
    %v7099 = vadd.f32 %v6922, %v7098
    %7100 = vdwg.mxu0
    %7101 = vmatprep.subr.bf16.mxu0 %v6839
    %7102 = vmatpush1.bf16.msra.mxu0 %v6838
    %7103 = vmatprep.subr.bf16.mxu0 %v6843
    %7104 = vmatpush1.bf16.msra.mxu0 %v6842
    %7105 = vmatprep.subr.bf16.mxu0 0
    %7106 = vmatpush1.bf16.msra.mxu0 0
    %7107 = vmatprep.subr.bf16.mxu0 0
    %7108 = vmatpush1.bf16.msra.mxu0 0
    %7109 = vmatprep.subr.bf16.mxu0 0
    %7110 = vmatpush1.bf16.msra.mxu0 0
    %7111 = vmatprep.subr.bf16.mxu0 0
    %7112 = vmatpush1.bf16.msra.mxu0 0
    %7113 = vmatprep.subr.bf16.mxu0 0
    %7114 = vmatpush1.bf16.msra.mxu0 0
    %7115 = vmatprep.subr.bf16.mxu0 0
    %7116 = vmatpush1.bf16.msra.mxu0 0
    %7117 = vmatprep.subr.bf16.mxu0 0
    %7118 = vmatpush1.bf16.msra.mxu0 0
    %7119 = vmatprep.subr.bf16.mxu0 0
    %7120 = vmatpush1.bf16.msra.mxu0 0
    %7121 = vmatprep.subr.bf16.mxu0 0
    %7122 = vmatpush1.bf16.msra.mxu0 0
    %7123 = vmatprep.subr.bf16.mxu0 0
    %7124 = vmatpush1.bf16.msra.mxu0 0
    %7125 = vmatprep.subr.bf16.mxu0 0
    %7126 = vmatpush1.bf16.msra.mxu0 0
    %7127 = vmatprep.subr.bf16.mxu0 0
    %7128 = vmatpush1.bf16.msra.mxu0 0
    %7129 = vmatprep.subr.bf16.mxu0 0
    %7130 = vmatpush1.bf16.msra.mxu0 0
    %7131 = vmatprep.subr.bf16.mxu0 0
    %7132 = vmatpush1.bf16.msra.mxu0 0
    %7133 = vmatprep.mubr.bf16.mxu0 0
    %7134 = vmatmul.mubr.bf16.gmra.mrb[0].mxu0 %v6965
    %v7135 = vpop.f32.mrb[0].mxu0
    %v7136 = vadd.f32 %v6847, %v7135
    %v7137 = vpop.f32.mrb[0].mxu0
    %v7138 = vadd.f32 %v6847, %v7137
    %v7139 = vpop.f32.mrb[0].mxu0
    %v7140 = vadd.f32 %v6852, %v7139
    %v7141 = vpop.f32.mrb[0].mxu0
    %v7142 = vadd.f32 %v6852, %v7141
    %7143 = vmatprep.mubr.bf16.mxu0 0
    %7144 = vmatmul.mubr.bf16.gmra.mrb[0].mxu0 %v6968
    %v7145 = vpop.f32.mrb[0].mxu0
    %v7146 = vadd.f32 %v6857, %v7145
    %v7147 = vpop.f32.mrb[0].mxu0
    %v7148 = vadd.f32 %v6857, %v7147
    %v7149 = vpop.f32.mrb[0].mxu0
    %v7150 = vadd.f32 %v6862, %v7149
    %v7151 = vpop.f32.mrb[0].mxu0
    %v7152 = vadd.f32 %v6862, %v7151
    %7153 = vmatprep.mubr.bf16.mxu0 0
    %7154 = vmatmul.mubr.bf16.gmra.mrb[0].mxu0 %v6971
    %v7155 = vpop.f32.mrb[0].mxu0
    %v7156 = vadd.f32 %v6867, %v7155
    %v7157 = vpop.f32.mrb[0].mxu0
    %v7158 = vadd.f32 %v6867, %v7157
    %v7159 = vpop.f32.mrb[0].mxu0
    %v7160 = vadd.f32 %v6872, %v7159
    %v7161 = vpop.f32.mrb[0].mxu0
    %v7162 = vadd.f32 %v6872, %v7161
    %7163 = vmatprep.mubr.bf16.mxu0 0
    %7164 = vmatmul.mubr.bf16.gmra.mrb[0].mxu0 %v6974
    %v7165 = vpop.f32.mrb[0].mxu0
    %v7166 = vadd.f32 %v6877, %v7165
    %v7167 = vpop.f32.mrb[0].mxu0
    %v7168 = vadd.f32 %v6877, %v7167
    %v7169 = vpop.f32.mrb[0].mxu0
    %v7170 = vadd.f32 %v6882, %v7169
    %v7171 = vpop.f32.mrb[0].mxu0
    %v7172 = vadd.f32 %v6882, %v7171
    %7173 = vmatprep.mubr.bf16.mxu0 0
    %7174 = vmatmul.mubr.bf16.gmra.mrb[0].mxu0 %v6977
    %v7175 = vpop.f32.mrb[0].mxu0
    %v7176 = vadd.f32 %v6887, %v7175
    %v7177 = vpop.f32.mrb[0].mxu0
    %v7178 = vadd.f32 %v6887, %v7177
    %v7179 = vpop.f32.mrb[0].mxu0
    %v7180 = vadd.f32 %v6892, %v7179
    %v7181 = vpop.f32.mrb[0].mxu0
    %v7182 = vadd.f32 %v6892, %v7181
    %7183 = vmatprep.mubr.bf16.mxu0 0
    %7184 = vmatmul.mubr.bf16.gmra.mrb[0].mxu0 %v6980
    %v7185 = vpop.f32.mrb[0].mxu0
    %v7186 = vadd.f32 %v6897, %v7185
    %v7187 = vpop.f32.mrb[0].mxu0
    %v7188 = vadd.f32 %v6897, %v7187
    %v7189 = vpop.f32.mrb[0].mxu0
    %v7190 = vadd.f32 %v6902, %v7189
    %v7191 = vpop.f32.mrb[0].mxu0
    %v7192 = vadd.f32 %v6902, %v7191
    %7193 = vmatprep.mubr.bf16.mxu0 0
    %7194 = vmatmul.mubr.bf16.gmra.mrb[0].mxu0 %v6983
    %v7195 = vpop.f32.mrb[0].mxu0
    %v7196 = vadd.f32 %v6907, %v7195
    %v7197 = vpop.f32.mrb[0].mxu0
    %v7198 = vadd.f32 %v6907, %v7197
    %v7199 = vpop.f32.mrb[0].mxu0
    %v7200 = vadd.f32 %v6912, %v7199
    %v7201 = vpop.f32.mrb[0].mxu0
    %v7202 = vadd.f32 %v6912, %v7201
    %7203 = vmatprep.mubr.bf16.mxu0 0
    %7204 = vmatmul.mubr.bf16.gmra.mrb[0].mxu0 %v6986
    %v7205 = vpop.f32.mrb[0].mxu0
    %v7206 = vadd.f32 %v6917, %v7205
    %v7207 = vpop.f32.mrb[0].mxu0
    %v7208 = vadd.f32 %v6917, %v7207
    %v7209 = vpop.f32.mrb[0].mxu0
    %v7210 = vadd.f32 %v6922, %v7209
    %v7211 = vpop.f32.mrb[0].mxu0
    %v7212 = vadd.f32 %v6922, %v7211
    %7213 = vdwg.mxu0
    %v7214 = vmul.f32 %v7023, 0.5
    %v7215 = vmul.f32 %v7025, 0.5
    %v7216 = vmul.f32 %v7136, 0.5
    %v7217 = vmul.f32 %v7138, 0.5
    %v7218 = vmul.f32 %v7027, 0.5
    %v7219 = vmul.f32 %v7029, 0.5
    %v7220 = vmul.f32 %v7140, 0.5
    %v7221 = vmul.f32 %v7142, 0.5
    %v7222 = vmul.f32 %v7033, 0.5
    %v7223 = vmul.f32 %v7035, 0.5
    %v7224 = vmul.f32 %v7146, 0.5
    %v7225 = vmul.f32 %v7148, 0.5
    %v7226 = vmul.f32 %v7037, 0.5
    %v7227 = vmul.f32 %v7039, 0.5
    %v7228 = vmul.f32 %v7150, 0.5
    %v7229 = vmul.f32 %v7152, 0.5
    %v7230 = vmul.f32 %v7043, 0.5
    %v7231 = vmul.f32 %v7045, 0.5
    %v7232 = vmul.f32 %v7156, 0.5
    %v7233 = vmul.f32 %v7158, 0.5
    %v7234 = vmul.f32 %v7047, 0.5
    %v7235 = vmul.f32 %v7049, 0.5
    %v7236 = vmul.f32 %v7160, 0.5
    %v7237 = vmul.f32 %v7162, 0.5
    %v7238 = vmul.f32 %v7053, 0.5
    %v7239 = vmul.f32 %v7055, 0.5
    %v7240 = vmul.f32 %v7166, 0.5
    %v7241 = vmul.f32 %v7168, 0.5
    %v7242 = vmul.f32 %v7057, 0.5
    %v7243 = vmul.f32 %v7059, 0.5
    %v7244 = vmul.f32 %v7170, 0.5
    %v7245 = vmul.f32 %v7172, 0.5
    %v7246 = vmul.f32 %v7063, 0.5
    %v7247 = vmul.f32 %v7065, 0.5
    %v7248 = vmul.f32 %v7176, 0.5
    %v7249 = vmul.f32 %v7178, 0.5
    %v7250 = vmul.f32 %v7067, 0.5
    %v7251 = vmul.f32 %v7069, 0.5
    %v7252 = vmul.f32 %v7180, 0.5
    %v7253 = vmul.f32 %v7182, 0.5
    %v7254 = vmul.f32 %v7073, 0.5
    %v7255 = vmul.f32 %v7075, 0.5
    %v7256 = vmul.f32 %v7186, 0.5
    %v7257 = vmul.f32 %v7188, 0.5
    %v7258 = vmul.f32 %v7077, 0.5
    %v7259 = vmul.f32 %v7079, 0.5
    %v7260 = vmul.f32 %v7190, 0.5
    %v7261 = vmul.f32 %v7192, 0.5
    %v7262 = vmul.f32 %v7083, 0.5
    %v7263 = vmul.f32 %v7085, 0.5
    %v7264 = vmul.f32 %v7196, 0.5
    %v7265 = vmul.f32 %v7198, 0.5
    %v7266 = vmul.f32 %v7087, 0.5
    %v7267 = vmul.f32 %v7089, 0.5
    %v7268 = vmul.f32 %v7200, 0.5
    %v7269 = vmul.f32 %v7202, 0.5
    %v7270 = vmul.f32 %v7093, 0.5
    %v7271 = vmul.f32 %v7095, 0.5
    %v7272 = vmul.f32 %v7206, 0.5
    %v7273 = vmul.f32 %v7208, 0.5
    %v7274 = vmul.f32 %v7097, 0.5
    %v7275 = vmul.f32 %v7099, 0.5
    %v7276 = vmul.f32 %v7210, 0.5
    %v7277 = vmul.f32 %v7212, 0.5
    %v7278 = vmul.f32 %v7023, 0.044715
    %v7279 = vmul.f32 %v7025, 0.044715
    %v7280 = vmul.f32 %v7136, 0.044715
    %v7281 = vmul.f32 %v7138, 0.044715
    %v7282 = vmul.f32 %v7027, 0.044715
    %v7283 = vmul.f32 %v7029, 0.044715
    %v7284 = vmul.f32 %v7140, 0.044715
    %v7285 = vmul.f32 %v7142, 0.044715
    %v7286 = vmul.f32 %v7033, 0.044715
    %v7287 = vmul.f32 %v7035, 0.044715
    %v7288 = vmul.f32 %v7146, 0.044715
    %v7289 = vmul.f32 %v7148, 0.044715
    %v7290 = vmul.f32 %v7037, 0.044715
    %v7291 = vmul.f32 %v7039, 0.044715
    %v7292 = vmul.f32 %v7150, 0.044715
    %v7293 = vmul.f32 %v7152, 0.044715
    %v7294 = vmul.f32 %v7043, 0.044715
    %v7295 = vmul.f32 %v7045, 0.044715
    %v7296 = vmul.f32 %v7156, 0.044715
    %v7297 = vmul.f32 %v7158, 0.044715
    %v7298 = vmul.f32 %v7047, 0.044715
    %v7299 = vmul.f32 %v7049, 0.044715
    %v7300 = vmul.f32 %v7160, 0.044715
    %v7301 = vmul.f32 %v7162, 0.044715
    %v7302 = vmul.f32 %v7053, 0.044715
    %v7303 = vmul.f32 %v7055, 0.044715
    %v7304 = vmul.f32 %v7166, 0.044715
    %v7305 = vmul.f32 %v7168, 0.044715
    %v7306 = vmul.f32 %v7057, 0.044715
    %v7307 = vmul.f32 %v7059, 0.044715
    %v7308 = vmul.f32 %v7170, 0.044715
    %v7309 = vmul.f32 %v7172, 0.044715
    %v7310 = vmul.f32 %v7063, 0.044715
    %v7311 = vmul.f32 %v7065, 0.044715
    %v7312 = vmul.f32 %v7176, 0.044715
    %v7313 = vmul.f32 %v7178, 0.044715
    %v7314 = vmul.f32 %v7067, 0.044715
    %v7315 = vmul.f32 %v7069, 0.044715
    %v7316 = vmul.f32 %v7180, 0.044715
    %v7317 = vmul.f32 %v7182, 0.044715
    %v7318 = vmul.f32 %v7073, 0.044715
    %v7319 = vmul.f32 %v7075, 0.044715
    %v7320 = vmul.f32 %v7186, 0.044715
    %v7321 = vmul.f32 %v7188, 0.044715
    %v7322 = vmul.f32 %v7077, 0.044715
    %v7323 = vmul.f32 %v7079, 0.044715
    %v7324 = vmul.f32 %v7190, 0.044715
    %v7325 = vmul.f32 %v7192, 0.044715
    %v7326 = vmul.f32 %v7083, 0.044715
    %v7327 = vmul.f32 %v7085, 0.044715
    %v7328 = vmul.f32 %v7196, 0.044715
    %v7329 = vmul.f32 %v7198, 0.044715
    %v7330 = vmul.f32 %v7087, 0.044715
    %v7331 = vmul.f32 %v7089, 0.044715
    %v7332 = vmul.f32 %v7200, 0.044715
    %v7333 = vmul.f32 %v7202, 0.044715
    %v7334 = vmul.f32 %v7093, 0.044715
    %v7335 = vmul.f32 %v7095, 0.044715
    %v7336 = vmul.f32 %v7206, 0.044715
    %v7337 = vmul.f32 %v7208, 0.044715
    %v7338 = vmul.f32 %v7097, 0.044715
    %v7339 = vmul.f32 %v7099, 0.044715
    %v7340 = vmul.f32 %v7210, 0.044715
    %v7341 = vmul.f32 %v7212, 0.044715
    %v7342 = vmul.f32 %v7278, %v7023
    %v7343 = vmul.f32 %v7279, %v7025
    %v7344 = vmul.f32 %v7280, %v7136
    %v7345 = vmul.f32 %v7281, %v7138
    %v7346 = vmul.f32 %v7282, %v7027
    %v7347 = vmul.f32 %v7283, %v7029
    %v7348 = vmul.f32 %v7284, %v7140
    %v7349 = vmul.f32 %v7285, %v7142
    %v7350 = vmul.f32 %v7286, %v7033
    %v7351 = vmul.f32 %v7287, %v7035
    %v7352 = vmul.f32 %v7288, %v7146
    %v7353 = vmul.f32 %v7289, %v7148
    %v7354 = vmul.f32 %v7290, %v7037
    %v7355 = vmul.f32 %v7291, %v7039
    %v7356 = vmul.f32 %v7292, %v7150
    %v7357 = vmul.f32 %v7293, %v7152
    %v7358 = vmul.f32 %v7294, %v7043
    %v7359 = vmul.f32 %v7295, %v7045
    %v7360 = vmul.f32 %v7296, %v7156
    %v7361 = vmul.f32 %v7297, %v7158
    %v7362 = vmul.f32 %v7298, %v7047
    %v7363 = vmul.f32 %v7299, %v7049
    %v7364 = vmul.f32 %v7300, %v7160
    %v7365 = vmul.f32 %v7301, %v7162
    %v7366 = vmul.f32 %v7302, %v7053
    %v7367 = vmul.f32 %v7303, %v7055
    %v7368 = vmul.f32 %v7304, %v7166
    %v7369 = vmul.f32 %v7305, %v7168
    %v7370 = vmul.f32 %v7306, %v7057
    %v7371 = vmul.f32 %v7307, %v7059
    %v7372 = vmul.f32 %v7308, %v7170
    %v7373 = vmul.f32 %v7309, %v7172
    %v7374 = vmul.f32 %v7310, %v7063
    %v7375 = vmul.f32 %v7311, %v7065
    %v7376 = vmul.f32 %v7312, %v7176
    %v7377 = vmul.f32 %v7313, %v7178
    %v7378 = vmul.f32 %v7314, %v7067
    %v7379 = vmul.f32 %v7315, %v7069
    %v7380 = vmul.f32 %v7316, %v7180
    %v7381 = vmul.f32 %v7317, %v7182
    %v7382 = vmul.f32 %v7318, %v7073
    %v7383 = vmul.f32 %v7319, %v7075
    %v7384 = vmul.f32 %v7320, %v7186
    %v7385 = vmul.f32 %v7321, %v7188
    %v7386 = vmul.f32 %v7322, %v7077
    %v7387 = vmul.f32 %v7323, %v7079
    %v7388 = vmul.f32 %v7324, %v7190
    %v7389 = vmul.f32 %v7325, %v7192
    %v7390 = vmul.f32 %v7326, %v7083
    %v7391 = vmul.f32 %v7327, %v7085
    %v7392 = vmul.f32 %v7328, %v7196
    %v7393 = vmul.f32 %v7329, %v7198
    %v7394 = vmul.f32 %v7330, %v7087
    %v7395 = vmul.f32 %v7331, %v7089
    %v7396 = vmul.f32 %v7332, %v7200
    %v7397 = vmul.f32 %v7333, %v7202
    %v7398 = vmul.f32 %v7334, %v7093
    %v7399 = vmul.f32 %v7335, %v7095
    %v7400 = vmul.f32 %v7336, %v7206
    %v7401 = vmul.f32 %v7337, %v7208
    %v7402 = vmul.f32 %v7338, %v7097
    %v7403 = vmul.f32 %v7339, %v7099
    %v7404 = vmul.f32 %v7340, %v7210
    %v7405 = vmul.f32 %v7341, %v7212
    %v7406 = vmul.f32 %v7342, %v7023
    %v7407 = vmul.f32 %v7343, %v7025
    %v7408 = vmul.f32 %v7344, %v7136
    %v7409 = vmul.f32 %v7345, %v7138
    %v7410 = vmul.f32 %v7346, %v7027
    %v7411 = vmul.f32 %v7347, %v7029
    %v7412 = vmul.f32 %v7348, %v7140
    %v7413 = vmul.f32 %v7349, %v7142
    %v7414 = vmul.f32 %v7350, %v7033
    %v7415 = vmul.f32 %v7351, %v7035
    %v7416 = vmul.f32 %v7352, %v7146
    %v7417 = vmul.f32 %v7353, %v7148
    %v7418 = vmul.f32 %v7354, %v7037
    %v7419 = vmul.f32 %v7355, %v7039
    %v7420 = vmul.f32 %v7356, %v7150
    %v7421 = vmul.f32 %v7357, %v7152
    %v7422 = vmul.f32 %v7358, %v7043
    %v7423 = vmul.f32 %v7359, %v7045
    %v7424 = vmul.f32 %v7360, %v7156
    %v7425 = vmul.f32 %v7361, %v7158
    %v7426 = vmul.f32 %v7362, %v7047
    %v7427 = vmul.f32 %v7363, %v7049
    %v7428 = vmul.f32 %v7364, %v7160
    %v7429 = vmul.f32 %v7365, %v7162
    %v7430 = vmul.f32 %v7366, %v7053
    %v7431 = vmul.f32 %v7367, %v7055
    %v7432 = vmul.f32 %v7368, %v7166
    %v7433 = vmul.f32 %v7369, %v7168
    %v7434 = vmul.f32 %v7370, %v7057
    %v7435 = vmul.f32 %v7371, %v7059
    %v7436 = vmul.f32 %v7372, %v7170
    %v7437 = vmul.f32 %v7373, %v7172
    %v7438 = vmul.f32 %v7374, %v7063
    %v7439 = vmul.f32 %v7375, %v7065
    %v7440 = vmul.f32 %v7376, %v7176
    %v7441 = vmul.f32 %v7377, %v7178
    %v7442 = vmul.f32 %v7378, %v7067
    %v7443 = vmul.f32 %v7379, %v7069
    %v7444 = vmul.f32 %v7380, %v7180
    %v7445 = vmul.f32 %v7381, %v7182
    %v7446 = vmul.f32 %v7382, %v7073
    %v7447 = vmul.f32 %v7383, %v7075
    %v7448 = vmul.f32 %v7384, %v7186
    %v7449 = vmul.f32 %v7385, %v7188
    %v7450 = vmul.f32 %v7386, %v7077
    %v7451 = vmul.f32 %v7387, %v7079
    %v7452 = vmul.f32 %v7388, %v7190
    %v7453 = vmul.f32 %v7389, %v7192
    %v7454 = vmul.f32 %v7390, %v7083
    %v7455 = vmul.f32 %v7391, %v7085
    %v7456 = vmul.f32 %v7392, %v7196
    %v7457 = vmul.f32 %v7393, %v7198
    %v7458 = vmul.f32 %v7394, %v7087
    %v7459 = vmul.f32 %v7395, %v7089
    %v7460 = vmul.f32 %v7396, %v7200
    %v7461 = vmul.f32 %v7397, %v7202
    %v7462 = vmul.f32 %v7398, %v7093
    %v7463 = vmul.f32 %v7399, %v7095
    %v7464 = vmul.f32 %v7400, %v7206
    %v7465 = vmul.f32 %v7401, %v7208
    %v7466 = vmul.f32 %v7402, %v7097
    %v7467 = vmul.f32 %v7403, %v7099
    %v7468 = vmul.f32 %v7404, %v7210
    %v7469 = vmul.f32 %v7405, %v7212
    %v7470 = vadd.f32 %v7023, %v7406
    %v7471 = vadd.f32 %v7025, %v7407
    %v7472 = vadd.f32 %v7136, %v7408
    %v7473 = vadd.f32 %v7138, %v7409
    %v7474 = vadd.f32 %v7027, %v7410
    %v7475 = vadd.f32 %v7029, %v7411
    %v7476 = vadd.f32 %v7140, %v7412
    %v7477 = vadd.f32 %v7142, %v7413
    %v7478 = vadd.f32 %v7033, %v7414
    %v7479 = vadd.f32 %v7035, %v7415
    %v7480 = vadd.f32 %v7146, %v7416
    %v7481 = vadd.f32 %v7148, %v7417
    %v7482 = vadd.f32 %v7037, %v7418
    %v7483 = vadd.f32 %v7039, %v7419
    %v7484 = vadd.f32 %v7150, %v7420
    %v7485 = vadd.f32 %v7152, %v7421
    %v7486 = vadd.f32 %v7043, %v7422
    %v7487 = vadd.f32 %v7045, %v7423
    %v7488 = vadd.f32 %v7156, %v7424
    %v7489 = vadd.f32 %v7158, %v7425
    %v7490 = vadd.f32 %v7047, %v7426
    %v7491 = vadd.f32 %v7049, %v7427
    %v7492 = vadd.f32 %v7160, %v7428
    %v7493 = vadd.f32 %v7162, %v7429
    %v7494 = vadd.f32 %v7053, %v7430
    %v7495 = vadd.f32 %v7055, %v7431
    %v7496 = vadd.f32 %v7166, %v7432
    %v7497 = vadd.f32 %v7168, %v7433
    %v7498 = vadd.f32 %v7057, %v7434
    %v7499 = vadd.f32 %v7059, %v7435
    %v7500 = vadd.f32 %v7170, %v7436
    %v7501 = vadd.f32 %v7172, %v7437
    %v7502 = vadd.f32 %v7063, %v7438
    %v7503 = vadd.f32 %v7065, %v7439
    %v7504 = vadd.f32 %v7176, %v7440
    %v7505 = vadd.f32 %v7178, %v7441
    %v7506 = vadd.f32 %v7067, %v7442
    %v7507 = vadd.f32 %v7069, %v7443
    %v7508 = vadd.f32 %v7180, %v7444
    %v7509 = vadd.f32 %v7182, %v7445
    %v7510 = vadd.f32 %v7073, %v7446
    %v7511 = vadd.f32 %v7075, %v7447
    %v7512 = vadd.f32 %v7186, %v7448
    %v7513 = vadd.f32 %v7188, %v7449
    %v7514 = vadd.f32 %v7077, %v7450
    %v7515 = vadd.f32 %v7079, %v7451
    %v7516 = vadd.f32 %v7190, %v7452
    %v7517 = vadd.f32 %v7192, %v7453
    %v7518 = vadd.f32 %v7083, %v7454
    %v7519 = vadd.f32 %v7085, %v7455
    %v7520 = vadd.f32 %v7196, %v7456
    %v7521 = vadd.f32 %v7198, %v7457
    %v7522 = vadd.f32 %v7087, %v7458
    %v7523 = vadd.f32 %v7089, %v7459
    %v7524 = vadd.f32 %v7200, %v7460
    %v7525 = vadd.f32 %v7202, %v7461
    %v7526 = vadd.f32 %v7093, %v7462
    %v7527 = vadd.f32 %v7095, %v7463
    %v7528 = vadd.f32 %v7206, %v7464
    %v7529 = vadd.f32 %v7208, %v7465
    %v7530 = vadd.f32 %v7097, %v7466
    %v7531 = vadd.f32 %v7099, %v7467
    %v7532 = vadd.f32 %v7210, %v7468
    %v7533 = vadd.f32 %v7212, %v7469
    %v7534 = vmul.f32 %v7470, 0.7978846
    %v7535 = vmul.f32 %v7471, 0.7978846
    %v7536 = vmul.f32 %v7472, 0.7978846
    %v7537 = vmul.f32 %v7473, 0.7978846
    %v7538 = vmul.f32 %v7474, 0.7978846
    %v7539 = vmul.f32 %v7475, 0.7978846
    %v7540 = vmul.f32 %v7476, 0.7978846
    %v7541 = vmul.f32 %v7477, 0.7978846
    %v7542 = vmul.f32 %v7478, 0.7978846
    %v7543 = vmul.f32 %v7479, 0.7978846
    %v7544 = vmul.f32 %v7480, 0.7978846
    %v7545 = vmul.f32 %v7481, 0.7978846
    %v7546 = vmul.f32 %v7482, 0.7978846
    %v7547 = vmul.f32 %v7483, 0.7978846
    %v7548 = vmul.f32 %v7484, 0.7978846
    %v7549 = vmul.f32 %v7485, 0.7978846
    %v7550 = vmul.f32 %v7486, 0.7978846
    %v7551 = vmul.f32 %v7487, 0.7978846
    %v7552 = vmul.f32 %v7488, 0.7978846
    %v7553 = vmul.f32 %v7489, 0.7978846
    %v7554 = vmul.f32 %v7490, 0.7978846
    %v7555 = vmul.f32 %v7491, 0.7978846
    %v7556 = vmul.f32 %v7492, 0.7978846
    %v7557 = vmul.f32 %v7493, 0.7978846
    %v7558 = vmul.f32 %v7494, 0.7978846
    %v7559 = vmul.f32 %v7495, 0.7978846
    %v7560 = vmul.f32 %v7496, 0.7978846
    %v7561 = vmul.f32 %v7497, 0.7978846
    %v7562 = vmul.f32 %v7498, 0.7978846
    %v7563 = vmul.f32 %v7499, 0.7978846
    %v7564 = vmul.f32 %v7500, 0.7978846
    %v7565 = vmul.f32 %v7501, 0.7978846
    %v7566 = vmul.f32 %v7502, 0.7978846
    %v7567 = vmul.f32 %v7503, 0.7978846
    %v7568 = vmul.f32 %v7504, 0.7978846
    %v7569 = vmul.f32 %v7505, 0.7978846
    %v7570 = vmul.f32 %v7506, 0.7978846
    %v7571 = vmul.f32 %v7507, 0.7978846
    %v7572 = vmul.f32 %v7508, 0.7978846
    %v7573 = vmul.f32 %v7509, 0.7978846
    %v7574 = vmul.f32 %v7510, 0.7978846
    %v7575 = vmul.f32 %v7511, 0.7978846
    %v7576 = vmul.f32 %v7512, 0.7978846
    %v7577 = vmul.f32 %v7513, 0.7978846
    %v7578 = vmul.f32 %v7514, 0.7978846
    %v7579 = vmul.f32 %v7515, 0.7978846
    %v7580 = vmul.f32 %v7516, 0.7978846
    %v7581 = vmul.f32 %v7517, 0.7978846
    %v7582 = vmul.f32 %v7518, 0.7978846
    %v7583 = vmul.f32 %v7519, 0.7978846
    %v7584 = vmul.f32 %v7520, 0.7978846
    %v7585 = vmul.f32 %v7521, 0.7978846
    %v7586 = vmul.f32 %v7522, 0.7978846
    %v7587 = vmul.f32 %v7523, 0.7978846
    %v7588 = vmul.f32 %v7524, 0.7978846
    %v7589 = vmul.f32 %v7525, 0.7978846
    %v7590 = vmul.f32 %v7526, 0.7978846
    %v7591 = vmul.f32 %v7527, 0.7978846
    %v7592 = vmul.f32 %v7528, 0.7978846
    %v7593 = vmul.f32 %v7529, 0.7978846
    %v7594 = vmul.f32 %v7530, 0.7978846
    %v7595 = vmul.f32 %v7531, 0.7978846
    %v7596 = vmul.f32 %v7532, 0.7978846
    %v7597 = vmul.f32 %v7533, 0.7978846
    %v7598 = vtanh.pop %v7534
    %v7599 = vtanh.pop %v7535
    %v7600 = vtanh.pop %v7536
    %v7601 = vtanh.pop %v7537
    %v7602 = vtanh.pop %v7538
    %v7603 = vtanh.pop %v7539
    %v7604 = vtanh.pop %v7540
    %v7605 = vtanh.pop %v7541
    %v7606 = vtanh.pop %v7542
    %v7607 = vtanh.pop %v7543
    %v7608 = vtanh.pop %v7544
    %v7609 = vtanh.pop %v7545
    %v7610 = vtanh.pop %v7546
    %v7611 = vtanh.pop %v7547
    %v7612 = vtanh.pop %v7548
    %v7613 = vtanh.pop %v7549
    %v7614 = vtanh.pop %v7550
    %v7615 = vtanh.pop %v7551
    %v7616 = vtanh.pop %v7552
    %v7617 = vtanh.pop %v7553
    %v7618 = vtanh.pop %v7554
    %v7619 = vtanh.pop %v7555
    %v7620 = vtanh.pop %v7556
    %v7621 = vtanh.pop %v7557
    %v7622 = vtanh.pop %v7558
    %v7623 = vtanh.pop %v7559
    %v7624 = vtanh.pop %v7560
    %v7625 = vtanh.pop %v7561
    %v7626 = vtanh.pop %v7562
    %v7627 = vtanh.pop %v7563
    %v7628 = vtanh.pop %v7564
    %v7629 = vtanh.pop %v7565
    %v7630 = vtanh.pop %v7566
    %v7631 = vtanh.pop %v7567
    %v7632 = vtanh.pop %v7568
    %v7633 = vtanh.pop %v7569
    %v7634 = vtanh.pop %v7570
    %v7635 = vtanh.pop %v7571
    %v7636 = vtanh.pop %v7572
    %v7637 = vtanh.pop %v7573
    %v7638 = vtanh.pop %v7574
    %v7639 = vtanh.pop %v7575
    %v7640 = vtanh.pop %v7576
    %v7641 = vtanh.pop %v7577
    %v7642 = vtanh.pop %v7578
    %v7643 = vtanh.pop %v7579
    %v7644 = vtanh.pop %v7580
    %v7645 = vtanh.pop %v7581
    %v7646 = vtanh.pop %v7582
    %v7647 = vtanh.pop %v7583
    %v7648 = vtanh.pop %v7584
    %v7649 = vtanh.pop %v7585
    %v7650 = vtanh.pop %v7586
    %v7651 = vtanh.pop %v7587
    %v7652 = vtanh.pop %v7588
    %v7653 = vtanh.pop %v7589
    %v7654 = vtanh.pop %v7590
    %v7655 = vtanh.pop %v7591
    %v7656 = vtanh.pop %v7592
    %v7657 = vtanh.pop %v7593
    %v7658 = vtanh.pop %v7594
    %v7659 = vtanh.pop %v7595
    %v7660 = vtanh.pop %v7596
    %v7661 = vtanh.pop %v7597
    %v7662 = vadd.f32 %v7598, 1.0
    %v7663 = vadd.f32 %v7599, 1.0
    %v7664 = vadd.f32 %v7600, 1.0
    %v7665 = vadd.f32 %v7601, 1.0
    %v7666 = vadd.f32 %v7602, 1.0
    %v7667 = vadd.f32 %v7603, 1.0
    %v7668 = vadd.f32 %v7604, 1.0
    %v7669 = vadd.f32 %v7605, 1.0
    %v7670 = vadd.f32 %v7606, 1.0
    %v7671 = vadd.f32 %v7607, 1.0
    %v7672 = vadd.f32 %v7608, 1.0
    %v7673 = vadd.f32 %v7609, 1.0
    %v7674 = vadd.f32 %v7610, 1.0
    %v7675 = vadd.f32 %v7611, 1.0
    %v7676 = vadd.f32 %v7612, 1.0
    %v7677 = vadd.f32 %v7613, 1.0
    %v7678 = vadd.f32 %v7614, 1.0
    %v7679 = vadd.f32 %v7615, 1.0
    %v7680 = vadd.f32 %v7616, 1.0
    %v7681 = vadd.f32 %v7617, 1.0
    %v7682 = vadd.f32 %v7618, 1.0
    %v7683 = vadd.f32 %v7619, 1.0
    %v7684 = vadd.f32 %v7620, 1.0
    %v7685 = vadd.f32 %v7621, 1.0
    %v7686 = vadd.f32 %v7622, 1.0
    %v7687 = vadd.f32 %v7623, 1.0
    %v7688 = vadd.f32 %v7624, 1.0
    %v7689 = vadd.f32 %v7625, 1.0
    %v7690 = vadd.f32 %v7626, 1.0
    %v7691 = vadd.f32 %v7627, 1.0
    %v7692 = vadd.f32 %v7628, 1.0
    %v7693 = vadd.f32 %v7629, 1.0
    %v7694 = vadd.f32 %v7630, 1.0
    %v7695 = vadd.f32 %v7631, 1.0
    %v7696 = vadd.f32 %v7632, 1.0
    %v7697 = vadd.f32 %v7633, 1.0
    %v7698 = vadd.f32 %v7634, 1.0
    %v7699 = vadd.f32 %v7635, 1.0
    %v7700 = vadd.f32 %v7636, 1.0
    %v7701 = vadd.f32 %v7637, 1.0
    %v7702 = vadd.f32 %v7638, 1.0
    %v7703 = vadd.f32 %v7639, 1.0
    %v7704 = vadd.f32 %v7640, 1.0
    %v7705 = vadd.f32 %v7641, 1.0
    %v7706 = vadd.f32 %v7642, 1.0
    %v7707 = vadd.f32 %v7643, 1.0
    %v7708 = vadd.f32 %v7644, 1.0
    %v7709 = vadd.f32 %v7645, 1.0
    %v7710 = vadd.f32 %v7646, 1.0
    %v7711 = vadd.f32 %v7647, 1.0
    %v7712 = vadd.f32 %v7648, 1.0
    %v7713 = vadd.f32 %v7649, 1.0
    %v7714 = vadd.f32 %v7650, 1.0
    %v7715 = vadd.f32 %v7651, 1.0
    %v7716 = vadd.f32 %v7652, 1.0
    %v7717 = vadd.f32 %v7653, 1.0
    %v7718 = vadd.f32 %v7654, 1.0
    %v7719 = vadd.f32 %v7655, 1.0
    %v7720 = vadd.f32 %v7656, 1.0
    %v7721 = vadd.f32 %v7657, 1.0
    %v7722 = vadd.f32 %v7658, 1.0
    %v7723 = vadd.f32 %v7659, 1.0
    %v7724 = vadd.f32 %v7660, 1.0
    %v7725 = vadd.f32 %v7661, 1.0
    %v7726 = vmul.f32 %v7214, %v7662
    %v7727 = vmul.f32 %v7215, %v7663
    %v7728 = vmul.f32 %v7216, %v7664
    %v7729 = vmul.f32 %v7217, %v7665
    %v7730 = vmul.f32 %v7218, %v7666
    %v7731 = vmul.f32 %v7219, %v7667
    %v7732 = vmul.f32 %v7220, %v7668
    %v7733 = vmul.f32 %v7221, %v7669
    %v7734 = vmul.f32 %v7222, %v7670
    %v7735 = vmul.f32 %v7223, %v7671
    %v7736 = vmul.f32 %v7224, %v7672
    %v7737 = vmul.f32 %v7225, %v7673
    %v7738 = vmul.f32 %v7226, %v7674
    %v7739 = vmul.f32 %v7227, %v7675
    %v7740 = vmul.f32 %v7228, %v7676
    %v7741 = vmul.f32 %v7229, %v7677
    %v7742 = vmul.f32 %v7230, %v7678
    %v7743 = vmul.f32 %v7231, %v7679
    %v7744 = vmul.f32 %v7232, %v7680
    %v7745 = vmul.f32 %v7233, %v7681
    %v7746 = vmul.f32 %v7234, %v7682
    %v7747 = vmul.f32 %v7235, %v7683
    %v7748 = vmul.f32 %v7236, %v7684
    %v7749 = vmul.f32 %v7237, %v7685
    %v7750 = vmul.f32 %v7238, %v7686
    %v7751 = vmul.f32 %v7239, %v7687
    %v7752 = vmul.f32 %v7240, %v7688
    %v7753 = vmul.f32 %v7241, %v7689
    %v7754 = vmul.f32 %v7242, %v7690
    %v7755 = vmul.f32 %v7243, %v7691
    %v7756 = vmul.f32 %v7244, %v7692
    %v7757 = vmul.f32 %v7245, %v7693
    %v7758 = vmul.f32 %v7246, %v7694
    %v7759 = vmul.f32 %v7247, %v7695
    %v7760 = vmul.f32 %v7248, %v7696
    %v7761 = vmul.f32 %v7249, %v7697
    %v7762 = vmul.f32 %v7250, %v7698
    %v7763 = vmul.f32 %v7251, %v7699
    %v7764 = vmul.f32 %v7252, %v7700
    %v7765 = vmul.f32 %v7253, %v7701
    %v7766 = vmul.f32 %v7254, %v7702
    %v7767 = vmul.f32 %v7255, %v7703
    %v7768 = vmul.f32 %v7256, %v7704
    %v7769 = vmul.f32 %v7257, %v7705
    %v7770 = vmul.f32 %v7258, %v7706
    %v7771 = vmul.f32 %v7259, %v7707
    %v7772 = vmul.f32 %v7260, %v7708
    %v7773 = vmul.f32 %v7261, %v7709
    %v7774 = vmul.f32 %v7262, %v7710
    %v7775 = vmul.f32 %v7263, %v7711
    %v7776 = vmul.f32 %v7264, %v7712
    %v7777 = vmul.f32 %v7265, %v7713
    %v7778 = vmul.f32 %v7266, %v7714
    %v7779 = vmul.f32 %v7267, %v7715
    %v7780 = vmul.f32 %v7268, %v7716
    %v7781 = vmul.f32 %v7269, %v7717
    %v7782 = vmul.f32 %v7270, %v7718
    %v7783 = vmul.f32 %v7271, %v7719
    %v7784 = vmul.f32 %v7272, %v7720
    %v7785 = vmul.f32 %v7273, %v7721
    %v7786 = vmul.f32 %v7274, %v7722
    %v7787 = vmul.f32 %v7275, %v7723
    %v7788 = vmul.f32 %v7276, %v7724
    %v7789 = vmul.f32 %v7277, %v7725
    %s7790 = scalar_lea.vmem %s7, 16
    %v7791 = vld [vmem:[%s7790] sm:$0xf]
    %v7792 = vld [vmem:[%s7790 + $0x4] sm:$0xf]
    %v7793 = vld [vmem:[%s7790 + $0x8] sm:$0xf]
    %v7794 = vld [vmem:[%s7790 + $0xc] sm:$0xf]
    %v7795 = vpack.c.bf16 %v7730, %v7726
    %v7796 = vpack.c.bf16 %v7731, %v7727
    %v7797 = vpack.c.bf16 %v7732, %v7728
    %v7798 = vpack.c.bf16 %v7733, %v7729
    %v7799 = vpack.c.bf16 %v7738, %v7734
    %v7800 = vpack.c.bf16 %v7739, %v7735
    %v7801 = vpack.c.bf16 %v7740, %v7736
    %v7802 = vpack.c.bf16 %v7741, %v7737
    %v7803 = vpack.c.bf16 %v7746, %v7742
    %v7804 = vpack.c.bf16 %v7747, %v7743
    %v7805 = vpack.c.bf16 %v7748, %v7744
    %v7806 = vpack.c.bf16 %v7749, %v7745
    %v7807 = vpack.c.bf16 %v7754, %v7750
    %v7808 = vpack.c.bf16 %v7755, %v7751
    %v7809 = vpack.c.bf16 %v7756, %v7752
    %v7810 = vpack.c.bf16 %v7757, %v7753
    %v7811 = vpack.c.bf16 %v7762, %v7758
    %v7812 = vpack.c.bf16 %v7763, %v7759
    %v7813 = vpack.c.bf16 %v7764, %v7760
    %v7814 = vpack.c.bf16 %v7765, %v7761
    %v7815 = vpack.c.bf16 %v7770, %v7766
    %v7816 = vpack.c.bf16 %v7771, %v7767
    %v7817 = vpack.c.bf16 %v7772, %v7768
    %v7818 = vpack.c.bf16 %v7773, %v7769
    %v7819 = vpack.c.bf16 %v7778, %v7774
    %v7820 = vpack.c.bf16 %v7779, %v7775
    %v7821 = vpack.c.bf16 %v7780, %v7776
    %v7822 = vpack.c.bf16 %v7781, %v7777
    %v7823 = vpack.c.bf16 %v7786, %v7782
    %v7824 = vpack.c.bf16 %v7787, %v7783
    %v7825 = vpack.c.bf16 %v7788, %v7784
    %v7826 = vpack.c.bf16 %v7789, %v7785
    %7828 = vset.pattern.permute.xlu0 0
    %7829 = vperm.xlu0 %7828, %v4842
    %v7830 = vpop.permute.xlu0 %7829
    %7833 = vset.pattern.permute.xlu0 0
    %7834 = vperm.xlu0 %7833, %v4843
    %v7835 = vpop.permute.xlu0 %7834
    %7838 = vset.pattern.permute.xlu0 0
    %7839 = vperm.xlu0 %7838, %v4844
    %v7840 = vpop.permute.xlu0 %7839
    %7843 = vset.pattern.permute.xlu0 0
    %7844 = vperm.xlu0 %7843, %v4845
    %v7845 = vpop.permute.xlu0 %7844
    %v7851 = vunpack.c.l.b16 %v7791
    %v7852 = vunpack.c.l.b16 %v7792
    %v7853 = vunpack.c.l.b16 %v7793
    %v7854 = vunpack.c.l.b16 %v7794
    %v7855 = vpack.c.b16 %v7852, %v7851
    %v7856 = vpack.c.b16 %v7854, %v7853
    %7859 = vmatprep.subr.bf16.mxu0 %v7796
    %7860 = vmatpush1.bf16.msra.mxu0 %v7795
    %7861 = vmatprep.subr.bf16.mxu0 %v7800
    %7862 = vmatpush1.bf16.msra.mxu0 %v7799
    %7863 = vmatprep.subr.bf16.mxu0 %v7804
    %7864 = vmatpush1.bf16.msra.mxu0 %v7803
    %7865 = vmatprep.subr.bf16.mxu0 %v7808
    %7866 = vmatpush1.bf16.msra.mxu0 %v7807
    %7867 = vmatprep.subr.bf16.mxu0 %v7812
    %7868 = vmatpush1.bf16.msra.mxu0 %v7811
    %7869 = vmatprep.subr.bf16.mxu0 %v7816
    %7870 = vmatpush1.bf16.msra.mxu0 %v7815
    %7871 = vmatprep.subr.bf16.mxu0 %v7820
    %7872 = vmatpush1.bf16.msra.mxu0 %v7819
    %7873 = vmatprep.subr.bf16.mxu0 %v7824
    %7874 = vmatpush1.bf16.msra.mxu0 %v7823
    %7875 = vmatprep.subr.bf16.mxu0 0
    %7876 = vmatpush1.bf16.msra.mxu0 0
    %7877 = vmatprep.subr.bf16.mxu0 0
    %7878 = vmatpush1.bf16.msra.mxu0 0
    %7879 = vmatprep.subr.bf16.mxu0 0
    %7880 = vmatpush1.bf16.msra.mxu0 0
    %7881 = vmatprep.subr.bf16.mxu0 0
    %7882 = vmatpush1.bf16.msra.mxu0 0
    %7883 = vmatprep.subr.bf16.mxu0 0
    %7884 = vmatpush1.bf16.msra.mxu0 0
    %7885 = vmatprep.subr.bf16.mxu0 0
    %7886 = vmatpush1.bf16.msra.mxu0 0
    %7887 = vmatprep.subr.bf16.mxu0 0
    %7888 = vmatpush1.bf16.msra.mxu0 0
    %7889 = vmatprep.subr.bf16.mxu0 0
    %7890 = vmatpush1.bf16.msra.mxu0 0
    %7891 = vmatprep.mubr.bf16.mxu0 0
    %7892 = vmatmul.mubr.bf16.gmra.mrb[0].mxu0 %v7855
    %v7893 = vpop.f32.mrb[0].mxu0
    %v7894 = vadd.f32 %v7830, %v7893
    %v7895 = vpop.f32.mrb[0].mxu0
    %v7896 = vadd.f32 %v7830, %v7895
    %v7897 = vpop.f32.mrb[0].mxu0
    %v7898 = vadd.f32 %v7835, %v7897
    %v7899 = vpop.f32.mrb[0].mxu0
    %v7900 = vadd.f32 %v7835, %v7899
    %7901 = vmatprep.mubr.bf16.mxu0 0
    %7902 = vmatmul.mubr.bf16.gmra.mrb[0].mxu0 %v7856
    %v7903 = vpop.f32.mrb[0].mxu0
    %v7904 = vadd.f32 %v7840, %v7903
    %v7905 = vpop.f32.mrb[0].mxu0
    %v7906 = vadd.f32 %v7840, %v7905
    %v7907 = vpop.f32.mrb[0].mxu0
    %v7908 = vadd.f32 %v7845, %v7907
    %v7909 = vpop.f32.mrb[0].mxu0
    %v7910 = vadd.f32 %v7845, %v7909
    %7911 = vdwg.mxu0
    %7912 = vmatprep.subr.bf16.mxu0 %v7798
    %7913 = vmatpush1.bf16.msra.mxu0 %v7797
    %7914 = vmatprep.subr.bf16.mxu0 %v7802
    %7915 = vmatpush1.bf16.msra.mxu0 %v7801
    %7916 = vmatprep.subr.bf16.mxu0 %v7806
    %7917 = vmatpush1.bf16.msra.mxu0 %v7805
    %7918 = vmatprep.subr.bf16.mxu0 %v7810
    %7919 = vmatpush1.bf16.msra.mxu0 %v7809
    %7920 = vmatprep.subr.bf16.mxu0 %v7814
    %7921 = vmatpush1.bf16.msra.mxu0 %v7813
    %7922 = vmatprep.subr.bf16.mxu0 %v7818
    %7923 = vmatpush1.bf16.msra.mxu0 %v7817
    %7924 = vmatprep.subr.bf16.mxu0 %v7822
    %7925 = vmatpush1.bf16.msra.mxu0 %v7821
    %7926 = vmatprep.subr.bf16.mxu0 %v7826
    %7927 = vmatpush1.bf16.msra.mxu0 %v7825
    %7928 = vmatprep.subr.bf16.mxu0 0
    %7929 = vmatpush1.bf16.msra.mxu0 0
    %7930 = vmatprep.subr.bf16.mxu0 0
    %7931 = vmatpush1.bf16.msra.mxu0 0
    %7932 = vmatprep.subr.bf16.mxu0 0
    %7933 = vmatpush1.bf16.msra.mxu0 0
    %7934 = vmatprep.subr.bf16.mxu0 0
    %7935 = vmatpush1.bf16.msra.mxu0 0
    %7936 = vmatprep.subr.bf16.mxu0 0
    %7937 = vmatpush1.bf16.msra.mxu0 0
    %7938 = vmatprep.subr.bf16.mxu0 0
    %7939 = vmatpush1.bf16.msra.mxu0 0
    %7940 = vmatprep.subr.bf16.mxu0 0
    %7941 = vmatpush1.bf16.msra.mxu0 0
    %7942 = vmatprep.subr.bf16.mxu0 0
    %7943 = vmatpush1.bf16.msra.mxu0 0
    %7944 = vmatprep.mubr.bf16.mxu0 0
    %7945 = vmatmul.mubr.bf16.gmra.mrb[0].mxu0 %v7855
    %v7946 = vpop.f32.mrb[0].mxu0
    %v7947 = vadd.f32 %v7830, %v7946
    %v7948 = vpop.f32.mrb[0].mxu0
    %v7949 = vadd.f32 %v7830, %v7948
    %v7950 = vpop.f32.mrb[0].mxu0
    %v7951 = vadd.f32 %v7835, %v7950
    %v7952 = vpop.f32.mrb[0].mxu0
    %v7953 = vadd.f32 %v7835, %v7952
    %7954 = vmatprep.mubr.bf16.mxu0 0
    %7955 = vmatmul.mubr.bf16.gmra.mrb[0].mxu0 %v7856
    %v7956 = vpop.f32.mrb[0].mxu0
    %v7957 = vadd.f32 %v7840, %v7956
    %v7958 = vpop.f32.mrb[0].mxu0
    %v7959 = vadd.f32 %v7840, %v7958
    %v7960 = vpop.f32.mrb[0].mxu0
    %v7961 = vadd.f32 %v7845, %v7960
    %v7962 = vpop.f32.mrb[0].mxu0
    %v7963 = vadd.f32 %v7845, %v7962
    %7964 = vdwg.mxu0
    %v7965 = vadd.f32 %v6803, %v7894
    %v7966 = vadd.f32 %v6804, %v7896
    %v7967 = vadd.f32 %v6805, %v7947
    %v7968 = vadd.f32 %v6806, %v7949
    %v7969 = vadd.f32 %v6807, %v7898
    %v7970 = vadd.f32 %v6808, %v7900
    %v7971 = vadd.f32 %v6809, %v7951
    %v7972 = vadd.f32 %v6810, %v7953
    %v7973 = vadd.f32 %v6811, %v7904
    %v7974 = vadd.f32 %v6812, %v7906
    %v7975 = vadd.f32 %v6813, %v7957
    %v7976 = vadd.f32 %v6814, %v7959
    %v7977 = vadd.f32 %v6815, %v7908
    %v7978 = vadd.f32 %v6816, %v7910
    %v7979 = vadd.f32 %v6817, %v7961
    %v7980 = vadd.f32 %v6818, %v7963
    %v7981 = vadd.f32 %v7965, %v7969
    %v7982 = vadd.f32 %v7981, %v7973
    %v7983 = vadd.f32 %v7982, %v7977
    %v7984 = vrot.slane %v7983, 4
    %v7985 = vadd.f32 %v7983, %v7984
    %v7986 = vrot.slane %v7985, 2
    %v7987 = vadd.f32 %v7985, %v7986
    %v7988 = vrot.slane %v7987, 1
    %v7989 = vadd.f32 %v7987, %v7988
    %v7990 = vadd.f32 %v7966, %v7970
    %v7991 = vadd.f32 %v7990, %v7974
    %v7992 = vadd.f32 %v7991, %v7978
    %v7993 = vrot.slane %v7992, 4
    %v7994 = vadd.f32 %v7992, %v7993
    %v7995 = vrot.slane %v7994, 2
    %v7996 = vadd.f32 %v7994, %v7995
    %v7997 = vrot.slane %v7996, 1
    %v7998 = vadd.f32 %v7996, %v7997
    %v7999 = vadd.f32 %v7967, %v7971
    %v8000 = vadd.f32 %v7999, %v7975
    %v8001 = vadd.f32 %v8000, %v7979
    %v8002 = vrot.slane %v8001, 4
    %v8003 = vadd.f32 %v8001, %v8002
    %v8004 = vrot.slane %v8003, 2
    %v8005 = vadd.f32 %v8003, %v8004
    %v8006 = vrot.slane %v8005, 1
    %v8007 = vadd.f32 %v8005, %v8006
    %v8008 = vadd.f32 %v7968, %v7972
    %v8009 = vadd.f32 %v8008, %v7976
    %v8010 = vadd.f32 %v8009, %v7980
    %v8011 = vrot.slane %v8010, 4
    %v8012 = vadd.f32 %v8010, %v8011
    %v8013 = vrot.slane %v8012, 2
    %v8014 = vadd.f32 %v8012, %v8013
    %v8015 = vrot.slane %v8014, 1
    %v8016 = vadd.f32 %v8014, %v8015
    %v8017 = vmul.f32 %v7989, %v2889
    %v8018 = vmul.f32 %v7998, %v2889
    %v8019 = vmul.f32 %v8007, %v2889
    %v8020 = vmul.f32 %v8016, %v2889
    %v8021 = vsub.f32 %v7965, %v8017
    %v8022 = vsub.f32 %v7966, %v8018
    %v8023 = vsub.f32 %v7967, %v8019
    %v8024 = vsub.f32 %v7968, %v8020
    %v8025 = vsub.f32 %v7969, %v8017
    %v8026 = vsub.f32 %v7970, %v8018
    %v8027 = vsub.f32 %v7971, %v8019
    %v8028 = vsub.f32 %v7972, %v8020
    %v8029 = vsub.f32 %v7973, %v8017
    %v8030 = vsub.f32 %v7974, %v8018
    %v8031 = vsub.f32 %v7975, %v8019
    %v8032 = vsub.f32 %v7976, %v8020
    %v8033 = vsub.f32 %v7977, %v8017
    %v8034 = vsub.f32 %v7978, %v8018
    %v8035 = vsub.f32 %v7979, %v8019
    %v8036 = vsub.f32 %v7980, %v8020
    %v8037 = vmul.f32 %v8021, %v8021
    %v8038 = vmul.f32 %v8022, %v8022
    %v8039 = vmul.f32 %v8023, %v8023
    %v8040 = vmul.f32 %v8024, %v8024
    %v8041 = vmul.f32 %v8025, %v8025
    %v8042 = vmul.f32 %v8026, %v8026
    %v8043 = vmul.f32 %v8027, %v8027
    %v8044 = vmul.f32 %v8028, %v8028
    %v8045 = vmul.f32 %v8029, %v8029
    %v8046 = vmul.f32 %v8030, %v8030
    %v8047 = vmul.f32 %v8031, %v8031
    %v8048 = vmul.f32 %v8032, %v8032
    %v8049 = vmul.f32 %v8033, %v8033
    %v8050 = vmul.f32 %v8034, %v8034
    %v8051 = vmul.f32 %v8035, %v8035
    %v8052 = vmul.f32 %v8036, %v8036
    %v8053 = vadd.f32 %v8037, %v8041
    %v8054 = vadd.f32 %v8053, %v8045
    %v8055 = vadd.f32 %v8054, %v8049
    %v8056 = vrot.slane %v8055, 4
    %v8057 = vadd.f32 %v8055, %v8056
    %v8058 = vrot.slane %v8057, 2
    %v8059 = vadd.f32 %v8057, %v8058
    %v8060 = vrot.slane %v8059, 1
    %v8061 = vadd.f32 %v8059, %v8060
    %v8062 = vadd.f32 %v8038, %v8042
    %v8063 = vadd.f32 %v8062, %v8046
    %v8064 = vadd.f32 %v8063, %v8050
    %v8065 = vrot.slane %v8064, 4
    %v8066 = vadd.f32 %v8064, %v8065
    %v8067 = vrot.slane %v8066, 2
    %v8068 = vadd.f32 %v8066, %v8067
    %v8069 = vrot.slane %v8068, 1
    %v8070 = vadd.f32 %v8068, %v8069
    %v8071 = vadd.f32 %v8039, %v8043
    %v8072 = vadd.f32 %v8071, %v8047
    %v8073 = vadd.f32 %v8072, %v8051
    %v8074 = vrot.slane %v8073, 4
    %v8075 = vadd.f32 %v8073, %v8074
    %v8076 = vrot.slane %v8075, 2
    %v8077 = vadd.f32 %v8075, %v8076
    %v8078 = vrot.slane %v8077, 1
    %v8079 = vadd.f32 %v8077, %v8078
    %v8080 = vadd.f32 %v8040, %v8044
    %v8081 = vadd.f32 %v8080, %v8048
    %v8082 = vadd.f32 %v8081, %v8052
    %v8083 = vrot.slane %v8082, 4
    %v8084 = vadd.f32 %v8082, %v8083
    %v8085 = vrot.slane %v8084, 2
    %v8086 = vadd.f32 %v8084, %v8085
    %v8087 = vrot.slane %v8086, 1
    %v8088 = vadd.f32 %v8086, %v8087
    %v8089 = vmul.f32 %v8061, %v2889
    %v8090 = vmul.f32 %v8070, %v2889
    %v8091 = vmul.f32 %v8079, %v2889
    %v8092 = vmul.f32 %v8088, %v2889
    %v8093 = vadd.f32 %v8089, 1e-05
    %v8094 = vadd.f32 %v8090, 1e-05
    %v8095 = vadd.f32 %v8091, 1e-05
    %v8096 = vadd.f32 %v8092, 1e-05
    %v8097 = vrsqrt.pop %v8093
    %v8098 = vrsqrt.pop %v8094
    %v8099 = vrsqrt.pop %v8095
    %v8100 = vrsqrt.pop %v8096
    %v8101 = vmul.f32 %v8021, %v8097
    %v8102 = vmul.f32 %v8022, %v8098
    %v8103 = vmul.f32 %v8023, %v8099
    %v8104 = vmul.f32 %v8024, %v8100
    %v8105 = vmul.f32 %v8025, %v8097
    %v8106 = vmul.f32 %v8026, %v8098
    %v8107 = vmul.f32 %v8027, %v8099
    %v8108 = vmul.f32 %v8028, %v8100
    %v8109 = vmul.f32 %v8029, %v8097
    %v8110 = vmul.f32 %v8030, %v8098
    %v8111 = vmul.f32 %v8031, %v8099
    %v8112 = vmul.f32 %v8032, %v8100
    %v8113 = vmul.f32 %v8033, %v8097
    %v8114 = vmul.f32 %v8034, %v8098
    %v8115 = vmul.f32 %v8035, %v8099
    %v8116 = vmul.f32 %v8036, %v8100
    %8118 = vset.pattern.permute.xlu0 0
    %8119 = vperm.xlu0 %8118, %v4854
    %v8120 = vpop.permute.xlu0 %8119
    %8123 = vset.pattern.permute.xlu0 0
    %8124 = vperm.xlu0 %8123, %v4855
    %v8125 = vpop.permute.xlu0 %8124
    %8128 = vset.pattern.permute.xlu0 0
    %8129 = vperm.xlu0 %8128, %v4856
    %v8130 = vpop.permute.xlu0 %8129
    %8133 = vset.pattern.permute.xlu0 0
    %8134 = vperm.xlu0 %8133, %v4857
    %v8135 = vpop.permute.xlu0 %8134
    %v8137 = vmul.f32 %v8101, %v8120
    %v8138 = vmul.f32 %v8102, %v8120
    %v8139 = vmul.f32 %v8103, %v8120
    %v8140 = vmul.f32 %v8104, %v8120
    %v8141 = vmul.f32 %v8105, %v8125
    %v8142 = vmul.f32 %v8106, %v8125
    %v8143 = vmul.f32 %v8107, %v8125
    %v8144 = vmul.f32 %v8108, %v8125
    %v8145 = vmul.f32 %v8109, %v8130
    %v8146 = vmul.f32 %v8110, %v8130
    %v8147 = vmul.f32 %v8111, %v8130
    %v8148 = vmul.f32 %v8112, %v8130
    %v8149 = vmul.f32 %v8113, %v8135
    %v8150 = vmul.f32 %v8114, %v8135
    %v8151 = vmul.f32 %v8115, %v8135
    %v8152 = vmul.f32 %v8116, %v8135
    %8154 = vset.pattern.permute.xlu0 0
    %8155 = vperm.xlu0 %8154, %v4858
    %v8156 = vpop.permute.xlu0 %8155
    %8159 = vset.pattern.permute.xlu0 0
    %8160 = vperm.xlu0 %8159, %v4859
    %v8161 = vpop.permute.xlu0 %8160
    %8164 = vset.pattern.permute.xlu0 0
    %8165 = vperm.xlu0 %8164, %v4860
    %v8166 = vpop.permute.xlu0 %8165
    %8169 = vset.pattern.permute.xlu0 0
    %8170 = vperm.xlu0 %8169, %v4861
    %v8171 = vpop.permute.xlu0 %8170
    %v8173 = vadd.f32 %v8137, %v8156
    %v8174 = vadd.f32 %v8138, %v8156
    %v8175 = vadd.f32 %v8139, %v8156
    %v8176 = vadd.f32 %v8140, %v8156
    %v8177 = vadd.f32 %v8141, %v8161
    %v8178 = vadd.f32 %v8142, %v8161
    %v8179 = vadd.f32 %v8143, %v8161
    %v8180 = vadd.f32 %v8144, %v8161
    %v8181 = vadd.f32 %v8145, %v8166
    %v8182 = vadd.f32 %v8146, %v8166
    %v8183 = vadd.f32 %v8147, %v8166
    %v8184 = vadd.f32 %v8148, %v8166
    %v8185 = vadd.f32 %v8149, %v8171
    %v8186 = vadd.f32 %v8150, %v8171
    %v8187 = vadd.f32 %v8151, %v8171
    %v8188 = vadd.f32 %v8152, %v8171
    %v8189 = vld [vmem:[%s10] sm:$0xff]
    %v8190 = vld [vmem:[%s10 + $0x8] sm:$0xff]
    %v8191 = vld [vmem:[%s10 + $0x10] sm:$0xff]
    %v8192 = vld [vmem:[%s10 + $0x18] sm:$0xff]
    %v8193 = vld [vmem:[%s9] sm:$0xf]
    %v8194 = vld [vmem:[%s9 + $0x4] sm:$0xf]
    %v8195 = vld [vmem:[%s9 + $0x8] sm:$0xf]
    %v8196 = vld [vmem:[%s9 + $0xc] sm:$0xf]
    %v8197 = vpack.c.bf16 %v8177, %v8173
    %v8198 = vpack.c.bf16 %v8178, %v8174
    %v8199 = vpack.c.bf16 %v8179, %v8175
    %v8200 = vpack.c.bf16 %v8180, %v8176
    %v8201 = vpack.c.bf16 %v8185, %v8181
    %v8202 = vpack.c.bf16 %v8186, %v8182
    %v8203 = vpack.c.bf16 %v8187, %v8183
    %v8204 = vpack.c.bf16 %v8188, %v8184
    %8206 = vset.pattern.permute.xlu0 0
    %8207 = vperm.xlu0 %8206, %v8189
    %v8208 = vpop.permute.xlu0 %8207
    %8211 = vset.pattern.permute.xlu0 0
    %8212 = vperm.xlu0 %8211, %v8190
    %v8213 = vpop.permute.xlu0 %8212
    %8216 = vset.pattern.permute.xlu0 0
    %8217 = vperm.xlu0 %8216, %v8191
    %v8218 = vpop.permute.xlu0 %8217
    %8221 = vset.pattern.permute.xlu0 0
    %8222 = vperm.xlu0 %8221, %v8192
    %v8223 = vpop.permute.xlu0 %8222
    %v8229 = vunpack.c.l.b16 %v8193
    %v8230 = vunpack.c.l.b16 %v8194
    %v8231 = vunpack.c.l.b16 %v8195
    %v8232 = vunpack.c.l.b16 %v8196
    %v8233 = vpack.c.b16 %v8230, %v8229
    %v8234 = vpack.c.b16 %v8232, %v8231
    %v8236 = vsel %vm384, %v8233, 0
    %v8239 = vsel %vm384, %v8234, 0
    %8241 = vmatprep.subr.bf16.mxu0 %v8198
    %8242 = vmatpush1.bf16.msra.mxu0 %v8197
    %8243 = vmatprep.subr.bf16.mxu0 %v8202
    %8244 = vmatpush1.bf16.msra.mxu0 %v8201
    %8245 = vmatprep.subr.bf16.mxu0 0
    %8246 = vmatpush1.bf16.msra.mxu0 0
    %8247 = vmatprep.subr.bf16.mxu0 0
    %8248 = vmatpush1.bf16.msra.mxu0 0
    %8249 = vmatprep.subr.bf16.mxu0 0
    %8250 = vmatpush1.bf16.msra.mxu0 0
    %8251 = vmatprep.subr.bf16.mxu0 0
    %8252 = vmatpush1.bf16.msra.mxu0 0
    %8253 = vmatprep.subr.bf16.mxu0 0
    %8254 = vmatpush1.bf16.msra.mxu0 0
    %8255 = vmatprep.subr.bf16.mxu0 0
    %8256 = vmatpush1.bf16.msra.mxu0 0
    %8257 = vmatprep.subr.bf16.mxu0 0
    %8258 = vmatpush1.bf16.msra.mxu0 0
    %8259 = vmatprep.subr.bf16.mxu0 0
    %8260 = vmatpush1.bf16.msra.mxu0 0
    %8261 = vmatprep.subr.bf16.mxu0 0
    %8262 = vmatpush1.bf16.msra.mxu0 0
    %8263 = vmatprep.subr.bf16.mxu0 0
    %8264 = vmatpush1.bf16.msra.mxu0 0
    %8265 = vmatprep.subr.bf16.mxu0 0
    %8266 = vmatpush1.bf16.msra.mxu0 0
    %8267 = vmatprep.subr.bf16.mxu0 0
    %8268 = vmatpush1.bf16.msra.mxu0 0
    %8269 = vmatprep.subr.bf16.mxu0 0
    %8270 = vmatpush1.bf16.msra.mxu0 0
    %8271 = vmatprep.subr.bf16.mxu0 0
    %8272 = vmatpush1.bf16.msra.mxu0 0
    %8273 = vmatprep.mubr.bf16.mxu0 0
    %8274 = vmatmul.mubr.bf16.gmra.mrb[0].mxu0 %v8236
    %v8275 = vpop.f32.mrb[0].mxu0
    %v8276 = vadd.f32 %v8208, %v8275
    %v8277 = vpop.f32.mrb[0].mxu0
    %v8278 = vadd.f32 %v8208, %v8277
    %v8279 = vpop.f32.mrb[0].mxu0
    %v8280 = vadd.f32 %v8213, %v8279
    %v8281 = vpop.f32.mrb[0].mxu0
    %v8282 = vadd.f32 %v8213, %v8281
    %8283 = vmatprep.mubr.bf16.mxu0 0
    %8284 = vmatmul.mubr.bf16.gmra.mrb[0].mxu0 %v8239
    %v8285 = vpop.f32.mrb[0].mxu0
    %v8286 = vadd.f32 %v8218, %v8285
    %v8287 = vpop.f32.mrb[0].mxu0
    %v8288 = vadd.f32 %v8218, %v8287
    %v8289 = vpop.f32.mrb[0].mxu0
    %v8290 = vadd.f32 %v8223, %v8289
    %v8291 = vpop.f32.mrb[0].mxu0
    %v8292 = vadd.f32 %v8223, %v8291
    %8293 = vdwg.mxu0
    %8294 = vmatprep.subr.bf16.mxu0 %v8200
    %8295 = vmatpush1.bf16.msra.mxu0 %v8199
    %8296 = vmatprep.subr.bf16.mxu0 %v8204
    %8297 = vmatpush1.bf16.msra.mxu0 %v8203
    %8298 = vmatprep.subr.bf16.mxu0 0
    %8299 = vmatpush1.bf16.msra.mxu0 0
    %8300 = vmatprep.subr.bf16.mxu0 0
    %8301 = vmatpush1.bf16.msra.mxu0 0
    %8302 = vmatprep.subr.bf16.mxu0 0
    %8303 = vmatpush1.bf16.msra.mxu0 0
    %8304 = vmatprep.subr.bf16.mxu0 0
    %8305 = vmatpush1.bf16.msra.mxu0 0
    %8306 = vmatprep.subr.bf16.mxu0 0
    %8307 = vmatpush1.bf16.msra.mxu0 0
    %8308 = vmatprep.subr.bf16.mxu0 0
    %8309 = vmatpush1.bf16.msra.mxu0 0
    %8310 = vmatprep.subr.bf16.mxu0 0
    %8311 = vmatpush1.bf16.msra.mxu0 0
    %8312 = vmatprep.subr.bf16.mxu0 0
    %8313 = vmatpush1.bf16.msra.mxu0 0
    %8314 = vmatprep.subr.bf16.mxu0 0
    %8315 = vmatpush1.bf16.msra.mxu0 0
    %8316 = vmatprep.subr.bf16.mxu0 0
    %8317 = vmatpush1.bf16.msra.mxu0 0
    %8318 = vmatprep.subr.bf16.mxu0 0
    %8319 = vmatpush1.bf16.msra.mxu0 0
    %8320 = vmatprep.subr.bf16.mxu0 0
    %8321 = vmatpush1.bf16.msra.mxu0 0
    %8322 = vmatprep.subr.bf16.mxu0 0
    %8323 = vmatpush1.bf16.msra.mxu0 0
    %8324 = vmatprep.subr.bf16.mxu0 0
    %8325 = vmatpush1.bf16.msra.mxu0 0
    %8326 = vmatprep.mubr.bf16.mxu0 0
    %8327 = vmatmul.mubr.bf16.gmra.mrb[0].mxu0 %v8236
    %v8328 = vpop.f32.mrb[0].mxu0
    %v8329 = vadd.f32 %v8208, %v8328
    %v8330 = vpop.f32.mrb[0].mxu0
    %v8331 = vadd.f32 %v8208, %v8330
    %v8332 = vpop.f32.mrb[0].mxu0
    %v8333 = vadd.f32 %v8213, %v8332
    %v8334 = vpop.f32.mrb[0].mxu0
    %v8335 = vadd.f32 %v8213, %v8334
    %8336 = vmatprep.mubr.bf16.mxu0 0
    %8337 = vmatmul.mubr.bf16.gmra.mrb[0].mxu0 %v8239
    %v8338 = vpop.f32.mrb[0].mxu0
    %v8339 = vadd.f32 %v8218, %v8338
    %v8340 = vpop.f32.mrb[0].mxu0
    %v8341 = vadd.f32 %v8218, %v8340
    %v8342 = vpop.f32.mrb[0].mxu0
    %v8343 = vadd.f32 %v8223, %v8342
    %v8344 = vpop.f32.mrb[0].mxu0
    %v8345 = vadd.f32 %v8223, %v8344
    %8346 = vdwg.mxu0
    %v8347 = vmul.f32 %v8276, 0.5
    %v8348 = vmul.f32 %v8278, 0.5
    %v8349 = vmul.f32 %v8329, 0.5
    %v8350 = vmul.f32 %v8331, 0.5
    %v8351 = vmul.f32 %v8280, 0.5
    %v8352 = vmul.f32 %v8282, 0.5
    %v8353 = vmul.f32 %v8333, 0.5
    %v8354 = vmul.f32 %v8335, 0.5
    %v8355 = vmul.f32 %v8286, 0.5
    %v8356 = vmul.f32 %v8288, 0.5
    %v8357 = vmul.f32 %v8339, 0.5
    %v8358 = vmul.f32 %v8341, 0.5
    %v8359 = vmul.f32 %v8290, 0.5
    %v8360 = vmul.f32 %v8292, 0.5
    %v8361 = vmul.f32 %v8343, 0.5
    %v8362 = vmul.f32 %v8345, 0.5
    %v8363 = vmul.f32 %v8276, 0.044715
    %v8364 = vmul.f32 %v8278, 0.044715
    %v8365 = vmul.f32 %v8329, 0.044715
    %v8366 = vmul.f32 %v8331, 0.044715
    %v8367 = vmul.f32 %v8280, 0.044715
    %v8368 = vmul.f32 %v8282, 0.044715
    %v8369 = vmul.f32 %v8333, 0.044715
    %v8370 = vmul.f32 %v8335, 0.044715
    %v8371 = vmul.f32 %v8286, 0.044715
    %v8372 = vmul.f32 %v8288, 0.044715
    %v8373 = vmul.f32 %v8339, 0.044715
    %v8374 = vmul.f32 %v8341, 0.044715
    %v8375 = vmul.f32 %v8290, 0.044715
    %v8376 = vmul.f32 %v8292, 0.044715
    %v8377 = vmul.f32 %v8343, 0.044715
    %v8378 = vmul.f32 %v8345, 0.044715
    %v8379 = vmul.f32 %v8363, %v8276
    %v8380 = vmul.f32 %v8364, %v8278
    %v8381 = vmul.f32 %v8365, %v8329
    %v8382 = vmul.f32 %v8366, %v8331
    %v8383 = vmul.f32 %v8367, %v8280
    %v8384 = vmul.f32 %v8368, %v8282
    %v8385 = vmul.f32 %v8369, %v8333
    %v8386 = vmul.f32 %v8370, %v8335
    %v8387 = vmul.f32 %v8371, %v8286
    %v8388 = vmul.f32 %v8372, %v8288
    %v8389 = vmul.f32 %v8373, %v8339
    %v8390 = vmul.f32 %v8374, %v8341
    %v8391 = vmul.f32 %v8375, %v8290
    %v8392 = vmul.f32 %v8376, %v8292
    %v8393 = vmul.f32 %v8377, %v8343
    %v8394 = vmul.f32 %v8378, %v8345
    %v8395 = vmul.f32 %v8379, %v8276
    %v8396 = vmul.f32 %v8380, %v8278
    %v8397 = vmul.f32 %v8381, %v8329
    %v8398 = vmul.f32 %v8382, %v8331
    %v8399 = vmul.f32 %v8383, %v8280
    %v8400 = vmul.f32 %v8384, %v8282
    %v8401 = vmul.f32 %v8385, %v8333
    %v8402 = vmul.f32 %v8386, %v8335
    %v8403 = vmul.f32 %v8387, %v8286
    %v8404 = vmul.f32 %v8388, %v8288
    %v8405 = vmul.f32 %v8389, %v8339
    %v8406 = vmul.f32 %v8390, %v8341
    %v8407 = vmul.f32 %v8391, %v8290
    %v8408 = vmul.f32 %v8392, %v8292
    %v8409 = vmul.f32 %v8393, %v8343
    %v8410 = vmul.f32 %v8394, %v8345
    %v8411 = vadd.f32 %v8276, %v8395
    %v8412 = vadd.f32 %v8278, %v8396
    %v8413 = vadd.f32 %v8329, %v8397
    %v8414 = vadd.f32 %v8331, %v8398
    %v8415 = vadd.f32 %v8280, %v8399
    %v8416 = vadd.f32 %v8282, %v8400
    %v8417 = vadd.f32 %v8333, %v8401
    %v8418 = vadd.f32 %v8335, %v8402
    %v8419 = vadd.f32 %v8286, %v8403
    %v8420 = vadd.f32 %v8288, %v8404
    %v8421 = vadd.f32 %v8339, %v8405
    %v8422 = vadd.f32 %v8341, %v8406
    %v8423 = vadd.f32 %v8290, %v8407
    %v8424 = vadd.f32 %v8292, %v8408
    %v8425 = vadd.f32 %v8343, %v8409
    %v8426 = vadd.f32 %v8345, %v8410
    %v8427 = vmul.f32 %v8411, 0.7978846
    %v8428 = vmul.f32 %v8412, 0.7978846
    %v8429 = vmul.f32 %v8413, 0.7978846
    %v8430 = vmul.f32 %v8414, 0.7978846
    %v8431 = vmul.f32 %v8415, 0.7978846
    %v8432 = vmul.f32 %v8416, 0.7978846
    %v8433 = vmul.f32 %v8417, 0.7978846
    %v8434 = vmul.f32 %v8418, 0.7978846
    %v8435 = vmul.f32 %v8419, 0.7978846
    %v8436 = vmul.f32 %v8420, 0.7978846
    %v8437 = vmul.f32 %v8421, 0.7978846
    %v8438 = vmul.f32 %v8422, 0.7978846
    %v8439 = vmul.f32 %v8423, 0.7978846
    %v8440 = vmul.f32 %v8424, 0.7978846
    %v8441 = vmul.f32 %v8425, 0.7978846
    %v8442 = vmul.f32 %v8426, 0.7978846
    %v8443 = vtanh.pop %v8427
    %v8444 = vtanh.pop %v8428
    %v8445 = vtanh.pop %v8429
    %v8446 = vtanh.pop %v8430
    %v8447 = vtanh.pop %v8431
    %v8448 = vtanh.pop %v8432
    %v8449 = vtanh.pop %v8433
    %v8450 = vtanh.pop %v8434
    %v8451 = vtanh.pop %v8435
    %v8452 = vtanh.pop %v8436
    %v8453 = vtanh.pop %v8437
    %v8454 = vtanh.pop %v8438
    %v8455 = vtanh.pop %v8439
    %v8456 = vtanh.pop %v8440
    %v8457 = vtanh.pop %v8441
    %v8458 = vtanh.pop %v8442
    %v8459 = vadd.f32 %v8443, 1.0
    %v8460 = vadd.f32 %v8444, 1.0
    %v8461 = vadd.f32 %v8445, 1.0
    %v8462 = vadd.f32 %v8446, 1.0
    %v8463 = vadd.f32 %v8447, 1.0
    %v8464 = vadd.f32 %v8448, 1.0
    %v8465 = vadd.f32 %v8449, 1.0
    %v8466 = vadd.f32 %v8450, 1.0
    %v8467 = vadd.f32 %v8451, 1.0
    %v8468 = vadd.f32 %v8452, 1.0
    %v8469 = vadd.f32 %v8453, 1.0
    %v8470 = vadd.f32 %v8454, 1.0
    %v8471 = vadd.f32 %v8455, 1.0
    %v8472 = vadd.f32 %v8456, 1.0
    %v8473 = vadd.f32 %v8457, 1.0
    %v8474 = vadd.f32 %v8458, 1.0
    %v8475 = vmul.f32 %v8347, %v8459
    %v8476 = vmul.f32 %v8348, %v8460
    %v8477 = vmul.f32 %v8349, %v8461
    %v8478 = vmul.f32 %v8350, %v8462
    %v8479 = vmul.f32 %v8351, %v8463
    %v8480 = vmul.f32 %v8352, %v8464
    %v8481 = vmul.f32 %v8353, %v8465
    %v8482 = vmul.f32 %v8354, %v8466
    %v8483 = vmul.f32 %v8355, %v8467
    %v8484 = vmul.f32 %v8356, %v8468
    %v8485 = vmul.f32 %v8357, %v8469
    %v8486 = vmul.f32 %v8358, %v8470
    %v8487 = vmul.f32 %v8359, %v8471
    %v8488 = vmul.f32 %v8360, %v8472
    %v8489 = vmul.f32 %v8361, %v8473
    %v8490 = vmul.f32 %v8362, %v8474
    %8491 = vset.pattern.permute.xlu0 1
    %8492 = vperm.xlu0 %8491, %v8189
    %v8493 = vpop.permute.xlu0 %8492
    %8495 = vset.pattern.permute.xlu0 1
    %8496 = vperm.xlu0 %8495, %v8190
    %v8497 = vpop.permute.xlu0 %8496
    %8499 = vset.pattern.permute.xlu0 1
    %8500 = vperm.xlu0 %8499, %v8191
    %v8501 = vpop.permute.xlu0 %8500
    %8503 = vset.pattern.permute.xlu0 1
    %8504 = vperm.xlu0 %8503, %v8192
    %v8505 = vpop.permute.xlu0 %8504
    %v8507 = vmul.f32 %v8475, %v8493
    %v8508 = vmul.f32 %v8476, %v8493
    %v8509 = vmul.f32 %v8477, %v8493
    %v8510 = vmul.f32 %v8478, %v8493
    %v8511 = vmul.f32 %v8479, %v8497
    %v8512 = vmul.f32 %v8480, %v8497
    %v8513 = vmul.f32 %v8481, %v8497
    %v8514 = vmul.f32 %v8482, %v8497
    %v8515 = vmul.f32 %v8483, %v8501
    %v8516 = vmul.f32 %v8484, %v8501
    %v8517 = vmul.f32 %v8485, %v8501
    %v8518 = vmul.f32 %v8486, %v8501
    %v8519 = vmul.f32 %v8487, %v8505
    %v8520 = vmul.f32 %v8488, %v8505
    %v8521 = vmul.f32 %v8489, %v8505
    %v8522 = vmul.f32 %v8490, %v8505
    %v8523 = vadd.f32 %v8507, %v8511
    %v8524 = vadd.f32 %v8523, %v8515
    %v8525 = vadd.f32 %v8524, %v8519
    %v8526 = vrot.slane %v8525, 4
    %v8527 = vadd.f32 %v8525, %v8526
    %v8528 = vrot.slane %v8527, 2
    %v8529 = vadd.f32 %v8527, %v8528
    %v8530 = vrot.slane %v8529, 1
    %v8531 = vadd.f32 %v8529, %v8530
    %v8532 = vadd.f32 %v8508, %v8512
    %v8533 = vadd.f32 %v8532, %v8516
    %v8534 = vadd.f32 %v8533, %v8520
    %v8535 = vrot.slane %v8534, 4
    %v8536 = vadd.f32 %v8534, %v8535
    %v8537 = vrot.slane %v8536, 2
    %v8538 = vadd.f32 %v8536, %v8537
    %v8539 = vrot.slane %v8538, 1
    %v8540 = vadd.f32 %v8538, %v8539
    %v8541 = vadd.f32 %v8509, %v8513
    %v8542 = vadd.f32 %v8541, %v8517
    %v8543 = vadd.f32 %v8542, %v8521
    %v8544 = vrot.slane %v8543, 4
    %v8545 = vadd.f32 %v8543, %v8544
    %v8546 = vrot.slane %v8545, 2
    %v8547 = vadd.f32 %v8545, %v8546
    %v8548 = vrot.slane %v8547, 1
    %v8549 = vadd.f32 %v8547, %v8548
    %v8550 = vadd.f32 %v8510, %v8514
    %v8551 = vadd.f32 %v8550, %v8518
    %v8552 = vadd.f32 %v8551, %v8522
    %v8553 = vrot.slane %v8552, 4
    %v8554 = vadd.f32 %v8552, %v8553
    %v8555 = vrot.slane %v8554, 2
    %v8556 = vadd.f32 %v8554, %v8555
    %v8557 = vrot.slane %v8556, 1
    %v8558 = vadd.f32 %v8556, %v8557
    %vm8559 = vcmask 1040384
    %v8560 = vsel %vm8559, %v8531, %v8540
    %vm8561 = vcmask 1041408
    %v8562 = vsel %vm8561, %v8560, %v8549
    %vm8563 = vcmask 1042432
    %v8564 = vsel %vm8563, %v8562, %v8558
    %8565 = vrot.lane.b32.xlu0 %v8189, 126
    %v8566 = vpop.permute.xlu0 %8565
    %s8567 = vtos %v8566
    %v8568 = vstv %s8567
    %v8570 = vadd.f32 %v8564, %v8568
    %8571 = vst [vmem:[#allocation2] sm:$0xf] %v8570
    // Predicated region
    $region46: #{tpu_custom_call.1} parent=1 // pred_check
      _
    $region47: #{tpu_custom_call.1} parent=1 // pred_check_branch
      %8573 = sbr.rel (0) target = $region49
    $region48: #{tpu_custom_call.1} parent=1 // pred_region
      %s8575 = ssub.s32 64, 64
      %8576 = vsyncadd [#allocation3], %s8575
      %s8578 = sshll.u32 [#allocation2], 4
      %s8579 = int_to_ptr.vmem [resolvable:$true] %s8578
      %8581 = dma.vmem_to_hbm [thread:$0]  %s8579, 64, %s11, [#allocation3]
    $region49: #{tpu_custom_call.1} parent=1 // pred_fallthru
      _
    // Predicated region
    $region50: #{tpu_custom_call.1} parent=1 // pred_check
      _
    $region51: #{tpu_custom_call.1} parent=1 // pred_check_branch
      %8583 = sbr.rel (0) target = $region53
    $region52: #{tpu_custom_call.1} parent=1 // pred_region
      %8584 = dma.done [#allocation3], 64
    $region53: #{tpu_custom_call.1} parent=1 // pred_fallthru
      _
    %8585 = vsyncpa [#allocation3], 1

</llo_original>
